<compile_context>
chip_gen: v7x
topology: tpu7x:2x2x1
jax: 0.10.0
libtpu: 0.0.40
codegen_flags: <defaults>
</compile_context>

<pallas_src>
import jax
import jax.numpy as jnp
from jax import lax
from jax.experimental import pallas as pl
from jax.experimental.pallas import tpu as pltpu


# -----------------------------------------------------------------------------
# Pallas kernel: the "inverse model" head for ONE sample per grid step.
#   feat block : (1, 49, 1024) bf16   rows ordered r = h*7 + w (7x7 spatial grid)
#   outputs    : encoding (1,1,3) softmax, y (1,1,3)
# -----------------------------------------------------------------------------
def head_kernel(feat_ref, w1_ref, b1_ref, w2_ref, b2_ref, w3_ref, b3_ref,
                wf1_ref, bf1_ref, wf2_ref, bf2_ref, wacc_ref, bacc_ref,
                enc_ref, y_ref, x1_ref, x2_ref, x3_ref):
    f32 = jnp.float32
    bf16 = jnp.bfloat16

    # ---- conv1: 1x1, 1024 -> 256, ReLU.  One (49,1024)@(1024,256) dot.
    feat = feat_ref[0]                                                # (49, 1024) bf16
    x1 = jnp.dot(feat, w1_ref[...], preferred_element_type=f32) + b1_ref[...]
    x1_ref[...] = jnp.maximum(x1, 0.0)                                # rows r = h*7 + w

    # ---- conv2: 3x3 valid, 256 -> 256, ReLU (7x7 -> 5x5).
    # Row-shift trick: out[r] = sum_{kh,kw} x1[r + kh*7 + kw] @ W2[kh,kw].
    # Rows 0..32 cover every valid output row (h<=4, w<=4 => r<=32); rows with
    # w in {5,6} hold wrap-around garbage that no valid conv3 row ever reads.
    acc2 = jnp.zeros((33, 256), f32)
    for t in range(9):
        sh = (t // 3) * 7 + (t % 3)
        patch = x1_ref[pl.ds(sh, 33), :].astype(bf16)                 # (33, 256)
        acc2 = acc2 + jnp.dot(patch, w2_ref[t], preferred_element_type=f32)
    x2_ref[...] = jnp.maximum(acc2 + b2_ref[...], 0.0)

    # ---- conv3: 3x3 valid, 256 -> 64, ReLU (5x5 -> 3x3).  Same trick, rows 0..16.
    acc3 = jnp.zeros((17, 64), f32)
    for t in range(9):
        sh = (t // 3) * 7 + (t % 3)
        patch = x2_ref[pl.ds(sh, 17), :].astype(bf16)                 # (17, 256)
        acc3 = acc3 + jnp.dot(patch, w3_ref[t], preferred_element_type=f32)
    x3_ref[...] = jnp.maximum(acc3 + b3_ref[...], 0.0)

    # ---- fc1 over the flattened 3x3x64 block (valid rows r = h*7 + w, h,w <= 2), ReLU.
    h1 = jnp.zeros((1, 128), f32)
    for t in range(9):
        r = (t // 3) * 7 + (t % 3)
        row = x3_ref[pl.ds(r, 1), :].astype(bf16)                     # (1, 64)
        h1 = h1 + jnp.dot(row, wf1_ref[t], preferred_element_type=f32)
    h1 = jnp.maximum(h1 + bf1_ref[...], 0.0)
    # Dropout2d(0.5) is identity at inference.

    # ---- fc2 -> logits; softmax(dim=1) -> encoding; fc_accuracy(logits) -> y.
    logits = jnp.dot(h1, wf2_ref[...], preferred_element_type=f32) + bf2_ref[...]
    m = jnp.max(logits, axis=-1, keepdims=True)
    e = jnp.exp(logits - m)
    inv = pl.reciprocal(jnp.sum(e, axis=-1, keepdims=True), approx=True)
    enc_ref[0] = e * inv
    y_ref[0] = jnp.dot(logits, wacc_ref[...], preferred_element_type=f32) + bacc_ref[...]


def inverse_head(feat, p):
    """feat: (B, 7, 7, 1024) float32 NHWC -> (encoding (B, 3), y (B, 3))."""
    B = feat.shape[0]
    bf16 = jnp.bfloat16
    feat_r = feat.astype(bf16).reshape(B, 49, 1024)       # rows r = h*7 + w

    w1 = p['w1'].astype(bf16)
    w2 = p['w2'].astype(bf16)
    w3 = p['w3'].astype(bf16)
    wf1 = p['wf1'].astype(bf16)

    const2 = lambda b: (0, 0)
    const3 = lambda b: (0, 0, 0)
    in_specs = [
        pl.BlockSpec((1, 49, 1024), lambda b: (b, 0, 0)),   # feat, per-sample block
        pl.BlockSpec((1024, 256), const2),                  # w1   (resident)
        pl.BlockSpec((1, 256), const2),                     # b1
        pl.BlockSpec((9, 256, 256), const3),                # w2
        pl.BlockSpec((1, 256), const2),                     # b2
        pl.BlockSpec((9, 256, 64), const3),                 # w3
        pl.BlockSpec((1, 64), const2),                      # b3
        pl.BlockSpec((9, 64, 128), const3),                 # wf1
        pl.BlockSpec((1, 128), const2),                     # bf1
        pl.BlockSpec((128, 3), const2),                     # wf2
        pl.BlockSpec((1, 3), const2),                       # bf2
        pl.BlockSpec((3, 3), const2),                       # wacc
        pl.BlockSpec((1, 3), const2),                       # bacc
    ]
    out_specs = (pl.BlockSpec((1, 1, 3), lambda b: (b, 0, 0)),
                 pl.BlockSpec((1, 1, 3), lambda b: (b, 0, 0)))

    flops = 2 * B * (49 * 1024 * 256 + 9 * 33 * 256 * 256 + 9 * 17 * 256 * 64
                     + 9 * 64 * 128 + 128 * 3 + 3 * 3)
    bytes_accessed = int(
        feat_r.size * 2 + w1.size * 2 + w2.size * 2 + w3.size * 2 + wf1.size * 2
        + sum(int(p[k].size) * 4 for k in
              ('b1', 'b2', 'b3', 'bf1', 'wf2', 'bf2', 'wacc', 'bacc'))
        + 2 * B * 3 * 4)

    call = pl.pallas_call(
        head_kernel,
        out_shape=(jax.ShapeDtypeStruct((B, 1, 3), jnp.float32),
                   jax.ShapeDtypeStruct((B, 1, 3), jnp.float32)),
        grid_spec=pltpu.PrefetchScalarGridSpec(
            num_scalar_prefetch=0,
            grid=(B,),
            in_specs=in_specs,
            out_specs=out_specs,
            scratch_shapes=[
                pltpu.VMEM((49, 256), jnp.float32),   # conv1 rows (7x7 grid)
                pltpu.VMEM((33, 256), jnp.float32),   # conv2 rows 0..32
                pltpu.VMEM((17, 64), jnp.float32),    # conv3 rows 0..16
            ]),
        compiler_params=pltpu.CompilerParams(
            dimension_semantics=("parallel",),        # megacore / v7x dual-TC sharding
            vmem_limit_bytes=64 * 1024 * 1024),
        cost_estimate=pl.CostEstimate(flops=flops, transcendentals=3 * B,
                                      bytes_accessed=bytes_accessed),
    )
    enc, y = call(feat_r, w1, p['b1'], w2, p['b2'], w3, p['b3'],
                  wf1, p['bf1'], p['wf2'], p['bf2'], p['wacc'], p['bacc'])
    return enc.reshape(B, 3), y.reshape(B, 3)


# -----------------------------------------------------------------------------
# Frozen resnet18 feature extractor (conv1..layer4), plain JAX, NHWC.
# Deterministic synthetic weights stand in for the pretrained checkpoint.
# -----------------------------------------------------------------------------
def _conv_init(key, kh, kw, cin, cout):
    fan_in = kh * kw * cin
    return jax.random.normal(key, (kh, kw, cin, cout), jnp.float32) * jnp.sqrt(2.0 / fan_in)


def _bn_init(c):
    return dict(gamma=jnp.ones((c,), jnp.float32), beta=jnp.zeros((c,), jnp.float32),
                mean=jnp.zeros((c,), jnp.float32), var=jnp.ones((c,), jnp.float32))


def init_resnet18(key):
    keys = iter(jax.random.split(key, 64))
    params = {'stem_w': _conv_init(next(keys), 7, 7, 3, 64), 'stem_bn': _bn_init(64)}

    def block(cin, cout, stride):
        b = {'w1': _conv_init(next(keys), 3, 3, cin, cout), 'bn1': _bn_init(cout),
             'w2': _conv_init(next(keys), 3, 3, cout, cout), 'bn2': _bn_init(cout)}
        if stride != 1 or cin != cout:
            b['wd'] = _conv_init(next(keys), 1, 1, cin, cout)
            b['bnd'] = _bn_init(cout)
        return b

    layers = []
    for cin, cout, s in [(64, 64, 1), (64, 128, 2), (128, 256, 2), (256, 512, 2)]:
        layers.append([block(cin, cout, s), block(cout, cout, 1)])
    params['layers'] = layers
    return params


def _bn(x, p):
    return (x - p['mean']) * p['gamma'] / jnp.sqrt(p['var'] + 1e-5) + p['beta']


def _conv(x, w, stride, pad):
    return lax.conv_general_dilated(x, w, (stride, stride), pad,
                                    dimension_numbers=('NHWC', 'HWIO', 'NHWC'))


def resnet18_features(params, x):
    # x: (N, H, W, 3) NHWC
    x = _conv(x, params['stem_w'], 2, [(3, 3), (3, 3)])
    x = jax.nn.relu(_bn(x, params['stem_bn']))
    x = lax.reduce_window(x, -jnp.inf, lax.max, (1, 3, 3, 1), (1, 2, 2, 1),
                          [(0, 0), (1, 1), (1, 1), (0, 0)])
    for layer, s0 in zip(params['layers'], [1, 2, 2, 2]):
        for i, b in enumerate(layer):
            s = s0 if i == 0 else 1
            out = jax.nn.relu(_bn(_conv(x, b['w1'], s, [(1, 1), (1, 1)]), b['bn1']))
            out = _bn(_conv(out, b['w2'], 1, [(1, 1), (1, 1)]), b['bn2'])
            idn = (_bn(_conv(x, b['wd'], s, [(0, 0), (0, 0)]), b['bnd'])
                   if 'wd' in b else x)
            x = jax.nn.relu(out + idn)
    return x  # (N, 7, 7, 512) for 224x224 input


# -----------------------------------------------------------------------------
# Head parameter init (deterministic).  Layout relative to PyTorch:
#   conv*: OIHW -> (kh*3+kw, in, out);  fc1 (128, 64*3*3) CHW-flatten -> (h*3+w, 64, 128).
# -----------------------------------------------------------------------------
def init_head_params(key):
    ks = jax.random.split(key, 6)

    def he(k, shape, fan_in):
        return jax.random.normal(k, shape, jnp.float32) * jnp.sqrt(2.0 / fan_in)

    return {
        'w1': he(ks[0], (1024, 256), 1024), 'b1': jnp.zeros((1, 256), jnp.float32),
        'w2': he(ks[1], (9, 256, 256), 9 * 256), 'b2': jnp.zeros((1, 256), jnp.float32),
        'w3': he(ks[2], (9, 256, 64), 9 * 256), 'b3': jnp.zeros((1, 64), jnp.float32),
        'wf1': he(ks[3], (9, 64, 128), 64 * 3 * 3), 'bf1': jnp.zeros((1, 128), jnp.float32),
        'wf2': he(ks[4], (128, 3), 128), 'bf2': jnp.zeros((1, 3), jnp.float32),
        'wacc': he(ks[5], (3, 3), 3), 'bacc': jnp.zeros((1, 3), jnp.float32),
    }


def model_forward(resnet_params, head_params, k, k_plus_one):
    # k, k_plus_one arrive in PyTorch NCHW; convert to NHWC. Both frames share one
    # backbone pass (single batched conv stack) to halve backbone wall-clock.
    B = k.shape[0]
    x = jnp.concatenate([k, k_plus_one], axis=0)
    x = jnp.transpose(x, (0, 2, 3, 1))
    feats = resnet18_features(resnet_params, x)               # (2B, 7, 7, 512)
    feat = jnp.concatenate([feats[:B], feats[B:]], axis=-1)   # torch.cat(dim=1) == channel concat
    encoding, y = inverse_head(feat, head_params)
    return encoding, y


if __name__ == "__main__":
    key = jax.random.PRNGKey(0)
    k_res, k_head, k_in1, k_in2 = jax.random.split(key, 4)

    resnet_params = init_resnet18(k_res)
    head_params = init_head_params(k_head)

    # Spatial size 224 is forced by the module: fc1 expects 64*3*3 after the two
    # valid 3x3 convs, so the resnet feature map must be 7x7.
    B = 2
    k_img = jax.random.normal(k_in1, (B, 3, 224, 224), jnp.float32)
    kp1_img = jax.random.normal(k_in2, (B, 3, 224, 224), jnp.float32)

    @jax.jit
    def fwd(a, b):
        return model_forward(resnet_params, head_params, a, b)

    encoding, y = fwd(k_img, kp1_img)
    jax.block_until_ready((encoding, y))
    assert encoding.shape == (B, 3) and y.shape == (B, 3)
    assert bool(jnp.all(jnp.isfinite(encoding))) and bool(jnp.all(jnp.isfinite(y)))
    print("KERNEL_OK")
</pallas_src>

<mosaic_0001>
module attributes {stable_mosaic.version = 11 : i64} {
  func.func @head_kernel(%arg0: i32, %arg1: memref<1x49x1024xbf16, #tpu.memory_space<vmem>>, %arg2: memref<1024x256xbf16, #tpu.memory_space<vmem>>, %arg3: memref<1x256xf32, #tpu.memory_space<vmem>>, %arg4: memref<9x256x256xbf16, #tpu.memory_space<vmem>>, %arg5: memref<1x256xf32, #tpu.memory_space<vmem>>, %arg6: memref<9x256x64xbf16, #tpu.memory_space<vmem>>, %arg7: memref<1x64xf32, #tpu.memory_space<vmem>>, %arg8: memref<9x64x128xbf16, #tpu.memory_space<vmem>>, %arg9: memref<1x128xf32, #tpu.memory_space<vmem>>, %arg10: memref<128x3xf32, #tpu.memory_space<vmem>>, %arg11: memref<1x3xf32, #tpu.memory_space<vmem>>, %arg12: memref<3x3xf32, #tpu.memory_space<vmem>>, %arg13: memref<1x3xf32, #tpu.memory_space<vmem>>, %arg14: memref<1x1x3xf32, #tpu.memory_space<vmem>>, %arg15: memref<1x1x3xf32, #tpu.memory_space<vmem>>, %arg16: memref<49x256xf32, #tpu.memory_space<vmem>>, %arg17: memref<33x256xf32, #tpu.memory_space<vmem>>, %arg18: memref<17x64xf32, #tpu.memory_space<vmem>>) attributes {dimension_semantics = [#tpu.dimension_semantics<parallel>], iteration_bounds = array<i64: 2>, scalar_prefetch = 0 : i64, scratch_operands = 3 : i64, tpu.core_type = #tpu.core_type<tc>, window_params = [{transform_indices = @transform_0, window_bounds = array<i64: 1, 49, 1024>}, {pipeline_mode = #tpu.pipeline_mode<synchronous>, transform_indices = @transform_1, window_bounds = array<i64: 1024, 256>}, {pipeline_mode = #tpu.pipeline_mode<synchronous>, transform_indices = @transform_2, window_bounds = array<i64: 1, 256>}, {pipeline_mode = #tpu.pipeline_mode<synchronous>, transform_indices = @transform_3, window_bounds = array<i64: 9, 256, 256>}, {pipeline_mode = #tpu.pipeline_mode<synchronous>, transform_indices = @transform_4, window_bounds = array<i64: 1, 256>}, {pipeline_mode = #tpu.pipeline_mode<synchronous>, transform_indices = @transform_5, window_bounds = array<i64: 9, 256, 64>}, {pipeline_mode = #tpu.pipeline_mode<synchronous>, transform_indices = @transform_6, window_bounds = array<i64: 1, 64>}, {pipeline_mode = #tpu.pipeline_mode<synchronous>, transform_indices = @transform_7, window_bounds = array<i64: 9, 64, 128>}, {pipeline_mode = #tpu.pipeline_mode<synchronous>, transform_indices = @transform_8, window_bounds = array<i64: 1, 128>}, {pipeline_mode = #tpu.pipeline_mode<synchronous>, transform_indices = @transform_9, window_bounds = array<i64: 128, 3>}, {pipeline_mode = #tpu.pipeline_mode<synchronous>, transform_indices = @transform_10, window_bounds = array<i64: 1, 3>}, {pipeline_mode = #tpu.pipeline_mode<synchronous>, transform_indices = @transform_11, window_bounds = array<i64: 3, 3>}, {pipeline_mode = #tpu.pipeline_mode<synchronous>, transform_indices = @transform_12, window_bounds = array<i64: 1, 3>}, {transform_indices = @transform_13, window_bounds = array<i64: 1, 1, 3>}, {transform_indices = @transform_14, window_bounds = array<i64: 1, 1, 3>}]} {
    %c0 = arith.constant 0 : index
    %c0_0 = arith.constant 0 : index
    %c0_1 = arith.constant 0 : index
    %0 = vector.load %arg1[%c0, %c0_0, %c0_1] : memref<1x49x1024xbf16, #tpu.memory_space<vmem>>, vector<1x49x1024xbf16>
    %1 = vector.shape_cast %0 : vector<1x49x1024xbf16> to vector<49x1024xbf16>
    %c0_2 = arith.constant 0 : index
    %c0_3 = arith.constant 0 : index
    %2 = vector.load %arg2[%c0_2, %c0_3] : memref<1024x256xbf16, #tpu.memory_space<vmem>>, vector<1024x256xbf16>
    %cst = arith.constant dense<0.000000e+00> : vector<49x256xf32>
    %3 = tpu.matmul %1, %2, %cst {dimension_numbers = #tpu.dot_dimension_numbers<[1], [0], [0], [1], [0, 0, 1, 1], [], []>} : vector<49x1024xbf16>, vector<1024x256xbf16>, vector<49x256xf32> -> vector<49x256xf32>
    %c0_4 = arith.constant 0 : index
    %c0_5 = arith.constant 0 : index
    %4 = vector.load %arg3[%c0_4, %c0_5] : memref<1x256xf32, #tpu.memory_space<vmem>>, vector<1x256xf32>
    %5 = vector.broadcast %4 : vector<1x256xf32> to vector<49x256xf32>
    %6 = arith.addf %3, %5 : vector<49x256xf32>
    %cst_6 = arith.constant 0.000000e+00 : f32
    %7 = vector.broadcast %cst_6 : f32 to vector<49x256xf32>
    %8 = arith.maximumf %6, %7 : vector<49x256xf32>
    %c0_7 = arith.constant 0 : index
    %c0_8 = arith.constant 0 : index
    %9 = vector.load %arg16[%c0_7, %c0_8] : memref<49x256xf32, #tpu.memory_space<vmem>>, vector<49x256xf32>
    tpu.vector_store %arg16[%c0_7, %c0_8], %8 {strides = array<i32>} : memref<49x256xf32, #tpu.memory_space<vmem>>, vector<49x256xf32>,
    %cst_9 = arith.constant 0.000000e+00 : f32
    %10 = vector.broadcast %cst_9 : f32 to vector<33x256xf32>
    %c0_10 = arith.constant 0 : index
    %c0_11 = arith.constant 0 : index
    %11 = vector.load %arg16[%c0_10, %c0_11] : memref<49x256xf32, #tpu.memory_space<vmem>>, vector<33x256xf32>
    %12 = arith.truncf %11 : vector<33x256xf32> to vector<33x256xbf16>
    %c0_12 = arith.constant 0 : index
    %c0_13 = arith.constant 0 : index
    %c0_14 = arith.constant 0 : index
    %13 = vector.load %arg4[%c0_12, %c0_13, %c0_14] : memref<9x256x256xbf16, #tpu.memory_space<vmem>>, vector<1x256x256xbf16>
    %14 = vector.shape_cast %13 : vector<1x256x256xbf16> to vector<256x256xbf16>
    %cst_15 = arith.constant dense<0.000000e+00> : vector<33x256xf32>
    %15 = tpu.matmul %12, %14, %cst_15 {dimension_numbers = #tpu.dot_dimension_numbers<[1], [0], [0], [1], [0, 0, 1, 1], [], []>} : vector<33x256xbf16>, vector<256x256xbf16>, vector<33x256xf32> -> vector<33x256xf32>
    %16 = arith.addf %10, %15 : vector<33x256xf32>
    %c1 = arith.constant 1 : index
    %c0_16 = arith.constant 0 : index
    %17 = vector.load %arg16[%c1, %c0_16] : memref<49x256xf32, #tpu.memory_space<vmem>>, vector<33x256xf32>
    %18 = arith.truncf %17 : vector<33x256xf32> to vector<33x256xbf16>
    %c1_17 = arith.constant 1 : index
    %c0_18 = arith.constant 0 : index
    %c0_19 = arith.constant 0 : index
    %19 = vector.load %arg4[%c1_17, %c0_18, %c0_19] : memref<9x256x256xbf16, #tpu.memory_space<vmem>>, vector<1x256x256xbf16>
    %20 = vector.shape_cast %19 : vector<1x256x256xbf16> to vector<256x256xbf16>
    %cst_20 = arith.constant dense<0.000000e+00> : vector<33x256xf32>
    %21 = tpu.matmul %18, %20, %cst_20 {dimension_numbers = #tpu.dot_dimension_numbers<[1], [0], [0], [1], [0, 0, 1, 1], [], []>} : vector<33x256xbf16>, vector<256x256xbf16>, vector<33x256xf32> -> vector<33x256xf32>
    %22 = arith.addf %16, %21 : vector<33x256xf32>
    %c2 = arith.constant 2 : index
    %c0_21 = arith.constant 0 : index
    %23 = vector.load %arg16[%c2, %c0_21] : memref<49x256xf32, #tpu.memory_space<vmem>>, vector<33x256xf32>
    %24 = arith.truncf %23 : vector<33x256xf32> to vector<33x256xbf16>
    %c2_22 = arith.constant 2 : index
    %c0_23 = arith.constant 0 : index
    %c0_24 = arith.constant 0 : index
    %25 = vector.load %arg4[%c2_22, %c0_23, %c0_24] : memref<9x256x256xbf16, #tpu.memory_space<vmem>>, vector<1x256x256xbf16>
    %26 = vector.shape_cast %25 : vector<1x256x256xbf16> to vector<256x256xbf16>
    %cst_25 = arith.constant dense<0.000000e+00> : vector<33x256xf32>
    %27 = tpu.matmul %24, %26, %cst_25 {dimension_numbers = #tpu.dot_dimension_numbers<[1], [0], [0], [1], [0, 0, 1, 1], [], []>} : vector<33x256xbf16>, vector<256x256xbf16>, vector<33x256xf32> -> vector<33x256xf32>
    %28 = arith.addf %22, %27 : vector<33x256xf32>
    %c7 = arith.constant 7 : index
    %c0_26 = arith.constant 0 : index
    %29 = vector.load %arg16[%c7, %c0_26] : memref<49x256xf32, #tpu.memory_space<vmem>>, vector<33x256xf32>
    %30 = arith.truncf %29 : vector<33x256xf32> to vector<33x256xbf16>
    %c3 = arith.constant 3 : index
    %c0_27 = arith.constant 0 : index
    %c0_28 = arith.constant 0 : index
    %31 = vector.load %arg4[%c3, %c0_27, %c0_28] : memref<9x256x256xbf16, #tpu.memory_space<vmem>>, vector<1x256x256xbf16>
    %32 = vector.shape_cast %31 : vector<1x256x256xbf16> to vector<256x256xbf16>
    %cst_29 = arith.constant dense<0.000000e+00> : vector<33x256xf32>
    %33 = tpu.matmul %30, %32, %cst_29 {dimension_numbers = #tpu.dot_dimension_numbers<[1], [0], [0], [1], [0, 0, 1, 1], [], []>} : vector<33x256xbf16>, vector<256x256xbf16>, vector<33x256xf32> -> vector<33x256xf32>
    %34 = arith.addf %28, %33 : vector<33x256xf32>
    %c8 = arith.constant 8 : index
    %c0_30 = arith.constant 0 : index
    %35 = vector.load %arg16[%c8, %c0_30] : memref<49x256xf32, #tpu.memory_space<vmem>>, vector<33x256xf32>
    %36 = arith.truncf %35 : vector<33x256xf32> to vector<33x256xbf16>
    %c4 = arith.constant 4 : index
    %c0_31 = arith.constant 0 : index
    %c0_32 = arith.constant 0 : index
    %37 = vector.load %arg4[%c4, %c0_31, %c0_32] : memref<9x256x256xbf16, #tpu.memory_space<vmem>>, vector<1x256x256xbf16>
    %38 = vector.shape_cast %37 : vector<1x256x256xbf16> to vector<256x256xbf16>
    %cst_33 = arith.constant dense<0.000000e+00> : vector<33x256xf32>
    %39 = tpu.matmul %36, %38, %cst_33 {dimension_numbers = #tpu.dot_dimension_numbers<[1], [0], [0], [1], [0, 0, 1, 1], [], []>} : vector<33x256xbf16>, vector<256x256xbf16>, vector<33x256xf32> -> vector<33x256xf32>
    %40 = arith.addf %34, %39 : vector<33x256xf32>
    %c9 = arith.constant 9 : index
    %c0_34 = arith.constant 0 : index
    %41 = vector.load %arg16[%c9, %c0_34] : memref<49x256xf32, #tpu.memory_space<vmem>>, vector<33x256xf32>
    %42 = arith.truncf %41 : vector<33x256xf32> to vector<33x256xbf16>
    %c5 = arith.constant 5 : index
    %c0_35 = arith.constant 0 : index
    %c0_36 = arith.constant 0 : index
    %43 = vector.load %arg4[%c5, %c0_35, %c0_36] : memref<9x256x256xbf16, #tpu.memory_space<vmem>>, vector<1x256x256xbf16>
    %44 = vector.shape_cast %43 : vector<1x256x256xbf16> to vector<256x256xbf16>
    %cst_37 = arith.constant dense<0.000000e+00> : vector<33x256xf32>
    %45 = tpu.matmul %42, %44, %cst_37 {dimension_numbers = #tpu.dot_dimension_numbers<[1], [0], [0], [1], [0, 0, 1, 1], [], []>} : vector<33x256xbf16>, vector<256x256xbf16>, vector<33x256xf32> -> vector<33x256xf32>
    %46 = arith.addf %40, %45 : vector<33x256xf32>
    %c14 = arith.constant 14 : index
    %c0_38 = arith.constant 0 : index
    %47 = vector.load %arg16[%c14, %c0_38] : memref<49x256xf32, #tpu.memory_space<vmem>>, vector<33x256xf32>
    %48 = arith.truncf %47 : vector<33x256xf32> to vector<33x256xbf16>
    %c6 = arith.constant 6 : index
    %c0_39 = arith.constant 0 : index
    %c0_40 = arith.constant 0 : index
    %49 = vector.load %arg4[%c6, %c0_39, %c0_40] : memref<9x256x256xbf16, #tpu.memory_space<vmem>>, vector<1x256x256xbf16>
    %50 = vector.shape_cast %49 : vector<1x256x256xbf16> to vector<256x256xbf16>
    %cst_41 = arith.constant dense<0.000000e+00> : vector<33x256xf32>
    %51 = tpu.matmul %48, %50, %cst_41 {dimension_numbers = #tpu.dot_dimension_numbers<[1], [0], [0], [1], [0, 0, 1, 1], [], []>} : vector<33x256xbf16>, vector<256x256xbf16>, vector<33x256xf32> -> vector<33x256xf32>
    %52 = arith.addf %46, %51 : vector<33x256xf32>
    %c15 = arith.constant 15 : index
    %c0_42 = arith.constant 0 : index
    %53 = vector.load %arg16[%c15, %c0_42] : memref<49x256xf32, #tpu.memory_space<vmem>>, vector<33x256xf32>
    %54 = arith.truncf %53 : vector<33x256xf32> to vector<33x256xbf16>
    %c7_43 = arith.constant 7 : index
    %c0_44 = arith.constant 0 : index
    %c0_45 = arith.constant 0 : index
    %55 = vector.load %arg4[%c7_43, %c0_44, %c0_45] : memref<9x256x256xbf16, #tpu.memory_space<vmem>>, vector<1x256x256xbf16>
    %56 = vector.shape_cast %55 : vector<1x256x256xbf16> to vector<256x256xbf16>
    %cst_46 = arith.constant dense<0.000000e+00> : vector<33x256xf32>
    %57 = tpu.matmul %54, %56, %cst_46 {dimension_numbers = #tpu.dot_dimension_numbers<[1], [0], [0], [1], [0, 0, 1, 1], [], []>} : vector<33x256xbf16>, vector<256x256xbf16>, vector<33x256xf32> -> vector<33x256xf32>
    %58 = arith.addf %52, %57 : vector<33x256xf32>
    %c16 = arith.constant 16 : index
    %c0_47 = arith.constant 0 : index
    %59 = vector.load %arg16[%c16, %c0_47] : memref<49x256xf32, #tpu.memory_space<vmem>>, vector<33x256xf32>
    %60 = arith.truncf %59 : vector<33x256xf32> to vector<33x256xbf16>
    %c8_48 = arith.constant 8 : index
    %c0_49 = arith.constant 0 : index
    %c0_50 = arith.constant 0 : index
    %61 = vector.load %arg4[%c8_48, %c0_49, %c0_50] : memref<9x256x256xbf16, #tpu.memory_space<vmem>>, vector<1x256x256xbf16>
    %62 = vector.shape_cast %61 : vector<1x256x256xbf16> to vector<256x256xbf16>
    %cst_51 = arith.constant dense<0.000000e+00> : vector<33x256xf32>
    %63 = tpu.matmul %60, %62, %cst_51 {dimension_numbers = #tpu.dot_dimension_numbers<[1], [0], [0], [1], [0, 0, 1, 1], [], []>} : vector<33x256xbf16>, vector<256x256xbf16>, vector<33x256xf32> -> vector<33x256xf32>
    %64 = arith.addf %58, %63 : vector<33x256xf32>
    %c0_52 = arith.constant 0 : index
    %c0_53 = arith.constant 0 : index
    %65 = vector.load %arg5[%c0_52, %c0_53] : memref<1x256xf32, #tpu.memory_space<vmem>>, vector<1x256xf32>
    %66 = vector.broadcast %65 : vector<1x256xf32> to vector<33x256xf32>
    %67 = arith.addf %64, %66 : vector<33x256xf32>
    %cst_54 = arith.constant 0.000000e+00 : f32
    %68 = vector.broadcast %cst_54 : f32 to vector<33x256xf32>
    %69 = arith.maximumf %67, %68 : vector<33x256xf32>
    %c0_55 = arith.constant 0 : index
    %c0_56 = arith.constant 0 : index
    %70 = vector.load %arg17[%c0_55, %c0_56] : memref<33x256xf32, #tpu.memory_space<vmem>>, vector<33x256xf32>
    tpu.vector_store %arg17[%c0_55, %c0_56], %69 {strides = array<i32>} : memref<33x256xf32, #tpu.memory_space<vmem>>, vector<33x256xf32>,
    %cst_57 = arith.constant 0.000000e+00 : f32
    %71 = vector.broadcast %cst_57 : f32 to vector<17x64xf32>
    %c0_58 = arith.constant 0 : index
    %c0_59 = arith.constant 0 : index
    %72 = vector.load %arg17[%c0_58, %c0_59] : memref<33x256xf32, #tpu.memory_space<vmem>>, vector<17x256xf32>
    %73 = arith.truncf %72 : vector<17x256xf32> to vector<17x256xbf16>
    %c0_60 = arith.constant 0 : index
    %c0_61 = arith.constant 0 : index
    %c0_62 = arith.constant 0 : index
    %74 = vector.load %arg6[%c0_60, %c0_61, %c0_62] : memref<9x256x64xbf16, #tpu.memory_space<vmem>>, vector<1x256x64xbf16>
    %75 = vector.shape_cast %74 : vector<1x256x64xbf16> to vector<256x64xbf16>
    %cst_63 = arith.constant dense<0.000000e+00> : vector<17x64xf32>
    %76 = tpu.matmul %73, %75, %cst_63 {dimension_numbers = #tpu.dot_dimension_numbers<[1], [0], [0], [1], [0, 0, 1, 1], [], []>} : vector<17x256xbf16>, vector<256x64xbf16>, vector<17x64xf32> -> vector<17x64xf32>
    %77 = arith.addf %71, %76 : vector<17x64xf32>
    %c1_64 = arith.constant 1 : index
    %c0_65 = arith.constant 0 : index
    %78 = vector.load %arg17[%c1_64, %c0_65] : memref<33x256xf32, #tpu.memory_space<vmem>>, vector<17x256xf32>
    %79 = arith.truncf %78 : vector<17x256xf32> to vector<17x256xbf16>
    %c1_66 = arith.constant 1 : index
    %c0_67 = arith.constant 0 : index
    %c0_68 = arith.constant 0 : index
    %80 = vector.load %arg6[%c1_66, %c0_67, %c0_68] : memref<9x256x64xbf16, #tpu.memory_space<vmem>>, vector<1x256x64xbf16>
    %81 = vector.shape_cast %80 : vector<1x256x64xbf16> to vector<256x64xbf16>
    %cst_69 = arith.constant dense<0.000000e+00> : vector<17x64xf32>
    %82 = tpu.matmul %79, %81, %cst_69 {dimension_numbers = #tpu.dot_dimension_numbers<[1], [0], [0], [1], [0, 0, 1, 1], [], []>} : vector<17x256xbf16>, vector<256x64xbf16>, vector<17x64xf32> -> vector<17x64xf32>
    %83 = arith.addf %77, %82 : vector<17x64xf32>
    %c2_70 = arith.constant 2 : index
    %c0_71 = arith.constant 0 : index
    %84 = vector.load %arg17[%c2_70, %c0_71] : memref<33x256xf32, #tpu.memory_space<vmem>>, vector<17x256xf32>
    %85 = arith.truncf %84 : vector<17x256xf32> to vector<17x256xbf16>
    %c2_72 = arith.constant 2 : index
    %c0_73 = arith.constant 0 : index
    %c0_74 = arith.constant 0 : index
    %86 = vector.load %arg6[%c2_72, %c0_73, %c0_74] : memref<9x256x64xbf16, #tpu.memory_space<vmem>>, vector<1x256x64xbf16>
    %87 = vector.shape_cast %86 : vector<1x256x64xbf16> to vector<256x64xbf16>
    %cst_75 = arith.constant dense<0.000000e+00> : vector<17x64xf32>
    %88 = tpu.matmul %85, %87, %cst_75 {dimension_numbers = #tpu.dot_dimension_numbers<[1], [0], [0], [1], [0, 0, 1, 1], [], []>} : vector<17x256xbf16>, vector<256x64xbf16>, vector<17x64xf32> -> vector<17x64xf32>
    %89 = arith.addf %83, %88 : vector<17x64xf32>
    %c7_76 = arith.constant 7 : index
    %c0_77 = arith.constant 0 : index
    %90 = vector.load %arg17[%c7_76, %c0_77] : memref<33x256xf32, #tpu.memory_space<vmem>>, vector<17x256xf32>
    %91 = arith.truncf %90 : vector<17x256xf32> to vector<17x256xbf16>
    %c3_78 = arith.constant 3 : index
    %c0_79 = arith.constant 0 : index
    %c0_80 = arith.constant 0 : index
    %92 = vector.load %arg6[%c3_78, %c0_79, %c0_80] : memref<9x256x64xbf16, #tpu.memory_space<vmem>>, vector<1x256x64xbf16>
    %93 = vector.shape_cast %92 : vector<1x256x64xbf16> to vector<256x64xbf16>
    %cst_81 = arith.constant dense<0.000000e+00> : vector<17x64xf32>
    %94 = tpu.matmul %91, %93, %cst_81 {dimension_numbers = #tpu.dot_dimension_numbers<[1], [0], [0], [1], [0, 0, 1, 1], [], []>} : vector<17x256xbf16>, vector<256x64xbf16>, vector<17x64xf32> -> vector<17x64xf32>
    %95 = arith.addf %89, %94 : vector<17x64xf32>
    %c8_82 = arith.constant 8 : index
    %c0_83 = arith.constant 0 : index
    %96 = vector.load %arg17[%c8_82, %c0_83] : memref<33x256xf32, #tpu.memory_space<vmem>>, vector<17x256xf32>
    %97 = arith.truncf %96 : vector<17x256xf32> to vector<17x256xbf16>
    %c4_84 = arith.constant 4 : index
    %c0_85 = arith.constant 0 : index
    %c0_86 = arith.constant 0 : index
    %98 = vector.load %arg6[%c4_84, %c0_85, %c0_86] : memref<9x256x64xbf16, #tpu.memory_space<vmem>>, vector<1x256x64xbf16>
    %99 = vector.shape_cast %98 : vector<1x256x64xbf16> to vector<256x64xbf16>
    %cst_87 = arith.constant dense<0.000000e+00> : vector<17x64xf32>
    %100 = tpu.matmul %97, %99, %cst_87 {dimension_numbers = #tpu.dot_dimension_numbers<[1], [0], [0], [1], [0, 0, 1, 1], [], []>} : vector<17x256xbf16>, vector<256x64xbf16>, vector<17x64xf32> -> vector<17x64xf32>
    %101 = arith.addf %95, %100 : vector<17x64xf32>
    %c9_88 = arith.constant 9 : index
    %c0_89 = arith.constant 0 : index
    %102 = vector.load %arg17[%c9_88, %c0_89] : memref<33x256xf32, #tpu.memory_space<vmem>>, vector<17x256xf32>
    %103 = arith.truncf %102 : vector<17x256xf32> to vector<17x256xbf16>
    %c5_90 = arith.constant 5 : index
    %c0_91 = arith.constant 0 : index
    %c0_92 = arith.constant 0 : index
    %104 = vector.load %arg6[%c5_90, %c0_91, %c0_92] : memref<9x256x64xbf16, #tpu.memory_space<vmem>>, vector<1x256x64xbf16>
    %105 = vector.shape_cast %104 : vector<1x256x64xbf16> to vector<256x64xbf16>
    %cst_93 = arith.constant dense<0.000000e+00> : vector<17x64xf32>
    %106 = tpu.matmul %103, %105, %cst_93 {dimension_numbers = #tpu.dot_dimension_numbers<[1], [0], [0], [1], [0, 0, 1, 1], [], []>} : vector<17x256xbf16>, vector<256x64xbf16>, vector<17x64xf32> -> vector<17x64xf32>
    %107 = arith.addf %101, %106 : vector<17x64xf32>
    %c14_94 = arith.constant 14 : index
    %c0_95 = arith.constant 0 : index
    %108 = vector.load %arg17[%c14_94, %c0_95] : memref<33x256xf32, #tpu.memory_space<vmem>>, vector<17x256xf32>
    %109 = arith.truncf %108 : vector<17x256xf32> to vector<17x256xbf16>
    %c6_96 = arith.constant 6 : index
    %c0_97 = arith.constant 0 : index
    %c0_98 = arith.constant 0 : index
    %110 = vector.load %arg6[%c6_96, %c0_97, %c0_98] : memref<9x256x64xbf16, #tpu.memory_space<vmem>>, vector<1x256x64xbf16>
    %111 = vector.shape_cast %110 : vector<1x256x64xbf16> to vector<256x64xbf16>
    %cst_99 = arith.constant dense<0.000000e+00> : vector<17x64xf32>
    %112 = tpu.matmul %109, %111, %cst_99 {dimension_numbers = #tpu.dot_dimension_numbers<[1], [0], [0], [1], [0, 0, 1, 1], [], []>} : vector<17x256xbf16>, vector<256x64xbf16>, vector<17x64xf32> -> vector<17x64xf32>
    %113 = arith.addf %107, %112 : vector<17x64xf32>
    %c15_100 = arith.constant 15 : index
    %c0_101 = arith.constant 0 : index
    %114 = vector.load %arg17[%c15_100, %c0_101] : memref<33x256xf32, #tpu.memory_space<vmem>>, vector<17x256xf32>
    %115 = arith.truncf %114 : vector<17x256xf32> to vector<17x256xbf16>
    %c7_102 = arith.constant 7 : index
    %c0_103 = arith.constant 0 : index
    %c0_104 = arith.constant 0 : index
    %116 = vector.load %arg6[%c7_102, %c0_103, %c0_104] : memref<9x256x64xbf16, #tpu.memory_space<vmem>>, vector<1x256x64xbf16>
    %117 = vector.shape_cast %116 : vector<1x256x64xbf16> to vector<256x64xbf16>
    %cst_105 = arith.constant dense<0.000000e+00> : vector<17x64xf32>
    %118 = tpu.matmul %115, %117, %cst_105 {dimension_numbers = #tpu.dot_dimension_numbers<[1], [0], [0], [1], [0, 0, 1, 1], [], []>} : vector<17x256xbf16>, vector<256x64xbf16>, vector<17x64xf32> -> vector<17x64xf32>
    %119 = arith.addf %113, %118 : vector<17x64xf32>
    %c16_106 = arith.constant 16 : index
    %c0_107 = arith.constant 0 : index
    %120 = vector.load %arg17[%c16_106, %c0_107] : memref<33x256xf32, #tpu.memory_space<vmem>>, vector<17x256xf32>
    %121 = arith.truncf %120 : vector<17x256xf32> to vector<17x256xbf16>
    %c8_108 = arith.constant 8 : index
    %c0_109 = arith.constant 0 : index
    %c0_110 = arith.constant 0 : index
    %122 = vector.load %arg6[%c8_108, %c0_109, %c0_110] : memref<9x256x64xbf16, #tpu.memory_space<vmem>>, vector<1x256x64xbf16>
    %123 = vector.shape_cast %122 : vector<1x256x64xbf16> to vector<256x64xbf16>
    %cst_111 = arith.constant dense<0.000000e+00> : vector<17x64xf32>
    %124 = tpu.matmul %121, %123, %cst_111 {dimension_numbers = #tpu.dot_dimension_numbers<[1], [0], [0], [1], [0, 0, 1, 1], [], []>} : vector<17x256xbf16>, vector<256x64xbf16>, vector<17x64xf32> -> vector<17x64xf32>
    %125 = arith.addf %119, %124 : vector<17x64xf32>
    %c0_112 = arith.constant 0 : index
    %c0_113 = arith.constant 0 : index
    %126 = vector.load %arg7[%c0_112, %c0_113] : memref<1x64xf32, #tpu.memory_space<vmem>>, vector<1x64xf32>
    %127 = vector.broadcast %126 : vector<1x64xf32> to vector<17x64xf32>
    %128 = arith.addf %125, %127 : vector<17x64xf32>
    %cst_114 = arith.constant 0.000000e+00 : f32
    %129 = vector.broadcast %cst_114 : f32 to vector<17x64xf32>
    %130 = arith.maximumf %128, %129 : vector<17x64xf32>
    %c0_115 = arith.constant 0 : index
    %c0_116 = arith.constant 0 : index
    %131 = vector.load %arg18[%c0_115, %c0_116] : memref<17x64xf32, #tpu.memory_space<vmem>>, vector<17x64xf32>
    tpu.vector_store %arg18[%c0_115, %c0_116], %130 {strides = array<i32>} : memref<17x64xf32, #tpu.memory_space<vmem>>, vector<17x64xf32>,
    %cst_117 = arith.constant 0.000000e+00 : f32
    %132 = vector.broadcast %cst_117 : f32 to vector<1x128xf32>
    %c0_118 = arith.constant 0 : index
    %c0_119 = arith.constant 0 : index
    %133 = vector.load %arg18[%c0_118, %c0_119] : memref<17x64xf32, #tpu.memory_space<vmem>>, vector<1x64xf32>
    %134 = arith.truncf %133 : vector<1x64xf32> to vector<1x64xbf16>
    %c0_120 = arith.constant 0 : index
    %c0_121 = arith.constant 0 : index
    %c0_122 = arith.constant 0 : index
    %135 = vector.load %arg8[%c0_120, %c0_121, %c0_122] : memref<9x64x128xbf16, #tpu.memory_space<vmem>>, vector<1x64x128xbf16>
    %136 = vector.shape_cast %135 : vector<1x64x128xbf16> to vector<64x128xbf16>
    %cst_123 = arith.constant dense<0.000000e+00> : vector<1x128xf32>
    %137 = tpu.matmul %134, %136, %cst_123 {dimension_numbers = #tpu.dot_dimension_numbers<[1], [0], [0], [1], [0, 0, 1, 1], [], []>} : vector<1x64xbf16>, vector<64x128xbf16>, vector<1x128xf32> -> vector<1x128xf32>
    %138 = arith.addf %132, %137 : vector<1x128xf32>
    %c1_124 = arith.constant 1 : index
    %c0_125 = arith.constant 0 : index
    %139 = vector.load %arg18[%c1_124, %c0_125] : memref<17x64xf32, #tpu.memory_space<vmem>>, vector<1x64xf32>
    %140 = arith.truncf %139 : vector<1x64xf32> to vector<1x64xbf16>
    %c1_126 = arith.constant 1 : index
    %c0_127 = arith.constant 0 : index
    %c0_128 = arith.constant 0 : index
    %141 = vector.load %arg8[%c1_126, %c0_127, %c0_128] : memref<9x64x128xbf16, #tpu.memory_space<vmem>>, vector<1x64x128xbf16>
    %142 = vector.shape_cast %141 : vector<1x64x128xbf16> to vector<64x128xbf16>
    %cst_129 = arith.constant dense<0.000000e+00> : vector<1x128xf32>
    %143 = tpu.matmul %140, %142, %cst_129 {dimension_numbers = #tpu.dot_dimension_numbers<[1], [0], [0], [1], [0, 0, 1, 1], [], []>} : vector<1x64xbf16>, vector<64x128xbf16>, vector<1x128xf32> -> vector<1x128xf32>
    %144 = arith.addf %138, %143 : vector<1x128xf32>
    %c2_130 = arith.constant 2 : index
    %c0_131 = arith.constant 0 : index
    %145 = vector.load %arg18[%c2_130, %c0_131] : memref<17x64xf32, #tpu.memory_space<vmem>>, vector<1x64xf32>
    %146 = arith.truncf %145 : vector<1x64xf32> to vector<1x64xbf16>
    %c2_132 = arith.constant 2 : index
    %c0_133 = arith.constant 0 : index
    %c0_134 = arith.constant 0 : index
    %147 = vector.load %arg8[%c2_132, %c0_133, %c0_134] : memref<9x64x128xbf16, #tpu.memory_space<vmem>>, vector<1x64x128xbf16>
    %148 = vector.shape_cast %147 : vector<1x64x128xbf16> to vector<64x128xbf16>
    %cst_135 = arith.constant dense<0.000000e+00> : vector<1x128xf32>
    %149 = tpu.matmul %146, %148, %cst_135 {dimension_numbers = #tpu.dot_dimension_numbers<[1], [0], [0], [1], [0, 0, 1, 1], [], []>} : vector<1x64xbf16>, vector<64x128xbf16>, vector<1x128xf32> -> vector<1x128xf32>
    %150 = arith.addf %144, %149 : vector<1x128xf32>
    %c7_136 = arith.constant 7 : index
    %c0_137 = arith.constant 0 : index
    %151 = vector.load %arg18[%c7_136, %c0_137] : memref<17x64xf32, #tpu.memory_space<vmem>>, vector<1x64xf32>
    %152 = arith.truncf %151 : vector<1x64xf32> to vector<1x64xbf16>
    %c3_138 = arith.constant 3 : index
    %c0_139 = arith.constant 0 : index
    %c0_140 = arith.constant 0 : index
    %153 = vector.load %arg8[%c3_138, %c0_139, %c0_140] : memref<9x64x128xbf16, #tpu.memory_space<vmem>>, vector<1x64x128xbf16>
    %154 = vector.shape_cast %153 : vector<1x64x128xbf16> to vector<64x128xbf16>
    %cst_141 = arith.constant dense<0.000000e+00> : vector<1x128xf32>
    %155 = tpu.matmul %152, %154, %cst_141 {dimension_numbers = #tpu.dot_dimension_numbers<[1], [0], [0], [1], [0, 0, 1, 1], [], []>} : vector<1x64xbf16>, vector<64x128xbf16>, vector<1x128xf32> -> vector<1x128xf32>
    %156 = arith.addf %150, %155 : vector<1x128xf32>
    %c8_142 = arith.constant 8 : index
    %c0_143 = arith.constant 0 : index
    %157 = vector.load %arg18[%c8_142, %c0_143] : memref<17x64xf32, #tpu.memory_space<vmem>>, vector<1x64xf32>
    %158 = arith.truncf %157 : vector<1x64xf32> to vector<1x64xbf16>
    %c4_144 = arith.constant 4 : index
    %c0_145 = arith.constant 0 : index
    %c0_146 = arith.constant 0 : index
    %159 = vector.load %arg8[%c4_144, %c0_145, %c0_146] : memref<9x64x128xbf16, #tpu.memory_space<vmem>>, vector<1x64x128xbf16>
    %160 = vector.shape_cast %159 : vector<1x64x128xbf16> to vector<64x128xbf16>
    %cst_147 = arith.constant dense<0.000000e+00> : vector<1x128xf32>
    %161 = tpu.matmul %158, %160, %cst_147 {dimension_numbers = #tpu.dot_dimension_numbers<[1], [0], [0], [1], [0, 0, 1, 1], [], []>} : vector<1x64xbf16>, vector<64x128xbf16>, vector<1x128xf32> -> vector<1x128xf32>
    %162 = arith.addf %156, %161 : vector<1x128xf32>
    %c9_148 = arith.constant 9 : index
    %c0_149 = arith.constant 0 : index
    %163 = vector.load %arg18[%c9_148, %c0_149] : memref<17x64xf32, #tpu.memory_space<vmem>>, vector<1x64xf32>
    %164 = arith.truncf %163 : vector<1x64xf32> to vector<1x64xbf16>
    %c5_150 = arith.constant 5 : index
    %c0_151 = arith.constant 0 : index
    %c0_152 = arith.constant 0 : index
    %165 = vector.load %arg8[%c5_150, %c0_151, %c0_152] : memref<9x64x128xbf16, #tpu.memory_space<vmem>>, vector<1x64x128xbf16>
    %166 = vector.shape_cast %165 : vector<1x64x128xbf16> to vector<64x128xbf16>
    %cst_153 = arith.constant dense<0.000000e+00> : vector<1x128xf32>
    %167 = tpu.matmul %164, %166, %cst_153 {dimension_numbers = #tpu.dot_dimension_numbers<[1], [0], [0], [1], [0, 0, 1, 1], [], []>} : vector<1x64xbf16>, vector<64x128xbf16>, vector<1x128xf32> -> vector<1x128xf32>
    %168 = arith.addf %162, %167 : vector<1x128xf32>
    %c14_154 = arith.constant 14 : index
    %c0_155 = arith.constant 0 : index
    %169 = vector.load %arg18[%c14_154, %c0_155] : memref<17x64xf32, #tpu.memory_space<vmem>>, vector<1x64xf32>
    %170 = arith.truncf %169 : vector<1x64xf32> to vector<1x64xbf16>
    %c6_156 = arith.constant 6 : index
    %c0_157 = arith.constant 0 : index
    %c0_158 = arith.constant 0 : index
    %171 = vector.load %arg8[%c6_156, %c0_157, %c0_158] : memref<9x64x128xbf16, #tpu.memory_space<vmem>>, vector<1x64x128xbf16>
    %172 = vector.shape_cast %171 : vector<1x64x128xbf16> to vector<64x128xbf16>
    %cst_159 = arith.constant dense<0.000000e+00> : vector<1x128xf32>
    %173 = tpu.matmul %170, %172, %cst_159 {dimension_numbers = #tpu.dot_dimension_numbers<[1], [0], [0], [1], [0, 0, 1, 1], [], []>} : vector<1x64xbf16>, vector<64x128xbf16>, vector<1x128xf32> -> vector<1x128xf32>
    %174 = arith.addf %168, %173 : vector<1x128xf32>
    %c15_160 = arith.constant 15 : index
    %c0_161 = arith.constant 0 : index
    %175 = vector.load %arg18[%c15_160, %c0_161] : memref<17x64xf32, #tpu.memory_space<vmem>>, vector<1x64xf32>
    %176 = arith.truncf %175 : vector<1x64xf32> to vector<1x64xbf16>
    %c7_162 = arith.constant 7 : index
    %c0_163 = arith.constant 0 : index
    %c0_164 = arith.constant 0 : index
    %177 = vector.load %arg8[%c7_162, %c0_163, %c0_164] : memref<9x64x128xbf16, #tpu.memory_space<vmem>>, vector<1x64x128xbf16>
    %178 = vector.shape_cast %177 : vector<1x64x128xbf16> to vector<64x128xbf16>
    %cst_165 = arith.constant dense<0.000000e+00> : vector<1x128xf32>
    %179 = tpu.matmul %176, %178, %cst_165 {dimension_numbers = #tpu.dot_dimension_numbers<[1], [0], [0], [1], [0, 0, 1, 1], [], []>} : vector<1x64xbf16>, vector<64x128xbf16>, vector<1x128xf32> -> vector<1x128xf32>
    %180 = arith.addf %174, %179 : vector<1x128xf32>
    %c16_166 = arith.constant 16 : index
    %c0_167 = arith.constant 0 : index
    %181 = vector.load %arg18[%c16_166, %c0_167] : memref<17x64xf32, #tpu.memory_space<vmem>>, vector<1x64xf32>
    %182 = arith.truncf %181 : vector<1x64xf32> to vector<1x64xbf16>
    %c8_168 = arith.constant 8 : index
    %c0_169 = arith.constant 0 : index
    %c0_170 = arith.constant 0 : index
    %183 = vector.load %arg8[%c8_168, %c0_169, %c0_170] : memref<9x64x128xbf16, #tpu.memory_space<vmem>>, vector<1x64x128xbf16>
    %184 = vector.shape_cast %183 : vector<1x64x128xbf16> to vector<64x128xbf16>
    %cst_171 = arith.constant dense<0.000000e+00> : vector<1x128xf32>
    %185 = tpu.matmul %182, %184, %cst_171 {dimension_numbers = #tpu.dot_dimension_numbers<[1], [0], [0], [1], [0, 0, 1, 1], [], []>} : vector<1x64xbf16>, vector<64x128xbf16>, vector<1x128xf32> -> vector<1x128xf32>
    %186 = arith.addf %180, %185 : vector<1x128xf32>
    %c0_172 = arith.constant 0 : index
    %c0_173 = arith.constant 0 : index
    %187 = vector.load %arg9[%c0_172, %c0_173] : memref<1x128xf32, #tpu.memory_space<vmem>>, vector<1x128xf32>
    %188 = arith.addf %186, %187 : vector<1x128xf32>
    %cst_174 = arith.constant 0.000000e+00 : f32
    %189 = vector.broadcast %cst_174 : f32 to vector<1x128xf32>
    %190 = arith.maximumf %188, %189 : vector<1x128xf32>
    %c0_175 = arith.constant 0 : index
    %c0_176 = arith.constant 0 : index
    %191 = vector.load %arg10[%c0_175, %c0_176] : memref<128x3xf32, #tpu.memory_space<vmem>>, vector<128x3xf32>
    %cst_177 = arith.constant dense<0.000000e+00> : vector<1x3xf32>
    %192 = tpu.matmul %190, %191, %cst_177 {dimension_numbers = #tpu.dot_dimension_numbers<[1], [0], [0], [1], [0, 0, 1, 1], [], []>} : vector<1x128xf32>, vector<128x3xf32>, vector<1x3xf32> -> vector<1x3xf32>
    %c0_178 = arith.constant 0 : index
    %c0_179 = arith.constant 0 : index
    %193 = vector.load %arg11[%c0_178, %c0_179] : memref<1x3xf32, #tpu.memory_space<vmem>>, vector<1x3xf32>
    %194 = arith.addf %192, %193 : vector<1x3xf32>
    %cst_180 = arith.constant dense<0xFF800000> : vector<1xf32>
    %195 = vector.multi_reduction <maximumf>, %194, %cst_180 [1] : vector<1x3xf32> to vector<1xf32>
    %196 = vector.shape_cast %195 : vector<1xf32> to vector<1x1xf32>
    %197 = vector.broadcast %196 : vector<1x1xf32> to vector<1x3xf32>
    %198 = arith.subf %194, %197 : vector<1x3xf32>
    %199 = math.exp %198 : vector<1x3xf32>
    %cst_181 = arith.constant dense<0.000000e+00> : vector<1xf32>
    %200 = vector.multi_reduction <add>, %199, %cst_181 [1] : vector<1x3xf32> to vector<1xf32>
    %201 = vector.shape_cast %200 : vector<1xf32> to vector<1x1xf32>
    %202 = tpu.reciprocal %201 {approx = true} : vector<1x1xf32> -> vector<1x1xf32>
    %203 = vector.broadcast %202 : vector<1x1xf32> to vector<1x3xf32>
    %204 = arith.mulf %199, %203 : vector<1x3xf32>
    %c0_182 = arith.constant 0 : index
    %c0_183 = arith.constant 0 : index
    %c0_184 = arith.constant 0 : index
    %205 = vector.load %arg14[%c0_182, %c0_183, %c0_184] : memref<1x1x3xf32, #tpu.memory_space<vmem>>, vector<1x1x3xf32>
    %206 = vector.shape_cast %205 : vector<1x1x3xf32> to vector<1x3xf32>
    %207 = vector.shape_cast %204 : vector<1x3xf32> to vector<1x1x3xf32>
    tpu.vector_store %arg14[%c0_182, %c0_183, %c0_184], %207 {strides = array<i32>} : memref<1x1x3xf32, #tpu.memory_space<vmem>>, vector<1x1x3xf32>,
    %c0_185 = arith.constant 0 : index
    %c0_186 = arith.constant 0 : index
    %208 = vector.load %arg12[%c0_185, %c0_186] : memref<3x3xf32, #tpu.memory_space<vmem>>, vector<3x3xf32>
    %cst_187 = arith.constant dense<0.000000e+00> : vector<1x3xf32>
    %209 = tpu.matmul %194, %208, %cst_187 {dimension_numbers = #tpu.dot_dimension_numbers<[1], [0], [0], [1], [0, 0, 1, 1], [], []>} : vector<1x3xf32>, vector<3x3xf32>, vector<1x3xf32> -> vector<1x3xf32>
    %c0_188 = arith.constant 0 : index
    %c0_189 = arith.constant 0 : index
    %210 = vector.load %arg13[%c0_188, %c0_189] : memref<1x3xf32, #tpu.memory_space<vmem>>, vector<1x3xf32>
    %211 = arith.addf %209, %210 : vector<1x3xf32>
    %c0_190 = arith.constant 0 : index
    %c0_191 = arith.constant 0 : index
    %c0_192 = arith.constant 0 : index
    %212 = vector.load %arg15[%c0_190, %c0_191, %c0_192] : memref<1x1x3xf32, #tpu.memory_space<vmem>>, vector<1x1x3xf32>
    %213 = vector.shape_cast %212 : vector<1x1x3xf32> to vector<1x3xf32>
    %214 = vector.shape_cast %211 : vector<1x3xf32> to vector<1x1x3xf32>
    tpu.vector_store %arg15[%c0_190, %c0_191, %c0_192], %214 {strides = array<i32>} : memref<1x1x3xf32, #tpu.memory_space<vmem>>, vector<1x1x3xf32>,
    return
  }
  func.func @transform_0(%arg0: i32) -> (i32, i32, i32) {
    %c0_i32 = arith.constant 0 : i32
    %c0_i32_0 = arith.constant 0 : i32
    %c0_i32_1 = arith.constant 0 : i32
    return %arg0, %c0_i32, %c0_i32_0 : i32, i32, i32
  }
  func.func @transform_1(%arg0: i32) -> (i32, i32) {
    %c0_i32 = arith.constant 0 : i32
    %c0_i32_0 = arith.constant 0 : i32
    %c0_i32_1 = arith.constant 0 : i32
    return %c0_i32, %c0_i32_0 : i32, i32
  }
  func.func @transform_2(%arg0: i32) -> (i32, i32) {
    %c0_i32 = arith.constant 0 : i32
    %c0_i32_0 = arith.constant 0 : i32
    %c0_i32_1 = arith.constant 0 : i32
    return %c0_i32, %c0_i32_0 : i32, i32
  }
  func.func @transform_3(%arg0: i32) -> (i32, i32, i32) {
    %c0_i32 = arith.constant 0 : i32
    %c0_i32_0 = arith.constant 0 : i32
    %c0_i32_1 = arith.constant 0 : i32
    %c0_i32_2 = arith.constant 0 : i32
    return %c0_i32, %c0_i32_0, %c0_i32_1 : i32, i32, i32
  }
  func.func @transform_4(%arg0: i32) -> (i32, i32) {
    %c0_i32 = arith.constant 0 : i32
    %c0_i32_0 = arith.constant 0 : i32
    %c0_i32_1 = arith.constant 0 : i32
    return %c0_i32, %c0_i32_0 : i32, i32
  }
  func.func @transform_5(%arg0: i32) -> (i32, i32, i32) {
    %c0_i32 = arith.constant 0 : i32
    %c0_i32_0 = arith.constant 0 : i32
    %c0_i32_1 = arith.constant 0 : i32
    %c0_i32_2 = arith.constant 0 : i32
    return %c0_i32, %c0_i32_0, %c0_i32_1 : i32, i32, i32
  }
  func.func @transform_6(%arg0: i32) -> (i32, i32) {
    %c0_i32 = arith.constant 0 : i32
    %c0_i32_0 = arith.constant 0 : i32
    %c0_i32_1 = arith.constant 0 : i32
    return %c0_i32, %c0_i32_0 : i32, i32
  }
  func.func @transform_7(%arg0: i32) -> (i32, i32, i32) {
    %c0_i32 = arith.constant 0 : i32
    %c0_i32_0 = arith.constant 0 : i32
    %c0_i32_1 = arith.constant 0 : i32
    %c0_i32_2 = arith.constant 0 : i32
    return %c0_i32, %c0_i32_0, %c0_i32_1 : i32, i32, i32
  }
  func.func @transform_8(%arg0: i32) -> (i32, i32) {
    %c0_i32 = arith.constant 0 : i32
    %c0_i32_0 = arith.constant 0 : i32
    %c0_i32_1 = arith.constant 0 : i32
    return %c0_i32, %c0_i32_0 : i32, i32
  }
  func.func @transform_9(%arg0: i32) -> (i32, i32) {
    %c0_i32 = arith.constant 0 : i32
    %c0_i32_0 = arith.constant 0 : i32
    %c0_i32_1 = arith.constant 0 : i32
    return %c0_i32, %c0_i32_0 : i32, i32
  }
  func.func @transform_10(%arg0: i32) -> (i32, i32) {
    %c0_i32 = arith.constant 0 : i32
    %c0_i32_0 = arith.constant 0 : i32
    %c0_i32_1 = arith.constant 0 : i32
    return %c0_i32, %c0_i32_0 : i32, i32
  }
  func.func @transform_11(%arg0: i32) -> (i32, i32) {
    %c0_i32 = arith.constant 0 : i32
    %c0_i32_0 = arith.constant 0 : i32
    %c0_i32_1 = arith.constant 0 : i32
    return %c0_i32, %c0_i32_0 : i32, i32
  }
  func.func @transform_12(%arg0: i32) -> (i32, i32) {
    %c0_i32 = arith.constant 0 : i32
    %c0_i32_0 = arith.constant 0 : i32
    %c0_i32_1 = arith.constant 0 : i32
    return %c0_i32, %c0_i32_0 : i32, i32
  }
  func.func @transform_13(%arg0: i32) -> (i32, i32, i32) {
    %c0_i32 = arith.constant 0 : i32
    %c0_i32_0 = arith.constant 0 : i32
    %c0_i32_1 = arith.constant 0 : i32
    return %arg0, %c0_i32, %c0_i32_0 : i32, i32, i32
  }
  func.func @transform_14(%arg0: i32) -> (i32, i32, i32) {
    %c0_i32 = arith.constant 0 : i32
    %c0_i32_0 = arith.constant 0 : i32
    %c0_i32_1 = arith.constant 0 : i32
    return %arg0, %c0_i32, %c0_i32_0 : i32, i32, i32
  }
}

</mosaic_0001>

<llo_original>
// kernel: fwd.1
$region0: #{fwd.1}
  #allocation0 [shape = 'u32[]', space=smem, size = 0x4, offset = 0x4, fixed_abs, tag = 'smem constant byte address 0x4 - core index']
  #allocation1 [shape = 'u32[144,128]{1,0:T(1,128)}', space=vmem, size = 0x12000, scoped, tag = 'internal scratch']
  #allocation2 [shape = 'f32[49,256]{1,0:T(8,128)}', space=vmem, size = 0xe000, scoped, tag = 'scratch operand']
  #allocation3 [shape = 'f32[33,256]{1,0:T(8,128)}', space=vmem, size = 0xa000, scoped, tag = 'scratch operand']
  #allocation4 [shape = 'f32[17,64]{1,0:T(8,128)}', space=vmem, size = 0x3000, scoped, tag = 'scratch operand']
  %s0 = inlined_call_operand.hbm [shape: bf16[2,49,1024], index: 0, kind: input, shape index: {}]
  %s1 = inlined_call_operand.hbm [shape: bf16[1024,256], index: 1, kind: input, shape index: {}]
  %s2 = inlined_call_operand.hbm [shape: f32[1,256], index: 2, kind: input, shape index: {}, may-alias: {2,4}]
  %s3 = inlined_call_operand.hbm [shape: bf16[9,256,256], index: 3, kind: input, shape index: {}]
  %s4 = inlined_call_operand.hbm [shape: f32[1,256], index: 4, kind: input, shape index: {}, may-alias: {2,4}]
  %s5 = inlined_call_operand.hbm [shape: bf16[9,256,64], index: 5, kind: input, shape index: {}]
  %s6 = inlined_call_operand.hbm [shape: f32[1,64], index: 6, kind: input, shape index: {}]
  %s7 = inlined_call_operand.hbm [shape: bf16[9,64,128], index: 7, kind: input, shape index: {}]
  %s8 = inlined_call_operand.hbm [shape: f32[1,128], index: 8, kind: input, shape index: {}]
  %s9 = inlined_call_operand.hbm [shape: f32[128,3], index: 9, kind: input, shape index: {}]
  %s10 = inlined_call_operand.hbm [shape: f32[1,3], index: 10, kind: input, shape index: {}, may-alias: {10,12}]
  %s11 = inlined_call_operand.hbm [shape: f32[3,3], index: 11, kind: input, shape index: {}]
  %s12 = inlined_call_operand.hbm [shape: f32[1,3], index: 12, kind: input, shape index: {}, may-alias: {10,12}]
  %s13 = inlined_call_operand.hbm [shape: f32[2,1,3], index: 13, kind: output, shape index: {0}]
  %s14 = inlined_call_operand.hbm [shape: f32[2,1,3], index: 14, kind: output, shape index: {1}]
  %15 = xla_tuple %s13, %s14
  %s16 = sld [smem:[#allocation0]]
  $region145: #{fwd.1} parent=0
    _
  %s18 = ssub.s32 1, %s16
  %s19 = scalar_select 0, %s18, %s16
  $region1: #{fwd.1} parent=0
    #allocation5 [shape = 'u8[229376]{0}', space=vmem, size = 0x38000, scoped, tag = 'input window, operand 0']
    #allocation6 [shape = 's32[2]{0}', space=sflag, size = 0x8, scoped, tag = 'scoped memory for fwd.1']
    #allocation7 [shape = 's32[2]{0}', space=sflag, size = 0x8, scoped, tag = 'scoped memory for fwd.1']
    #allocation8 [shape = 'u8[524288]{0}', space=vmem, size = 0x80000, scoped, tag = 'input window, operand 1, single buffered']
    #allocation9 [shape = 's32[1]{0}', space=sflag, size = 0x4, scoped, tag = 'scoped memory for fwd.1']
    #allocation10 [shape = 'u8[1024]{0}', space=vmem, size = 0x400, scoped, tag = 'input window, operand 2, single buffered']
    #allocation11 [shape = 'u8[1179648]{0}', space=vmem, size = 0x120000, scoped, tag = 'input window, operand 3, single buffered']
    #allocation12 [shape = 's32[1]{0}', space=sflag, size = 0x4, scoped, tag = 'scoped memory for fwd.1']
    #allocation13 [shape = 'u8[1024]{0}', space=vmem, size = 0x400, scoped, tag = 'input window, operand 4, single buffered']
    #allocation14 [shape = 'u8[589824]{0}', space=vmem, size = 0x90000, scoped, tag = 'input window, operand 5, single buffered']
    #allocation15 [shape = 's32[1]{0}', space=sflag, size = 0x4, scoped, tag = 'scoped memory for fwd.1']
    #allocation16 [shape = 'u8[512]{0}', space=vmem, size = 0x400, scoped, tag = 'input window, operand 6, single buffered']
    #allocation17 [shape = 'u8[147456]{0}', space=vmem, size = 0x24000, scoped, tag = 'input window, operand 7, single buffered']
    #allocation18 [shape = 's32[1]{0}', space=sflag, size = 0x4, scoped, tag = 'scoped memory for fwd.1']
    #allocation19 [shape = 'u8[512]{0}', space=vmem, size = 0x400, scoped, tag = 'input window, operand 8, single buffered']
    #allocation20 [shape = 'u8[65536]{0}', space=vmem, size = 0x10000, scoped, tag = 'input window, operand 9, single buffered']
    #allocation21 [shape = 's32[1]{0}', space=sflag, size = 0x4, scoped, tag = 'scoped memory for fwd.1']
    #allocation22 [shape = 'u8[512]{0}', space=vmem, size = 0x400, scoped, tag = 'input window, operand 10, single buffered']
    #allocation23 [shape = 'u8[2048]{0}', space=vmem, size = 0x800, scoped, tag = 'input window, operand 11, single buffered']
    #allocation24 [shape = 's32[1]{0}', space=sflag, size = 0x4, scoped, tag = 'scoped memory for fwd.1']
    #allocation25 [shape = 'u8[512]{0}', space=vmem, size = 0x400, scoped, tag = 'input window, operand 12, single buffered']
    #allocation26 [shape = 'u8[1024]{0}', space=vmem, size = 0x400, scoped, tag = 'output window, operand 0']
    #allocation27 [shape = 'u8[1024]{0}', space=vmem, size = 0x400, scoped, tag = 'output window, operand 1']
    #allocation28 [shape = 's32[2]{0}', space=sflag, size = 0x8, scoped, tag = 'scoped memory for fwd.1']
    %20 = vsyncpa [#allocation6], 0
    %s21 = scalar_lea.sflag [#allocation6], 1
    %22 = vsyncpa %s21, 0
    %23 = vsyncpa [#allocation9], 0
    %24 = vsyncpa [#allocation12], 0
    %25 = vsyncpa [#allocation15], 0
    %26 = vsyncpa [#allocation18], 0
    %27 = vsyncpa [#allocation21], 0
    %28 = vsyncpa [#allocation24], 0
    %29 = vsyncpa [#allocation7], 0
    %s30 = scalar_lea.sflag [#allocation7], 1
    %31 = vsyncpa %s30, 0
    %32 = vsyncpa [#allocation28], 0
    %s33 = scalar_lea.sflag [#allocation28], 1
    %34 = vsyncpa %s33, 0
    loop: start=0, step=1, limit=4
    $region2: #{fwd.1} parent=1 // loop_pre_header
      _
    $region3: #{fwd.1} parent=1 // loop_header
      %s36 = sphi 0, %s40
      %p37 = scmp.ge.s32.totalorder %s36, 4
      %s46 = sphi 0, %s48
      %s49 = sphi 0, %s46
      %s50 = sphi 0, %s49
      %s66 = sphi 0, %s50
      %s70 = sphi 0, %s70
      %s72 = sphi 0, %s70
      %s73 = sphi 0, %s72
      %s87 = sphi 0, %s73
      %s91 = sphi 0, %s91
      %s93 = sphi 0, %s91
      %s94 = sphi 0, %s93
      %s108 = sphi 0, %s94
      %s112 = sphi 0, %s112
      %s114 = sphi 0, %s112
      %s115 = sphi 0, %s114
      %s129 = sphi 0, %s115
      %s133 = sphi 0, %s133
      %s135 = sphi 0, %s133
      %s136 = sphi 0, %s135
      %s150 = sphi 0, %s136
      %s154 = sphi 0, %s154
      %s156 = sphi 0, %s154
      %s157 = sphi 0, %s156
      %s171 = sphi 0, %s157
      %s175 = sphi 0, %s175
      %s177 = sphi 0, %s175
      %s178 = sphi 0, %s177
      %s192 = sphi 0, %s178
      %s196 = sphi 0, %s196
      %s198 = sphi 0, %s196
      %s199 = sphi 0, %s198
      %s213 = sphi 0, %s199
      %s217 = sphi 0, %s217
      %s219 = sphi 0, %s217
      %s220 = sphi 0, %s219
      %s234 = sphi 0, %s220
      %s238 = sphi 0, %s238
      %s240 = sphi 0, %s238
      %s241 = sphi 0, %s240
      %s255 = sphi 0, %s241
      %s259 = sphi 0, %s259
      %s261 = sphi 0, %s259
      %s262 = sphi 0, %s261
      %s276 = sphi 0, %s262
      %s280 = sphi 0, %s280
      %s282 = sphi 0, %s280
      %s283 = sphi 0, %s282
      %s297 = sphi 0, %s283
      %s301 = sphi 0, %s301
      %s303 = sphi 0, %s301
      %s304 = sphi 0, %s303
      %s318 = sphi 0, %s304
      %s324 = sphi 0, %s326
      %s327 = sphi 0, %s324
      %s328 = sphi 0, %s327
      %s344 = sphi 0, %s328
      %s350 = sphi 0, %s352
      %s353 = sphi 0, %s350
      %s354 = sphi 0, %s353
      %s370 = sphi 0, %s354
    $region4: #{fwd.1} parent=1 // loop_header_branch
      %39 = sbr.rel (%p37) target = $region8
    $region5: #{fwd.1} parent=1 // loop_body
      %s41 = ssub.s32 %s36, 1
      %s42 = ssub.s32 %s36, 2
      %s43 = sadd.s32 %s36, 1
      %s44 = ssub.s32 %s36, %s43
      %p45 = scmp.eq.s32.totalorder %s44, 0
      %s47 = sadd.s32 %s46, 1
      %s48 = scalar_select %p45, %s46, %s47
      %p51 = pneg %p45
      %p52 = scmp.eq.s32.totalorder %s36, 1
      %p53 = por %p51, %p52
      %p54 = scmp.ne.s32.totalorder %s46, %s49
      %p55 = scmp.eq.s32.totalorder %s36, 0
      %p56 = por %p54, %p55
      %p57 = scmp.ne.s32.totalorder %s46, %s49
      %p58 = scmp.eq.s32.totalorder %s41, 1
      %p59 = por %p57, %p58
      %p60 = scmp.ne.s32.totalorder %s49, %s50
      %p61 = scmp.eq.s32.totalorder %s41, 0
      %p62 = por %p60, %p61
      %p63 = scmp.ne.s32.totalorder %s49, %s50
      %p64 = scmp.eq.s32.totalorder %s42, 1
      %p65 = por %p63, %p64
      %p67 = scmp.ne.s32.totalorder %s50, %s66
      %p68 = scmp.eq.s32.totalorder %s42, 0
      %p69 = por %p67, %p68
      %s71 = sadd.s32 %s70, 1
      %p74 = scmp.eq.s32.totalorder %s36, 1
      %p75 = scmp.ne.s32.totalorder %s70, %s72
      %p76 = scmp.eq.s32.totalorder %s36, 0
      %p77 = por %p75, %p76
      %p78 = scmp.ne.s32.totalorder %s70, %s72
      %p79 = scmp.eq.s32.totalorder %s41, 1
      %p80 = por %p78, %p79
      %p81 = scmp.ne.s32.totalorder %s72, %s73
      %p82 = scmp.eq.s32.totalorder %s41, 0
      %p83 = por %p81, %p82
      %p84 = scmp.ne.s32.totalorder %s72, %s73
      %p85 = scmp.eq.s32.totalorder %s42, 1
      %p86 = por %p84, %p85
      %p88 = scmp.ne.s32.totalorder %s73, %s87
      %p89 = scmp.eq.s32.totalorder %s42, 0
      %p90 = por %p88, %p89
      %s92 = sadd.s32 %s91, 1
      %p95 = scmp.eq.s32.totalorder %s36, 1
      %p96 = scmp.ne.s32.totalorder %s91, %s93
      %p97 = scmp.eq.s32.totalorder %s36, 0
      %p98 = por %p96, %p97
      %p99 = scmp.ne.s32.totalorder %s91, %s93
      %p100 = scmp.eq.s32.totalorder %s41, 1
      %p101 = por %p99, %p100
      %p102 = scmp.ne.s32.totalorder %s93, %s94
      %p103 = scmp.eq.s32.totalorder %s41, 0
      %p104 = por %p102, %p103
      %p105 = scmp.ne.s32.totalorder %s93, %s94
      %p106 = scmp.eq.s32.totalorder %s42, 1
      %p107 = por %p105, %p106
      %p109 = scmp.ne.s32.totalorder %s94, %s108
      %p110 = scmp.eq.s32.totalorder %s42, 0
      %p111 = por %p109, %p110
      %s113 = sadd.s32 %s112, 1
      %p116 = scmp.eq.s32.totalorder %s36, 1
      %p117 = scmp.ne.s32.totalorder %s112, %s114
      %p118 = scmp.eq.s32.totalorder %s36, 0
      %p119 = por %p117, %p118
      %p120 = scmp.ne.s32.totalorder %s112, %s114
      %p121 = scmp.eq.s32.totalorder %s41, 1
      %p122 = por %p120, %p121
      %p123 = scmp.ne.s32.totalorder %s114, %s115
      %p124 = scmp.eq.s32.totalorder %s41, 0
      %p125 = por %p123, %p124
      %p126 = scmp.ne.s32.totalorder %s114, %s115
      %p127 = scmp.eq.s32.totalorder %s42, 1
      %p128 = por %p126, %p127
      %p130 = scmp.ne.s32.totalorder %s115, %s129
      %p131 = scmp.eq.s32.totalorder %s42, 0
      %p132 = por %p130, %p131
      %s134 = sadd.s32 %s133, 1
      %p137 = scmp.eq.s32.totalorder %s36, 1
      %p138 = scmp.ne.s32.totalorder %s133, %s135
      %p139 = scmp.eq.s32.totalorder %s36, 0
      %p140 = por %p138, %p139
      %p141 = scmp.ne.s32.totalorder %s133, %s135
      %p142 = scmp.eq.s32.totalorder %s41, 1
      %p143 = por %p141, %p142
      %p144 = scmp.ne.s32.totalorder %s135, %s136
      %p145 = scmp.eq.s32.totalorder %s41, 0
      %p146 = por %p144, %p145
      %p147 = scmp.ne.s32.totalorder %s135, %s136
      %p148 = scmp.eq.s32.totalorder %s42, 1
      %p149 = por %p147, %p148
      %p151 = scmp.ne.s32.totalorder %s136, %s150
      %p152 = scmp.eq.s32.totalorder %s42, 0
      %p153 = por %p151, %p152
      %s155 = sadd.s32 %s154, 1
      %p158 = scmp.eq.s32.totalorder %s36, 1
      %p159 = scmp.ne.s32.totalorder %s154, %s156
      %p160 = scmp.eq.s32.totalorder %s36, 0
      %p161 = por %p159, %p160
      %p162 = scmp.ne.s32.totalorder %s154, %s156
      %p163 = scmp.eq.s32.totalorder %s41, 1
      %p164 = por %p162, %p163
      %p165 = scmp.ne.s32.totalorder %s156, %s157
      %p166 = scmp.eq.s32.totalorder %s41, 0
      %p167 = por %p165, %p166
      %p168 = scmp.ne.s32.totalorder %s156, %s157
      %p169 = scmp.eq.s32.totalorder %s42, 1
      %p170 = por %p168, %p169
      %p172 = scmp.ne.s32.totalorder %s157, %s171
      %p173 = scmp.eq.s32.totalorder %s42, 0
      %p174 = por %p172, %p173
      %s176 = sadd.s32 %s175, 1
      %p179 = scmp.eq.s32.totalorder %s36, 1
      %p180 = scmp.ne.s32.totalorder %s175, %s177
      %p181 = scmp.eq.s32.totalorder %s36, 0
      %p182 = por %p180, %p181
      %p183 = scmp.ne.s32.totalorder %s175, %s177
      %p184 = scmp.eq.s32.totalorder %s41, 1
      %p185 = por %p183, %p184
      %p186 = scmp.ne.s32.totalorder %s177, %s178
      %p187 = scmp.eq.s32.totalorder %s41, 0
      %p188 = por %p186, %p187
      %p189 = scmp.ne.s32.totalorder %s177, %s178
      %p190 = scmp.eq.s32.totalorder %s42, 1
      %p191 = por %p189, %p190
      %p193 = scmp.ne.s32.totalorder %s178, %s192
      %p194 = scmp.eq.s32.totalorder %s42, 0
      %p195 = por %p193, %p194
      %s197 = sadd.s32 %s196, 1
      %p200 = scmp.eq.s32.totalorder %s36, 1
      %p201 = scmp.ne.s32.totalorder %s196, %s198
      %p202 = scmp.eq.s32.totalorder %s36, 0
      %p203 = por %p201, %p202
      %p204 = scmp.ne.s32.totalorder %s196, %s198
      %p205 = scmp.eq.s32.totalorder %s41, 1
      %p206 = por %p204, %p205
      %p207 = scmp.ne.s32.totalorder %s198, %s199
      %p208 = scmp.eq.s32.totalorder %s41, 0
      %p209 = por %p207, %p208
      %p210 = scmp.ne.s32.totalorder %s198, %s199
      %p211 = scmp.eq.s32.totalorder %s42, 1
      %p212 = por %p210, %p211
      %p214 = scmp.ne.s32.totalorder %s199, %s213
      %p215 = scmp.eq.s32.totalorder %s42, 0
      %p216 = por %p214, %p215
      %s218 = sadd.s32 %s217, 1
      %p221 = scmp.eq.s32.totalorder %s36, 1
      %p222 = scmp.ne.s32.totalorder %s217, %s219
      %p223 = scmp.eq.s32.totalorder %s36, 0
      %p224 = por %p222, %p223
      %p225 = scmp.ne.s32.totalorder %s217, %s219
      %p226 = scmp.eq.s32.totalorder %s41, 1
      %p227 = por %p225, %p226
      %p228 = scmp.ne.s32.totalorder %s219, %s220
      %p229 = scmp.eq.s32.totalorder %s41, 0
      %p230 = por %p228, %p229
      %p231 = scmp.ne.s32.totalorder %s219, %s220
      %p232 = scmp.eq.s32.totalorder %s42, 1
      %p233 = por %p231, %p232
      %p235 = scmp.ne.s32.totalorder %s220, %s234
      %p236 = scmp.eq.s32.totalorder %s42, 0
      %p237 = por %p235, %p236
      %s239 = sadd.s32 %s238, 1
      %p242 = scmp.eq.s32.totalorder %s36, 1
      %p243 = scmp.ne.s32.totalorder %s238, %s240
      %p244 = scmp.eq.s32.totalorder %s36, 0
      %p245 = por %p243, %p244
      %p246 = scmp.ne.s32.totalorder %s238, %s240
      %p247 = scmp.eq.s32.totalorder %s41, 1
      %p248 = por %p246, %p247
      %p249 = scmp.ne.s32.totalorder %s240, %s241
      %p250 = scmp.eq.s32.totalorder %s41, 0
      %p251 = por %p249, %p250
      %p252 = scmp.ne.s32.totalorder %s240, %s241
      %p253 = scmp.eq.s32.totalorder %s42, 1
      %p254 = por %p252, %p253
      %p256 = scmp.ne.s32.totalorder %s241, %s255
      %p257 = scmp.eq.s32.totalorder %s42, 0
      %p258 = por %p256, %p257
      %s260 = sadd.s32 %s259, 1
      %p263 = scmp.eq.s32.totalorder %s36, 1
      %p264 = scmp.ne.s32.totalorder %s259, %s261
      %p265 = scmp.eq.s32.totalorder %s36, 0
      %p266 = por %p264, %p265
      %p267 = scmp.ne.s32.totalorder %s259, %s261
      %p268 = scmp.eq.s32.totalorder %s41, 1
      %p269 = por %p267, %p268
      %p270 = scmp.ne.s32.totalorder %s261, %s262
      %p271 = scmp.eq.s32.totalorder %s41, 0
      %p272 = por %p270, %p271
      %p273 = scmp.ne.s32.totalorder %s261, %s262
      %p274 = scmp.eq.s32.totalorder %s42, 1
      %p275 = por %p273, %p274
      %p277 = scmp.ne.s32.totalorder %s262, %s276
      %p278 = scmp.eq.s32.totalorder %s42, 0
      %p279 = por %p277, %p278
      %s281 = sadd.s32 %s280, 1
      %p284 = scmp.eq.s32.totalorder %s36, 1
      %p285 = scmp.ne.s32.totalorder %s280, %s282
      %p286 = scmp.eq.s32.totalorder %s36, 0
      %p287 = por %p285, %p286
      %p288 = scmp.ne.s32.totalorder %s280, %s282
      %p289 = scmp.eq.s32.totalorder %s41, 1
      %p290 = por %p288, %p289
      %p291 = scmp.ne.s32.totalorder %s282, %s283
      %p292 = scmp.eq.s32.totalorder %s41, 0
      %p293 = por %p291, %p292
      %p294 = scmp.ne.s32.totalorder %s282, %s283
      %p295 = scmp.eq.s32.totalorder %s42, 1
      %p296 = por %p294, %p295
      %p298 = scmp.ne.s32.totalorder %s283, %s297
      %p299 = scmp.eq.s32.totalorder %s42, 0
      %p300 = por %p298, %p299
      %s302 = sadd.s32 %s301, 1
      %p305 = scmp.eq.s32.totalorder %s36, 1
      %p306 = scmp.ne.s32.totalorder %s301, %s303
      %p307 = scmp.eq.s32.totalorder %s36, 0
      %p308 = por %p306, %p307
      %p309 = scmp.ne.s32.totalorder %s301, %s303
      %p310 = scmp.eq.s32.totalorder %s41, 1
      %p311 = por %p309, %p310
      %p312 = scmp.ne.s32.totalorder %s303, %s304
      %p313 = scmp.eq.s32.totalorder %s41, 0
      %p314 = por %p312, %p313
      %p315 = scmp.ne.s32.totalorder %s303, %s304
      %p316 = scmp.eq.s32.totalorder %s42, 1
      %p317 = por %p315, %p316
      %p319 = scmp.ne.s32.totalorder %s304, %s318
      %p320 = scmp.eq.s32.totalorder %s42, 0
      %p321 = por %p319, %p320
      %s322 = ssub.s32 %s36, %s43
      %p323 = scmp.eq.s32.totalorder %s322, 0
      %s325 = sadd.s32 %s324, 1
      %s326 = scalar_select %p323, %s324, %s325
      %p329 = pneg %p323
      %p330 = scmp.eq.s32.totalorder %s36, 1
      %p331 = por %p329, %p330
      %p332 = scmp.ne.s32.totalorder %s324, %s327
      %p333 = scmp.eq.s32.totalorder %s36, 0
      %p334 = por %p332, %p333
      %p335 = scmp.ne.s32.totalorder %s324, %s327
      %p336 = scmp.eq.s32.totalorder %s41, 1
      %p337 = por %p335, %p336
      %p338 = scmp.ne.s32.totalorder %s327, %s328
      %p339 = scmp.eq.s32.totalorder %s41, 0
      %p340 = por %p338, %p339
      %p341 = scmp.ne.s32.totalorder %s327, %s328
      %p342 = scmp.eq.s32.totalorder %s42, 1
      %p343 = por %p341, %p342
      %p345 = scmp.ne.s32.totalorder %s328, %s344
      %p346 = scmp.eq.s32.totalorder %s42, 0
      %p347 = por %p345, %p346
      %s348 = ssub.s32 %s36, %s43
      %p349 = scmp.eq.s32.totalorder %s348, 0
      %s351 = sadd.s32 %s350, 1
      %s352 = scalar_select %p349, %s350, %s351
      %p355 = pneg %p349
      %p356 = scmp.eq.s32.totalorder %s36, 1
      %p357 = por %p355, %p356
      %p358 = scmp.ne.s32.totalorder %s350, %s353
      %p359 = scmp.eq.s32.totalorder %s36, 0
      %p360 = por %p358, %p359
      %p361 = scmp.ne.s32.totalorder %s350, %s353
      %p362 = scmp.eq.s32.totalorder %s41, 1
      %p363 = por %p361, %p362
      %p364 = scmp.ne.s32.totalorder %s353, %s354
      %p365 = scmp.eq.s32.totalorder %s41, 0
      %p366 = por %p364, %p365
      %p367 = scmp.ne.s32.totalorder %s353, %s354
      %p368 = scmp.eq.s32.totalorder %s42, 1
      %p369 = por %p367, %p368
      %p371 = scmp.ne.s32.totalorder %s354, %s370
      %p372 = scmp.eq.s32.totalorder %s42, 0
      %p373 = por %p371, %p372
      %p374 = scmp.le.s32.totalorder 1, %s36
      %p375 = scmp.lt.s32.totalorder %s36, 3
      %p376 = pnand %p374, %p375
      %p377 = pneg %p376
      // Predicated region
      $region9: #{fwd.1} parent=5 // pred_check
        _
      $region10: #{fwd.1} parent=5 // pred_check_branch
        %379 = sbr.rel (%p376) target = $region12
      $region11: #{fwd.1} parent=5 // pred_region
        %s380 = ssub.s32 %s36, 1
        // Predicated region
        $region13: #{fwd.1} parent=11 // pred_check
          %p381 = pneg %p83
        $region14: #{fwd.1} parent=11 // pred_check_branch
          %383 = sbr.rel (%p381) target = $region16
        $region15: #{fwd.1} parent=11 // pred_region
          %s385 = ssub.s32 16384, 16384
          %386 = vsyncadd [#allocation9], %s385
          %s387 = sshll.u32 [#allocation8], 4
          %s388 = int_to_ptr.vmem [resolvable:$true] %s387
          %393 = dma.hbm_to_vmem [thread:$0]  %s1, 16384, %s388, [#allocation9], 128, 128, 8
        $region16: #{fwd.1} parent=11 // pred_fallthru
          _
        // Predicated region
        $region17: #{fwd.1} parent=11 // pred_check
          %p394 = pneg %p104
        $region18: #{fwd.1} parent=11 // pred_check_branch
          %396 = sbr.rel (%p394) target = $region20
        $region19: #{fwd.1} parent=11 // pred_region
          %s398 = ssub.s32 32, 32
          %399 = vsyncadd [#allocation9], %s398
          %s401 = sshll.u32 [#allocation10], 4
          %s402 = int_to_ptr.vmem [resolvable:$true] %s401
          %404 = dma.hbm_to_vmem [thread:$0]  %s2, 32, %s402, [#allocation9]
        $region20: #{fwd.1} parent=11 // pred_fallthru
          _
        // Predicated region
        $region21: #{fwd.1} parent=11 // pred_check
          %p405 = pneg %p125
        $region22: #{fwd.1} parent=11 // pred_check_branch
          %407 = sbr.rel (%p405) target = $region24
        $region23: #{fwd.1} parent=11 // pred_region
          %s409 = ssub.s32 36864, 36864
          %410 = vsyncadd [#allocation12], %s409
          %s411 = sshll.u32 [#allocation11], 4
          %s412 = int_to_ptr.vmem [resolvable:$true] %s411
          %417 = dma.hbm_to_vmem [thread:$0]  %s3, 36864, %s412, [#allocation12], 128, 128, 8
        $region24: #{fwd.1} parent=11 // pred_fallthru
          _
        // Predicated region
        $region25: #{fwd.1} parent=11 // pred_check
          %p418 = pneg %p146
        $region26: #{fwd.1} parent=11 // pred_check_branch
          %420 = sbr.rel (%p418) target = $region28
        $region27: #{fwd.1} parent=11 // pred_region
          %s422 = ssub.s32 32, 32
          %423 = vsyncadd [#allocation12], %s422
          %s425 = sshll.u32 [#allocation13], 4
          %s426 = int_to_ptr.vmem [resolvable:$true] %s425
          %428 = dma.hbm_to_vmem [thread:$0]  %s4, 32, %s426, [#allocation12]
        $region28: #{fwd.1} parent=11 // pred_fallthru
          _
        // Predicated region
        $region29: #{fwd.1} parent=11 // pred_check
          %p429 = pneg %p167
        $region30: #{fwd.1} parent=11 // pred_check_branch
          %431 = sbr.rel (%p429) target = $region32
        $region31: #{fwd.1} parent=11 // pred_region
          %s433 = ssub.s32 18432, 18432
          %434 = vsyncadd [#allocation15], %s433
          %s435 = sshll.u32 [#allocation14], 4
          %s436 = int_to_ptr.vmem [resolvable:$true] %s435
          %441 = dma.hbm_to_vmem [thread:$0]  %s5, 18432, %s436, [#allocation15], 64, 64, 4
        $region32: #{fwd.1} parent=11 // pred_fallthru
          _
        // Predicated region
        $region33: #{fwd.1} parent=11 // pred_check
          %p442 = pneg %p188
        $region34: #{fwd.1} parent=11 // pred_check_branch
          %444 = sbr.rel (%p442) target = $region36
        $region35: #{fwd.1} parent=11 // pred_region
          %s446 = ssub.s32 16, 16
          %447 = vsyncadd [#allocation15], %s446
          %s449 = sshll.u32 [#allocation16], 4
          %s450 = int_to_ptr.vmem [resolvable:$true] %s449
          %452 = dma.hbm_to_vmem [thread:$0]  %s6, 16, %s450, [#allocation15]
        $region36: #{fwd.1} parent=11 // pred_fallthru
          _
        // Predicated region
        $region37: #{fwd.1} parent=11 // pred_check
          %p453 = pneg %p209
        $region38: #{fwd.1} parent=11 // pred_check_branch
          %455 = sbr.rel (%p453) target = $region40
        $region39: #{fwd.1} parent=11 // pred_region
          %s457 = ssub.s32 4608, 4608
          %458 = vsyncadd [#allocation18], %s457
          %s459 = sshll.u32 [#allocation17], 4
          %s460 = int_to_ptr.vmem [resolvable:$true] %s459
          %465 = dma.hbm_to_vmem [thread:$0]  %s7, 4608, %s460, [#allocation18], 64, 64, 4
        $region40: #{fwd.1} parent=11 // pred_fallthru
          _
        // Predicated region
        $region41: #{fwd.1} parent=11 // pred_check
          %p466 = pneg %p230
        $region42: #{fwd.1} parent=11 // pred_check_branch
          %468 = sbr.rel (%p466) target = $region44
        $region43: #{fwd.1} parent=11 // pred_region
          %s470 = ssub.s32 16, 16
          %471 = vsyncadd [#allocation18], %s470
          %s473 = sshll.u32 [#allocation19], 4
          %s474 = int_to_ptr.vmem [resolvable:$true] %s473
          %476 = dma.hbm_to_vmem [thread:$0]  %s8, 16, %s474, [#allocation18]
        $region44: #{fwd.1} parent=11 // pred_fallthru
          _
        // Predicated region
        $region45: #{fwd.1} parent=11 // pred_check
          %p477 = pneg %p251
        $region46: #{fwd.1} parent=11 // pred_check_branch
          %479 = sbr.rel (%p477) target = $region48
        $region47: #{fwd.1} parent=11 // pred_region
          %s481 = ssub.s32 2048, 2048
          %482 = vsyncadd [#allocation21], %s481
          %s483 = sshll.u32 [#allocation20], 4
          %s484 = int_to_ptr.vmem [resolvable:$true] %s483
          %489 = dma.hbm_to_vmem [thread:$0]  %s9, 2048, %s484, [#allocation21], 128, 128, 8
        $region48: #{fwd.1} parent=11 // pred_fallthru
          _
        // Predicated region
        $region49: #{fwd.1} parent=11 // pred_check
          %p490 = pneg %p272
        $region50: #{fwd.1} parent=11 // pred_check_branch
          %492 = sbr.rel (%p490) target = $region52
        $region51: #{fwd.1} parent=11 // pred_region
          %s494 = ssub.s32 16, 16
          %495 = vsyncadd [#allocation21], %s494
          %s497 = sshll.u32 [#allocation22], 4
          %s498 = int_to_ptr.vmem [resolvable:$true] %s497
          %500 = dma.hbm_to_vmem [thread:$0]  %s10, 16, %s498, [#allocation21]
        $region52: #{fwd.1} parent=11 // pred_fallthru
          _
        // Predicated region
        $region53: #{fwd.1} parent=11 // pred_check
          %p501 = pneg %p293
        $region54: #{fwd.1} parent=11 // pred_check_branch
          %503 = sbr.rel (%p501) target = $region56
        $region55: #{fwd.1} parent=11 // pred_region
          %s505 = ssub.s32 64, 64
          %506 = vsyncadd [#allocation24], %s505
          %s508 = sshll.u32 [#allocation23], 4
          %s509 = int_to_ptr.vmem [resolvable:$true] %s508
          %511 = dma.hbm_to_vmem [thread:$0]  %s11, 64, %s509, [#allocation24]
        $region56: #{fwd.1} parent=11 // pred_fallthru
          _
        // Predicated region
        $region57: #{fwd.1} parent=11 // pred_check
          %p512 = pneg %p314
        $region58: #{fwd.1} parent=11 // pred_check_branch
          %514 = sbr.rel (%p512) target = $region60
        $region59: #{fwd.1} parent=11 // pred_region
          %s516 = ssub.s32 16, 16
          %517 = vsyncadd [#allocation24], %s516
          %s519 = sshll.u32 [#allocation25], 4
          %s520 = int_to_ptr.vmem [resolvable:$true] %s519
          %522 = dma.hbm_to_vmem [thread:$0]  %s12, 16, %s520, [#allocation24]
        $region60: #{fwd.1} parent=11 // pred_fallthru
          _
      $region12: #{fwd.1} parent=5 // pred_fallthru
        _
      %p523 = scmp.lt.s32.totalorder %s36, 2
      // Predicated region
      $region61: #{fwd.1} parent=5 // pred_check
        %p524 = pneg %p523
      $region62: #{fwd.1} parent=5 // pred_check_branch
        %526 = sbr.rel (%p524) target = $region64
      $region63: #{fwd.1} parent=5 // pred_region
        // Predicated region
        $region65: #{fwd.1} parent=63 // pred_check
          %p527 = pneg %p56
        $region66: #{fwd.1} parent=63 // pred_check_branch
          %529 = sbr.rel (%p527) target = $region68
        $region67: #{fwd.1} parent=63 // pred_region
          %s530 = sand.u32 %s46, 1
          %s531 = scalar_lea.sflag [#allocation6], %s530
          %s532 = sand.u32 %s46, 1
          %s533 = smul.addr %s532, 224
          %s534 = scalar_lea.vmem [#allocation5], %s533
          %s536 = ssub.s32 3584, 3584
          %537 = vsyncadd %s531, %s536
          %s538 = smul.addr %s36, 56
          %s539 = smul.addr %s538, 64
          %s540 = scalar_lea.hbm %s0, %s539
          %s541 = sshll.u32 %s534, 4
          %s542 = int_to_ptr.vmem [resolvable:$true] %s541
          %547 = dma.hbm_to_vmem [thread:$0]  %s540, 3584, %s542, %s531, 512, 512, 32
        $region68: #{fwd.1} parent=63 // pred_fallthru
          _
      $region64: #{fwd.1} parent=5 // pred_fallthru
        _
      %p548 = scmp.le.s32.totalorder 1, %s36
      %p549 = scmp.lt.s32.totalorder %s36, 3
      %p550 = pnand %p548, %p549
      %p551 = pneg %p550
      // Predicated region
      $region69: #{fwd.1} parent=5 // pred_check
        _
      $region70: #{fwd.1} parent=5 // pred_check_branch
        %553 = sbr.rel (%p550) target = $region72
      $region71: #{fwd.1} parent=5 // pred_region
        %s554 = ssub.s32 %s36, 1
        %s555 = sand.u32 %s49, 1
        %s556 = scalar_lea.sflag [#allocation6], %s555
        %s557 = sand.u32 %s49, 1
        %s558 = smul.addr %s557, 224
        %s559 = scalar_lea.vmem [#allocation5], %s558
        // Predicated region
        $region73: #{fwd.1} parent=71 // pred_check
          %p560 = pneg %p62
        $region74: #{fwd.1} parent=71 // pred_check_branch
          %562 = sbr.rel (%p560) target = $region76
        $region75: #{fwd.1} parent=71 // pred_region
          %563 = dma.done %s556, 3584
        $region76: #{fwd.1} parent=71 // pred_fallthru
          _
        // Predicated region
        $region77: #{fwd.1} parent=71 // pred_check
          %p564 = pneg %p83
        $region78: #{fwd.1} parent=71 // pred_check_branch
          %566 = sbr.rel (%p564) target = $region80
        $region79: #{fwd.1} parent=71 // pred_region
          %567 = dma.done [#allocation9], 16384
        $region80: #{fwd.1} parent=71 // pred_fallthru
          _
        // Predicated region
        $region81: #{fwd.1} parent=71 // pred_check
          %p568 = pneg %p104
        $region82: #{fwd.1} parent=71 // pred_check_branch
          %570 = sbr.rel (%p568) target = $region84
        $region83: #{fwd.1} parent=71 // pred_region
          %571 = dma.done [#allocation9], 32
        $region84: #{fwd.1} parent=71 // pred_fallthru
          _
        // Predicated region
        $region85: #{fwd.1} parent=71 // pred_check
          %p572 = pneg %p125
        $region86: #{fwd.1} parent=71 // pred_check_branch
          %574 = sbr.rel (%p572) target = $region88
        $region87: #{fwd.1} parent=71 // pred_region
          %575 = dma.done [#allocation12], 36864
        $region88: #{fwd.1} parent=71 // pred_fallthru
          _
        // Predicated region
        $region89: #{fwd.1} parent=71 // pred_check
          %p576 = pneg %p146
        $region90: #{fwd.1} parent=71 // pred_check_branch
          %578 = sbr.rel (%p576) target = $region92
        $region91: #{fwd.1} parent=71 // pred_region
          %579 = dma.done [#allocation12], 32
        $region92: #{fwd.1} parent=71 // pred_fallthru
          _
        // Predicated region
        $region93: #{fwd.1} parent=71 // pred_check
          %p580 = pneg %p167
        $region94: #{fwd.1} parent=71 // pred_check_branch
          %582 = sbr.rel (%p580) target = $region96
        $region95: #{fwd.1} parent=71 // pred_region
          %583 = dma.done [#allocation15], 18432
        $region96: #{fwd.1} parent=71 // pred_fallthru
          _
        // Predicated region
        $region97: #{fwd.1} parent=71 // pred_check
          %p584 = pneg %p188
        $region98: #{fwd.1} parent=71 // pred_check_branch
          %586 = sbr.rel (%p584) target = $region100
        $region99: #{fwd.1} parent=71 // pred_region
          %587 = dma.done [#allocation15], 16
        $region100: #{fwd.1} parent=71 // pred_fallthru
          _
        // Predicated region
        $region101: #{fwd.1} parent=71 // pred_check
          %p588 = pneg %p209
        $region102: #{fwd.1} parent=71 // pred_check_branch
          %590 = sbr.rel (%p588) target = $region104
        $region103: #{fwd.1} parent=71 // pred_region
          %591 = dma.done [#allocation18], 4608
        $region104: #{fwd.1} parent=71 // pred_fallthru
          _
        // Predicated region
        $region105: #{fwd.1} parent=71 // pred_check
          %p592 = pneg %p230
        $region106: #{fwd.1} parent=71 // pred_check_branch
          %594 = sbr.rel (%p592) target = $region108
        $region107: #{fwd.1} parent=71 // pred_region
          %595 = dma.done [#allocation18], 16
        $region108: #{fwd.1} parent=71 // pred_fallthru
          _
        // Predicated region
        $region109: #{fwd.1} parent=71 // pred_check
          %p596 = pneg %p251
        $region110: #{fwd.1} parent=71 // pred_check_branch
          %598 = sbr.rel (%p596) target = $region112
        $region111: #{fwd.1} parent=71 // pred_region
          %599 = dma.done [#allocation21], 2048
        $region112: #{fwd.1} parent=71 // pred_fallthru
          _
        // Predicated region
        $region113: #{fwd.1} parent=71 // pred_check
          %p600 = pneg %p272
        $region114: #{fwd.1} parent=71 // pred_check_branch
          %602 = sbr.rel (%p600) target = $region116
        $region115: #{fwd.1} parent=71 // pred_region
          %603 = dma.done [#allocation21], 16
        $region116: #{fwd.1} parent=71 // pred_fallthru
          _
        // Predicated region
        $region117: #{fwd.1} parent=71 // pred_check
          %p604 = pneg %p293
        $region118: #{fwd.1} parent=71 // pred_check_branch
          %606 = sbr.rel (%p604) target = $region120
        $region119: #{fwd.1} parent=71 // pred_region
          %607 = dma.done [#allocation24], 64
        $region120: #{fwd.1} parent=71 // pred_fallthru
          _
        // Predicated region
        $region121: #{fwd.1} parent=71 // pred_check
          %p608 = pneg %p314
        $region122: #{fwd.1} parent=71 // pred_check_branch
          %610 = sbr.rel (%p608) target = $region124
        $region123: #{fwd.1} parent=71 // pred_region
          %611 = dma.done [#allocation24], 16
        $region124: #{fwd.1} parent=71 // pred_fallthru
          _
        %s612 = sand.u32 %s49, 1
        %s613 = scalar_lea.sflag [#allocation6], %s612
        %s614 = sand.u32 %s49, 1
        %s615 = smul.addr %s614, 224
        %s616 = scalar_lea.vmem [#allocation5], %s615
        %p617 = pneg %p62
        %p618 = pneg %p59
        %p619 = pneg %p83
        %p620 = pneg %p80
        %p621 = pneg %p104
        %p622 = pneg %p101
        %p623 = pneg %p125
        %p624 = pneg %p122
        %p625 = pneg %p146
        %p626 = pneg %p143
        %p627 = pneg %p167
        %p628 = pneg %p164
        %p629 = pneg %p188
        %p630 = pneg %p185
        %p631 = pneg %p209
        %p632 = pneg %p206
        %p633 = pneg %p230
        %p634 = pneg %p227
        %p635 = pneg %p251
        %p636 = pneg %p248
        %p637 = pneg %p272
        %p638 = pneg %p269
        %p639 = pneg %p293
        %p640 = pneg %p290
        %p641 = pneg %p314
        %p642 = pneg %p311
        %p643 = pneg %p340
        %p644 = pneg %p337
        %s645 = sand.u32 %s327, 1
        %s646 = scalar_lea.sflag [#allocation7], %s645
        %s647 = sand.u32 %s327, 1
        %s648 = scalar_lea.vmem [#allocation26], %s647
        %p649 = pneg %p366
        %p650 = pneg %p363
        %s651 = sand.u32 %s353, 1
        %s652 = scalar_lea.sflag [#allocation28], %s651
        %s653 = sand.u32 %s353, 1
        %s654 = scalar_lea.vmem [#allocation27], %s653
        %v656 = vld [vmem:[%s559] sm:$0xff]
        %v657 = vld [vmem:[%s559 + $0x8] sm:$0xff]
        %v658 = vld [vmem:[%s559 + $0x10] sm:$0xff]
        %v659 = vld [vmem:[%s559 + $0x18] sm:$0xff]
        %v660 = vld [vmem:[%s559 + $0x20] sm:$0xff]
        %v661 = vld [vmem:[%s559 + $0x28] sm:$0xff]
        %v662 = vld [vmem:[%s559 + $0x30] sm:$0xff]
        %v663 = vld [vmem:[%s559 + $0x38] sm:$0xff]
        %v664 = vld [vmem:[%s559 + $0x40] sm:$0xff]
        %v665 = vld [vmem:[%s559 + $0x48] sm:$0xff]
        %v666 = vld [vmem:[%s559 + $0x50] sm:$0xff]
        %v667 = vld [vmem:[%s559 + $0x58] sm:$0xff]
        %v668 = vld [vmem:[%s559 + $0x60] sm:$0xff]
        %v669 = vld [vmem:[%s559 + $0x68] sm:$0xff]
        %v670 = vld [vmem:[%s559 + $0x70] sm:$0xff]
        %v671 = vld [vmem:[%s559 + $0x78] sm:$0xff]
        %v672 = vld [vmem:[%s559 + $0x80] sm:$0xff]
        %v673 = vld [vmem:[%s559 + $0x88] sm:$0xff]
        %v674 = vld [vmem:[%s559 + $0x90] sm:$0xff]
        %v675 = vld [vmem:[%s559 + $0x98] sm:$0xff]
        %v676 = vld [vmem:[%s559 + $0xa0] sm:$0xff]
        %v677 = vld [vmem:[%s559 + $0xa8] sm:$0xff]
        %v678 = vld [vmem:[%s559 + $0xb0] sm:$0xff]
        %v679 = vld [vmem:[%s559 + $0xb8] sm:$0xff]
        %v680 = vld [vmem:[%s559 + $0xc0] sm:$0x11]
        %v681 = vld [vmem:[%s559 + $0xc8] sm:$0x11]
        %v682 = vld [vmem:[%s559 + $0xd0] sm:$0x11]
        %v683 = vld [vmem:[%s559 + $0xd8] sm:$0x11]
        %v684 = vld [vmem:[#allocation8] sm:$0xff]
        %v685 = vld [vmem:[#allocation8 + $0x8] sm:$0xff]
        %v686 = vld [vmem:[#allocation8 + $0x10] sm:$0xff]
        %v687 = vld [vmem:[#allocation8 + $0x18] sm:$0xff]
        %v688 = vld [vmem:[#allocation8 + $0x20] sm:$0xff]
        %v689 = vld [vmem:[#allocation8 + $0x28] sm:$0xff]
        %v690 = vld [vmem:[#allocation8 + $0x30] sm:$0xff]
        %v691 = vld [vmem:[#allocation8 + $0x38] sm:$0xff]
        %v692 = vld [vmem:[#allocation8 + $0x40] sm:$0xff]
        %v693 = vld [vmem:[#allocation8 + $0x48] sm:$0xff]
        %v694 = vld [vmem:[#allocation8 + $0x50] sm:$0xff]
        %v695 = vld [vmem:[#allocation8 + $0x58] sm:$0xff]
        %v696 = vld [vmem:[#allocation8 + $0x60] sm:$0xff]
        %v697 = vld [vmem:[#allocation8 + $0x68] sm:$0xff]
        %v698 = vld [vmem:[#allocation8 + $0x70] sm:$0xff]
        %v699 = vld [vmem:[#allocation8 + $0x78] sm:$0xff]
        %v700 = vld [vmem:[#allocation8 + $0x80] sm:$0xff]
        %v701 = vld [vmem:[#allocation8 + $0x88] sm:$0xff]
        %v702 = vld [vmem:[#allocation8 + $0x90] sm:$0xff]
        %v703 = vld [vmem:[#allocation8 + $0x98] sm:$0xff]
        %v704 = vld [vmem:[#allocation8 + $0xa0] sm:$0xff]
        %v705 = vld [vmem:[#allocation8 + $0xa8] sm:$0xff]
        %v706 = vld [vmem:[#allocation8 + $0xb0] sm:$0xff]
        %v707 = vld [vmem:[#allocation8 + $0xb8] sm:$0xff]
        %v708 = vld [vmem:[#allocation8 + $0xc0] sm:$0xff]
        %v709 = vld [vmem:[#allocation8 + $0xc8] sm:$0xff]
        %v710 = vld [vmem:[#allocation8 + $0xd0] sm:$0xff]
        %v711 = vld [vmem:[#allocation8 + $0xd8] sm:$0xff]
        %v712 = vld [vmem:[#allocation8 + $0xe0] sm:$0xff]
        %v713 = vld [vmem:[#allocation8 + $0xe8] sm:$0xff]
        %v714 = vld [vmem:[#allocation8 + $0xf0] sm:$0xff]
        %v715 = vld [vmem:[#allocation8 + $0xf8] sm:$0xff]
        %v716 = vld [vmem:[#allocation8 + $0x100] sm:$0xff]
        %v717 = vld [vmem:[#allocation8 + $0x108] sm:$0xff]
        %v718 = vld [vmem:[#allocation8 + $0x110] sm:$0xff]
        %v719 = vld [vmem:[#allocation8 + $0x118] sm:$0xff]
        %v720 = vld [vmem:[#allocation8 + $0x120] sm:$0xff]
        %v721 = vld [vmem:[#allocation8 + $0x128] sm:$0xff]
        %v722 = vld [vmem:[#allocation8 + $0x130] sm:$0xff]
        %v723 = vld [vmem:[#allocation8 + $0x138] sm:$0xff]
        %v724 = vld [vmem:[#allocation8 + $0x140] sm:$0xff]
        %v725 = vld [vmem:[#allocation8 + $0x148] sm:$0xff]
        %v726 = vld [vmem:[#allocation8 + $0x150] sm:$0xff]
        %v727 = vld [vmem:[#allocation8 + $0x158] sm:$0xff]
        %v728 = vld [vmem:[#allocation8 + $0x160] sm:$0xff]
        %v729 = vld [vmem:[#allocation8 + $0x168] sm:$0xff]
        %v730 = vld [vmem:[#allocation8 + $0x170] sm:$0xff]
        %v731 = vld [vmem:[#allocation8 + $0x178] sm:$0xff]
        %v732 = vld [vmem:[#allocation8 + $0x180] sm:$0xff]
        %v733 = vld [vmem:[#allocation8 + $0x188] sm:$0xff]
        %v734 = vld [vmem:[#allocation8 + $0x190] sm:$0xff]
        %v735 = vld [vmem:[#allocation8 + $0x198] sm:$0xff]
        %v736 = vld [vmem:[#allocation8 + $0x1a0] sm:$0xff]
        %v737 = vld [vmem:[#allocation8 + $0x1a8] sm:$0xff]
        %v738 = vld [vmem:[#allocation8 + $0x1b0] sm:$0xff]
        %v739 = vld [vmem:[#allocation8 + $0x1b8] sm:$0xff]
        %v740 = vld [vmem:[#allocation8 + $0x1c0] sm:$0xff]
        %v741 = vld [vmem:[#allocation8 + $0x1c8] sm:$0xff]
        %v742 = vld [vmem:[#allocation8 + $0x1d0] sm:$0xff]
        %v743 = vld [vmem:[#allocation8 + $0x1d8] sm:$0xff]
        %v744 = vld [vmem:[#allocation8 + $0x1e0] sm:$0xff]
        %v745 = vld [vmem:[#allocation8 + $0x1e8] sm:$0xff]
        %v746 = vld [vmem:[#allocation8 + $0x1f0] sm:$0xff]
        %v747 = vld [vmem:[#allocation8 + $0x1f8] sm:$0xff]
        %v748 = vld [vmem:[#allocation8 + $0x200] sm:$0xff]
        %v749 = vld [vmem:[#allocation8 + $0x208] sm:$0xff]
        %v750 = vld [vmem:[#allocation8 + $0x210] sm:$0xff]
        %v751 = vld [vmem:[#allocation8 + $0x218] sm:$0xff]
        %v752 = vld [vmem:[#allocation8 + $0x220] sm:$0xff]
        %v753 = vld [vmem:[#allocation8 + $0x228] sm:$0xff]
        %v754 = vld [vmem:[#allocation8 + $0x230] sm:$0xff]
        %v755 = vld [vmem:[#allocation8 + $0x238] sm:$0xff]
        %v756 = vld [vmem:[#allocation8 + $0x240] sm:$0xff]
        %v757 = vld [vmem:[#allocation8 + $0x248] sm:$0xff]
        %v758 = vld [vmem:[#allocation8 + $0x250] sm:$0xff]
        %v759 = vld [vmem:[#allocation8 + $0x258] sm:$0xff]
        %v760 = vld [vmem:[#allocation8 + $0x260] sm:$0xff]
        %v761 = vld [vmem:[#allocation8 + $0x268] sm:$0xff]
        %v762 = vld [vmem:[#allocation8 + $0x270] sm:$0xff]
        %v763 = vld [vmem:[#allocation8 + $0x278] sm:$0xff]
        %v764 = vld [vmem:[#allocation8 + $0x280] sm:$0xff]
        %v765 = vld [vmem:[#allocation8 + $0x288] sm:$0xff]
        %v766 = vld [vmem:[#allocation8 + $0x290] sm:$0xff]
        %v767 = vld [vmem:[#allocation8 + $0x298] sm:$0xff]
        %v768 = vld [vmem:[#allocation8 + $0x2a0] sm:$0xff]
        %v769 = vld [vmem:[#allocation8 + $0x2a8] sm:$0xff]
        %v770 = vld [vmem:[#allocation8 + $0x2b0] sm:$0xff]
        %v771 = vld [vmem:[#allocation8 + $0x2b8] sm:$0xff]
        %v772 = vld [vmem:[#allocation8 + $0x2c0] sm:$0xff]
        %v773 = vld [vmem:[#allocation8 + $0x2c8] sm:$0xff]
        %v774 = vld [vmem:[#allocation8 + $0x2d0] sm:$0xff]
        %v775 = vld [vmem:[#allocation8 + $0x2d8] sm:$0xff]
        %v776 = vld [vmem:[#allocation8 + $0x2e0] sm:$0xff]
        %v777 = vld [vmem:[#allocation8 + $0x2e8] sm:$0xff]
        %v778 = vld [vmem:[#allocation8 + $0x2f0] sm:$0xff]
        %v779 = vld [vmem:[#allocation8 + $0x2f8] sm:$0xff]
        %v780 = vld [vmem:[#allocation8 + $0x300] sm:$0xff]
        %v781 = vld [vmem:[#allocation8 + $0x308] sm:$0xff]
        %v782 = vld [vmem:[#allocation8 + $0x310] sm:$0xff]
        %v783 = vld [vmem:[#allocation8 + $0x318] sm:$0xff]
        %v784 = vld [vmem:[#allocation8 + $0x320] sm:$0xff]
        %v785 = vld [vmem:[#allocation8 + $0x328] sm:$0xff]
        %v786 = vld [vmem:[#allocation8 + $0x330] sm:$0xff]
        %v787 = vld [vmem:[#allocation8 + $0x338] sm:$0xff]
        %v788 = vld [vmem:[#allocation8 + $0x340] sm:$0xff]
        %v789 = vld [vmem:[#allocation8 + $0x348] sm:$0xff]
        %v790 = vld [vmem:[#allocation8 + $0x350] sm:$0xff]
        %v791 = vld [vmem:[#allocation8 + $0x358] sm:$0xff]
        %v792 = vld [vmem:[#allocation8 + $0x360] sm:$0xff]
        %v793 = vld [vmem:[#allocation8 + $0x368] sm:$0xff]
        %v794 = vld [vmem:[#allocation8 + $0x370] sm:$0xff]
        %v795 = vld [vmem:[#allocation8 + $0x378] sm:$0xff]
        %v796 = vld [vmem:[#allocation8 + $0x380] sm:$0xff]
        %v797 = vld [vmem:[#allocation8 + $0x388] sm:$0xff]
        %v798 = vld [vmem:[#allocation8 + $0x390] sm:$0xff]
        %v799 = vld [vmem:[#allocation8 + $0x398] sm:$0xff]
        %v800 = vld [vmem:[#allocation8 + $0x3a0] sm:$0xff]
        %v801 = vld [vmem:[#allocation8 + $0x3a8] sm:$0xff]
        %v802 = vld [vmem:[#allocation8 + $0x3b0] sm:$0xff]
        %v803 = vld [vmem:[#allocation8 + $0x3b8] sm:$0xff]
        %v804 = vld [vmem:[#allocation8 + $0x3c0] sm:$0xff]
        %v805 = vld [vmem:[#allocation8 + $0x3c8] sm:$0xff]
        %v806 = vld [vmem:[#allocation8 + $0x3d0] sm:$0xff]
        %v807 = vld [vmem:[#allocation8 + $0x3d8] sm:$0xff]
        %v808 = vld [vmem:[#allocation8 + $0x3e0] sm:$0xff]
        %v809 = vld [vmem:[#allocation8 + $0x3e8] sm:$0xff]
        %v810 = vld [vmem:[#allocation8 + $0x3f0] sm:$0xff]
        %v811 = vld [vmem:[#allocation8 + $0x3f8] sm:$0xff]
        %v812 = vld [vmem:[#allocation10] sm:$0x3]
        %v814 = vlaneseq
        %v815 = vshrl.u32 %v814, 7
        %v816 = vsub.s32 0, %v815
        %v817 = vrot.slane %v812, %v816
        %v818 = vlaneseq
        %v819 = vshrl.u32 %v818, 7
        %v820 = vsub.s32 1, %v819
        %v821 = vrot.slane %v812, %v820
        %v852 = vunpack.c.l.b16 %v656
        %v853 = vunpack.c.h.b16 %v656
        %v854 = vunpack.c.l.b16 %v657
        %v855 = vunpack.c.h.b16 %v657
        %v856 = vunpack.c.l.b16 %v658
        %v857 = vunpack.c.h.b16 %v658
        %v858 = vunpack.c.l.b16 %v659
        %v859 = vunpack.c.h.b16 %v659
        %v860 = vunpack.c.l.b16 %v660
        %v861 = vunpack.c.h.b16 %v660
        %v862 = vunpack.c.l.b16 %v661
        %v863 = vunpack.c.h.b16 %v661
        %v864 = vunpack.c.l.b16 %v662
        %v865 = vunpack.c.h.b16 %v662
        %v866 = vunpack.c.l.b16 %v663
        %v867 = vunpack.c.h.b16 %v663
        %v868 = vunpack.c.l.b16 %v664
        %v869 = vunpack.c.h.b16 %v664
        %v870 = vunpack.c.l.b16 %v665
        %v871 = vunpack.c.h.b16 %v665
        %v872 = vunpack.c.l.b16 %v666
        %v873 = vunpack.c.h.b16 %v666
        %v874 = vunpack.c.l.b16 %v667
        %v875 = vunpack.c.h.b16 %v667
        %v876 = vunpack.c.l.b16 %v668
        %v877 = vunpack.c.h.b16 %v668
        %v878 = vunpack.c.l.b16 %v669
        %v879 = vunpack.c.h.b16 %v669
        %v880 = vunpack.c.l.b16 %v670
        %v881 = vunpack.c.h.b16 %v670
        %v882 = vunpack.c.l.b16 %v671
        %v883 = vunpack.c.h.b16 %v671
        %v884 = vunpack.c.l.b16 %v672
        %v885 = vunpack.c.h.b16 %v672
        %v886 = vunpack.c.l.b16 %v673
        %v887 = vunpack.c.h.b16 %v673
        %v888 = vunpack.c.l.b16 %v674
        %v889 = vunpack.c.h.b16 %v674
        %v890 = vunpack.c.l.b16 %v675
        %v891 = vunpack.c.h.b16 %v675
        %v892 = vunpack.c.l.b16 %v676
        %v893 = vunpack.c.h.b16 %v676
        %v894 = vunpack.c.l.b16 %v677
        %v895 = vunpack.c.h.b16 %v677
        %v896 = vunpack.c.l.b16 %v678
        %v897 = vunpack.c.h.b16 %v678
        %v898 = vunpack.c.l.b16 %v679
        %v899 = vunpack.c.h.b16 %v679
        %v900 = vunpack.c.l.b16 %v680
        %v901 = vunpack.c.h.b16 %v680
        %v902 = vunpack.c.l.b16 %v681
        %v903 = vunpack.c.h.b16 %v681
        %v904 = vunpack.c.l.b16 %v682
        %v905 = vunpack.c.h.b16 %v682
        %v906 = vunpack.c.l.b16 %v683
        %v907 = vunpack.c.h.b16 %v683
        %v908 = vpack.c.b16 %v860, %v852
        %v909 = vpack.c.b16 %v861, %v853
        %v910 = vpack.c.b16 %v862, %v854
        %v911 = vpack.c.b16 %v863, %v855
        %v912 = vpack.c.b16 %v864, %v856
        %v913 = vpack.c.b16 %v865, %v857
        %v914 = vpack.c.b16 %v866, %v858
        %v915 = vpack.c.b16 %v867, %v859
        %v916 = vpack.c.b16 %v876, %v868
        %v917 = vpack.c.b16 %v877, %v869
        %v918 = vpack.c.b16 %v878, %v870
        %v919 = vpack.c.b16 %v879, %v871
        %v920 = vpack.c.b16 %v880, %v872
        %v921 = vpack.c.b16 %v881, %v873
        %v922 = vpack.c.b16 %v882, %v874
        %v923 = vpack.c.b16 %v883, %v875
        %v924 = vpack.c.b16 %v892, %v884
        %v925 = vpack.c.b16 %v893, %v885
        %v926 = vpack.c.b16 %v894, %v886
        %v927 = vpack.c.b16 %v895, %v887
        %v928 = vpack.c.b16 %v896, %v888
        %v929 = vpack.c.b16 %v897, %v889
        %v930 = vpack.c.b16 %v898, %v890
        %v931 = vpack.c.b16 %v899, %v891
        %v932 = vpack.c.b16 %v900, %v900
        %v933 = vpack.c.b16 %v901, %v901
        %v934 = vpack.c.b16 %v902, %v902
        %v935 = vpack.c.b16 %v903, %v903
        %v936 = vpack.c.b16 %v904, %v904
        %v937 = vpack.c.b16 %v905, %v905
        %v938 = vpack.c.b16 %v906, %v906
        %v939 = vpack.c.b16 %v907, %v907
        %v1100 = vunpack.c.l.b16 %v684
        %v1101 = vunpack.c.h.b16 %v684
        %v1102 = vunpack.c.l.b16 %v685
        %v1103 = vunpack.c.h.b16 %v685
        %v1104 = vunpack.c.l.b16 %v686
        %v1105 = vunpack.c.h.b16 %v686
        %v1106 = vunpack.c.l.b16 %v687
        %v1107 = vunpack.c.h.b16 %v687
        %v1108 = vunpack.c.l.b16 %v688
        %v1109 = vunpack.c.h.b16 %v688
        %v1110 = vunpack.c.l.b16 %v689
        %v1111 = vunpack.c.h.b16 %v689
        %v1112 = vunpack.c.l.b16 %v690
        %v1113 = vunpack.c.h.b16 %v690
        %v1114 = vunpack.c.l.b16 %v691
        %v1115 = vunpack.c.h.b16 %v691
        %v1116 = vunpack.c.l.b16 %v692
        %v1117 = vunpack.c.h.b16 %v692
        %v1118 = vunpack.c.l.b16 %v693
        %v1119 = vunpack.c.h.b16 %v693
        %v1120 = vunpack.c.l.b16 %v694
        %v1121 = vunpack.c.h.b16 %v694
        %v1122 = vunpack.c.l.b16 %v695
        %v1123 = vunpack.c.h.b16 %v695
        %v1124 = vunpack.c.l.b16 %v696
        %v1125 = vunpack.c.h.b16 %v696
        %v1126 = vunpack.c.l.b16 %v697
        %v1127 = vunpack.c.h.b16 %v697
        %v1128 = vunpack.c.l.b16 %v698
        %v1129 = vunpack.c.h.b16 %v698
        %v1130 = vunpack.c.l.b16 %v699
        %v1131 = vunpack.c.h.b16 %v699
        %v1132 = vunpack.c.l.b16 %v700
        %v1133 = vunpack.c.h.b16 %v700
        %v1134 = vunpack.c.l.b16 %v701
        %v1135 = vunpack.c.h.b16 %v701
        %v1136 = vunpack.c.l.b16 %v702
        %v1137 = vunpack.c.h.b16 %v702
        %v1138 = vunpack.c.l.b16 %v703
        %v1139 = vunpack.c.h.b16 %v703
        %v1140 = vunpack.c.l.b16 %v704
        %v1141 = vunpack.c.h.b16 %v704
        %v1142 = vunpack.c.l.b16 %v705
        %v1143 = vunpack.c.h.b16 %v705
        %v1144 = vunpack.c.l.b16 %v706
        %v1145 = vunpack.c.h.b16 %v706
        %v1146 = vunpack.c.l.b16 %v707
        %v1147 = vunpack.c.h.b16 %v707
        %v1148 = vunpack.c.l.b16 %v708
        %v1149 = vunpack.c.h.b16 %v708
        %v1150 = vunpack.c.l.b16 %v709
        %v1151 = vunpack.c.h.b16 %v709
        %v1152 = vunpack.c.l.b16 %v710
        %v1153 = vunpack.c.h.b16 %v710
        %v1154 = vunpack.c.l.b16 %v711
        %v1155 = vunpack.c.h.b16 %v711
        %v1156 = vunpack.c.l.b16 %v712
        %v1157 = vunpack.c.h.b16 %v712
        %v1158 = vunpack.c.l.b16 %v713
        %v1159 = vunpack.c.h.b16 %v713
        %v1160 = vunpack.c.l.b16 %v714
        %v1161 = vunpack.c.h.b16 %v714
        %v1162 = vunpack.c.l.b16 %v715
        %v1163 = vunpack.c.h.b16 %v715
        %v1164 = vunpack.c.l.b16 %v716
        %v1165 = vunpack.c.h.b16 %v716
        %v1166 = vunpack.c.l.b16 %v717
        %v1167 = vunpack.c.h.b16 %v717
        %v1168 = vunpack.c.l.b16 %v718
        %v1169 = vunpack.c.h.b16 %v718
        %v1170 = vunpack.c.l.b16 %v719
        %v1171 = vunpack.c.h.b16 %v719
        %v1172 = vunpack.c.l.b16 %v720
        %v1173 = vunpack.c.h.b16 %v720
        %v1174 = vunpack.c.l.b16 %v721
        %v1175 = vunpack.c.h.b16 %v721
        %v1176 = vunpack.c.l.b16 %v722
        %v1177 = vunpack.c.h.b16 %v722
        %v1178 = vunpack.c.l.b16 %v723
        %v1179 = vunpack.c.h.b16 %v723
        %v1180 = vunpack.c.l.b16 %v724
        %v1181 = vunpack.c.h.b16 %v724
        %v1182 = vunpack.c.l.b16 %v725
        %v1183 = vunpack.c.h.b16 %v725
        %v1184 = vunpack.c.l.b16 %v726
        %v1185 = vunpack.c.h.b16 %v726
        %v1186 = vunpack.c.l.b16 %v727
        %v1187 = vunpack.c.h.b16 %v727
        %v1188 = vunpack.c.l.b16 %v728
        %v1189 = vunpack.c.h.b16 %v728
        %v1190 = vunpack.c.l.b16 %v729
        %v1191 = vunpack.c.h.b16 %v729
        %v1192 = vunpack.c.l.b16 %v730
        %v1193 = vunpack.c.h.b16 %v730
        %v1194 = vunpack.c.l.b16 %v731
        %v1195 = vunpack.c.h.b16 %v731
        %v1196 = vunpack.c.l.b16 %v732
        %v1197 = vunpack.c.h.b16 %v732
        %v1198 = vunpack.c.l.b16 %v733
        %v1199 = vunpack.c.h.b16 %v733
        %v1200 = vunpack.c.l.b16 %v734
        %v1201 = vunpack.c.h.b16 %v734
        %v1202 = vunpack.c.l.b16 %v735
        %v1203 = vunpack.c.h.b16 %v735
        %v1204 = vunpack.c.l.b16 %v736
        %v1205 = vunpack.c.h.b16 %v736
        %v1206 = vunpack.c.l.b16 %v737
        %v1207 = vunpack.c.h.b16 %v737
        %v1208 = vunpack.c.l.b16 %v738
        %v1209 = vunpack.c.h.b16 %v738
        %v1210 = vunpack.c.l.b16 %v739
        %v1211 = vunpack.c.h.b16 %v739
        %v1212 = vunpack.c.l.b16 %v740
        %v1213 = vunpack.c.h.b16 %v740
        %v1214 = vunpack.c.l.b16 %v741
        %v1215 = vunpack.c.h.b16 %v741
        %v1216 = vunpack.c.l.b16 %v742
        %v1217 = vunpack.c.h.b16 %v742
        %v1218 = vunpack.c.l.b16 %v743
        %v1219 = vunpack.c.h.b16 %v743
        %v1220 = vunpack.c.l.b16 %v744
        %v1221 = vunpack.c.h.b16 %v744
        %v1222 = vunpack.c.l.b16 %v745
        %v1223 = vunpack.c.h.b16 %v745
        %v1224 = vunpack.c.l.b16 %v746
        %v1225 = vunpack.c.h.b16 %v746
        %v1226 = vunpack.c.l.b16 %v747
        %v1227 = vunpack.c.h.b16 %v747
        %v1228 = vunpack.c.l.b16 %v748
        %v1229 = vunpack.c.h.b16 %v748
        %v1230 = vunpack.c.l.b16 %v749
        %v1231 = vunpack.c.h.b16 %v749
        %v1232 = vunpack.c.l.b16 %v750
        %v1233 = vunpack.c.h.b16 %v750
        %v1234 = vunpack.c.l.b16 %v751
        %v1235 = vunpack.c.h.b16 %v751
        %v1236 = vunpack.c.l.b16 %v752
        %v1237 = vunpack.c.h.b16 %v752
        %v1238 = vunpack.c.l.b16 %v753
        %v1239 = vunpack.c.h.b16 %v753
        %v1240 = vunpack.c.l.b16 %v754
        %v1241 = vunpack.c.h.b16 %v754
        %v1242 = vunpack.c.l.b16 %v755
        %v1243 = vunpack.c.h.b16 %v755
        %v1244 = vunpack.c.l.b16 %v756
        %v1245 = vunpack.c.h.b16 %v756
        %v1246 = vunpack.c.l.b16 %v757
        %v1247 = vunpack.c.h.b16 %v757
        %v1248 = vunpack.c.l.b16 %v758
        %v1249 = vunpack.c.h.b16 %v758
        %v1250 = vunpack.c.l.b16 %v759
        %v1251 = vunpack.c.h.b16 %v759
        %v1252 = vunpack.c.l.b16 %v760
        %v1253 = vunpack.c.h.b16 %v760
        %v1254 = vunpack.c.l.b16 %v761
        %v1255 = vunpack.c.h.b16 %v761
        %v1256 = vunpack.c.l.b16 %v762
        %v1257 = vunpack.c.h.b16 %v762
        %v1258 = vunpack.c.l.b16 %v763
        %v1259 = vunpack.c.h.b16 %v763
        %v1260 = vunpack.c.l.b16 %v764
        %v1261 = vunpack.c.h.b16 %v764
        %v1262 = vunpack.c.l.b16 %v765
        %v1263 = vunpack.c.h.b16 %v765
        %v1264 = vunpack.c.l.b16 %v766
        %v1265 = vunpack.c.h.b16 %v766
        %v1266 = vunpack.c.l.b16 %v767
        %v1267 = vunpack.c.h.b16 %v767
        %v1268 = vunpack.c.l.b16 %v768
        %v1269 = vunpack.c.h.b16 %v768
        %v1270 = vunpack.c.l.b16 %v769
        %v1271 = vunpack.c.h.b16 %v769
        %v1272 = vunpack.c.l.b16 %v770
        %v1273 = vunpack.c.h.b16 %v770
        %v1274 = vunpack.c.l.b16 %v771
        %v1275 = vunpack.c.h.b16 %v771
        %v1276 = vunpack.c.l.b16 %v772
        %v1277 = vunpack.c.h.b16 %v772
        %v1278 = vunpack.c.l.b16 %v773
        %v1279 = vunpack.c.h.b16 %v773
        %v1280 = vunpack.c.l.b16 %v774
        %v1281 = vunpack.c.h.b16 %v774
        %v1282 = vunpack.c.l.b16 %v775
        %v1283 = vunpack.c.h.b16 %v775
        %v1284 = vunpack.c.l.b16 %v776
        %v1285 = vunpack.c.h.b16 %v776
        %v1286 = vunpack.c.l.b16 %v777
        %v1287 = vunpack.c.h.b16 %v777
        %v1288 = vunpack.c.l.b16 %v778
        %v1289 = vunpack.c.h.b16 %v778
        %v1290 = vunpack.c.l.b16 %v779
        %v1291 = vunpack.c.h.b16 %v779
        %v1292 = vunpack.c.l.b16 %v780
        %v1293 = vunpack.c.h.b16 %v780
        %v1294 = vunpack.c.l.b16 %v781
        %v1295 = vunpack.c.h.b16 %v781
        %v1296 = vunpack.c.l.b16 %v782
        %v1297 = vunpack.c.h.b16 %v782
        %v1298 = vunpack.c.l.b16 %v783
        %v1299 = vunpack.c.h.b16 %v783
        %v1300 = vunpack.c.l.b16 %v784
        %v1301 = vunpack.c.h.b16 %v784
        %v1302 = vunpack.c.l.b16 %v785
        %v1303 = vunpack.c.h.b16 %v785
        %v1304 = vunpack.c.l.b16 %v786
        %v1305 = vunpack.c.h.b16 %v786
        %v1306 = vunpack.c.l.b16 %v787
        %v1307 = vunpack.c.h.b16 %v787
        %v1308 = vunpack.c.l.b16 %v788
        %v1309 = vunpack.c.h.b16 %v788
        %v1310 = vunpack.c.l.b16 %v789
        %v1311 = vunpack.c.h.b16 %v789
        %v1312 = vunpack.c.l.b16 %v790
        %v1313 = vunpack.c.h.b16 %v790
        %v1314 = vunpack.c.l.b16 %v791
        %v1315 = vunpack.c.h.b16 %v791
        %v1316 = vunpack.c.l.b16 %v792
        %v1317 = vunpack.c.h.b16 %v792
        %v1318 = vunpack.c.l.b16 %v793
        %v1319 = vunpack.c.h.b16 %v793
        %v1320 = vunpack.c.l.b16 %v794
        %v1321 = vunpack.c.h.b16 %v794
        %v1322 = vunpack.c.l.b16 %v795
        %v1323 = vunpack.c.h.b16 %v795
        %v1324 = vunpack.c.l.b16 %v796
        %v1325 = vunpack.c.h.b16 %v796
        %v1326 = vunpack.c.l.b16 %v797
        %v1327 = vunpack.c.h.b16 %v797
        %v1328 = vunpack.c.l.b16 %v798
        %v1329 = vunpack.c.h.b16 %v798
        %v1330 = vunpack.c.l.b16 %v799
        %v1331 = vunpack.c.h.b16 %v799
        %v1332 = vunpack.c.l.b16 %v800
        %v1333 = vunpack.c.h.b16 %v800
        %v1334 = vunpack.c.l.b16 %v801
        %v1335 = vunpack.c.h.b16 %v801
        %v1336 = vunpack.c.l.b16 %v802
        %v1337 = vunpack.c.h.b16 %v802
        %v1338 = vunpack.c.l.b16 %v803
        %v1339 = vunpack.c.h.b16 %v803
        %v1340 = vunpack.c.l.b16 %v804
        %v1341 = vunpack.c.h.b16 %v804
        %v1342 = vunpack.c.l.b16 %v805
        %v1343 = vunpack.c.h.b16 %v805
        %v1344 = vunpack.c.l.b16 %v806
        %v1345 = vunpack.c.h.b16 %v806
        %v1346 = vunpack.c.l.b16 %v807
        %v1347 = vunpack.c.h.b16 %v807
        %v1348 = vunpack.c.l.b16 %v808
        %v1349 = vunpack.c.h.b16 %v808
        %v1350 = vunpack.c.l.b16 %v809
        %v1351 = vunpack.c.h.b16 %v809
        %v1352 = vunpack.c.l.b16 %v810
        %v1353 = vunpack.c.h.b16 %v810
        %v1354 = vunpack.c.l.b16 %v811
        %v1355 = vunpack.c.h.b16 %v811
        %v1356 = vpack.c.b16 %v1102, %v1100
        %v1357 = vpack.c.b16 %v1103, %v1101
        %v1358 = vpack.c.b16 %v1106, %v1104
        %v1359 = vpack.c.b16 %v1107, %v1105
        %v1360 = vpack.c.b16 %v1110, %v1108
        %v1361 = vpack.c.b16 %v1111, %v1109
        %v1362 = vpack.c.b16 %v1114, %v1112
        %v1363 = vpack.c.b16 %v1115, %v1113
        %v1364 = vpack.c.b16 %v1118, %v1116
        %v1365 = vpack.c.b16 %v1119, %v1117
        %v1366 = vpack.c.b16 %v1122, %v1120
        %v1367 = vpack.c.b16 %v1123, %v1121
        %v1368 = vpack.c.b16 %v1126, %v1124
        %v1369 = vpack.c.b16 %v1127, %v1125
        %v1370 = vpack.c.b16 %v1130, %v1128
        %v1371 = vpack.c.b16 %v1131, %v1129
        %v1372 = vpack.c.b16 %v1134, %v1132
        %v1373 = vpack.c.b16 %v1135, %v1133
        %v1374 = vpack.c.b16 %v1138, %v1136
        %v1375 = vpack.c.b16 %v1139, %v1137
        %v1376 = vpack.c.b16 %v1142, %v1140
        %v1377 = vpack.c.b16 %v1143, %v1141
        %v1378 = vpack.c.b16 %v1146, %v1144
        %v1379 = vpack.c.b16 %v1147, %v1145
        %v1380 = vpack.c.b16 %v1150, %v1148
        %v1381 = vpack.c.b16 %v1151, %v1149
        %v1382 = vpack.c.b16 %v1154, %v1152
        %v1383 = vpack.c.b16 %v1155, %v1153
        %v1384 = vpack.c.b16 %v1158, %v1156
        %v1385 = vpack.c.b16 %v1159, %v1157
        %v1386 = vpack.c.b16 %v1162, %v1160
        %v1387 = vpack.c.b16 %v1163, %v1161
        %v1388 = vpack.c.b16 %v1166, %v1164
        %v1389 = vpack.c.b16 %v1167, %v1165
        %v1390 = vpack.c.b16 %v1170, %v1168
        %v1391 = vpack.c.b16 %v1171, %v1169
        %v1392 = vpack.c.b16 %v1174, %v1172
        %v1393 = vpack.c.b16 %v1175, %v1173
        %v1394 = vpack.c.b16 %v1178, %v1176
        %v1395 = vpack.c.b16 %v1179, %v1177
        %v1396 = vpack.c.b16 %v1182, %v1180
        %v1397 = vpack.c.b16 %v1183, %v1181
        %v1398 = vpack.c.b16 %v1186, %v1184
        %v1399 = vpack.c.b16 %v1187, %v1185
        %v1400 = vpack.c.b16 %v1190, %v1188
        %v1401 = vpack.c.b16 %v1191, %v1189
        %v1402 = vpack.c.b16 %v1194, %v1192
        %v1403 = vpack.c.b16 %v1195, %v1193
        %v1404 = vpack.c.b16 %v1198, %v1196
        %v1405 = vpack.c.b16 %v1199, %v1197
        %v1406 = vpack.c.b16 %v1202, %v1200
        %v1407 = vpack.c.b16 %v1203, %v1201
        %v1408 = vpack.c.b16 %v1206, %v1204
        %v1409 = vpack.c.b16 %v1207, %v1205
        %v1410 = vpack.c.b16 %v1210, %v1208
        %v1411 = vpack.c.b16 %v1211, %v1209
        %v1412 = vpack.c.b16 %v1214, %v1212
        %v1413 = vpack.c.b16 %v1215, %v1213
        %v1414 = vpack.c.b16 %v1218, %v1216
        %v1415 = vpack.c.b16 %v1219, %v1217
        %v1416 = vpack.c.b16 %v1222, %v1220
        %v1417 = vpack.c.b16 %v1223, %v1221
        %v1418 = vpack.c.b16 %v1226, %v1224
        %v1419 = vpack.c.b16 %v1227, %v1225
        %v1420 = vpack.c.b16 %v1230, %v1228
        %v1421 = vpack.c.b16 %v1231, %v1229
        %v1422 = vpack.c.b16 %v1234, %v1232
        %v1423 = vpack.c.b16 %v1235, %v1233
        %v1424 = vpack.c.b16 %v1238, %v1236
        %v1425 = vpack.c.b16 %v1239, %v1237
        %v1426 = vpack.c.b16 %v1242, %v1240
        %v1427 = vpack.c.b16 %v1243, %v1241
        %v1428 = vpack.c.b16 %v1246, %v1244
        %v1429 = vpack.c.b16 %v1247, %v1245
        %v1430 = vpack.c.b16 %v1250, %v1248
        %v1431 = vpack.c.b16 %v1251, %v1249
        %v1432 = vpack.c.b16 %v1254, %v1252
        %v1433 = vpack.c.b16 %v1255, %v1253
        %v1434 = vpack.c.b16 %v1258, %v1256
        %v1435 = vpack.c.b16 %v1259, %v1257
        %v1436 = vpack.c.b16 %v1262, %v1260
        %v1437 = vpack.c.b16 %v1263, %v1261
        %v1438 = vpack.c.b16 %v1266, %v1264
        %v1439 = vpack.c.b16 %v1267, %v1265
        %v1440 = vpack.c.b16 %v1270, %v1268
        %v1441 = vpack.c.b16 %v1271, %v1269
        %v1442 = vpack.c.b16 %v1274, %v1272
        %v1443 = vpack.c.b16 %v1275, %v1273
        %v1444 = vpack.c.b16 %v1278, %v1276
        %v1445 = vpack.c.b16 %v1279, %v1277
        %v1446 = vpack.c.b16 %v1282, %v1280
        %v1447 = vpack.c.b16 %v1283, %v1281
        %v1448 = vpack.c.b16 %v1286, %v1284
        %v1449 = vpack.c.b16 %v1287, %v1285
        %v1450 = vpack.c.b16 %v1290, %v1288
        %v1451 = vpack.c.b16 %v1291, %v1289
        %v1452 = vpack.c.b16 %v1294, %v1292
        %v1453 = vpack.c.b16 %v1295, %v1293
        %v1454 = vpack.c.b16 %v1298, %v1296
        %v1455 = vpack.c.b16 %v1299, %v1297
        %v1456 = vpack.c.b16 %v1302, %v1300
        %v1457 = vpack.c.b16 %v1303, %v1301
        %v1458 = vpack.c.b16 %v1306, %v1304
        %v1459 = vpack.c.b16 %v1307, %v1305
        %v1460 = vpack.c.b16 %v1310, %v1308
        %v1461 = vpack.c.b16 %v1311, %v1309
        %v1462 = vpack.c.b16 %v1314, %v1312
        %v1463 = vpack.c.b16 %v1315, %v1313
        %v1464 = vpack.c.b16 %v1318, %v1316
        %v1465 = vpack.c.b16 %v1319, %v1317
        %v1466 = vpack.c.b16 %v1322, %v1320
        %v1467 = vpack.c.b16 %v1323, %v1321
        %v1468 = vpack.c.b16 %v1326, %v1324
        %v1469 = vpack.c.b16 %v1327, %v1325
        %v1470 = vpack.c.b16 %v1330, %v1328
        %v1471 = vpack.c.b16 %v1331, %v1329
        %v1472 = vpack.c.b16 %v1334, %v1332
        %v1473 = vpack.c.b16 %v1335, %v1333
        %v1474 = vpack.c.b16 %v1338, %v1336
        %v1475 = vpack.c.b16 %v1339, %v1337
        %v1476 = vpack.c.b16 %v1342, %v1340
        %v1477 = vpack.c.b16 %v1343, %v1341
        %v1478 = vpack.c.b16 %v1346, %v1344
        %v1479 = vpack.c.b16 %v1347, %v1345
        %v1480 = vpack.c.b16 %v1350, %v1348
        %v1481 = vpack.c.b16 %v1351, %v1349
        %v1482 = vpack.c.b16 %v1354, %v1352
        %v1483 = vpack.c.b16 %v1355, %v1353
        %1612 = vmatprep.subr.bf16.mxu0 %v1357
        %1613 = vmatpush1.bf16.msra.mxu0 %v1356
        %1614 = vmatprep.subr.bf16.mxu0 %v1359
        %1615 = vmatpush1.bf16.msra.mxu0 %v1358
        %1616 = vmatprep.subr.bf16.mxu0 %v1361
        %1617 = vmatpush1.bf16.msra.mxu0 %v1360
        %1618 = vmatprep.subr.bf16.mxu0 %v1363
        %1619 = vmatpush1.bf16.msra.mxu0 %v1362
        %1620 = vmatprep.subr.bf16.mxu0 %v1365
        %1621 = vmatpush1.bf16.msra.mxu0 %v1364
        %1622 = vmatprep.subr.bf16.mxu0 %v1367
        %1623 = vmatpush1.bf16.msra.mxu0 %v1366
        %1624 = vmatprep.subr.bf16.mxu0 %v1369
        %1625 = vmatpush1.bf16.msra.mxu0 %v1368
        %1626 = vmatprep.subr.bf16.mxu0 %v1371
        %1627 = vmatpush1.bf16.msra.mxu0 %v1370
        %1628 = vmatprep.subr.bf16.mxu0 %v1373
        %1629 = vmatpush1.bf16.msra.mxu0 %v1372
        %1630 = vmatprep.subr.bf16.mxu0 %v1375
        %1631 = vmatpush1.bf16.msra.mxu0 %v1374
        %1632 = vmatprep.subr.bf16.mxu0 %v1377
        %1633 = vmatpush1.bf16.msra.mxu0 %v1376
        %1634 = vmatprep.subr.bf16.mxu0 %v1379
        %1635 = vmatpush1.bf16.msra.mxu0 %v1378
        %1636 = vmatprep.subr.bf16.mxu0 %v1381
        %1637 = vmatpush1.bf16.msra.mxu0 %v1380
        %1638 = vmatprep.subr.bf16.mxu0 %v1383
        %1639 = vmatpush1.bf16.msra.mxu0 %v1382
        %1640 = vmatprep.subr.bf16.mxu0 %v1385
        %1641 = vmatpush1.bf16.msra.mxu0 %v1384
        %1642 = vmatprep.subr.bf16.mxu0 %v1387
        %1643 = vmatpush1.bf16.msra.mxu0 %v1386
        %1644 = vmatprep.mubr.bf16.mxu0 %v909
        %1645 = vmatmul.mubr.bf16.gmra.mrb[0].mxu0 %v908
        %v1646 = vpop.f32.mrb[0].mxu0
        %v1647 = vadd.f32 %v817, %v1646
        %v1648 = vpop.f32.mrb[0].mxu0
        %v1649 = vadd.f32 %v821, %v1648
        %v1650 = vpop.f32.mrb[0].mxu0
        %v1651 = vadd.f32 %v817, %v1650
        %v1652 = vpop.f32.mrb[0].mxu0
        %v1653 = vadd.f32 %v821, %v1652
        %1654 = vmatprep.mubr.bf16.mxu0 %v917
        %1655 = vmatmul.mubr.bf16.gmra.mrb[0].mxu0 %v916
        %v1656 = vpop.f32.mrb[0].mxu0
        %v1657 = vadd.f32 %v817, %v1656
        %v1658 = vpop.f32.mrb[0].mxu0
        %v1659 = vadd.f32 %v821, %v1658
        %v1660 = vpop.f32.mrb[0].mxu0
        %v1661 = vadd.f32 %v817, %v1660
        %v1662 = vpop.f32.mrb[0].mxu0
        %v1663 = vadd.f32 %v821, %v1662
        %1664 = vmatprep.mubr.bf16.mxu0 %v925
        %1665 = vmatmul.mubr.bf16.gmra.mrb[0].mxu0 %v924
        %v1666 = vpop.f32.mrb[0].mxu0
        %v1667 = vadd.f32 %v817, %v1666
        %v1668 = vpop.f32.mrb[0].mxu0
        %v1669 = vadd.f32 %v821, %v1668
        %v1670 = vpop.f32.mrb[0].mxu0
        %v1671 = vadd.f32 %v817, %v1670
        %v1672 = vpop.f32.mrb[0].mxu0
        %v1673 = vadd.f32 %v821, %v1672
        %1674 = vmatprep.mubr.bf16.mxu0 %v933
        %1675 = vmatmul.mubr.bf16.gmra.mrb[0].mxu0 %v932
        %v1676 = vpop.f32.mrb[0].mxu0
        %v1677 = vadd.f32 %v817, %v1676
        %v1678 = vpop.f32.mrb[0].mxu0
        %v1679 = vadd.f32 %v821, %v1678
        %v1680 = vpop.f32.mrb[0].mxu0
        %v1681 = vpop.f32.mrb[0].mxu0
        %1682 = vdwg.mxu0
        %1683 = vmatprep.subr.bf16.mxu0 %v1389
        %1684 = vmatpush1.bf16.msra.mxu0 %v1388
        %1685 = vmatprep.subr.bf16.mxu0 %v1391
        %1686 = vmatpush1.bf16.msra.mxu0 %v1390
        %1687 = vmatprep.subr.bf16.mxu0 %v1393
        %1688 = vmatpush1.bf16.msra.mxu0 %v1392
        %1689 = vmatprep.subr.bf16.mxu0 %v1395
        %1690 = vmatpush1.bf16.msra.mxu0 %v1394
        %1691 = vmatprep.subr.bf16.mxu0 %v1397
        %1692 = vmatpush1.bf16.msra.mxu0 %v1396
        %1693 = vmatprep.subr.bf16.mxu0 %v1399
        %1694 = vmatpush1.bf16.msra.mxu0 %v1398
        %1695 = vmatprep.subr.bf16.mxu0 %v1401
        %1696 = vmatpush1.bf16.msra.mxu0 %v1400
        %1697 = vmatprep.subr.bf16.mxu0 %v1403
        %1698 = vmatpush1.bf16.msra.mxu0 %v1402
        %1699 = vmatprep.subr.bf16.mxu0 %v1405
        %1700 = vmatpush1.bf16.msra.mxu0 %v1404
        %1701 = vmatprep.subr.bf16.mxu0 %v1407
        %1702 = vmatpush1.bf16.msra.mxu0 %v1406
        %1703 = vmatprep.subr.bf16.mxu0 %v1409
        %1704 = vmatpush1.bf16.msra.mxu0 %v1408
        %1705 = vmatprep.subr.bf16.mxu0 %v1411
        %1706 = vmatpush1.bf16.msra.mxu0 %v1410
        %1707 = vmatprep.subr.bf16.mxu0 %v1413
        %1708 = vmatpush1.bf16.msra.mxu0 %v1412
        %1709 = vmatprep.subr.bf16.mxu0 %v1415
        %1710 = vmatpush1.bf16.msra.mxu0 %v1414
        %1711 = vmatprep.subr.bf16.mxu0 %v1417
        %1712 = vmatpush1.bf16.msra.mxu0 %v1416
        %1713 = vmatprep.subr.bf16.mxu0 %v1419
        %1714 = vmatpush1.bf16.msra.mxu0 %v1418
        %1715 = vmatprep.mubr.bf16.mxu0 %v911
        %1716 = vmatmul.mubr.bf16.gmra.mrb[0].mxu0 %v910
        %v1717 = vpop.f32.mrb[0].mxu0
        %v1718 = vadd.f32 %v1647, %v1717
        %v1719 = vpop.f32.mrb[0].mxu0
        %v1720 = vadd.f32 %v1649, %v1719
        %v1721 = vpop.f32.mrb[0].mxu0
        %v1722 = vadd.f32 %v1651, %v1721
        %v1723 = vpop.f32.mrb[0].mxu0
        %v1724 = vadd.f32 %v1653, %v1723
        %1725 = vmatprep.mubr.bf16.mxu0 %v919
        %1726 = vmatmul.mubr.bf16.gmra.mrb[0].mxu0 %v918
        %v1727 = vpop.f32.mrb[0].mxu0
        %v1728 = vadd.f32 %v1657, %v1727
        %v1729 = vpop.f32.mrb[0].mxu0
        %v1730 = vadd.f32 %v1659, %v1729
        %v1731 = vpop.f32.mrb[0].mxu0
        %v1732 = vadd.f32 %v1661, %v1731
        %v1733 = vpop.f32.mrb[0].mxu0
        %v1734 = vadd.f32 %v1663, %v1733
        %1735 = vmatprep.mubr.bf16.mxu0 %v927
        %1736 = vmatmul.mubr.bf16.gmra.mrb[0].mxu0 %v926
        %v1737 = vpop.f32.mrb[0].mxu0
        %v1738 = vadd.f32 %v1667, %v1737
        %v1739 = vpop.f32.mrb[0].mxu0
        %v1740 = vadd.f32 %v1669, %v1739
        %v1741 = vpop.f32.mrb[0].mxu0
        %v1742 = vadd.f32 %v1671, %v1741
        %v1743 = vpop.f32.mrb[0].mxu0
        %v1744 = vadd.f32 %v1673, %v1743
        %1745 = vmatprep.mubr.bf16.mxu0 %v935
        %1746 = vmatmul.mubr.bf16.gmra.mrb[0].mxu0 %v934
        %v1747 = vpop.f32.mrb[0].mxu0
        %v1748 = vadd.f32 %v1677, %v1747
        %v1749 = vpop.f32.mrb[0].mxu0
        %v1750 = vadd.f32 %v1679, %v1749
        %v1751 = vpop.f32.mrb[0].mxu0
        %v1752 = vpop.f32.mrb[0].mxu0
        %1753 = vdwg.mxu0
        %1754 = vmatprep.subr.bf16.mxu0 %v1421
        %1755 = vmatpush1.bf16.msra.mxu0 %v1420
        %1756 = vmatprep.subr.bf16.mxu0 %v1423
        %1757 = vmatpush1.bf16.msra.mxu0 %v1422
        %1758 = vmatprep.subr.bf16.mxu0 %v1425
        %1759 = vmatpush1.bf16.msra.mxu0 %v1424
        %1760 = vmatprep.subr.bf16.mxu0 %v1427
        %1761 = vmatpush1.bf16.msra.mxu0 %v1426
        %1762 = vmatprep.subr.bf16.mxu0 %v1429
        %1763 = vmatpush1.bf16.msra.mxu0 %v1428
        %1764 = vmatprep.subr.bf16.mxu0 %v1431
        %1765 = vmatpush1.bf16.msra.mxu0 %v1430
        %1766 = vmatprep.subr.bf16.mxu0 %v1433
        %1767 = vmatpush1.bf16.msra.mxu0 %v1432
        %1768 = vmatprep.subr.bf16.mxu0 %v1435
        %1769 = vmatpush1.bf16.msra.mxu0 %v1434
        %1770 = vmatprep.subr.bf16.mxu0 %v1437
        %1771 = vmatpush1.bf16.msra.mxu0 %v1436
        %1772 = vmatprep.subr.bf16.mxu0 %v1439
        %1773 = vmatpush1.bf16.msra.mxu0 %v1438
        %1774 = vmatprep.subr.bf16.mxu0 %v1441
        %1775 = vmatpush1.bf16.msra.mxu0 %v1440
        %1776 = vmatprep.subr.bf16.mxu0 %v1443
        %1777 = vmatpush1.bf16.msra.mxu0 %v1442
        %1778 = vmatprep.subr.bf16.mxu0 %v1445
        %1779 = vmatpush1.bf16.msra.mxu0 %v1444
        %1780 = vmatprep.subr.bf16.mxu0 %v1447
        %1781 = vmatpush1.bf16.msra.mxu0 %v1446
        %1782 = vmatprep.subr.bf16.mxu0 %v1449
        %1783 = vmatpush1.bf16.msra.mxu0 %v1448
        %1784 = vmatprep.subr.bf16.mxu0 %v1451
        %1785 = vmatpush1.bf16.msra.mxu0 %v1450
        %1786 = vmatprep.mubr.bf16.mxu0 %v913
        %1787 = vmatmul.mubr.bf16.gmra.mrb[0].mxu0 %v912
        %v1788 = vpop.f32.mrb[0].mxu0
        %v1789 = vadd.f32 %v1718, %v1788
        %v1790 = vpop.f32.mrb[0].mxu0
        %v1791 = vadd.f32 %v1720, %v1790
        %v1792 = vpop.f32.mrb[0].mxu0
        %v1793 = vadd.f32 %v1722, %v1792
        %v1794 = vpop.f32.mrb[0].mxu0
        %v1795 = vadd.f32 %v1724, %v1794
        %1796 = vmatprep.mubr.bf16.mxu0 %v921
        %1797 = vmatmul.mubr.bf16.gmra.mrb[0].mxu0 %v920
        %v1798 = vpop.f32.mrb[0].mxu0
        %v1799 = vadd.f32 %v1728, %v1798
        %v1800 = vpop.f32.mrb[0].mxu0
        %v1801 = vadd.f32 %v1730, %v1800
        %v1802 = vpop.f32.mrb[0].mxu0
        %v1803 = vadd.f32 %v1732, %v1802
        %v1804 = vpop.f32.mrb[0].mxu0
        %v1805 = vadd.f32 %v1734, %v1804
        %1806 = vmatprep.mubr.bf16.mxu0 %v929
        %1807 = vmatmul.mubr.bf16.gmra.mrb[0].mxu0 %v928
        %v1808 = vpop.f32.mrb[0].mxu0
        %v1809 = vadd.f32 %v1738, %v1808
        %v1810 = vpop.f32.mrb[0].mxu0
        %v1811 = vadd.f32 %v1740, %v1810
        %v1812 = vpop.f32.mrb[0].mxu0
        %v1813 = vadd.f32 %v1742, %v1812
        %v1814 = vpop.f32.mrb[0].mxu0
        %v1815 = vadd.f32 %v1744, %v1814
        %1816 = vmatprep.mubr.bf16.mxu0 %v937
        %1817 = vmatmul.mubr.bf16.gmra.mrb[0].mxu0 %v936
        %v1818 = vpop.f32.mrb[0].mxu0
        %v1819 = vadd.f32 %v1748, %v1818
        %v1820 = vpop.f32.mrb[0].mxu0
        %v1821 = vadd.f32 %v1750, %v1820
        %v1822 = vpop.f32.mrb[0].mxu0
        %v1823 = vpop.f32.mrb[0].mxu0
        %1824 = vdwg.mxu0
        %1825 = vmatprep.subr.bf16.mxu0 %v1453
        %1826 = vmatpush1.bf16.msra.mxu0 %v1452
        %1827 = vmatprep.subr.bf16.mxu0 %v1455
        %1828 = vmatpush1.bf16.msra.mxu0 %v1454
        %1829 = vmatprep.subr.bf16.mxu0 %v1457
        %1830 = vmatpush1.bf16.msra.mxu0 %v1456
        %1831 = vmatprep.subr.bf16.mxu0 %v1459
        %1832 = vmatpush1.bf16.msra.mxu0 %v1458
        %1833 = vmatprep.subr.bf16.mxu0 %v1461
        %1834 = vmatpush1.bf16.msra.mxu0 %v1460
        %1835 = vmatprep.subr.bf16.mxu0 %v1463
        %1836 = vmatpush1.bf16.msra.mxu0 %v1462
        %1837 = vmatprep.subr.bf16.mxu0 %v1465
        %1838 = vmatpush1.bf16.msra.mxu0 %v1464
        %1839 = vmatprep.subr.bf16.mxu0 %v1467
        %1840 = vmatpush1.bf16.msra.mxu0 %v1466
        %1841 = vmatprep.subr.bf16.mxu0 %v1469
        %1842 = vmatpush1.bf16.msra.mxu0 %v1468
        %1843 = vmatprep.subr.bf16.mxu0 %v1471
        %1844 = vmatpush1.bf16.msra.mxu0 %v1470
        %1845 = vmatprep.subr.bf16.mxu0 %v1473
        %1846 = vmatpush1.bf16.msra.mxu0 %v1472
        %1847 = vmatprep.subr.bf16.mxu0 %v1475
        %1848 = vmatpush1.bf16.msra.mxu0 %v1474
        %1849 = vmatprep.subr.bf16.mxu0 %v1477
        %1850 = vmatpush1.bf16.msra.mxu0 %v1476
        %1851 = vmatprep.subr.bf16.mxu0 %v1479
        %1852 = vmatpush1.bf16.msra.mxu0 %v1478
        %1853 = vmatprep.subr.bf16.mxu0 %v1481
        %1854 = vmatpush1.bf16.msra.mxu0 %v1480
        %1855 = vmatprep.subr.bf16.mxu0 %v1483
        %1856 = vmatpush1.bf16.msra.mxu0 %v1482
        %1857 = vmatprep.mubr.bf16.mxu0 %v915
        %1858 = vmatmul.mubr.bf16.gmra.mrb[0].mxu0 %v914
        %v1859 = vpop.f32.mrb[0].mxu0
        %v1860 = vadd.f32 %v1789, %v1859
        %v1861 = vpop.f32.mrb[0].mxu0
        %v1862 = vadd.f32 %v1791, %v1861
        %v1863 = vpop.f32.mrb[0].mxu0
        %v1864 = vadd.f32 %v1793, %v1863
        %v1865 = vpop.f32.mrb[0].mxu0
        %v1866 = vadd.f32 %v1795, %v1865
        %1867 = vmatprep.mubr.bf16.mxu0 %v923
        %1868 = vmatmul.mubr.bf16.gmra.mrb[0].mxu0 %v922
        %v1869 = vpop.f32.mrb[0].mxu0
        %v1870 = vadd.f32 %v1799, %v1869
        %v1871 = vpop.f32.mrb[0].mxu0
        %v1872 = vadd.f32 %v1801, %v1871
        %v1873 = vpop.f32.mrb[0].mxu0
        %v1874 = vadd.f32 %v1803, %v1873
        %v1875 = vpop.f32.mrb[0].mxu0
        %v1876 = vadd.f32 %v1805, %v1875
        %1877 = vmatprep.mubr.bf16.mxu0 %v931
        %1878 = vmatmul.mubr.bf16.gmra.mrb[0].mxu0 %v930
        %v1879 = vpop.f32.mrb[0].mxu0
        %v1880 = vadd.f32 %v1809, %v1879
        %v1881 = vpop.f32.mrb[0].mxu0
        %v1882 = vadd.f32 %v1811, %v1881
        %v1883 = vpop.f32.mrb[0].mxu0
        %v1884 = vadd.f32 %v1813, %v1883
        %v1885 = vpop.f32.mrb[0].mxu0
        %v1886 = vadd.f32 %v1815, %v1885
        %1887 = vmatprep.mubr.bf16.mxu0 %v939
        %1888 = vmatmul.mubr.bf16.gmra.mrb[0].mxu0 %v938
        %v1889 = vpop.f32.mrb[0].mxu0
        %v1890 = vadd.f32 %v1819, %v1889
        %v1891 = vpop.f32.mrb[0].mxu0
        %v1892 = vadd.f32 %v1821, %v1891
        %v1893 = vpop.f32.mrb[0].mxu0
        %v1894 = vpop.f32.mrb[0].mxu0
        %1895 = vdwg.mxu0
        %v1896 = vmax.f32 %v1860, 0.0
        %v1897 = vmax.f32 %v1862, 0.0
        %v1898 = vmax.f32 %v1864, 0.0
        %v1899 = vmax.f32 %v1866, 0.0
        %v1900 = vmax.f32 %v1870, 0.0
        %v1901 = vmax.f32 %v1872, 0.0
        %v1902 = vmax.f32 %v1874, 0.0
        %v1903 = vmax.f32 %v1876, 0.0
        %v1904 = vmax.f32 %v1880, 0.0
        %v1905 = vmax.f32 %v1882, 0.0
        %v1906 = vmax.f32 %v1884, 0.0
        %v1907 = vmax.f32 %v1886, 0.0
        %v1908 = vmax.f32 %v1890, 0.0
        %v1909 = vmax.f32 %v1892, 0.0
        %1910 = vst [vmem:[#allocation2] sm:$0xff] %v1896
        %1911 = vst [vmem:[#allocation2 + $0x8] sm:$0xff] %v1897
        %1912 = vst [vmem:[#allocation2 + $0x10] sm:$0xff] %v1898
        %1913 = vst [vmem:[#allocation2 + $0x18] sm:$0xff] %v1899
        %1914 = vst [vmem:[#allocation2 + $0x20] sm:$0xff] %v1900
        %1915 = vst [vmem:[#allocation2 + $0x28] sm:$0xff] %v1901
        %1916 = vst [vmem:[#allocation2 + $0x30] sm:$0xff] %v1902
        %1917 = vst [vmem:[#allocation2 + $0x38] sm:$0xff] %v1903
        %1918 = vst [vmem:[#allocation2 + $0x40] sm:$0xff] %v1904
        %1919 = vst [vmem:[#allocation2 + $0x48] sm:$0xff] %v1905
        %1920 = vst [vmem:[#allocation2 + $0x50] sm:$0xff] %v1906
        %1921 = vst [vmem:[#allocation2 + $0x58] sm:$0xff] %v1907
        %1922 = vst [vmem:[#allocation2 + $0x60] sm:$0x1] %v1908
        %1923 = vst [vmem:[#allocation2 + $0x68] sm:$0x1] %v1909
        %v1924 = vld [vmem:[#allocation2] sm:$0xff]
        %v1925 = vld [vmem:[#allocation2 + $0x8] sm:$0xff]
        %v1926 = vld [vmem:[#allocation2 + $0x10] sm:$0xff]
        %v1927 = vld [vmem:[#allocation2 + $0x18] sm:$0xff]
        %v1928 = vld [vmem:[#allocation2 + $0x20] sm:$0xff]
        %v1929 = vld [vmem:[#allocation2 + $0x28] sm:$0xff]
        %v1930 = vld [vmem:[#allocation2 + $0x30] sm:$0xff]
        %v1931 = vld [vmem:[#allocation2 + $0x38] sm:$0xff]
        %v1932 = vld [vmem:[#allocation2 + $0x40] sm:$0x1]
        %v1933 = vld [vmem:[#allocation2 + $0x48] sm:$0x1]
        %v1934 = vpack.c.bf16 %v1926, %v1924
        %v1935 = vpack.c.bf16 %v1927, %v1925
        %v1936 = vpack.c.bf16 %v1930, %v1928
        %v1937 = vpack.c.bf16 %v1931, %v1929
        %v1938 = vpack.c.bf16 %v1932, %v1932
        %v1939 = vpack.c.bf16 %v1933, %v1933
        %v1940 = vld [vmem:[#allocation11] sm:$0xff]
        %v1941 = vld [vmem:[#allocation11 + $0x8] sm:$0xff]
        %v1942 = vld [vmem:[#allocation11 + $0x10] sm:$0xff]
        %v1943 = vld [vmem:[#allocation11 + $0x18] sm:$0xff]
        %v1944 = vld [vmem:[#allocation11 + $0x20] sm:$0xff]
        %v1945 = vld [vmem:[#allocation11 + $0x28] sm:$0xff]
        %v1946 = vld [vmem:[#allocation11 + $0x30] sm:$0xff]
        %v1947 = vld [vmem:[#allocation11 + $0x38] sm:$0xff]
        %v1948 = vld [vmem:[#allocation11 + $0x40] sm:$0xff]
        %v1949 = vld [vmem:[#allocation11 + $0x48] sm:$0xff]
        %v1950 = vld [vmem:[#allocation11 + $0x50] sm:$0xff]
        %v1951 = vld [vmem:[#allocation11 + $0x58] sm:$0xff]
        %v1952 = vld [vmem:[#allocation11 + $0x60] sm:$0xff]
        %v1953 = vld [vmem:[#allocation11 + $0x68] sm:$0xff]
        %v1954 = vld [vmem:[#allocation11 + $0x70] sm:$0xff]
        %v1955 = vld [vmem:[#allocation11 + $0x78] sm:$0xff]
        %v1956 = vld [vmem:[#allocation11 + $0x80] sm:$0xff]
        %v1957 = vld [vmem:[#allocation11 + $0x88] sm:$0xff]
        %v1958 = vld [vmem:[#allocation11 + $0x90] sm:$0xff]
        %v1959 = vld [vmem:[#allocation11 + $0x98] sm:$0xff]
        %v1960 = vld [vmem:[#allocation11 + $0xa0] sm:$0xff]
        %v1961 = vld [vmem:[#allocation11 + $0xa8] sm:$0xff]
        %v1962 = vld [vmem:[#allocation11 + $0xb0] sm:$0xff]
        %v1963 = vld [vmem:[#allocation11 + $0xb8] sm:$0xff]
        %v1964 = vld [vmem:[#allocation11 + $0xc0] sm:$0xff]
        %v1965 = vld [vmem:[#allocation11 + $0xc8] sm:$0xff]
        %v1966 = vld [vmem:[#allocation11 + $0xd0] sm:$0xff]
        %v1967 = vld [vmem:[#allocation11 + $0xd8] sm:$0xff]
        %v1968 = vld [vmem:[#allocation11 + $0xe0] sm:$0xff]
        %v1969 = vld [vmem:[#allocation11 + $0xe8] sm:$0xff]
        %v1970 = vld [vmem:[#allocation11 + $0xf0] sm:$0xff]
        %v1971 = vld [vmem:[#allocation11 + $0xf8] sm:$0xff]
        %v1972 = vld [vmem:[#allocation2] sm:$0xfe]
        %v1973 = vld [vmem:[#allocation2 + $0x8] sm:$0xfe]
        %v1974 = vld [vmem:[#allocation2 + $0x40] sm:$0x3]
        %v1975 = vld [vmem:[#allocation2 + $0x48] sm:$0x3]
        %v1976 = vpack.c.bf16 %v1926, %v1972
        %v1977 = vpack.c.bf16 %v1927, %v1973
        %v1978 = vpack.c.bf16 %v1974, %v1974
        %v1979 = vpack.c.bf16 %v1975, %v1975
        %s1980 = scalar_lea.vmem [#allocation11], 256
        %v1981 = vld [vmem:[%s1980] sm:$0xff]
        %v1982 = vld [vmem:[%s1980 + $0x8] sm:$0xff]
        %v1983 = vld [vmem:[%s1980 + $0x10] sm:$0xff]
        %v1984 = vld [vmem:[%s1980 + $0x18] sm:$0xff]
        %v1985 = vld [vmem:[%s1980 + $0x20] sm:$0xff]
        %v1986 = vld [vmem:[%s1980 + $0x28] sm:$0xff]
        %v1987 = vld [vmem:[%s1980 + $0x30] sm:$0xff]
        %v1988 = vld [vmem:[%s1980 + $0x38] sm:$0xff]
        %v1989 = vld [vmem:[%s1980 + $0x40] sm:$0xff]
        %v1990 = vld [vmem:[%s1980 + $0x48] sm:$0xff]
        %v1991 = vld [vmem:[%s1980 + $0x50] sm:$0xff]
        %v1992 = vld [vmem:[%s1980 + $0x58] sm:$0xff]
        %v1993 = vld [vmem:[%s1980 + $0x60] sm:$0xff]
        %v1994 = vld [vmem:[%s1980 + $0x68] sm:$0xff]
        %v1995 = vld [vmem:[%s1980 + $0x70] sm:$0xff]
        %v1996 = vld [vmem:[%s1980 + $0x78] sm:$0xff]
        %v1997 = vld [vmem:[%s1980 + $0x80] sm:$0xff]
        %v1998 = vld [vmem:[%s1980 + $0x88] sm:$0xff]
        %v1999 = vld [vmem:[%s1980 + $0x90] sm:$0xff]
        %v2000 = vld [vmem:[%s1980 + $0x98] sm:$0xff]
        %v2001 = vld [vmem:[%s1980 + $0xa0] sm:$0xff]
        %v2002 = vld [vmem:[%s1980 + $0xa8] sm:$0xff]
        %v2003 = vld [vmem:[%s1980 + $0xb0] sm:$0xff]
        %v2004 = vld [vmem:[%s1980 + $0xb8] sm:$0xff]
        %v2005 = vld [vmem:[%s1980 + $0xc0] sm:$0xff]
        %v2006 = vld [vmem:[%s1980 + $0xc8] sm:$0xff]
        %v2007 = vld [vmem:[%s1980 + $0xd0] sm:$0xff]
        %v2008 = vld [vmem:[%s1980 + $0xd8] sm:$0xff]
        %v2009 = vld [vmem:[%s1980 + $0xe0] sm:$0xff]
        %v2010 = vld [vmem:[%s1980 + $0xe8] sm:$0xff]
        %v2011 = vld [vmem:[%s1980 + $0xf0] sm:$0xff]
        %v2012 = vld [vmem:[%s1980 + $0xf8] sm:$0xff]
        %vm2013 = vsmask.f32 7424
        %v2015 = vshrl.u32 %v1976, 16
        %v2017 = vshll.u32 %v1976, 16
        %v2019 = vrot.slane %v2017, 1
        %v2020 = vor.u32 %v2015, %v2019
        %v2022 = vshll.u32 %v1936, 16
        %v2024 = vrot.slane %v2022, 1
        %v2025 = vsel %vm2013, %v2020, %v2024
        %v2027 = vshrl.u32 %v1977, 16
        %v2029 = vshll.u32 %v1977, 16
        %v2031 = vrot.slane %v2029, 1
        %v2032 = vor.u32 %v2027, %v2031
        %v2034 = vshll.u32 %v1937, 16
        %v2036 = vrot.slane %v2034, 1
        %v2037 = vsel %vm2013, %v2032, %v2036
        %v2038 = vshrl.u32 %v1936, 16
        %v2040 = vor.u32 %v2038, %v2024
        %v2042 = vshll.u32 %v1978, 16
        %v2044 = vrot.slane %v2042, 1
        %v2045 = vsel %vm2013, %v2040, %v2044
        %v2046 = vshrl.u32 %v1937, 16
        %v2048 = vor.u32 %v2046, %v2036
        %v2050 = vshll.u32 %v1979, 16
        %v2052 = vrot.slane %v2050, 1
        %v2053 = vsel %vm2013, %v2048, %v2052
        %v2054 = vshrl.u32 %v1978, 16
        %v2056 = vshrl.u32 %v1979, 16
        %v2096 = vunpack.c.l.b16 %v1981
        %v2097 = vunpack.c.h.b16 %v1981
        %v2098 = vunpack.c.l.b16 %v1982
        %v2099 = vunpack.c.h.b16 %v1982
        %v2100 = vunpack.c.l.b16 %v1983
        %v2101 = vunpack.c.h.b16 %v1983
        %v2102 = vunpack.c.l.b16 %v1984
        %v2103 = vunpack.c.h.b16 %v1984
        %v2104 = vunpack.c.l.b16 %v1985
        %v2105 = vunpack.c.h.b16 %v1985
        %v2106 = vunpack.c.l.b16 %v1986
        %v2107 = vunpack.c.h.b16 %v1986
        %v2108 = vunpack.c.l.b16 %v1987
        %v2109 = vunpack.c.h.b16 %v1987
        %v2110 = vunpack.c.l.b16 %v1988
        %v2111 = vunpack.c.h.b16 %v1988
        %v2112 = vunpack.c.l.b16 %v1989
        %v2113 = vunpack.c.h.b16 %v1989
        %v2114 = vunpack.c.l.b16 %v1990
        %v2115 = vunpack.c.h.b16 %v1990
        %v2116 = vunpack.c.l.b16 %v1991
        %v2117 = vunpack.c.h.b16 %v1991
        %v2118 = vunpack.c.l.b16 %v1992
        %v2119 = vunpack.c.h.b16 %v1992
        %v2120 = vunpack.c.l.b16 %v1993
        %v2121 = vunpack.c.h.b16 %v1993
        %v2122 = vunpack.c.l.b16 %v1994
        %v2123 = vunpack.c.h.b16 %v1994
        %v2124 = vunpack.c.l.b16 %v1995
        %v2125 = vunpack.c.h.b16 %v1995
        %v2126 = vunpack.c.l.b16 %v1996
        %v2127 = vunpack.c.h.b16 %v1996
        %v2128 = vunpack.c.l.b16 %v1997
        %v2129 = vunpack.c.h.b16 %v1997
        %v2130 = vunpack.c.l.b16 %v1998
        %v2131 = vunpack.c.h.b16 %v1998
        %v2132 = vunpack.c.l.b16 %v1999
        %v2133 = vunpack.c.h.b16 %v1999
        %v2134 = vunpack.c.l.b16 %v2000
        %v2135 = vunpack.c.h.b16 %v2000
        %v2136 = vunpack.c.l.b16 %v2001
        %v2137 = vunpack.c.h.b16 %v2001
        %v2138 = vunpack.c.l.b16 %v2002
        %v2139 = vunpack.c.h.b16 %v2002
        %v2140 = vunpack.c.l.b16 %v2003
        %v2141 = vunpack.c.h.b16 %v2003
        %v2142 = vunpack.c.l.b16 %v2004
        %v2143 = vunpack.c.h.b16 %v2004
        %v2144 = vunpack.c.l.b16 %v2005
        %v2145 = vunpack.c.h.b16 %v2005
        %v2146 = vunpack.c.l.b16 %v2006
        %v2147 = vunpack.c.h.b16 %v2006
        %v2148 = vunpack.c.l.b16 %v2007
        %v2149 = vunpack.c.h.b16 %v2007
        %v2150 = vunpack.c.l.b16 %v2008
        %v2151 = vunpack.c.h.b16 %v2008
        %v2152 = vunpack.c.l.b16 %v2009
        %v2153 = vunpack.c.h.b16 %v2009
        %v2154 = vunpack.c.l.b16 %v2010
        %v2155 = vunpack.c.h.b16 %v2010
        %v2156 = vunpack.c.l.b16 %v2011
        %v2157 = vunpack.c.h.b16 %v2011
        %v2158 = vunpack.c.l.b16 %v2012
        %v2159 = vunpack.c.h.b16 %v2012
        %v2160 = vpack.c.b16 %v2098, %v2096
        %v2161 = vpack.c.b16 %v2099, %v2097
        %v2162 = vpack.c.b16 %v2102, %v2100
        %v2163 = vpack.c.b16 %v2103, %v2101
        %v2164 = vpack.c.b16 %v2106, %v2104
        %v2165 = vpack.c.b16 %v2107, %v2105
        %v2166 = vpack.c.b16 %v2110, %v2108
        %v2167 = vpack.c.b16 %v2111, %v2109
        %v2168 = vpack.c.b16 %v2114, %v2112
        %v2169 = vpack.c.b16 %v2115, %v2113
        %v2170 = vpack.c.b16 %v2118, %v2116
        %v2171 = vpack.c.b16 %v2119, %v2117
        %v2172 = vpack.c.b16 %v2122, %v2120
        %v2173 = vpack.c.b16 %v2123, %v2121
        %v2174 = vpack.c.b16 %v2126, %v2124
        %v2175 = vpack.c.b16 %v2127, %v2125
        %v2176 = vpack.c.b16 %v2130, %v2128
        %v2177 = vpack.c.b16 %v2131, %v2129
        %v2178 = vpack.c.b16 %v2134, %v2132
        %v2179 = vpack.c.b16 %v2135, %v2133
        %v2180 = vpack.c.b16 %v2138, %v2136
        %v2181 = vpack.c.b16 %v2139, %v2137
        %v2182 = vpack.c.b16 %v2142, %v2140
        %v2183 = vpack.c.b16 %v2143, %v2141
        %v2184 = vpack.c.b16 %v2146, %v2144
        %v2185 = vpack.c.b16 %v2147, %v2145
        %v2186 = vpack.c.b16 %v2150, %v2148
        %v2187 = vpack.c.b16 %v2151, %v2149
        %v2188 = vpack.c.b16 %v2154, %v2152
        %v2189 = vpack.c.b16 %v2155, %v2153
        %v2190 = vpack.c.b16 %v2158, %v2156
        %v2191 = vpack.c.b16 %v2159, %v2157
        %2224 = vmatprep.subr.bf16.mxu0 %v2161
        %2225 = vmatpush1.bf16.msra.mxu0 %v2160
        %2226 = vmatprep.subr.bf16.mxu0 %v2163
        %2227 = vmatpush1.bf16.msra.mxu0 %v2162
        %2228 = vmatprep.subr.bf16.mxu0 %v2165
        %2229 = vmatpush1.bf16.msra.mxu0 %v2164
        %2230 = vmatprep.subr.bf16.mxu0 %v2167
        %2231 = vmatpush1.bf16.msra.mxu0 %v2166
        %2232 = vmatprep.subr.bf16.mxu0 %v2169
        %2233 = vmatpush1.bf16.msra.mxu0 %v2168
        %2234 = vmatprep.subr.bf16.mxu0 %v2171
        %2235 = vmatpush1.bf16.msra.mxu0 %v2170
        %2236 = vmatprep.subr.bf16.mxu0 %v2173
        %2237 = vmatpush1.bf16.msra.mxu0 %v2172
        %2238 = vmatprep.subr.bf16.mxu0 %v2175
        %2239 = vmatpush1.bf16.msra.mxu0 %v2174
        %2240 = vmatprep.subr.bf16.mxu0 %v2177
        %2241 = vmatpush1.bf16.msra.mxu0 %v2176
        %2242 = vmatprep.subr.bf16.mxu0 %v2179
        %2243 = vmatpush1.bf16.msra.mxu0 %v2178
        %2244 = vmatprep.subr.bf16.mxu0 %v2181
        %2245 = vmatpush1.bf16.msra.mxu0 %v2180
        %2246 = vmatprep.subr.bf16.mxu0 %v2183
        %2247 = vmatpush1.bf16.msra.mxu0 %v2182
        %2248 = vmatprep.subr.bf16.mxu0 %v2185
        %2249 = vmatpush1.bf16.msra.mxu0 %v2184
        %2250 = vmatprep.subr.bf16.mxu0 %v2187
        %2251 = vmatpush1.bf16.msra.mxu0 %v2186
        %2252 = vmatprep.subr.bf16.mxu0 %v2189
        %2253 = vmatpush1.bf16.msra.mxu0 %v2188
        %2254 = vmatprep.subr.bf16.mxu0 %v2191
        %2255 = vmatpush1.bf16.msra.mxu0 %v2190
        %2256 = vmatprep.mubr.bf16.mxu0 %v2037
        %2257 = vmatmul.mubr.bf16.gmra.mrb[0].mxu0 %v2025
        %v2258 = vpop.f32.mrb[0].mxu0
        %v2259 = vadd.f32 0.0, %v2258
        %v2260 = vpop.f32.mrb[0].mxu0
        %v2261 = vadd.f32 0.0, %v2260
        %v2262 = vpop.f32.mrb[0].mxu0
        %v2263 = vadd.f32 0.0, %v2262
        %v2264 = vpop.f32.mrb[0].mxu0
        %v2265 = vadd.f32 0.0, %v2264
        %2266 = vmatprep.mubr.bf16.mxu0 %v2053
        %2267 = vmatmul.mubr.bf16.gmra.mrb[0].mxu0 %v2045
        %v2268 = vpop.f32.mrb[0].mxu0
        %v2269 = vadd.f32 0.0, %v2268
        %v2270 = vpop.f32.mrb[0].mxu0
        %v2271 = vadd.f32 0.0, %v2270
        %v2272 = vpop.f32.mrb[0].mxu0
        %v2273 = vadd.f32 0.0, %v2272
        %v2274 = vpop.f32.mrb[0].mxu0
        %v2275 = vadd.f32 0.0, %v2274
        %2276 = vmatprep.mubr.bf16.mxu0 %v2056
        %2277 = vmatmul.mubr.bf16.gmra.mrb[0].mxu0 %v2054
        %v2278 = vpop.f32.mrb[0].mxu0
        %v2279 = vadd.f32 0.0, %v2278
        %v2280 = vpop.f32.mrb[0].mxu0
        %v2281 = vadd.f32 0.0, %v2280
        %v2282 = vpop.f32.mrb[0].mxu0
        %v2283 = vpop.f32.mrb[0].mxu0
        %2284 = vdwg.mxu0
        %v2317 = vunpack.c.l.b16 %v1940
        %v2318 = vunpack.c.h.b16 %v1940
        %v2319 = vunpack.c.l.b16 %v1941
        %v2320 = vunpack.c.h.b16 %v1941
        %v2321 = vunpack.c.l.b16 %v1942
        %v2322 = vunpack.c.h.b16 %v1942
        %v2323 = vunpack.c.l.b16 %v1943
        %v2324 = vunpack.c.h.b16 %v1943
        %v2325 = vunpack.c.l.b16 %v1944
        %v2326 = vunpack.c.h.b16 %v1944
        %v2327 = vunpack.c.l.b16 %v1945
        %v2328 = vunpack.c.h.b16 %v1945
        %v2329 = vunpack.c.l.b16 %v1946
        %v2330 = vunpack.c.h.b16 %v1946
        %v2331 = vunpack.c.l.b16 %v1947
        %v2332 = vunpack.c.h.b16 %v1947
        %v2333 = vunpack.c.l.b16 %v1948
        %v2334 = vunpack.c.h.b16 %v1948
        %v2335 = vunpack.c.l.b16 %v1949
        %v2336 = vunpack.c.h.b16 %v1949
        %v2337 = vunpack.c.l.b16 %v1950
        %v2338 = vunpack.c.h.b16 %v1950
        %v2339 = vunpack.c.l.b16 %v1951
        %v2340 = vunpack.c.h.b16 %v1951
        %v2341 = vunpack.c.l.b16 %v1952
        %v2342 = vunpack.c.h.b16 %v1952
        %v2343 = vunpack.c.l.b16 %v1953
        %v2344 = vunpack.c.h.b16 %v1953
        %v2345 = vunpack.c.l.b16 %v1954
        %v2346 = vunpack.c.h.b16 %v1954
        %v2347 = vunpack.c.l.b16 %v1955
        %v2348 = vunpack.c.h.b16 %v1955
        %v2349 = vunpack.c.l.b16 %v1956
        %v2350 = vunpack.c.h.b16 %v1956
        %v2351 = vunpack.c.l.b16 %v1957
        %v2352 = vunpack.c.h.b16 %v1957
        %v2353 = vunpack.c.l.b16 %v1958
        %v2354 = vunpack.c.h.b16 %v1958
        %v2355 = vunpack.c.l.b16 %v1959
        %v2356 = vunpack.c.h.b16 %v1959
        %v2357 = vunpack.c.l.b16 %v1960
        %v2358 = vunpack.c.h.b16 %v1960
        %v2359 = vunpack.c.l.b16 %v1961
        %v2360 = vunpack.c.h.b16 %v1961
        %v2361 = vunpack.c.l.b16 %v1962
        %v2362 = vunpack.c.h.b16 %v1962
        %v2363 = vunpack.c.l.b16 %v1963
        %v2364 = vunpack.c.h.b16 %v1963
        %v2365 = vunpack.c.l.b16 %v1964
        %v2366 = vunpack.c.h.b16 %v1964
        %v2367 = vunpack.c.l.b16 %v1965
        %v2368 = vunpack.c.h.b16 %v1965
        %v2369 = vunpack.c.l.b16 %v1966
        %v2370 = vunpack.c.h.b16 %v1966
        %v2371 = vunpack.c.l.b16 %v1967
        %v2372 = vunpack.c.h.b16 %v1967
        %v2373 = vunpack.c.l.b16 %v1968
        %v2374 = vunpack.c.h.b16 %v1968
        %v2375 = vunpack.c.l.b16 %v1969
        %v2376 = vunpack.c.h.b16 %v1969
        %v2377 = vunpack.c.l.b16 %v1970
        %v2378 = vunpack.c.h.b16 %v1970
        %v2379 = vunpack.c.l.b16 %v1971
        %v2380 = vunpack.c.h.b16 %v1971
        %v2381 = vpack.c.b16 %v2319, %v2317
        %v2382 = vpack.c.b16 %v2320, %v2318
        %v2383 = vpack.c.b16 %v2323, %v2321
        %v2384 = vpack.c.b16 %v2324, %v2322
        %v2385 = vpack.c.b16 %v2327, %v2325
        %v2386 = vpack.c.b16 %v2328, %v2326
        %v2387 = vpack.c.b16 %v2331, %v2329
        %v2388 = vpack.c.b16 %v2332, %v2330
        %v2389 = vpack.c.b16 %v2335, %v2333
        %v2390 = vpack.c.b16 %v2336, %v2334
        %v2391 = vpack.c.b16 %v2339, %v2337
        %v2392 = vpack.c.b16 %v2340, %v2338
        %v2393 = vpack.c.b16 %v2343, %v2341
        %v2394 = vpack.c.b16 %v2344, %v2342
        %v2395 = vpack.c.b16 %v2347, %v2345
        %v2396 = vpack.c.b16 %v2348, %v2346
        %v2397 = vpack.c.b16 %v2351, %v2349
        %v2398 = vpack.c.b16 %v2352, %v2350
        %v2399 = vpack.c.b16 %v2355, %v2353
        %v2400 = vpack.c.b16 %v2356, %v2354
        %v2401 = vpack.c.b16 %v2359, %v2357
        %v2402 = vpack.c.b16 %v2360, %v2358
        %v2403 = vpack.c.b16 %v2363, %v2361
        %v2404 = vpack.c.b16 %v2364, %v2362
        %v2405 = vpack.c.b16 %v2367, %v2365
        %v2406 = vpack.c.b16 %v2368, %v2366
        %v2407 = vpack.c.b16 %v2371, %v2369
        %v2408 = vpack.c.b16 %v2372, %v2370
        %v2409 = vpack.c.b16 %v2375, %v2373
        %v2410 = vpack.c.b16 %v2376, %v2374
        %v2411 = vpack.c.b16 %v2379, %v2377
        %v2412 = vpack.c.b16 %v2380, %v2378
        %2445 = vmatprep.subr.bf16.mxu0 %v2382
        %2446 = vmatpush1.bf16.msra.mxu0 %v2381
        %2447 = vmatprep.subr.bf16.mxu0 %v2384
        %2448 = vmatpush1.bf16.msra.mxu0 %v2383
        %2449 = vmatprep.subr.bf16.mxu0 %v2386
        %2450 = vmatpush1.bf16.msra.mxu0 %v2385
        %2451 = vmatprep.subr.bf16.mxu0 %v2388
        %2452 = vmatpush1.bf16.msra.mxu0 %v2387
        %2453 = vmatprep.subr.bf16.mxu0 %v2390
        %2454 = vmatpush1.bf16.msra.mxu0 %v2389
        %2455 = vmatprep.subr.bf16.mxu0 %v2392
        %2456 = vmatpush1.bf16.msra.mxu0 %v2391
        %2457 = vmatprep.subr.bf16.mxu0 %v2394
        %2458 = vmatpush1.bf16.msra.mxu0 %v2393
        %2459 = vmatprep.subr.bf16.mxu0 %v2396
        %2460 = vmatpush1.bf16.msra.mxu0 %v2395
        %2461 = vmatprep.subr.bf16.mxu0 %v2398
        %2462 = vmatpush1.bf16.msra.mxu0 %v2397
        %2463 = vmatprep.subr.bf16.mxu0 %v2400
        %2464 = vmatpush1.bf16.msra.mxu0 %v2399
        %2465 = vmatprep.subr.bf16.mxu0 %v2402
        %2466 = vmatpush1.bf16.msra.mxu0 %v2401
        %2467 = vmatprep.subr.bf16.mxu0 %v2404
        %2468 = vmatpush1.bf16.msra.mxu0 %v2403
        %2469 = vmatprep.subr.bf16.mxu0 %v2406
        %2470 = vmatpush1.bf16.msra.mxu0 %v2405
        %2471 = vmatprep.subr.bf16.mxu0 %v2408
        %2472 = vmatpush1.bf16.msra.mxu0 %v2407
        %2473 = vmatprep.subr.bf16.mxu0 %v2410
        %2474 = vmatpush1.bf16.msra.mxu0 %v2409
        %2475 = vmatprep.subr.bf16.mxu0 %v2412
        %2476 = vmatpush1.bf16.msra.mxu0 %v2411
        %2477 = vmatprep.mubr.bf16.mxu0 %v1935
        %2478 = vmatmul.mubr.bf16.gmra.mrb[0].mxu0 %v1934
        %v2479 = vpop.f32.mrb[0].mxu0
        %v2480 = vadd.f32 %v2259, %v2479
        %v2481 = vpop.f32.mrb[0].mxu0
        %v2482 = vadd.f32 %v2261, %v2481
        %v2483 = vpop.f32.mrb[0].mxu0
        %v2484 = vadd.f32 %v2263, %v2483
        %v2485 = vpop.f32.mrb[0].mxu0
        %v2486 = vadd.f32 %v2265, %v2485
        %2487 = vmatprep.mubr.bf16.mxu0 %v1937
        %2488 = vmatmul.mubr.bf16.gmra.mrb[0].mxu0 %v1936
        %v2489 = vpop.f32.mrb[0].mxu0
        %v2490 = vadd.f32 %v2269, %v2489
        %v2491 = vpop.f32.mrb[0].mxu0
        %v2492 = vadd.f32 %v2271, %v2491
        %v2493 = vpop.f32.mrb[0].mxu0
        %v2494 = vadd.f32 %v2273, %v2493
        %v2495 = vpop.f32.mrb[0].mxu0
        %v2496 = vadd.f32 %v2275, %v2495
        %2497 = vmatprep.mubr.bf16.mxu0 %v1939
        %2498 = vmatmul.mubr.bf16.gmra.mrb[0].mxu0 %v1938
        %v2499 = vpop.f32.mrb[0].mxu0
        %v2500 = vadd.f32 %v2279, %v2499
        %v2501 = vpop.f32.mrb[0].mxu0
        %v2502 = vadd.f32 %v2281, %v2501
        %v2503 = vpop.f32.mrb[0].mxu0
        %v2504 = vpop.f32.mrb[0].mxu0
        %2505 = vdwg.mxu0
        %v2506 = vld [vmem:[#allocation2] sm:$0xfc]
        %v2507 = vld [vmem:[#allocation2 + $0x8] sm:$0xfc]
        %v2508 = vld [vmem:[#allocation2 + $0x40] sm:$0x7]
        %v2509 = vld [vmem:[#allocation2 + $0x48] sm:$0x7]
        %v2510 = vpack.c.bf16 %v1926, %v2506
        %v2511 = vpack.c.bf16 %v1927, %v2507
        %v2512 = vpack.c.bf16 %v2508, %v2508
        %v2513 = vpack.c.bf16 %v2509, %v2509
        %s2514 = scalar_lea.vmem [#allocation11], 512
        %v2515 = vld [vmem:[%s2514] sm:$0xff]
        %v2516 = vld [vmem:[%s2514 + $0x8] sm:$0xff]
        %v2517 = vld [vmem:[%s2514 + $0x10] sm:$0xff]
        %v2518 = vld [vmem:[%s2514 + $0x18] sm:$0xff]
        %v2519 = vld [vmem:[%s2514 + $0x20] sm:$0xff]
        %v2520 = vld [vmem:[%s2514 + $0x28] sm:$0xff]
        %v2521 = vld [vmem:[%s2514 + $0x30] sm:$0xff]
        %v2522 = vld [vmem:[%s2514 + $0x38] sm:$0xff]
        %v2523 = vld [vmem:[%s2514 + $0x40] sm:$0xff]
        %v2524 = vld [vmem:[%s2514 + $0x48] sm:$0xff]
        %v2525 = vld [vmem:[%s2514 + $0x50] sm:$0xff]
        %v2526 = vld [vmem:[%s2514 + $0x58] sm:$0xff]
        %v2527 = vld [vmem:[%s2514 + $0x60] sm:$0xff]
        %v2528 = vld [vmem:[%s2514 + $0x68] sm:$0xff]
        %v2529 = vld [vmem:[%s2514 + $0x70] sm:$0xff]
        %v2530 = vld [vmem:[%s2514 + $0x78] sm:$0xff]
        %v2531 = vld [vmem:[%s2514 + $0x80] sm:$0xff]
        %v2532 = vld [vmem:[%s2514 + $0x88] sm:$0xff]
        %v2533 = vld [vmem:[%s2514 + $0x90] sm:$0xff]
        %v2534 = vld [vmem:[%s2514 + $0x98] sm:$0xff]
        %v2535 = vld [vmem:[%s2514 + $0xa0] sm:$0xff]
        %v2536 = vld [vmem:[%s2514 + $0xa8] sm:$0xff]
        %v2537 = vld [vmem:[%s2514 + $0xb0] sm:$0xff]
        %v2538 = vld [vmem:[%s2514 + $0xb8] sm:$0xff]
        %v2539 = vld [vmem:[%s2514 + $0xc0] sm:$0xff]
        %v2540 = vld [vmem:[%s2514 + $0xc8] sm:$0xff]
        %v2541 = vld [vmem:[%s2514 + $0xd0] sm:$0xff]
        %v2542 = vld [vmem:[%s2514 + $0xd8] sm:$0xff]
        %v2543 = vld [vmem:[%s2514 + $0xe0] sm:$0xff]
        %v2544 = vld [vmem:[%s2514 + $0xe8] sm:$0xff]
        %v2545 = vld [vmem:[%s2514 + $0xf0] sm:$0xff]
        %v2546 = vld [vmem:[%s2514 + $0xf8] sm:$0xff]
        %vm2553 = vcmask 1046528
        %v2554 = vrot.slane %v2510, 1
        %v2555 = vrot.slane %v1936, 1
        %v2556 = vsel %vm2553, %v2554, %v2555
        %v2557 = vrot.slane %v2511, 1
        %v2558 = vrot.slane %v1937, 1
        %v2559 = vsel %vm2553, %v2557, %v2558
        %v2560 = vrot.slane %v2512, 1
        %v2561 = vsel %vm2553, %v2555, %v2560
        %v2562 = vrot.slane %v2513, 1
        %v2563 = vsel %vm2553, %v2558, %v2562
        %v2602 = vunpack.c.l.b16 %v2515
        %v2603 = vunpack.c.h.b16 %v2515
        %v2604 = vunpack.c.l.b16 %v2516
        %v2605 = vunpack.c.h.b16 %v2516
        %v2606 = vunpack.c.l.b16 %v2517
        %v2607 = vunpack.c.h.b16 %v2517
        %v2608 = vunpack.c.l.b16 %v2518
        %v2609 = vunpack.c.h.b16 %v2518
        %v2610 = vunpack.c.l.b16 %v2519
        %v2611 = vunpack.c.h.b16 %v2519
        %v2612 = vunpack.c.l.b16 %v2520
        %v2613 = vunpack.c.h.b16 %v2520
        %v2614 = vunpack.c.l.b16 %v2521
        %v2615 = vunpack.c.h.b16 %v2521
        %v2616 = vunpack.c.l.b16 %v2522
        %v2617 = vunpack.c.h.b16 %v2522
        %v2618 = vunpack.c.l.b16 %v2523
        %v2619 = vunpack.c.h.b16 %v2523
        %v2620 = vunpack.c.l.b16 %v2524
        %v2621 = vunpack.c.h.b16 %v2524
        %v2622 = vunpack.c.l.b16 %v2525
        %v2623 = vunpack.c.h.b16 %v2525
        %v2624 = vunpack.c.l.b16 %v2526
        %v2625 = vunpack.c.h.b16 %v2526
        %v2626 = vunpack.c.l.b16 %v2527
        %v2627 = vunpack.c.h.b16 %v2527
        %v2628 = vunpack.c.l.b16 %v2528
        %v2629 = vunpack.c.h.b16 %v2528
        %v2630 = vunpack.c.l.b16 %v2529
        %v2631 = vunpack.c.h.b16 %v2529
        %v2632 = vunpack.c.l.b16 %v2530
        %v2633 = vunpack.c.h.b16 %v2530
        %v2634 = vunpack.c.l.b16 %v2531
        %v2635 = vunpack.c.h.b16 %v2531
        %v2636 = vunpack.c.l.b16 %v2532
        %v2637 = vunpack.c.h.b16 %v2532
        %v2638 = vunpack.c.l.b16 %v2533
        %v2639 = vunpack.c.h.b16 %v2533
        %v2640 = vunpack.c.l.b16 %v2534
        %v2641 = vunpack.c.h.b16 %v2534
        %v2642 = vunpack.c.l.b16 %v2535
        %v2643 = vunpack.c.h.b16 %v2535
        %v2644 = vunpack.c.l.b16 %v2536
        %v2645 = vunpack.c.h.b16 %v2536
        %v2646 = vunpack.c.l.b16 %v2537
        %v2647 = vunpack.c.h.b16 %v2537
        %v2648 = vunpack.c.l.b16 %v2538
        %v2649 = vunpack.c.h.b16 %v2538
        %v2650 = vunpack.c.l.b16 %v2539
        %v2651 = vunpack.c.h.b16 %v2539
        %v2652 = vunpack.c.l.b16 %v2540
        %v2653 = vunpack.c.h.b16 %v2540
        %v2654 = vunpack.c.l.b16 %v2541
        %v2655 = vunpack.c.h.b16 %v2541
        %v2656 = vunpack.c.l.b16 %v2542
        %v2657 = vunpack.c.h.b16 %v2542
        %v2658 = vunpack.c.l.b16 %v2543
        %v2659 = vunpack.c.h.b16 %v2543
        %v2660 = vunpack.c.l.b16 %v2544
        %v2661 = vunpack.c.h.b16 %v2544
        %v2662 = vunpack.c.l.b16 %v2545
        %v2663 = vunpack.c.h.b16 %v2545
        %v2664 = vunpack.c.l.b16 %v2546
        %v2665 = vunpack.c.h.b16 %v2546
        %v2666 = vpack.c.b16 %v2604, %v2602
        %v2667 = vpack.c.b16 %v2605, %v2603
        %v2668 = vpack.c.b16 %v2608, %v2606
        %v2669 = vpack.c.b16 %v2609, %v2607
        %v2670 = vpack.c.b16 %v2612, %v2610
        %v2671 = vpack.c.b16 %v2613, %v2611
        %v2672 = vpack.c.b16 %v2616, %v2614
        %v2673 = vpack.c.b16 %v2617, %v2615
        %v2674 = vpack.c.b16 %v2620, %v2618
        %v2675 = vpack.c.b16 %v2621, %v2619
        %v2676 = vpack.c.b16 %v2624, %v2622
        %v2677 = vpack.c.b16 %v2625, %v2623
        %v2678 = vpack.c.b16 %v2628, %v2626
        %v2679 = vpack.c.b16 %v2629, %v2627
        %v2680 = vpack.c.b16 %v2632, %v2630
        %v2681 = vpack.c.b16 %v2633, %v2631
        %v2682 = vpack.c.b16 %v2636, %v2634
        %v2683 = vpack.c.b16 %v2637, %v2635
        %v2684 = vpack.c.b16 %v2640, %v2638
        %v2685 = vpack.c.b16 %v2641, %v2639
        %v2686 = vpack.c.b16 %v2644, %v2642
        %v2687 = vpack.c.b16 %v2645, %v2643
        %v2688 = vpack.c.b16 %v2648, %v2646
        %v2689 = vpack.c.b16 %v2649, %v2647
        %v2690 = vpack.c.b16 %v2652, %v2650
        %v2691 = vpack.c.b16 %v2653, %v2651
        %v2692 = vpack.c.b16 %v2656, %v2654
        %v2693 = vpack.c.b16 %v2657, %v2655
        %v2694 = vpack.c.b16 %v2660, %v2658
        %v2695 = vpack.c.b16 %v2661, %v2659
        %v2696 = vpack.c.b16 %v2664, %v2662
        %v2697 = vpack.c.b16 %v2665, %v2663
        %2730 = vmatprep.subr.bf16.mxu0 %v2667
        %2731 = vmatpush1.bf16.msra.mxu0 %v2666
        %2732 = vmatprep.subr.bf16.mxu0 %v2669
        %2733 = vmatpush1.bf16.msra.mxu0 %v2668
        %2734 = vmatprep.subr.bf16.mxu0 %v2671
        %2735 = vmatpush1.bf16.msra.mxu0 %v2670
        %2736 = vmatprep.subr.bf16.mxu0 %v2673
        %2737 = vmatpush1.bf16.msra.mxu0 %v2672
        %2738 = vmatprep.subr.bf16.mxu0 %v2675
        %2739 = vmatpush1.bf16.msra.mxu0 %v2674
        %2740 = vmatprep.subr.bf16.mxu0 %v2677
        %2741 = vmatpush1.bf16.msra.mxu0 %v2676
        %2742 = vmatprep.subr.bf16.mxu0 %v2679
        %2743 = vmatpush1.bf16.msra.mxu0 %v2678
        %2744 = vmatprep.subr.bf16.mxu0 %v2681
        %2745 = vmatpush1.bf16.msra.mxu0 %v2680
        %2746 = vmatprep.subr.bf16.mxu0 %v2683
        %2747 = vmatpush1.bf16.msra.mxu0 %v2682
        %2748 = vmatprep.subr.bf16.mxu0 %v2685
        %2749 = vmatpush1.bf16.msra.mxu0 %v2684
        %2750 = vmatprep.subr.bf16.mxu0 %v2687
        %2751 = vmatpush1.bf16.msra.mxu0 %v2686
        %2752 = vmatprep.subr.bf16.mxu0 %v2689
        %2753 = vmatpush1.bf16.msra.mxu0 %v2688
        %2754 = vmatprep.subr.bf16.mxu0 %v2691
        %2755 = vmatpush1.bf16.msra.mxu0 %v2690
        %2756 = vmatprep.subr.bf16.mxu0 %v2693
        %2757 = vmatpush1.bf16.msra.mxu0 %v2692
        %2758 = vmatprep.subr.bf16.mxu0 %v2695
        %2759 = vmatpush1.bf16.msra.mxu0 %v2694
        %2760 = vmatprep.subr.bf16.mxu0 %v2697
        %2761 = vmatpush1.bf16.msra.mxu0 %v2696
        %2762 = vmatprep.mubr.bf16.mxu0 %v2559
        %2763 = vmatmul.mubr.bf16.gmra.mrb[0].mxu0 %v2556
        %v2764 = vpop.f32.mrb[0].mxu0
        %v2765 = vadd.f32 0.0, %v2764
        %v2766 = vpop.f32.mrb[0].mxu0
        %v2767 = vadd.f32 0.0, %v2766
        %v2768 = vpop.f32.mrb[0].mxu0
        %v2769 = vadd.f32 0.0, %v2768
        %v2770 = vpop.f32.mrb[0].mxu0
        %v2771 = vadd.f32 0.0, %v2770
        %2772 = vmatprep.mubr.bf16.mxu0 %v2563
        %2773 = vmatmul.mubr.bf16.gmra.mrb[0].mxu0 %v2561
        %v2774 = vpop.f32.mrb[0].mxu0
        %v2775 = vadd.f32 0.0, %v2774
        %v2776 = vpop.f32.mrb[0].mxu0
        %v2777 = vadd.f32 0.0, %v2776
        %v2778 = vpop.f32.mrb[0].mxu0
        %v2779 = vadd.f32 0.0, %v2778
        %v2780 = vpop.f32.mrb[0].mxu0
        %v2781 = vadd.f32 0.0, %v2780
        %2782 = vmatprep.mubr.bf16.mxu0 %v2562
        %2783 = vmatmul.mubr.bf16.gmra.mrb[0].mxu0 %v2560
        %v2784 = vpop.f32.mrb[0].mxu0
        %v2785 = vadd.f32 0.0, %v2784
        %v2786 = vpop.f32.mrb[0].mxu0
        %v2787 = vadd.f32 0.0, %v2786
        %v2788 = vpop.f32.mrb[0].mxu0
        %v2789 = vpop.f32.mrb[0].mxu0
        %2790 = vdwg.mxu0
        %v2791 = vadd.f32 %v2480, %v2765
        %v2792 = vadd.f32 %v2482, %v2767
        %v2793 = vadd.f32 %v2484, %v2769
        %v2794 = vadd.f32 %v2486, %v2771
        %v2795 = vadd.f32 %v2490, %v2775
        %v2796 = vadd.f32 %v2492, %v2777
        %v2797 = vadd.f32 %v2494, %v2779
        %v2798 = vadd.f32 %v2496, %v2781
        %v2799 = vadd.f32 %v2500, %v2785
        %v2800 = vadd.f32 %v2502, %v2787
        %v2801 = vld [vmem:[#allocation2] sm:$0x80]
        %v2802 = vld [vmem:[#allocation2 + $0x8] sm:$0x80]
        %v2803 = vld [vmem:[#allocation2 + $0x40] sm:$0xff]
        %v2804 = vld [vmem:[#allocation2 + $0x48] sm:$0xff]
        %v2805 = vpack.c.bf16 %v1926, %v2801
        %v2806 = vpack.c.bf16 %v1927, %v2802
        %v2807 = vpack.c.bf16 %v2803, %v2803
        %v2808 = vpack.c.bf16 %v2804, %v2804
        %s2809 = scalar_lea.vmem [#allocation11], 768
        %v2810 = vld [vmem:[%s2809] sm:$0xff]
        %v2811 = vld [vmem:[%s2809 + $0x8] sm:$0xff]
        %v2812 = vld [vmem:[%s2809 + $0x10] sm:$0xff]
        %v2813 = vld [vmem:[%s2809 + $0x18] sm:$0xff]
        %v2814 = vld [vmem:[%s2809 + $0x20] sm:$0xff]
        %v2815 = vld [vmem:[%s2809 + $0x28] sm:$0xff]
        %v2816 = vld [vmem:[%s2809 + $0x30] sm:$0xff]
        %v2817 = vld [vmem:[%s2809 + $0x38] sm:$0xff]
        %v2818 = vld [vmem:[%s2809 + $0x40] sm:$0xff]
        %v2819 = vld [vmem:[%s2809 + $0x48] sm:$0xff]
        %v2820 = vld [vmem:[%s2809 + $0x50] sm:$0xff]
        %v2821 = vld [vmem:[%s2809 + $0x58] sm:$0xff]
        %v2822 = vld [vmem:[%s2809 + $0x60] sm:$0xff]
        %v2823 = vld [vmem:[%s2809 + $0x68] sm:$0xff]
        %v2824 = vld [vmem:[%s2809 + $0x70] sm:$0xff]
        %v2825 = vld [vmem:[%s2809 + $0x78] sm:$0xff]
        %v2826 = vld [vmem:[%s2809 + $0x80] sm:$0xff]
        %v2827 = vld [vmem:[%s2809 + $0x88] sm:$0xff]
        %v2828 = vld [vmem:[%s2809 + $0x90] sm:$0xff]
        %v2829 = vld [vmem:[%s2809 + $0x98] sm:$0xff]
        %v2830 = vld [vmem:[%s2809 + $0xa0] sm:$0xff]
        %v2831 = vld [vmem:[%s2809 + $0xa8] sm:$0xff]
        %v2832 = vld [vmem:[%s2809 + $0xb0] sm:$0xff]
        %v2833 = vld [vmem:[%s2809 + $0xb8] sm:$0xff]
        %v2834 = vld [vmem:[%s2809 + $0xc0] sm:$0xff]
        %v2835 = vld [vmem:[%s2809 + $0xc8] sm:$0xff]
        %v2836 = vld [vmem:[%s2809 + $0xd0] sm:$0xff]
        %v2837 = vld [vmem:[%s2809 + $0xd8] sm:$0xff]
        %v2838 = vld [vmem:[%s2809 + $0xe0] sm:$0xff]
        %v2839 = vld [vmem:[%s2809 + $0xe8] sm:$0xff]
        %v2840 = vld [vmem:[%s2809 + $0xf0] sm:$0xff]
        %v2841 = vld [vmem:[%s2809 + $0xf8] sm:$0xff]
        %vm2842 = vsmask.f32 4352
        %v2844 = vshrl.u32 %v2805, 16
        %v2846 = vrot.slane %v2844, 3
        %v2847 = vshll.u32 %v2805, 16
        %v2849 = vrot.slane %v2847, 4
        %v2850 = vor.u32 %v2846, %v2849
        %v2851 = vrot.slane %v2038, 3
        %v2852 = vrot.slane %v2022, 4
        %v2853 = vor.u32 %v2851, %v2852
        %v2854 = vsel %vm2842, %v2850, %v2853
        %v2856 = vshrl.u32 %v2806, 16
        %v2858 = vrot.slane %v2856, 3
        %v2859 = vshll.u32 %v2806, 16
        %v2861 = vrot.slane %v2859, 4
        %v2862 = vor.u32 %v2858, %v2861
        %v2863 = vrot.slane %v2046, 3
        %v2864 = vrot.slane %v2034, 4
        %v2865 = vor.u32 %v2863, %v2864
        %v2866 = vsel %vm2842, %v2862, %v2865
        %v2868 = vshrl.u32 %v2807, 16
        %v2870 = vrot.slane %v2868, 3
        %v2871 = vshll.u32 %v2807, 16
        %v2873 = vrot.slane %v2871, 4
        %v2874 = vor.u32 %v2870, %v2873
        %v2875 = vsel %vm2842, %v2853, %v2874
        %v2877 = vshrl.u32 %v2808, 16
        %v2879 = vrot.slane %v2877, 3
        %v2880 = vshll.u32 %v2808, 16
        %v2882 = vrot.slane %v2880, 4
        %v2883 = vor.u32 %v2879, %v2882
        %v2884 = vsel %vm2842, %v2865, %v2883
        %v2923 = vunpack.c.l.b16 %v2810
        %v2924 = vunpack.c.h.b16 %v2810
        %v2925 = vunpack.c.l.b16 %v2811
        %v2926 = vunpack.c.h.b16 %v2811
        %v2927 = vunpack.c.l.b16 %v2812
        %v2928 = vunpack.c.h.b16 %v2812
        %v2929 = vunpack.c.l.b16 %v2813
        %v2930 = vunpack.c.h.b16 %v2813
        %v2931 = vunpack.c.l.b16 %v2814
        %v2932 = vunpack.c.h.b16 %v2814
        %v2933 = vunpack.c.l.b16 %v2815
        %v2934 = vunpack.c.h.b16 %v2815
        %v2935 = vunpack.c.l.b16 %v2816
        %v2936 = vunpack.c.h.b16 %v2816
        %v2937 = vunpack.c.l.b16 %v2817
        %v2938 = vunpack.c.h.b16 %v2817
        %v2939 = vunpack.c.l.b16 %v2818
        %v2940 = vunpack.c.h.b16 %v2818
        %v2941 = vunpack.c.l.b16 %v2819
        %v2942 = vunpack.c.h.b16 %v2819
        %v2943 = vunpack.c.l.b16 %v2820
        %v2944 = vunpack.c.h.b16 %v2820
        %v2945 = vunpack.c.l.b16 %v2821
        %v2946 = vunpack.c.h.b16 %v2821
        %v2947 = vunpack.c.l.b16 %v2822
        %v2948 = vunpack.c.h.b16 %v2822
        %v2949 = vunpack.c.l.b16 %v2823
        %v2950 = vunpack.c.h.b16 %v2823
        %v2951 = vunpack.c.l.b16 %v2824
        %v2952 = vunpack.c.h.b16 %v2824
        %v2953 = vunpack.c.l.b16 %v2825
        %v2954 = vunpack.c.h.b16 %v2825
        %v2955 = vunpack.c.l.b16 %v2826
        %v2956 = vunpack.c.h.b16 %v2826
        %v2957 = vunpack.c.l.b16 %v2827
        %v2958 = vunpack.c.h.b16 %v2827
        %v2959 = vunpack.c.l.b16 %v2828
        %v2960 = vunpack.c.h.b16 %v2828
        %v2961 = vunpack.c.l.b16 %v2829
        %v2962 = vunpack.c.h.b16 %v2829
        %v2963 = vunpack.c.l.b16 %v2830
        %v2964 = vunpack.c.h.b16 %v2830
        %v2965 = vunpack.c.l.b16 %v2831
        %v2966 = vunpack.c.h.b16 %v2831
        %v2967 = vunpack.c.l.b16 %v2832
        %v2968 = vunpack.c.h.b16 %v2832
        %v2969 = vunpack.c.l.b16 %v2833
        %v2970 = vunpack.c.h.b16 %v2833
        %v2971 = vunpack.c.l.b16 %v2834
        %v2972 = vunpack.c.h.b16 %v2834
        %v2973 = vunpack.c.l.b16 %v2835
        %v2974 = vunpack.c.h.b16 %v2835
        %v2975 = vunpack.c.l.b16 %v2836
        %v2976 = vunpack.c.h.b16 %v2836
        %v2977 = vunpack.c.l.b16 %v2837
        %v2978 = vunpack.c.h.b16 %v2837
        %v2979 = vunpack.c.l.b16 %v2838
        %v2980 = vunpack.c.h.b16 %v2838
        %v2981 = vunpack.c.l.b16 %v2839
        %v2982 = vunpack.c.h.b16 %v2839
        %v2983 = vunpack.c.l.b16 %v2840
        %v2984 = vunpack.c.h.b16 %v2840
        %v2985 = vunpack.c.l.b16 %v2841
        %v2986 = vunpack.c.h.b16 %v2841
        %v2987 = vpack.c.b16 %v2925, %v2923
        %v2988 = vpack.c.b16 %v2926, %v2924
        %v2989 = vpack.c.b16 %v2929, %v2927
        %v2990 = vpack.c.b16 %v2930, %v2928
        %v2991 = vpack.c.b16 %v2933, %v2931
        %v2992 = vpack.c.b16 %v2934, %v2932
        %v2993 = vpack.c.b16 %v2937, %v2935
        %v2994 = vpack.c.b16 %v2938, %v2936
        %v2995 = vpack.c.b16 %v2941, %v2939
        %v2996 = vpack.c.b16 %v2942, %v2940
        %v2997 = vpack.c.b16 %v2945, %v2943
        %v2998 = vpack.c.b16 %v2946, %v2944
        %v2999 = vpack.c.b16 %v2949, %v2947
        %v3000 = vpack.c.b16 %v2950, %v2948
        %v3001 = vpack.c.b16 %v2953, %v2951
        %v3002 = vpack.c.b16 %v2954, %v2952
        %v3003 = vpack.c.b16 %v2957, %v2955
        %v3004 = vpack.c.b16 %v2958, %v2956
        %v3005 = vpack.c.b16 %v2961, %v2959
        %v3006 = vpack.c.b16 %v2962, %v2960
        %v3007 = vpack.c.b16 %v2965, %v2963
        %v3008 = vpack.c.b16 %v2966, %v2964
        %v3009 = vpack.c.b16 %v2969, %v2967
        %v3010 = vpack.c.b16 %v2970, %v2968
        %v3011 = vpack.c.b16 %v2973, %v2971
        %v3012 = vpack.c.b16 %v2974, %v2972
        %v3013 = vpack.c.b16 %v2977, %v2975
        %v3014 = vpack.c.b16 %v2978, %v2976
        %v3015 = vpack.c.b16 %v2981, %v2979
        %v3016 = vpack.c.b16 %v2982, %v2980
        %v3017 = vpack.c.b16 %v2985, %v2983
        %v3018 = vpack.c.b16 %v2986, %v2984
        %3051 = vmatprep.subr.bf16.mxu0 %v2988
        %3052 = vmatpush1.bf16.msra.mxu0 %v2987
        %3053 = vmatprep.subr.bf16.mxu0 %v2990
        %3054 = vmatpush1.bf16.msra.mxu0 %v2989
        %3055 = vmatprep.subr.bf16.mxu0 %v2992
        %3056 = vmatpush1.bf16.msra.mxu0 %v2991
        %3057 = vmatprep.subr.bf16.mxu0 %v2994
        %3058 = vmatpush1.bf16.msra.mxu0 %v2993
        %3059 = vmatprep.subr.bf16.mxu0 %v2996
        %3060 = vmatpush1.bf16.msra.mxu0 %v2995
        %3061 = vmatprep.subr.bf16.mxu0 %v2998
        %3062 = vmatpush1.bf16.msra.mxu0 %v2997
        %3063 = vmatprep.subr.bf16.mxu0 %v3000
        %3064 = vmatpush1.bf16.msra.mxu0 %v2999
        %3065 = vmatprep.subr.bf16.mxu0 %v3002
        %3066 = vmatpush1.bf16.msra.mxu0 %v3001
        %3067 = vmatprep.subr.bf16.mxu0 %v3004
        %3068 = vmatpush1.bf16.msra.mxu0 %v3003
        %3069 = vmatprep.subr.bf16.mxu0 %v3006
        %3070 = vmatpush1.bf16.msra.mxu0 %v3005
        %3071 = vmatprep.subr.bf16.mxu0 %v3008
        %3072 = vmatpush1.bf16.msra.mxu0 %v3007
        %3073 = vmatprep.subr.bf16.mxu0 %v3010
        %3074 = vmatpush1.bf16.msra.mxu0 %v3009
        %3075 = vmatprep.subr.bf16.mxu0 %v3012
        %3076 = vmatpush1.bf16.msra.mxu0 %v3011
        %3077 = vmatprep.subr.bf16.mxu0 %v3014
        %3078 = vmatpush1.bf16.msra.mxu0 %v3013
        %3079 = vmatprep.subr.bf16.mxu0 %v3016
        %3080 = vmatpush1.bf16.msra.mxu0 %v3015
        %3081 = vmatprep.subr.bf16.mxu0 %v3018
        %3082 = vmatpush1.bf16.msra.mxu0 %v3017
        %3083 = vmatprep.mubr.bf16.mxu0 %v2866
        %3084 = vmatmul.mubr.bf16.gmra.mrb[0].mxu0 %v2854
        %v3085 = vpop.f32.mrb[0].mxu0
        %v3086 = vadd.f32 0.0, %v3085
        %v3087 = vpop.f32.mrb[0].mxu0
        %v3088 = vadd.f32 0.0, %v3087
        %v3089 = vpop.f32.mrb[0].mxu0
        %v3090 = vadd.f32 0.0, %v3089
        %v3091 = vpop.f32.mrb[0].mxu0
        %v3092 = vadd.f32 0.0, %v3091
        %3093 = vmatprep.mubr.bf16.mxu0 %v2884
        %3094 = vmatmul.mubr.bf16.gmra.mrb[0].mxu0 %v2875
        %v3095 = vpop.f32.mrb[0].mxu0
        %v3096 = vadd.f32 0.0, %v3095
        %v3097 = vpop.f32.mrb[0].mxu0
        %v3098 = vadd.f32 0.0, %v3097
        %v3099 = vpop.f32.mrb[0].mxu0
        %v3100 = vadd.f32 0.0, %v3099
        %v3101 = vpop.f32.mrb[0].mxu0
        %v3102 = vadd.f32 0.0, %v3101
        %3103 = vmatprep.mubr.bf16.mxu0 %v2879
        %3104 = vmatmul.mubr.bf16.gmra.mrb[0].mxu0 %v2870
        %v3105 = vpop.f32.mrb[0].mxu0
        %v3106 = vadd.f32 0.0, %v3105
        %v3107 = vpop.f32.mrb[0].mxu0
        %v3108 = vadd.f32 0.0, %v3107
        %v3109 = vpop.f32.mrb[0].mxu0
        %v3110 = vpop.f32.mrb[0].mxu0
        %3111 = vdwg.mxu0
        %v3112 = vadd.f32 %v2791, %v3086
        %v3113 = vadd.f32 %v2792, %v3088
        %v3114 = vadd.f32 %v2793, %v3090
        %v3115 = vadd.f32 %v2794, %v3092
        %v3116 = vadd.f32 %v2795, %v3096
        %v3117 = vadd.f32 %v2796, %v3098
        %v3118 = vadd.f32 %v2797, %v3100
        %v3119 = vadd.f32 %v2798, %v3102
        %v3120 = vadd.f32 %v2799, %v3106
        %v3121 = vadd.f32 %v2800, %v3108
        %v3122 = vld [vmem:[#allocation2 + $0x10] sm:$0xff]
        %v3123 = vld [vmem:[#allocation2 + $0x18] sm:$0xff]
        %v3124 = vld [vmem:[#allocation2 + $0x20] sm:$0xff]
        %v3125 = vld [vmem:[#allocation2 + $0x28] sm:$0xff]
        %v3126 = vld [vmem:[#allocation2 + $0x30] sm:$0xff]
        %v3127 = vld [vmem:[#allocation2 + $0x38] sm:$0xff]
        %v3128 = vld [vmem:[#allocation2 + $0x40] sm:$0xff]
        %v3129 = vld [vmem:[#allocation2 + $0x48] sm:$0xff]
        %v3130 = vld [vmem:[#allocation2 + $0x50] sm:$0x1]
        %v3131 = vld [vmem:[#allocation2 + $0x58] sm:$0x1]
        %v3132 = vpack.c.bf16 %v3124, %v3122
        %v3133 = vpack.c.bf16 %v3125, %v3123
        %v3134 = vpack.c.bf16 %v3128, %v3126
        %v3135 = vpack.c.bf16 %v3129, %v3127
        %v3136 = vpack.c.bf16 %v3130, %v3130
        %v3137 = vpack.c.bf16 %v3131, %v3131
        %s3138 = scalar_lea.vmem [#allocation11], 1024
        %v3139 = vld [vmem:[%s3138] sm:$0xff]
        %v3140 = vld [vmem:[%s3138 + $0x8] sm:$0xff]
        %v3141 = vld [vmem:[%s3138 + $0x10] sm:$0xff]
        %v3142 = vld [vmem:[%s3138 + $0x18] sm:$0xff]
        %v3143 = vld [vmem:[%s3138 + $0x20] sm:$0xff]
        %v3144 = vld [vmem:[%s3138 + $0x28] sm:$0xff]
        %v3145 = vld [vmem:[%s3138 + $0x30] sm:$0xff]
        %v3146 = vld [vmem:[%s3138 + $0x38] sm:$0xff]
        %v3147 = vld [vmem:[%s3138 + $0x40] sm:$0xff]
        %v3148 = vld [vmem:[%s3138 + $0x48] sm:$0xff]
        %v3149 = vld [vmem:[%s3138 + $0x50] sm:$0xff]
        %v3150 = vld [vmem:[%s3138 + $0x58] sm:$0xff]
        %v3151 = vld [vmem:[%s3138 + $0x60] sm:$0xff]
        %v3152 = vld [vmem:[%s3138 + $0x68] sm:$0xff]
        %v3153 = vld [vmem:[%s3138 + $0x70] sm:$0xff]
        %v3154 = vld [vmem:[%s3138 + $0x78] sm:$0xff]
        %v3155 = vld [vmem:[%s3138 + $0x80] sm:$0xff]
        %v3156 = vld [vmem:[%s3138 + $0x88] sm:$0xff]
        %v3157 = vld [vmem:[%s3138 + $0x90] sm:$0xff]
        %v3158 = vld [vmem:[%s3138 + $0x98] sm:$0xff]
        %v3159 = vld [vmem:[%s3138 + $0xa0] sm:$0xff]
        %v3160 = vld [vmem:[%s3138 + $0xa8] sm:$0xff]
        %v3161 = vld [vmem:[%s3138 + $0xb0] sm:$0xff]
        %v3162 = vld [vmem:[%s3138 + $0xb8] sm:$0xff]
        %v3163 = vld [vmem:[%s3138 + $0xc0] sm:$0xff]
        %v3164 = vld [vmem:[%s3138 + $0xc8] sm:$0xff]
        %v3165 = vld [vmem:[%s3138 + $0xd0] sm:$0xff]
        %v3166 = vld [vmem:[%s3138 + $0xd8] sm:$0xff]
        %v3167 = vld [vmem:[%s3138 + $0xe0] sm:$0xff]
        %v3168 = vld [vmem:[%s3138 + $0xe8] sm:$0xff]
        %v3169 = vld [vmem:[%s3138 + $0xf0] sm:$0xff]
        %v3170 = vld [vmem:[%s3138 + $0xf8] sm:$0xff]
        %v3203 = vunpack.c.l.b16 %v3139
        %v3204 = vunpack.c.h.b16 %v3139
        %v3205 = vunpack.c.l.b16 %v3140
        %v3206 = vunpack.c.h.b16 %v3140
        %v3207 = vunpack.c.l.b16 %v3141
        %v3208 = vunpack.c.h.b16 %v3141
        %v3209 = vunpack.c.l.b16 %v3142
        %v3210 = vunpack.c.h.b16 %v3142
        %v3211 = vunpack.c.l.b16 %v3143
        %v3212 = vunpack.c.h.b16 %v3143
        %v3213 = vunpack.c.l.b16 %v3144
        %v3214 = vunpack.c.h.b16 %v3144
        %v3215 = vunpack.c.l.b16 %v3145
        %v3216 = vunpack.c.h.b16 %v3145
        %v3217 = vunpack.c.l.b16 %v3146
        %v3218 = vunpack.c.h.b16 %v3146
        %v3219 = vunpack.c.l.b16 %v3147
        %v3220 = vunpack.c.h.b16 %v3147
        %v3221 = vunpack.c.l.b16 %v3148
        %v3222 = vunpack.c.h.b16 %v3148
        %v3223 = vunpack.c.l.b16 %v3149
        %v3224 = vunpack.c.h.b16 %v3149
        %v3225 = vunpack.c.l.b16 %v3150
        %v3226 = vunpack.c.h.b16 %v3150
        %v3227 = vunpack.c.l.b16 %v3151
        %v3228 = vunpack.c.h.b16 %v3151
        %v3229 = vunpack.c.l.b16 %v3152
        %v3230 = vunpack.c.h.b16 %v3152
        %v3231 = vunpack.c.l.b16 %v3153
        %v3232 = vunpack.c.h.b16 %v3153
        %v3233 = vunpack.c.l.b16 %v3154
        %v3234 = vunpack.c.h.b16 %v3154
        %v3235 = vunpack.c.l.b16 %v3155
        %v3236 = vunpack.c.h.b16 %v3155
        %v3237 = vunpack.c.l.b16 %v3156
        %v3238 = vunpack.c.h.b16 %v3156
        %v3239 = vunpack.c.l.b16 %v3157
        %v3240 = vunpack.c.h.b16 %v3157
        %v3241 = vunpack.c.l.b16 %v3158
        %v3242 = vunpack.c.h.b16 %v3158
        %v3243 = vunpack.c.l.b16 %v3159
        %v3244 = vunpack.c.h.b16 %v3159
        %v3245 = vunpack.c.l.b16 %v3160
        %v3246 = vunpack.c.h.b16 %v3160
        %v3247 = vunpack.c.l.b16 %v3161
        %v3248 = vunpack.c.h.b16 %v3161
        %v3249 = vunpack.c.l.b16 %v3162
        %v3250 = vunpack.c.h.b16 %v3162
        %v3251 = vunpack.c.l.b16 %v3163
        %v3252 = vunpack.c.h.b16 %v3163
        %v3253 = vunpack.c.l.b16 %v3164
        %v3254 = vunpack.c.h.b16 %v3164
        %v3255 = vunpack.c.l.b16 %v3165
        %v3256 = vunpack.c.h.b16 %v3165
        %v3257 = vunpack.c.l.b16 %v3166
        %v3258 = vunpack.c.h.b16 %v3166
        %v3259 = vunpack.c.l.b16 %v3167
        %v3260 = vunpack.c.h.b16 %v3167
        %v3261 = vunpack.c.l.b16 %v3168
        %v3262 = vunpack.c.h.b16 %v3168
        %v3263 = vunpack.c.l.b16 %v3169
        %v3264 = vunpack.c.h.b16 %v3169
        %v3265 = vunpack.c.l.b16 %v3170
        %v3266 = vunpack.c.h.b16 %v3170
        %v3267 = vpack.c.b16 %v3205, %v3203
        %v3268 = vpack.c.b16 %v3206, %v3204
        %v3269 = vpack.c.b16 %v3209, %v3207
        %v3270 = vpack.c.b16 %v3210, %v3208
        %v3271 = vpack.c.b16 %v3213, %v3211
        %v3272 = vpack.c.b16 %v3214, %v3212
        %v3273 = vpack.c.b16 %v3217, %v3215
        %v3274 = vpack.c.b16 %v3218, %v3216
        %v3275 = vpack.c.b16 %v3221, %v3219
        %v3276 = vpack.c.b16 %v3222, %v3220
        %v3277 = vpack.c.b16 %v3225, %v3223
        %v3278 = vpack.c.b16 %v3226, %v3224
        %v3279 = vpack.c.b16 %v3229, %v3227
        %v3280 = vpack.c.b16 %v3230, %v3228
        %v3281 = vpack.c.b16 %v3233, %v3231
        %v3282 = vpack.c.b16 %v3234, %v3232
        %v3283 = vpack.c.b16 %v3237, %v3235
        %v3284 = vpack.c.b16 %v3238, %v3236
        %v3285 = vpack.c.b16 %v3241, %v3239
        %v3286 = vpack.c.b16 %v3242, %v3240
        %v3287 = vpack.c.b16 %v3245, %v3243
        %v3288 = vpack.c.b16 %v3246, %v3244
        %v3289 = vpack.c.b16 %v3249, %v3247
        %v3290 = vpack.c.b16 %v3250, %v3248
        %v3291 = vpack.c.b16 %v3253, %v3251
        %v3292 = vpack.c.b16 %v3254, %v3252
        %v3293 = vpack.c.b16 %v3257, %v3255
        %v3294 = vpack.c.b16 %v3258, %v3256
        %v3295 = vpack.c.b16 %v3261, %v3259
        %v3296 = vpack.c.b16 %v3262, %v3260
        %v3297 = vpack.c.b16 %v3265, %v3263
        %v3298 = vpack.c.b16 %v3266, %v3264
        %3331 = vmatprep.subr.bf16.mxu0 %v3268
        %3332 = vmatpush1.bf16.msra.mxu0 %v3267
        %3333 = vmatprep.subr.bf16.mxu0 %v3270
        %3334 = vmatpush1.bf16.msra.mxu0 %v3269
        %3335 = vmatprep.subr.bf16.mxu0 %v3272
        %3336 = vmatpush1.bf16.msra.mxu0 %v3271
        %3337 = vmatprep.subr.bf16.mxu0 %v3274
        %3338 = vmatpush1.bf16.msra.mxu0 %v3273
        %3339 = vmatprep.subr.bf16.mxu0 %v3276
        %3340 = vmatpush1.bf16.msra.mxu0 %v3275
        %3341 = vmatprep.subr.bf16.mxu0 %v3278
        %3342 = vmatpush1.bf16.msra.mxu0 %v3277
        %3343 = vmatprep.subr.bf16.mxu0 %v3280
        %3344 = vmatpush1.bf16.msra.mxu0 %v3279
        %3345 = vmatprep.subr.bf16.mxu0 %v3282
        %3346 = vmatpush1.bf16.msra.mxu0 %v3281
        %3347 = vmatprep.subr.bf16.mxu0 %v3284
        %3348 = vmatpush1.bf16.msra.mxu0 %v3283
        %3349 = vmatprep.subr.bf16.mxu0 %v3286
        %3350 = vmatpush1.bf16.msra.mxu0 %v3285
        %3351 = vmatprep.subr.bf16.mxu0 %v3288
        %3352 = vmatpush1.bf16.msra.mxu0 %v3287
        %3353 = vmatprep.subr.bf16.mxu0 %v3290
        %3354 = vmatpush1.bf16.msra.mxu0 %v3289
        %3355 = vmatprep.subr.bf16.mxu0 %v3292
        %3356 = vmatpush1.bf16.msra.mxu0 %v3291
        %3357 = vmatprep.subr.bf16.mxu0 %v3294
        %3358 = vmatpush1.bf16.msra.mxu0 %v3293
        %3359 = vmatprep.subr.bf16.mxu0 %v3296
        %3360 = vmatpush1.bf16.msra.mxu0 %v3295
        %3361 = vmatprep.subr.bf16.mxu0 %v3298
        %3362 = vmatpush1.bf16.msra.mxu0 %v3297
        %3363 = vmatprep.mubr.bf16.mxu0 %v3133
        %3364 = vmatmul.mubr.bf16.gmra.mrb[0].mxu0 %v3132
        %v3365 = vpop.f32.mrb[0].mxu0
        %v3366 = vadd.f32 0.0, %v3365
        %v3367 = vpop.f32.mrb[0].mxu0
        %v3368 = vadd.f32 0.0, %v3367
        %v3369 = vpop.f32.mrb[0].mxu0
        %v3370 = vadd.f32 0.0, %v3369
        %v3371 = vpop.f32.mrb[0].mxu0
        %v3372 = vadd.f32 0.0, %v3371
        %3373 = vmatprep.mubr.bf16.mxu0 %v3135
        %3374 = vmatmul.mubr.bf16.gmra.mrb[0].mxu0 %v3134
        %v3375 = vpop.f32.mrb[0].mxu0
        %v3376 = vadd.f32 0.0, %v3375
        %v3377 = vpop.f32.mrb[0].mxu0
        %v3378 = vadd.f32 0.0, %v3377
        %v3379 = vpop.f32.mrb[0].mxu0
        %v3380 = vadd.f32 0.0, %v3379
        %v3381 = vpop.f32.mrb[0].mxu0
        %v3382 = vadd.f32 0.0, %v3381
        %3383 = vmatprep.mubr.bf16.mxu0 %v3137
        %3384 = vmatmul.mubr.bf16.gmra.mrb[0].mxu0 %v3136
        %v3385 = vpop.f32.mrb[0].mxu0
        %v3386 = vadd.f32 0.0, %v3385
        %v3387 = vpop.f32.mrb[0].mxu0
        %v3388 = vadd.f32 0.0, %v3387
        %v3389 = vpop.f32.mrb[0].mxu0
        %v3390 = vpop.f32.mrb[0].mxu0
        %3391 = vdwg.mxu0
        %v3392 = vadd.f32 %v3112, %v3366
        %v3393 = vadd.f32 %v3113, %v3368
        %v3394 = vadd.f32 %v3114, %v3370
        %v3395 = vadd.f32 %v3115, %v3372
        %v3396 = vadd.f32 %v3116, %v3376
        %v3397 = vadd.f32 %v3117, %v3378
        %v3398 = vadd.f32 %v3118, %v3380
        %v3399 = vadd.f32 %v3119, %v3382
        %v3400 = vadd.f32 %v3120, %v3386
        %v3401 = vadd.f32 %v3121, %v3388
        %v3402 = vld [vmem:[#allocation2 + $0x10] sm:$0xfe]
        %v3403 = vld [vmem:[#allocation2 + $0x18] sm:$0xfe]
        %v3404 = vld [vmem:[#allocation2 + $0x50] sm:$0x3]
        %v3405 = vld [vmem:[#allocation2 + $0x58] sm:$0x3]
        %v3406 = vpack.c.bf16 %v3124, %v3402
        %v3407 = vpack.c.bf16 %v3125, %v3403
        %v3408 = vpack.c.bf16 %v3404, %v3404
        %v3409 = vpack.c.bf16 %v3405, %v3405
        %s3410 = scalar_lea.vmem [#allocation11], 1280
        %v3411 = vld [vmem:[%s3410] sm:$0xff]
        %v3412 = vld [vmem:[%s3410 + $0x8] sm:$0xff]
        %v3413 = vld [vmem:[%s3410 + $0x10] sm:$0xff]
        %v3414 = vld [vmem:[%s3410 + $0x18] sm:$0xff]
        %v3415 = vld [vmem:[%s3410 + $0x20] sm:$0xff]
        %v3416 = vld [vmem:[%s3410 + $0x28] sm:$0xff]
        %v3417 = vld [vmem:[%s3410 + $0x30] sm:$0xff]
        %v3418 = vld [vmem:[%s3410 + $0x38] sm:$0xff]
        %v3419 = vld [vmem:[%s3410 + $0x40] sm:$0xff]
        %v3420 = vld [vmem:[%s3410 + $0x48] sm:$0xff]
        %v3421 = vld [vmem:[%s3410 + $0x50] sm:$0xff]
        %v3422 = vld [vmem:[%s3410 + $0x58] sm:$0xff]
        %v3423 = vld [vmem:[%s3410 + $0x60] sm:$0xff]
        %v3424 = vld [vmem:[%s3410 + $0x68] sm:$0xff]
        %v3425 = vld [vmem:[%s3410 + $0x70] sm:$0xff]
        %v3426 = vld [vmem:[%s3410 + $0x78] sm:$0xff]
        %v3427 = vld [vmem:[%s3410 + $0x80] sm:$0xff]
        %v3428 = vld [vmem:[%s3410 + $0x88] sm:$0xff]
        %v3429 = vld [vmem:[%s3410 + $0x90] sm:$0xff]
        %v3430 = vld [vmem:[%s3410 + $0x98] sm:$0xff]
        %v3431 = vld [vmem:[%s3410 + $0xa0] sm:$0xff]
        %v3432 = vld [vmem:[%s3410 + $0xa8] sm:$0xff]
        %v3433 = vld [vmem:[%s3410 + $0xb0] sm:$0xff]
        %v3434 = vld [vmem:[%s3410 + $0xb8] sm:$0xff]
        %v3435 = vld [vmem:[%s3410 + $0xc0] sm:$0xff]
        %v3436 = vld [vmem:[%s3410 + $0xc8] sm:$0xff]
        %v3437 = vld [vmem:[%s3410 + $0xd0] sm:$0xff]
        %v3438 = vld [vmem:[%s3410 + $0xd8] sm:$0xff]
        %v3439 = vld [vmem:[%s3410 + $0xe0] sm:$0xff]
        %v3440 = vld [vmem:[%s3410 + $0xe8] sm:$0xff]
        %v3441 = vld [vmem:[%s3410 + $0xf0] sm:$0xff]
        %v3442 = vld [vmem:[%s3410 + $0xf8] sm:$0xff]
        %v3444 = vshrl.u32 %v3406, 16
        %v3446 = vshll.u32 %v3406, 16
        %v3448 = vrot.slane %v3446, 1
        %v3449 = vor.u32 %v3444, %v3448
        %v3451 = vshll.u32 %v3134, 16
        %v3453 = vrot.slane %v3451, 1
        %v3454 = vsel %vm2013, %v3449, %v3453
        %v3456 = vshrl.u32 %v3407, 16
        %v3458 = vshll.u32 %v3407, 16
        %v3460 = vrot.slane %v3458, 1
        %v3461 = vor.u32 %v3456, %v3460
        %v3463 = vshll.u32 %v3135, 16
        %v3465 = vrot.slane %v3463, 1
        %v3466 = vsel %vm2013, %v3461, %v3465
        %v3467 = vshrl.u32 %v3134, 16
        %v3469 = vor.u32 %v3467, %v3453
        %v3471 = vshll.u32 %v3408, 16
        %v3473 = vrot.slane %v3471, 1
        %v3474 = vsel %vm2013, %v3469, %v3473
        %v3475 = vshrl.u32 %v3135, 16
        %v3477 = vor.u32 %v3475, %v3465
        %v3479 = vshll.u32 %v3409, 16
        %v3481 = vrot.slane %v3479, 1
        %v3482 = vsel %vm2013, %v3477, %v3481
        %v3483 = vshrl.u32 %v3408, 16
        %v3485 = vshrl.u32 %v3409, 16
        %v3525 = vunpack.c.l.b16 %v3411
        %v3526 = vunpack.c.h.b16 %v3411
        %v3527 = vunpack.c.l.b16 %v3412
        %v3528 = vunpack.c.h.b16 %v3412
        %v3529 = vunpack.c.l.b16 %v3413
        %v3530 = vunpack.c.h.b16 %v3413
        %v3531 = vunpack.c.l.b16 %v3414
        %v3532 = vunpack.c.h.b16 %v3414
        %v3533 = vunpack.c.l.b16 %v3415
        %v3534 = vunpack.c.h.b16 %v3415
        %v3535 = vunpack.c.l.b16 %v3416
        %v3536 = vunpack.c.h.b16 %v3416
        %v3537 = vunpack.c.l.b16 %v3417
        %v3538 = vunpack.c.h.b16 %v3417
        %v3539 = vunpack.c.l.b16 %v3418
        %v3540 = vunpack.c.h.b16 %v3418
        %v3541 = vunpack.c.l.b16 %v3419
        %v3542 = vunpack.c.h.b16 %v3419
        %v3543 = vunpack.c.l.b16 %v3420
        %v3544 = vunpack.c.h.b16 %v3420
        %v3545 = vunpack.c.l.b16 %v3421
        %v3546 = vunpack.c.h.b16 %v3421
        %v3547 = vunpack.c.l.b16 %v3422
        %v3548 = vunpack.c.h.b16 %v3422
        %v3549 = vunpack.c.l.b16 %v3423
        %v3550 = vunpack.c.h.b16 %v3423
        %v3551 = vunpack.c.l.b16 %v3424
        %v3552 = vunpack.c.h.b16 %v3424
        %v3553 = vunpack.c.l.b16 %v3425
        %v3554 = vunpack.c.h.b16 %v3425
        %v3555 = vunpack.c.l.b16 %v3426
        %v3556 = vunpack.c.h.b16 %v3426
        %v3557 = vunpack.c.l.b16 %v3427
        %v3558 = vunpack.c.h.b16 %v3427
        %v3559 = vunpack.c.l.b16 %v3428
        %v3560 = vunpack.c.h.b16 %v3428
        %v3561 = vunpack.c.l.b16 %v3429
        %v3562 = vunpack.c.h.b16 %v3429
        %v3563 = vunpack.c.l.b16 %v3430
        %v3564 = vunpack.c.h.b16 %v3430
        %v3565 = vunpack.c.l.b16 %v3431
        %v3566 = vunpack.c.h.b16 %v3431
        %v3567 = vunpack.c.l.b16 %v3432
        %v3568 = vunpack.c.h.b16 %v3432
        %v3569 = vunpack.c.l.b16 %v3433
        %v3570 = vunpack.c.h.b16 %v3433
        %v3571 = vunpack.c.l.b16 %v3434
        %v3572 = vunpack.c.h.b16 %v3434
        %v3573 = vunpack.c.l.b16 %v3435
        %v3574 = vunpack.c.h.b16 %v3435
        %v3575 = vunpack.c.l.b16 %v3436
        %v3576 = vunpack.c.h.b16 %v3436
        %v3577 = vunpack.c.l.b16 %v3437
        %v3578 = vunpack.c.h.b16 %v3437
        %v3579 = vunpack.c.l.b16 %v3438
        %v3580 = vunpack.c.h.b16 %v3438
        %v3581 = vunpack.c.l.b16 %v3439
        %v3582 = vunpack.c.h.b16 %v3439
        %v3583 = vunpack.c.l.b16 %v3440
        %v3584 = vunpack.c.h.b16 %v3440
        %v3585 = vunpack.c.l.b16 %v3441
        %v3586 = vunpack.c.h.b16 %v3441
        %v3587 = vunpack.c.l.b16 %v3442
        %v3588 = vunpack.c.h.b16 %v3442
        %v3589 = vpack.c.b16 %v3527, %v3525
        %v3590 = vpack.c.b16 %v3528, %v3526
        %v3591 = vpack.c.b16 %v3531, %v3529
        %v3592 = vpack.c.b16 %v3532, %v3530
        %v3593 = vpack.c.b16 %v3535, %v3533
        %v3594 = vpack.c.b16 %v3536, %v3534
        %v3595 = vpack.c.b16 %v3539, %v3537
        %v3596 = vpack.c.b16 %v3540, %v3538
        %v3597 = vpack.c.b16 %v3543, %v3541
        %v3598 = vpack.c.b16 %v3544, %v3542
        %v3599 = vpack.c.b16 %v3547, %v3545
        %v3600 = vpack.c.b16 %v3548, %v3546
        %v3601 = vpack.c.b16 %v3551, %v3549
        %v3602 = vpack.c.b16 %v3552, %v3550
        %v3603 = vpack.c.b16 %v3555, %v3553
        %v3604 = vpack.c.b16 %v3556, %v3554
        %v3605 = vpack.c.b16 %v3559, %v3557
        %v3606 = vpack.c.b16 %v3560, %v3558
        %v3607 = vpack.c.b16 %v3563, %v3561
        %v3608 = vpack.c.b16 %v3564, %v3562
        %v3609 = vpack.c.b16 %v3567, %v3565
        %v3610 = vpack.c.b16 %v3568, %v3566
        %v3611 = vpack.c.b16 %v3571, %v3569
        %v3612 = vpack.c.b16 %v3572, %v3570
        %v3613 = vpack.c.b16 %v3575, %v3573
        %v3614 = vpack.c.b16 %v3576, %v3574
        %v3615 = vpack.c.b16 %v3579, %v3577
        %v3616 = vpack.c.b16 %v3580, %v3578
        %v3617 = vpack.c.b16 %v3583, %v3581
        %v3618 = vpack.c.b16 %v3584, %v3582
        %v3619 = vpack.c.b16 %v3587, %v3585
        %v3620 = vpack.c.b16 %v3588, %v3586
        %3653 = vmatprep.subr.bf16.mxu0 %v3590
        %3654 = vmatpush1.bf16.msra.mxu0 %v3589
        %3655 = vmatprep.subr.bf16.mxu0 %v3592
        %3656 = vmatpush1.bf16.msra.mxu0 %v3591
        %3657 = vmatprep.subr.bf16.mxu0 %v3594
        %3658 = vmatpush1.bf16.msra.mxu0 %v3593
        %3659 = vmatprep.subr.bf16.mxu0 %v3596
        %3660 = vmatpush1.bf16.msra.mxu0 %v3595
        %3661 = vmatprep.subr.bf16.mxu0 %v3598
        %3662 = vmatpush1.bf16.msra.mxu0 %v3597
        %3663 = vmatprep.subr.bf16.mxu0 %v3600
        %3664 = vmatpush1.bf16.msra.mxu0 %v3599
        %3665 = vmatprep.subr.bf16.mxu0 %v3602
        %3666 = vmatpush1.bf16.msra.mxu0 %v3601
        %3667 = vmatprep.subr.bf16.mxu0 %v3604
        %3668 = vmatpush1.bf16.msra.mxu0 %v3603
        %3669 = vmatprep.subr.bf16.mxu0 %v3606
        %3670 = vmatpush1.bf16.msra.mxu0 %v3605
        %3671 = vmatprep.subr.bf16.mxu0 %v3608
        %3672 = vmatpush1.bf16.msra.mxu0 %v3607
        %3673 = vmatprep.subr.bf16.mxu0 %v3610
        %3674 = vmatpush1.bf16.msra.mxu0 %v3609
        %3675 = vmatprep.subr.bf16.mxu0 %v3612
        %3676 = vmatpush1.bf16.msra.mxu0 %v3611
        %3677 = vmatprep.subr.bf16.mxu0 %v3614
        %3678 = vmatpush1.bf16.msra.mxu0 %v3613
        %3679 = vmatprep.subr.bf16.mxu0 %v3616
        %3680 = vmatpush1.bf16.msra.mxu0 %v3615
        %3681 = vmatprep.subr.bf16.mxu0 %v3618
        %3682 = vmatpush1.bf16.msra.mxu0 %v3617
        %3683 = vmatprep.subr.bf16.mxu0 %v3620
        %3684 = vmatpush1.bf16.msra.mxu0 %v3619
        %3685 = vmatprep.mubr.bf16.mxu0 %v3466
        %3686 = vmatmul.mubr.bf16.gmra.mrb[0].mxu0 %v3454
        %v3687 = vpop.f32.mrb[0].mxu0
        %v3688 = vadd.f32 0.0, %v3687
        %v3689 = vpop.f32.mrb[0].mxu0
        %v3690 = vadd.f32 0.0, %v3689
        %v3691 = vpop.f32.mrb[0].mxu0
        %v3692 = vadd.f32 0.0, %v3691
        %v3693 = vpop.f32.mrb[0].mxu0
        %v3694 = vadd.f32 0.0, %v3693
        %3695 = vmatprep.mubr.bf16.mxu0 %v3482
        %3696 = vmatmul.mubr.bf16.gmra.mrb[0].mxu0 %v3474
        %v3697 = vpop.f32.mrb[0].mxu0
        %v3698 = vadd.f32 0.0, %v3697
        %v3699 = vpop.f32.mrb[0].mxu0
        %v3700 = vadd.f32 0.0, %v3699
        %v3701 = vpop.f32.mrb[0].mxu0
        %v3702 = vadd.f32 0.0, %v3701
        %v3703 = vpop.f32.mrb[0].mxu0
        %v3704 = vadd.f32 0.0, %v3703
        %3705 = vmatprep.mubr.bf16.mxu0 %v3485
        %3706 = vmatmul.mubr.bf16.gmra.mrb[0].mxu0 %v3483
        %v3707 = vpop.f32.mrb[0].mxu0
        %v3708 = vadd.f32 0.0, %v3707
        %v3709 = vpop.f32.mrb[0].mxu0
        %v3710 = vadd.f32 0.0, %v3709
        %v3711 = vpop.f32.mrb[0].mxu0
        %v3712 = vpop.f32.mrb[0].mxu0
        %3713 = vdwg.mxu0
        %v3714 = vadd.f32 %v3392, %v3688
        %v3715 = vadd.f32 %v3393, %v3690
        %v3716 = vadd.f32 %v3394, %v3692
        %v3717 = vadd.f32 %v3395, %v3694
        %v3718 = vadd.f32 %v3396, %v3698
        %v3719 = vadd.f32 %v3397, %v3700
        %v3720 = vadd.f32 %v3398, %v3702
        %v3721 = vadd.f32 %v3399, %v3704
        %v3722 = vadd.f32 %v3400, %v3708
        %v3723 = vadd.f32 %v3401, %v3710
        %v3724 = vld [vmem:[#allocation2 + $0x10] sm:$0xc0]
        %v3725 = vld [vmem:[#allocation2 + $0x18] sm:$0xc0]
        %v3726 = vld [vmem:[#allocation2 + $0x50] sm:$0x7f]
        %v3727 = vld [vmem:[#allocation2 + $0x58] sm:$0x7f]
        %v3728 = vpack.c.bf16 %v3124, %v3724
        %v3729 = vpack.c.bf16 %v3125, %v3725
        %v3730 = vpack.c.bf16 %v3726, %v3726
        %v3731 = vpack.c.bf16 %v3727, %v3727
        %s3732 = scalar_lea.vmem [#allocation11], 1536
        %v3733 = vld [vmem:[%s3732] sm:$0xff]
        %v3734 = vld [vmem:[%s3732 + $0x8] sm:$0xff]
        %v3735 = vld [vmem:[%s3732 + $0x10] sm:$0xff]
        %v3736 = vld [vmem:[%s3732 + $0x18] sm:$0xff]
        %v3737 = vld [vmem:[%s3732 + $0x20] sm:$0xff]
        %v3738 = vld [vmem:[%s3732 + $0x28] sm:$0xff]
        %v3739 = vld [vmem:[%s3732 + $0x30] sm:$0xff]
        %v3740 = vld [vmem:[%s3732 + $0x38] sm:$0xff]
        %v3741 = vld [vmem:[%s3732 + $0x40] sm:$0xff]
        %v3742 = vld [vmem:[%s3732 + $0x48] sm:$0xff]
        %v3743 = vld [vmem:[%s3732 + $0x50] sm:$0xff]
        %v3744 = vld [vmem:[%s3732 + $0x58] sm:$0xff]
        %v3745 = vld [vmem:[%s3732 + $0x60] sm:$0xff]
        %v3746 = vld [vmem:[%s3732 + $0x68] sm:$0xff]
        %v3747 = vld [vmem:[%s3732 + $0x70] sm:$0xff]
        %v3748 = vld [vmem:[%s3732 + $0x78] sm:$0xff]
        %v3749 = vld [vmem:[%s3732 + $0x80] sm:$0xff]
        %v3750 = vld [vmem:[%s3732 + $0x88] sm:$0xff]
        %v3751 = vld [vmem:[%s3732 + $0x90] sm:$0xff]
        %v3752 = vld [vmem:[%s3732 + $0x98] sm:$0xff]
        %v3753 = vld [vmem:[%s3732 + $0xa0] sm:$0xff]
        %v3754 = vld [vmem:[%s3732 + $0xa8] sm:$0xff]
        %v3755 = vld [vmem:[%s3732 + $0xb0] sm:$0xff]
        %v3756 = vld [vmem:[%s3732 + $0xb8] sm:$0xff]
        %v3757 = vld [vmem:[%s3732 + $0xc0] sm:$0xff]
        %v3758 = vld [vmem:[%s3732 + $0xc8] sm:$0xff]
        %v3759 = vld [vmem:[%s3732 + $0xd0] sm:$0xff]
        %v3760 = vld [vmem:[%s3732 + $0xd8] sm:$0xff]
        %v3761 = vld [vmem:[%s3732 + $0xe0] sm:$0xff]
        %v3762 = vld [vmem:[%s3732 + $0xe8] sm:$0xff]
        %v3763 = vld [vmem:[%s3732 + $0xf0] sm:$0xff]
        %v3764 = vld [vmem:[%s3732 + $0xf8] sm:$0xff]
        %vm3771 = vcmask 1044480
        %v3772 = vrot.slane %v3728, 3
        %v3773 = vrot.slane %v3134, 3
        %v3774 = vsel %vm3771, %v3772, %v3773
        %v3775 = vrot.slane %v3729, 3
        %v3776 = vrot.slane %v3135, 3
        %v3777 = vsel %vm3771, %v3775, %v3776
        %v3778 = vrot.slane %v3730, 3
        %v3779 = vsel %vm3771, %v3773, %v3778
        %v3780 = vrot.slane %v3731, 3
        %v3781 = vsel %vm3771, %v3776, %v3780
        %v3820 = vunpack.c.l.b16 %v3733
        %v3821 = vunpack.c.h.b16 %v3733
        %v3822 = vunpack.c.l.b16 %v3734
        %v3823 = vunpack.c.h.b16 %v3734
        %v3824 = vunpack.c.l.b16 %v3735
        %v3825 = vunpack.c.h.b16 %v3735
        %v3826 = vunpack.c.l.b16 %v3736
        %v3827 = vunpack.c.h.b16 %v3736
        %v3828 = vunpack.c.l.b16 %v3737
        %v3829 = vunpack.c.h.b16 %v3737
        %v3830 = vunpack.c.l.b16 %v3738
        %v3831 = vunpack.c.h.b16 %v3738
        %v3832 = vunpack.c.l.b16 %v3739
        %v3833 = vunpack.c.h.b16 %v3739
        %v3834 = vunpack.c.l.b16 %v3740
        %v3835 = vunpack.c.h.b16 %v3740
        %v3836 = vunpack.c.l.b16 %v3741
        %v3837 = vunpack.c.h.b16 %v3741
        %v3838 = vunpack.c.l.b16 %v3742
        %v3839 = vunpack.c.h.b16 %v3742
        %v3840 = vunpack.c.l.b16 %v3743
        %v3841 = vunpack.c.h.b16 %v3743
        %v3842 = vunpack.c.l.b16 %v3744
        %v3843 = vunpack.c.h.b16 %v3744
        %v3844 = vunpack.c.l.b16 %v3745
        %v3845 = vunpack.c.h.b16 %v3745
        %v3846 = vunpack.c.l.b16 %v3746
        %v3847 = vunpack.c.h.b16 %v3746
        %v3848 = vunpack.c.l.b16 %v3747
        %v3849 = vunpack.c.h.b16 %v3747
        %v3850 = vunpack.c.l.b16 %v3748
        %v3851 = vunpack.c.h.b16 %v3748
        %v3852 = vunpack.c.l.b16 %v3749
        %v3853 = vunpack.c.h.b16 %v3749
        %v3854 = vunpack.c.l.b16 %v3750
        %v3855 = vunpack.c.h.b16 %v3750
        %v3856 = vunpack.c.l.b16 %v3751
        %v3857 = vunpack.c.h.b16 %v3751
        %v3858 = vunpack.c.l.b16 %v3752
        %v3859 = vunpack.c.h.b16 %v3752
        %v3860 = vunpack.c.l.b16 %v3753
        %v3861 = vunpack.c.h.b16 %v3753
        %v3862 = vunpack.c.l.b16 %v3754
        %v3863 = vunpack.c.h.b16 %v3754
        %v3864 = vunpack.c.l.b16 %v3755
        %v3865 = vunpack.c.h.b16 %v3755
        %v3866 = vunpack.c.l.b16 %v3756
        %v3867 = vunpack.c.h.b16 %v3756
        %v3868 = vunpack.c.l.b16 %v3757
        %v3869 = vunpack.c.h.b16 %v3757
        %v3870 = vunpack.c.l.b16 %v3758
        %v3871 = vunpack.c.h.b16 %v3758
        %v3872 = vunpack.c.l.b16 %v3759
        %v3873 = vunpack.c.h.b16 %v3759
        %v3874 = vunpack.c.l.b16 %v3760
        %v3875 = vunpack.c.h.b16 %v3760
        %v3876 = vunpack.c.l.b16 %v3761
        %v3877 = vunpack.c.h.b16 %v3761
        %v3878 = vunpack.c.l.b16 %v3762
        %v3879 = vunpack.c.h.b16 %v3762
        %v3880 = vunpack.c.l.b16 %v3763
        %v3881 = vunpack.c.h.b16 %v3763
        %v3882 = vunpack.c.l.b16 %v3764
        %v3883 = vunpack.c.h.b16 %v3764
        %v3884 = vpack.c.b16 %v3822, %v3820
        %v3885 = vpack.c.b16 %v3823, %v3821
        %v3886 = vpack.c.b16 %v3826, %v3824
        %v3887 = vpack.c.b16 %v3827, %v3825
        %v3888 = vpack.c.b16 %v3830, %v3828
        %v3889 = vpack.c.b16 %v3831, %v3829
        %v3890 = vpack.c.b16 %v3834, %v3832
        %v3891 = vpack.c.b16 %v3835, %v3833
        %v3892 = vpack.c.b16 %v3838, %v3836
        %v3893 = vpack.c.b16 %v3839, %v3837
        %v3894 = vpack.c.b16 %v3842, %v3840
        %v3895 = vpack.c.b16 %v3843, %v3841
        %v3896 = vpack.c.b16 %v3846, %v3844
        %v3897 = vpack.c.b16 %v3847, %v3845
        %v3898 = vpack.c.b16 %v3850, %v3848
        %v3899 = vpack.c.b16 %v3851, %v3849
        %v3900 = vpack.c.b16 %v3854, %v3852
        %v3901 = vpack.c.b16 %v3855, %v3853
        %v3902 = vpack.c.b16 %v3858, %v3856
        %v3903 = vpack.c.b16 %v3859, %v3857
        %v3904 = vpack.c.b16 %v3862, %v3860
        %v3905 = vpack.c.b16 %v3863, %v3861
        %v3906 = vpack.c.b16 %v3866, %v3864
        %v3907 = vpack.c.b16 %v3867, %v3865
        %v3908 = vpack.c.b16 %v3870, %v3868
        %v3909 = vpack.c.b16 %v3871, %v3869
        %v3910 = vpack.c.b16 %v3874, %v3872
        %v3911 = vpack.c.b16 %v3875, %v3873
        %v3912 = vpack.c.b16 %v3878, %v3876
        %v3913 = vpack.c.b16 %v3879, %v3877
        %v3914 = vpack.c.b16 %v3882, %v3880
        %v3915 = vpack.c.b16 %v3883, %v3881
        %3948 = vmatprep.subr.bf16.mxu0 %v3885
        %3949 = vmatpush1.bf16.msra.mxu0 %v3884
        %3950 = vmatprep.subr.bf16.mxu0 %v3887
        %3951 = vmatpush1.bf16.msra.mxu0 %v3886
        %3952 = vmatprep.subr.bf16.mxu0 %v3889
        %3953 = vmatpush1.bf16.msra.mxu0 %v3888
        %3954 = vmatprep.subr.bf16.mxu0 %v3891
        %3955 = vmatpush1.bf16.msra.mxu0 %v3890
        %3956 = vmatprep.subr.bf16.mxu0 %v3893
        %3957 = vmatpush1.bf16.msra.mxu0 %v3892
        %3958 = vmatprep.subr.bf16.mxu0 %v3895
        %3959 = vmatpush1.bf16.msra.mxu0 %v3894
        %3960 = vmatprep.subr.bf16.mxu0 %v3897
        %3961 = vmatpush1.bf16.msra.mxu0 %v3896
        %3962 = vmatprep.subr.bf16.mxu0 %v3899
        %3963 = vmatpush1.bf16.msra.mxu0 %v3898
        %3964 = vmatprep.subr.bf16.mxu0 %v3901
        %3965 = vmatpush1.bf16.msra.mxu0 %v3900
        %3966 = vmatprep.subr.bf16.mxu0 %v3903
        %3967 = vmatpush1.bf16.msra.mxu0 %v3902
        %3968 = vmatprep.subr.bf16.mxu0 %v3905
        %3969 = vmatpush1.bf16.msra.mxu0 %v3904
        %3970 = vmatprep.subr.bf16.mxu0 %v3907
        %3971 = vmatpush1.bf16.msra.mxu0 %v3906
        %3972 = vmatprep.subr.bf16.mxu0 %v3909
        %3973 = vmatpush1.bf16.msra.mxu0 %v3908
        %3974 = vmatprep.subr.bf16.mxu0 %v3911
        %3975 = vmatpush1.bf16.msra.mxu0 %v3910
        %3976 = vmatprep.subr.bf16.mxu0 %v3913
        %3977 = vmatpush1.bf16.msra.mxu0 %v3912
        %3978 = vmatprep.subr.bf16.mxu0 %v3915
        %3979 = vmatpush1.bf16.msra.mxu0 %v3914
        %3980 = vmatprep.mubr.bf16.mxu0 %v3777
        %3981 = vmatmul.mubr.bf16.gmra.mrb[0].mxu0 %v3774
        %v3982 = vpop.f32.mrb[0].mxu0
        %v3983 = vadd.f32 0.0, %v3982
        %v3984 = vpop.f32.mrb[0].mxu0
        %v3985 = vadd.f32 0.0, %v3984
        %v3986 = vpop.f32.mrb[0].mxu0
        %v3987 = vadd.f32 0.0, %v3986
        %v3988 = vpop.f32.mrb[0].mxu0
        %v3989 = vadd.f32 0.0, %v3988
        %3990 = vmatprep.mubr.bf16.mxu0 %v3781
        %3991 = vmatmul.mubr.bf16.gmra.mrb[0].mxu0 %v3779
        %v3992 = vpop.f32.mrb[0].mxu0
        %v3993 = vadd.f32 0.0, %v3992
        %v3994 = vpop.f32.mrb[0].mxu0
        %v3995 = vadd.f32 0.0, %v3994
        %v3996 = vpop.f32.mrb[0].mxu0
        %v3997 = vadd.f32 0.0, %v3996
        %v3998 = vpop.f32.mrb[0].mxu0
        %v3999 = vadd.f32 0.0, %v3998
        %4000 = vmatprep.mubr.bf16.mxu0 %v3780
        %4001 = vmatmul.mubr.bf16.gmra.mrb[0].mxu0 %v3778
        %v4002 = vpop.f32.mrb[0].mxu0
        %v4003 = vadd.f32 0.0, %v4002
        %v4004 = vpop.f32.mrb[0].mxu0
        %v4005 = vadd.f32 0.0, %v4004
        %v4006 = vpop.f32.mrb[0].mxu0
        %v4007 = vpop.f32.mrb[0].mxu0
        %4008 = vdwg.mxu0
        %v4009 = vadd.f32 %v3714, %v3983
        %v4010 = vadd.f32 %v3715, %v3985
        %v4011 = vadd.f32 %v3716, %v3987
        %v4012 = vadd.f32 %v3717, %v3989
        %v4013 = vadd.f32 %v3718, %v3993
        %v4014 = vadd.f32 %v3719, %v3995
        %v4015 = vadd.f32 %v3720, %v3997
        %v4016 = vadd.f32 %v3721, %v3999
        %v4017 = vadd.f32 %v3722, %v4003
        %v4018 = vadd.f32 %v3723, %v4005
        %v4019 = vld [vmem:[#allocation2 + $0x10] sm:$0x80]
        %v4020 = vld [vmem:[#allocation2 + $0x18] sm:$0x80]
        %v4021 = vld [vmem:[#allocation2 + $0x50] sm:$0xff]
        %v4022 = vld [vmem:[#allocation2 + $0x58] sm:$0xff]
        %v4023 = vpack.c.bf16 %v3124, %v4019
        %v4024 = vpack.c.bf16 %v3125, %v4020
        %v4025 = vpack.c.bf16 %v4021, %v4021
        %v4026 = vpack.c.bf16 %v4022, %v4022
        %s4027 = scalar_lea.vmem [#allocation11], 1792
        %v4028 = vld [vmem:[%s4027] sm:$0xff]
        %v4029 = vld [vmem:[%s4027 + $0x8] sm:$0xff]
        %v4030 = vld [vmem:[%s4027 + $0x10] sm:$0xff]
        %v4031 = vld [vmem:[%s4027 + $0x18] sm:$0xff]
        %v4032 = vld [vmem:[%s4027 + $0x20] sm:$0xff]
        %v4033 = vld [vmem:[%s4027 + $0x28] sm:$0xff]
        %v4034 = vld [vmem:[%s4027 + $0x30] sm:$0xff]
        %v4035 = vld [vmem:[%s4027 + $0x38] sm:$0xff]
        %v4036 = vld [vmem:[%s4027 + $0x40] sm:$0xff]
        %v4037 = vld [vmem:[%s4027 + $0x48] sm:$0xff]
        %v4038 = vld [vmem:[%s4027 + $0x50] sm:$0xff]
        %v4039 = vld [vmem:[%s4027 + $0x58] sm:$0xff]
        %v4040 = vld [vmem:[%s4027 + $0x60] sm:$0xff]
        %v4041 = vld [vmem:[%s4027 + $0x68] sm:$0xff]
        %v4042 = vld [vmem:[%s4027 + $0x70] sm:$0xff]
        %v4043 = vld [vmem:[%s4027 + $0x78] sm:$0xff]
        %v4044 = vld [vmem:[%s4027 + $0x80] sm:$0xff]
        %v4045 = vld [vmem:[%s4027 + $0x88] sm:$0xff]
        %v4046 = vld [vmem:[%s4027 + $0x90] sm:$0xff]
        %v4047 = vld [vmem:[%s4027 + $0x98] sm:$0xff]
        %v4048 = vld [vmem:[%s4027 + $0xa0] sm:$0xff]
        %v4049 = vld [vmem:[%s4027 + $0xa8] sm:$0xff]
        %v4050 = vld [vmem:[%s4027 + $0xb0] sm:$0xff]
        %v4051 = vld [vmem:[%s4027 + $0xb8] sm:$0xff]
        %v4052 = vld [vmem:[%s4027 + $0xc0] sm:$0xff]
        %v4053 = vld [vmem:[%s4027 + $0xc8] sm:$0xff]
        %v4054 = vld [vmem:[%s4027 + $0xd0] sm:$0xff]
        %v4055 = vld [vmem:[%s4027 + $0xd8] sm:$0xff]
        %v4056 = vld [vmem:[%s4027 + $0xe0] sm:$0xff]
        %v4057 = vld [vmem:[%s4027 + $0xe8] sm:$0xff]
        %v4058 = vld [vmem:[%s4027 + $0xf0] sm:$0xff]
        %v4059 = vld [vmem:[%s4027 + $0xf8] sm:$0xff]
        %v4061 = vshrl.u32 %v4023, 16
        %v4063 = vrot.slane %v4061, 3
        %v4064 = vshll.u32 %v4023, 16
        %v4066 = vrot.slane %v4064, 4
        %v4067 = vor.u32 %v4063, %v4066
        %v4068 = vrot.slane %v3467, 3
        %v4069 = vrot.slane %v3451, 4
        %v4070 = vor.u32 %v4068, %v4069
        %v4071 = vsel %vm2842, %v4067, %v4070
        %v4073 = vshrl.u32 %v4024, 16
        %v4075 = vrot.slane %v4073, 3
        %v4076 = vshll.u32 %v4024, 16
        %v4078 = vrot.slane %v4076, 4
        %v4079 = vor.u32 %v4075, %v4078
        %v4080 = vrot.slane %v3475, 3
        %v4081 = vrot.slane %v3463, 4
        %v4082 = vor.u32 %v4080, %v4081
        %v4083 = vsel %vm2842, %v4079, %v4082
        %v4085 = vshrl.u32 %v4025, 16
        %v4087 = vrot.slane %v4085, 3
        %v4088 = vshll.u32 %v4025, 16
        %v4090 = vrot.slane %v4088, 4
        %v4091 = vor.u32 %v4087, %v4090
        %v4092 = vsel %vm2842, %v4070, %v4091
        %v4094 = vshrl.u32 %v4026, 16
        %v4096 = vrot.slane %v4094, 3
        %v4097 = vshll.u32 %v4026, 16
        %v4099 = vrot.slane %v4097, 4
        %v4100 = vor.u32 %v4096, %v4099
        %v4101 = vsel %vm2842, %v4082, %v4100
        %v4140 = vunpack.c.l.b16 %v4028
        %v4141 = vunpack.c.h.b16 %v4028
        %v4142 = vunpack.c.l.b16 %v4029
        %v4143 = vunpack.c.h.b16 %v4029
        %v4144 = vunpack.c.l.b16 %v4030
        %v4145 = vunpack.c.h.b16 %v4030
        %v4146 = vunpack.c.l.b16 %v4031
        %v4147 = vunpack.c.h.b16 %v4031
        %v4148 = vunpack.c.l.b16 %v4032
        %v4149 = vunpack.c.h.b16 %v4032
        %v4150 = vunpack.c.l.b16 %v4033
        %v4151 = vunpack.c.h.b16 %v4033
        %v4152 = vunpack.c.l.b16 %v4034
        %v4153 = vunpack.c.h.b16 %v4034
        %v4154 = vunpack.c.l.b16 %v4035
        %v4155 = vunpack.c.h.b16 %v4035
        %v4156 = vunpack.c.l.b16 %v4036
        %v4157 = vunpack.c.h.b16 %v4036
        %v4158 = vunpack.c.l.b16 %v4037
        %v4159 = vunpack.c.h.b16 %v4037
        %v4160 = vunpack.c.l.b16 %v4038
        %v4161 = vunpack.c.h.b16 %v4038
        %v4162 = vunpack.c.l.b16 %v4039
        %v4163 = vunpack.c.h.b16 %v4039
        %v4164 = vunpack.c.l.b16 %v4040
        %v4165 = vunpack.c.h.b16 %v4040
        %v4166 = vunpack.c.l.b16 %v4041
        %v4167 = vunpack.c.h.b16 %v4041
        %v4168 = vunpack.c.l.b16 %v4042
        %v4169 = vunpack.c.h.b16 %v4042
        %v4170 = vunpack.c.l.b16 %v4043
        %v4171 = vunpack.c.h.b16 %v4043
        %v4172 = vunpack.c.l.b16 %v4044
        %v4173 = vunpack.c.h.b16 %v4044
        %v4174 = vunpack.c.l.b16 %v4045
        %v4175 = vunpack.c.h.b16 %v4045
        %v4176 = vunpack.c.l.b16 %v4046
        %v4177 = vunpack.c.h.b16 %v4046
        %v4178 = vunpack.c.l.b16 %v4047
        %v4179 = vunpack.c.h.b16 %v4047
        %v4180 = vunpack.c.l.b16 %v4048
        %v4181 = vunpack.c.h.b16 %v4048
        %v4182 = vunpack.c.l.b16 %v4049
        %v4183 = vunpack.c.h.b16 %v4049
        %v4184 = vunpack.c.l.b16 %v4050
        %v4185 = vunpack.c.h.b16 %v4050
        %v4186 = vunpack.c.l.b16 %v4051
        %v4187 = vunpack.c.h.b16 %v4051
        %v4188 = vunpack.c.l.b16 %v4052
        %v4189 = vunpack.c.h.b16 %v4052
        %v4190 = vunpack.c.l.b16 %v4053
        %v4191 = vunpack.c.h.b16 %v4053
        %v4192 = vunpack.c.l.b16 %v4054
        %v4193 = vunpack.c.h.b16 %v4054
        %v4194 = vunpack.c.l.b16 %v4055
        %v4195 = vunpack.c.h.b16 %v4055
        %v4196 = vunpack.c.l.b16 %v4056
        %v4197 = vunpack.c.h.b16 %v4056
        %v4198 = vunpack.c.l.b16 %v4057
        %v4199 = vunpack.c.h.b16 %v4057
        %v4200 = vunpack.c.l.b16 %v4058
        %v4201 = vunpack.c.h.b16 %v4058
        %v4202 = vunpack.c.l.b16 %v4059
        %v4203 = vunpack.c.h.b16 %v4059
        %v4204 = vpack.c.b16 %v4142, %v4140
        %v4205 = vpack.c.b16 %v4143, %v4141
        %v4206 = vpack.c.b16 %v4146, %v4144
        %v4207 = vpack.c.b16 %v4147, %v4145
        %v4208 = vpack.c.b16 %v4150, %v4148
        %v4209 = vpack.c.b16 %v4151, %v4149
        %v4210 = vpack.c.b16 %v4154, %v4152
        %v4211 = vpack.c.b16 %v4155, %v4153
        %v4212 = vpack.c.b16 %v4158, %v4156
        %v4213 = vpack.c.b16 %v4159, %v4157
        %v4214 = vpack.c.b16 %v4162, %v4160
        %v4215 = vpack.c.b16 %v4163, %v4161
        %v4216 = vpack.c.b16 %v4166, %v4164
        %v4217 = vpack.c.b16 %v4167, %v4165
        %v4218 = vpack.c.b16 %v4170, %v4168
        %v4219 = vpack.c.b16 %v4171, %v4169
        %v4220 = vpack.c.b16 %v4174, %v4172
        %v4221 = vpack.c.b16 %v4175, %v4173
        %v4222 = vpack.c.b16 %v4178, %v4176
        %v4223 = vpack.c.b16 %v4179, %v4177
        %v4224 = vpack.c.b16 %v4182, %v4180
        %v4225 = vpack.c.b16 %v4183, %v4181
        %v4226 = vpack.c.b16 %v4186, %v4184
        %v4227 = vpack.c.b16 %v4187, %v4185
        %v4228 = vpack.c.b16 %v4190, %v4188
        %v4229 = vpack.c.b16 %v4191, %v4189
        %v4230 = vpack.c.b16 %v4194, %v4192
        %v4231 = vpack.c.b16 %v4195, %v4193
        %v4232 = vpack.c.b16 %v4198, %v4196
        %v4233 = vpack.c.b16 %v4199, %v4197
        %v4234 = vpack.c.b16 %v4202, %v4200
        %v4235 = vpack.c.b16 %v4203, %v4201
        %4268 = vmatprep.subr.bf16.mxu0 %v4205
        %4269 = vmatpush1.bf16.msra.mxu0 %v4204
        %4270 = vmatprep.subr.bf16.mxu0 %v4207
        %4271 = vmatpush1.bf16.msra.mxu0 %v4206
        %4272 = vmatprep.subr.bf16.mxu0 %v4209
        %4273 = vmatpush1.bf16.msra.mxu0 %v4208
        %4274 = vmatprep.subr.bf16.mxu0 %v4211
        %4275 = vmatpush1.bf16.msra.mxu0 %v4210
        %4276 = vmatprep.subr.bf16.mxu0 %v4213
        %4277 = vmatpush1.bf16.msra.mxu0 %v4212
        %4278 = vmatprep.subr.bf16.mxu0 %v4215
        %4279 = vmatpush1.bf16.msra.mxu0 %v4214
        %4280 = vmatprep.subr.bf16.mxu0 %v4217
        %4281 = vmatpush1.bf16.msra.mxu0 %v4216
        %4282 = vmatprep.subr.bf16.mxu0 %v4219
        %4283 = vmatpush1.bf16.msra.mxu0 %v4218
        %4284 = vmatprep.subr.bf16.mxu0 %v4221
        %4285 = vmatpush1.bf16.msra.mxu0 %v4220
        %4286 = vmatprep.subr.bf16.mxu0 %v4223
        %4287 = vmatpush1.bf16.msra.mxu0 %v4222
        %4288 = vmatprep.subr.bf16.mxu0 %v4225
        %4289 = vmatpush1.bf16.msra.mxu0 %v4224
        %4290 = vmatprep.subr.bf16.mxu0 %v4227
        %4291 = vmatpush1.bf16.msra.mxu0 %v4226
        %4292 = vmatprep.subr.bf16.mxu0 %v4229
        %4293 = vmatpush1.bf16.msra.mxu0 %v4228
        %4294 = vmatprep.subr.bf16.mxu0 %v4231
        %4295 = vmatpush1.bf16.msra.mxu0 %v4230
        %4296 = vmatprep.subr.bf16.mxu0 %v4233
        %4297 = vmatpush1.bf16.msra.mxu0 %v4232
        %4298 = vmatprep.subr.bf16.mxu0 %v4235
        %4299 = vmatpush1.bf16.msra.mxu0 %v4234
        %4300 = vmatprep.mubr.bf16.mxu0 %v4083
        %4301 = vmatmul.mubr.bf16.gmra.mrb[0].mxu0 %v4071
        %v4302 = vpop.f32.mrb[0].mxu0
        %v4303 = vadd.f32 0.0, %v4302
        %v4304 = vpop.f32.mrb[0].mxu0
        %v4305 = vadd.f32 0.0, %v4304
        %v4306 = vpop.f32.mrb[0].mxu0
        %v4307 = vadd.f32 0.0, %v4306
        %v4308 = vpop.f32.mrb[0].mxu0
        %v4309 = vadd.f32 0.0, %v4308
        %4310 = vmatprep.mubr.bf16.mxu0 %v4101
        %4311 = vmatmul.mubr.bf16.gmra.mrb[0].mxu0 %v4092
        %v4312 = vpop.f32.mrb[0].mxu0
        %v4313 = vadd.f32 0.0, %v4312
        %v4314 = vpop.f32.mrb[0].mxu0
        %v4315 = vadd.f32 0.0, %v4314
        %v4316 = vpop.f32.mrb[0].mxu0
        %v4317 = vadd.f32 0.0, %v4316
        %v4318 = vpop.f32.mrb[0].mxu0
        %v4319 = vadd.f32 0.0, %v4318
        %4320 = vmatprep.mubr.bf16.mxu0 %v4096
        %4321 = vmatmul.mubr.bf16.gmra.mrb[0].mxu0 %v4087
        %v4322 = vpop.f32.mrb[0].mxu0
        %v4323 = vadd.f32 0.0, %v4322
        %v4324 = vpop.f32.mrb[0].mxu0
        %v4325 = vadd.f32 0.0, %v4324
        %v4326 = vpop.f32.mrb[0].mxu0
        %v4327 = vpop.f32.mrb[0].mxu0
        %4328 = vdwg.mxu0
        %v4329 = vadd.f32 %v4009, %v4303
        %v4330 = vadd.f32 %v4010, %v4305
        %v4331 = vadd.f32 %v4011, %v4307
        %v4332 = vadd.f32 %v4012, %v4309
        %v4333 = vadd.f32 %v4013, %v4313
        %v4334 = vadd.f32 %v4014, %v4315
        %v4335 = vadd.f32 %v4015, %v4317
        %v4336 = vadd.f32 %v4016, %v4319
        %v4337 = vadd.f32 %v4017, %v4323
        %v4338 = vadd.f32 %v4018, %v4325
        %v4339 = vld [vmem:[#allocation2 + $0x20] sm:$0xff]
        %v4340 = vld [vmem:[#allocation2 + $0x28] sm:$0xff]
        %v4341 = vld [vmem:[#allocation2 + $0x30] sm:$0xff]
        %v4342 = vld [vmem:[#allocation2 + $0x38] sm:$0xff]
        %v4343 = vld [vmem:[#allocation2 + $0x40] sm:$0xff]
        %v4344 = vld [vmem:[#allocation2 + $0x48] sm:$0xff]
        %v4345 = vld [vmem:[#allocation2 + $0x50] sm:$0xff]
        %v4346 = vld [vmem:[#allocation2 + $0x58] sm:$0xff]
        %v4347 = vld [vmem:[#allocation2 + $0x60] sm:$0x1]
        %v4348 = vld [vmem:[#allocation2 + $0x68] sm:$0x1]
        %v4349 = vpack.c.bf16 %v4341, %v4339
        %v4350 = vpack.c.bf16 %v4342, %v4340
        %v4351 = vpack.c.bf16 %v4345, %v4343
        %v4352 = vpack.c.bf16 %v4346, %v4344
        %v4353 = vpack.c.bf16 %v4347, %v4347
        %v4354 = vpack.c.bf16 %v4348, %v4348
        %s4355 = scalar_lea.vmem [#allocation11], 2048
        %v4356 = vld [vmem:[%s4355] sm:$0xff]
        %v4357 = vld [vmem:[%s4355 + $0x8] sm:$0xff]
        %v4358 = vld [vmem:[%s4355 + $0x10] sm:$0xff]
        %v4359 = vld [vmem:[%s4355 + $0x18] sm:$0xff]
        %v4360 = vld [vmem:[%s4355 + $0x20] sm:$0xff]
        %v4361 = vld [vmem:[%s4355 + $0x28] sm:$0xff]
        %v4362 = vld [vmem:[%s4355 + $0x30] sm:$0xff]
        %v4363 = vld [vmem:[%s4355 + $0x38] sm:$0xff]
        %v4364 = vld [vmem:[%s4355 + $0x40] sm:$0xff]
        %v4365 = vld [vmem:[%s4355 + $0x48] sm:$0xff]
        %v4366 = vld [vmem:[%s4355 + $0x50] sm:$0xff]
        %v4367 = vld [vmem:[%s4355 + $0x58] sm:$0xff]
        %v4368 = vld [vmem:[%s4355 + $0x60] sm:$0xff]
        %v4369 = vld [vmem:[%s4355 + $0x68] sm:$0xff]
        %v4370 = vld [vmem:[%s4355 + $0x70] sm:$0xff]
        %v4371 = vld [vmem:[%s4355 + $0x78] sm:$0xff]
        %v4372 = vld [vmem:[%s4355 + $0x80] sm:$0xff]
        %v4373 = vld [vmem:[%s4355 + $0x88] sm:$0xff]
        %v4374 = vld [vmem:[%s4355 + $0x90] sm:$0xff]
        %v4375 = vld [vmem:[%s4355 + $0x98] sm:$0xff]
        %v4376 = vld [vmem:[%s4355 + $0xa0] sm:$0xff]
        %v4377 = vld [vmem:[%s4355 + $0xa8] sm:$0xff]
        %v4378 = vld [vmem:[%s4355 + $0xb0] sm:$0xff]
        %v4379 = vld [vmem:[%s4355 + $0xb8] sm:$0xff]
        %v4380 = vld [vmem:[%s4355 + $0xc0] sm:$0xff]
        %v4381 = vld [vmem:[%s4355 + $0xc8] sm:$0xff]
        %v4382 = vld [vmem:[%s4355 + $0xd0] sm:$0xff]
        %v4383 = vld [vmem:[%s4355 + $0xd8] sm:$0xff]
        %v4384 = vld [vmem:[%s4355 + $0xe0] sm:$0xff]
        %v4385 = vld [vmem:[%s4355 + $0xe8] sm:$0xff]
        %v4386 = vld [vmem:[%s4355 + $0xf0] sm:$0xff]
        %v4387 = vld [vmem:[%s4355 + $0xf8] sm:$0xff]
        %v4420 = vunpack.c.l.b16 %v4356
        %v4421 = vunpack.c.h.b16 %v4356
        %v4422 = vunpack.c.l.b16 %v4357
        %v4423 = vunpack.c.h.b16 %v4357
        %v4424 = vunpack.c.l.b16 %v4358
        %v4425 = vunpack.c.h.b16 %v4358
        %v4426 = vunpack.c.l.b16 %v4359
        %v4427 = vunpack.c.h.b16 %v4359
        %v4428 = vunpack.c.l.b16 %v4360
        %v4429 = vunpack.c.h.b16 %v4360
        %v4430 = vunpack.c.l.b16 %v4361
        %v4431 = vunpack.c.h.b16 %v4361
        %v4432 = vunpack.c.l.b16 %v4362
        %v4433 = vunpack.c.h.b16 %v4362
        %v4434 = vunpack.c.l.b16 %v4363
        %v4435 = vunpack.c.h.b16 %v4363
        %v4436 = vunpack.c.l.b16 %v4364
        %v4437 = vunpack.c.h.b16 %v4364
        %v4438 = vunpack.c.l.b16 %v4365
        %v4439 = vunpack.c.h.b16 %v4365
        %v4440 = vunpack.c.l.b16 %v4366
        %v4441 = vunpack.c.h.b16 %v4366
        %v4442 = vunpack.c.l.b16 %v4367
        %v4443 = vunpack.c.h.b16 %v4367
        %v4444 = vunpack.c.l.b16 %v4368
        %v4445 = vunpack.c.h.b16 %v4368
        %v4446 = vunpack.c.l.b16 %v4369
        %v4447 = vunpack.c.h.b16 %v4369
        %v4448 = vunpack.c.l.b16 %v4370
        %v4449 = vunpack.c.h.b16 %v4370
        %v4450 = vunpack.c.l.b16 %v4371
        %v4451 = vunpack.c.h.b16 %v4371
        %v4452 = vunpack.c.l.b16 %v4372
        %v4453 = vunpack.c.h.b16 %v4372
        %v4454 = vunpack.c.l.b16 %v4373
        %v4455 = vunpack.c.h.b16 %v4373
        %v4456 = vunpack.c.l.b16 %v4374
        %v4457 = vunpack.c.h.b16 %v4374
        %v4458 = vunpack.c.l.b16 %v4375
        %v4459 = vunpack.c.h.b16 %v4375
        %v4460 = vunpack.c.l.b16 %v4376
        %v4461 = vunpack.c.h.b16 %v4376
        %v4462 = vunpack.c.l.b16 %v4377
        %v4463 = vunpack.c.h.b16 %v4377
        %v4464 = vunpack.c.l.b16 %v4378
        %v4465 = vunpack.c.h.b16 %v4378
        %v4466 = vunpack.c.l.b16 %v4379
        %v4467 = vunpack.c.h.b16 %v4379
        %v4468 = vunpack.c.l.b16 %v4380
        %v4469 = vunpack.c.h.b16 %v4380
        %v4470 = vunpack.c.l.b16 %v4381
        %v4471 = vunpack.c.h.b16 %v4381
        %v4472 = vunpack.c.l.b16 %v4382
        %v4473 = vunpack.c.h.b16 %v4382
        %v4474 = vunpack.c.l.b16 %v4383
        %v4475 = vunpack.c.h.b16 %v4383
        %v4476 = vunpack.c.l.b16 %v4384
        %v4477 = vunpack.c.h.b16 %v4384
        %v4478 = vunpack.c.l.b16 %v4385
        %v4479 = vunpack.c.h.b16 %v4385
        %v4480 = vunpack.c.l.b16 %v4386
        %v4481 = vunpack.c.h.b16 %v4386
        %v4482 = vunpack.c.l.b16 %v4387
        %v4483 = vunpack.c.h.b16 %v4387
        %v4484 = vpack.c.b16 %v4422, %v4420
        %v4485 = vpack.c.b16 %v4423, %v4421
        %v4486 = vpack.c.b16 %v4426, %v4424
        %v4487 = vpack.c.b16 %v4427, %v4425
        %v4488 = vpack.c.b16 %v4430, %v4428
        %v4489 = vpack.c.b16 %v4431, %v4429
        %v4490 = vpack.c.b16 %v4434, %v4432
        %v4491 = vpack.c.b16 %v4435, %v4433
        %v4492 = vpack.c.b16 %v4438, %v4436
        %v4493 = vpack.c.b16 %v4439, %v4437
        %v4494 = vpack.c.b16 %v4442, %v4440
        %v4495 = vpack.c.b16 %v4443, %v4441
        %v4496 = vpack.c.b16 %v4446, %v4444
        %v4497 = vpack.c.b16 %v4447, %v4445
        %v4498 = vpack.c.b16 %v4450, %v4448
        %v4499 = vpack.c.b16 %v4451, %v4449
        %v4500 = vpack.c.b16 %v4454, %v4452
        %v4501 = vpack.c.b16 %v4455, %v4453
        %v4502 = vpack.c.b16 %v4458, %v4456
        %v4503 = vpack.c.b16 %v4459, %v4457
        %v4504 = vpack.c.b16 %v4462, %v4460
        %v4505 = vpack.c.b16 %v4463, %v4461
        %v4506 = vpack.c.b16 %v4466, %v4464
        %v4507 = vpack.c.b16 %v4467, %v4465
        %v4508 = vpack.c.b16 %v4470, %v4468
        %v4509 = vpack.c.b16 %v4471, %v4469
        %v4510 = vpack.c.b16 %v4474, %v4472
        %v4511 = vpack.c.b16 %v4475, %v4473
        %v4512 = vpack.c.b16 %v4478, %v4476
        %v4513 = vpack.c.b16 %v4479, %v4477
        %v4514 = vpack.c.b16 %v4482, %v4480
        %v4515 = vpack.c.b16 %v4483, %v4481
        %4548 = vmatprep.subr.bf16.mxu0 %v4485
        %4549 = vmatpush1.bf16.msra.mxu0 %v4484
        %4550 = vmatprep.subr.bf16.mxu0 %v4487
        %4551 = vmatpush1.bf16.msra.mxu0 %v4486
        %4552 = vmatprep.subr.bf16.mxu0 %v4489
        %4553 = vmatpush1.bf16.msra.mxu0 %v4488
        %4554 = vmatprep.subr.bf16.mxu0 %v4491
        %4555 = vmatpush1.bf16.msra.mxu0 %v4490
        %4556 = vmatprep.subr.bf16.mxu0 %v4493
        %4557 = vmatpush1.bf16.msra.mxu0 %v4492
        %4558 = vmatprep.subr.bf16.mxu0 %v4495
        %4559 = vmatpush1.bf16.msra.mxu0 %v4494
        %4560 = vmatprep.subr.bf16.mxu0 %v4497
        %4561 = vmatpush1.bf16.msra.mxu0 %v4496
        %4562 = vmatprep.subr.bf16.mxu0 %v4499
        %4563 = vmatpush1.bf16.msra.mxu0 %v4498
        %4564 = vmatprep.subr.bf16.mxu0 %v4501
        %4565 = vmatpush1.bf16.msra.mxu0 %v4500
        %4566 = vmatprep.subr.bf16.mxu0 %v4503
        %4567 = vmatpush1.bf16.msra.mxu0 %v4502
        %4568 = vmatprep.subr.bf16.mxu0 %v4505
        %4569 = vmatpush1.bf16.msra.mxu0 %v4504
        %4570 = vmatprep.subr.bf16.mxu0 %v4507
        %4571 = vmatpush1.bf16.msra.mxu0 %v4506
        %4572 = vmatprep.subr.bf16.mxu0 %v4509
        %4573 = vmatpush1.bf16.msra.mxu0 %v4508
        %4574 = vmatprep.subr.bf16.mxu0 %v4511
        %4575 = vmatpush1.bf16.msra.mxu0 %v4510
        %4576 = vmatprep.subr.bf16.mxu0 %v4513
        %4577 = vmatpush1.bf16.msra.mxu0 %v4512
        %4578 = vmatprep.subr.bf16.mxu0 %v4515
        %4579 = vmatpush1.bf16.msra.mxu0 %v4514
        %4580 = vmatprep.mubr.bf16.mxu0 %v4350
        %4581 = vmatmul.mubr.bf16.gmra.mrb[0].mxu0 %v4349
        %v4582 = vpop.f32.mrb[0].mxu0
        %v4583 = vadd.f32 0.0, %v4582
        %v4584 = vpop.f32.mrb[0].mxu0
        %v4585 = vadd.f32 0.0, %v4584
        %v4586 = vpop.f32.mrb[0].mxu0
        %v4587 = vadd.f32 0.0, %v4586
        %v4588 = vpop.f32.mrb[0].mxu0
        %v4589 = vadd.f32 0.0, %v4588
        %4590 = vmatprep.mubr.bf16.mxu0 %v4352
        %4591 = vmatmul.mubr.bf16.gmra.mrb[0].mxu0 %v4351
        %v4592 = vpop.f32.mrb[0].mxu0
        %v4593 = vadd.f32 0.0, %v4592
        %v4594 = vpop.f32.mrb[0].mxu0
        %v4595 = vadd.f32 0.0, %v4594
        %v4596 = vpop.f32.mrb[0].mxu0
        %v4597 = vadd.f32 0.0, %v4596
        %v4598 = vpop.f32.mrb[0].mxu0
        %v4599 = vadd.f32 0.0, %v4598
        %4600 = vmatprep.mubr.bf16.mxu0 %v4354
        %4601 = vmatmul.mubr.bf16.gmra.mrb[0].mxu0 %v4353
        %v4602 = vpop.f32.mrb[0].mxu0
        %v4603 = vadd.f32 0.0, %v4602
        %v4604 = vpop.f32.mrb[0].mxu0
        %v4605 = vadd.f32 0.0, %v4604
        %v4606 = vpop.f32.mrb[0].mxu0
        %v4607 = vpop.f32.mrb[0].mxu0
        %4608 = vdwg.mxu0
        %v4609 = vadd.f32 %v4329, %v4583
        %v4610 = vadd.f32 %v4330, %v4585
        %v4611 = vadd.f32 %v4331, %v4587
        %v4612 = vadd.f32 %v4332, %v4589
        %v4613 = vadd.f32 %v4333, %v4593
        %v4614 = vadd.f32 %v4334, %v4595
        %v4615 = vadd.f32 %v4335, %v4597
        %v4616 = vadd.f32 %v4336, %v4599
        %v4617 = vadd.f32 %v4337, %v4603
        %v4618 = vadd.f32 %v4338, %v4605
        %v4619 = vld [vmem:[#allocation13] sm:$0x3]
        %v4621 = vlaneseq
        %v4622 = vshrl.u32 %v4621, 7
        %v4623 = vsub.s32 0, %v4622
        %v4624 = vrot.slane %v4619, %v4623
        %v4625 = vlaneseq
        %v4626 = vshrl.u32 %v4625, 7
        %v4627 = vsub.s32 1, %v4626
        %v4628 = vrot.slane %v4619, %v4627
        %v4631 = vadd.f32 %v4609, %v4624
        %v4632 = vadd.f32 %v4610, %v4628
        %v4633 = vadd.f32 %v4611, %v4624
        %v4634 = vadd.f32 %v4612, %v4628
        %v4635 = vadd.f32 %v4613, %v4624
        %v4636 = vadd.f32 %v4614, %v4628
        %v4637 = vadd.f32 %v4615, %v4624
        %v4638 = vadd.f32 %v4616, %v4628
        %v4639 = vadd.f32 %v4617, %v4624
        %v4640 = vadd.f32 %v4618, %v4628
        %v4641 = vmax.f32 %v4631, 0.0
        %v4642 = vmax.f32 %v4632, 0.0
        %v4643 = vmax.f32 %v4633, 0.0
        %v4644 = vmax.f32 %v4634, 0.0
        %v4645 = vmax.f32 %v4635, 0.0
        %v4646 = vmax.f32 %v4636, 0.0
        %v4647 = vmax.f32 %v4637, 0.0
        %v4648 = vmax.f32 %v4638, 0.0
        %v4649 = vmax.f32 %v4639, 0.0
        %v4650 = vmax.f32 %v4640, 0.0
        %4651 = vst [vmem:[#allocation3] sm:$0xff] %v4641
        %4652 = vst [vmem:[#allocation3 + $0x8] sm:$0xff] %v4642
        %4653 = vst [vmem:[#allocation3 + $0x10] sm:$0xff] %v4643
        %4654 = vst [vmem:[#allocation3 + $0x18] sm:$0xff] %v4644
        %4655 = vst [vmem:[#allocation3 + $0x20] sm:$0xff] %v4645
        %4656 = vst [vmem:[#allocation3 + $0x28] sm:$0xff] %v4646
        %4657 = vst [vmem:[#allocation3 + $0x30] sm:$0xff] %v4647
        %4658 = vst [vmem:[#allocation3 + $0x38] sm:$0xff] %v4648
        %4659 = vst [vmem:[#allocation3 + $0x40] sm:$0x1] %v4649
        %4660 = vst [vmem:[#allocation3 + $0x48] sm:$0x1] %v4650
        %v4661 = vld [vmem:[#allocation3] sm:$0xff]
        %v4662 = vld [vmem:[#allocation3 + $0x8] sm:$0xff]
        %v4663 = vld [vmem:[#allocation3 + $0x10] sm:$0xff]
        %v4664 = vld [vmem:[#allocation3 + $0x18] sm:$0xff]
        %v4665 = vld [vmem:[#allocation3 + $0x20] sm:$0x1]
        %v4666 = vld [vmem:[#allocation3 + $0x28] sm:$0x1]
        %v4667 = vpack.c.bf16 %v4663, %v4661
        %v4668 = vpack.c.bf16 %v4664, %v4662
        %v4669 = vpack.c.bf16 %v4665, %v4665
        %v4670 = vpack.c.bf16 %v4666, %v4666
        %v4671 = vld [vmem:[#allocation14] sm:$0xf]
        %v4672 = vld [vmem:[#allocation14 + $0x4] sm:$0xf]
        %v4673 = vld [vmem:[#allocation14 + $0x8] sm:$0xf]
        %v4674 = vld [vmem:[#allocation14 + $0xc] sm:$0xf]
        %v4675 = vld [vmem:[#allocation14 + $0x10] sm:$0xf]
        %v4676 = vld [vmem:[#allocation14 + $0x14] sm:$0xf]
        %v4677 = vld [vmem:[#allocation14 + $0x18] sm:$0xf]
        %v4678 = vld [vmem:[#allocation14 + $0x1c] sm:$0xf]
        %v4679 = vld [vmem:[#allocation14 + $0x20] sm:$0xf]
        %v4680 = vld [vmem:[#allocation14 + $0x24] sm:$0xf]
        %v4681 = vld [vmem:[#allocation14 + $0x28] sm:$0xf]
        %v4682 = vld [vmem:[#allocation14 + $0x2c] sm:$0xf]
        %v4683 = vld [vmem:[#allocation14 + $0x30] sm:$0xf]
        %v4684 = vld [vmem:[#allocation14 + $0x34] sm:$0xf]
        %v4685 = vld [vmem:[#allocation14 + $0x38] sm:$0xf]
        %v4686 = vld [vmem:[#allocation14 + $0x3c] sm:$0xf]
        %v4687 = vld [vmem:[#allocation14 + $0x40] sm:$0xf]
        %v4688 = vld [vmem:[#allocation14 + $0x44] sm:$0xf]
        %v4689 = vld [vmem:[#allocation14 + $0x48] sm:$0xf]
        %v4690 = vld [vmem:[#allocation14 + $0x4c] sm:$0xf]
        %v4691 = vld [vmem:[#allocation14 + $0x50] sm:$0xf]
        %v4692 = vld [vmem:[#allocation14 + $0x54] sm:$0xf]
        %v4693 = vld [vmem:[#allocation14 + $0x58] sm:$0xf]
        %v4694 = vld [vmem:[#allocation14 + $0x5c] sm:$0xf]
        %v4695 = vld [vmem:[#allocation14 + $0x60] sm:$0xf]
        %v4696 = vld [vmem:[#allocation14 + $0x64] sm:$0xf]
        %v4697 = vld [vmem:[#allocation14 + $0x68] sm:$0xf]
        %v4698 = vld [vmem:[#allocation14 + $0x6c] sm:$0xf]
        %v4699 = vld [vmem:[#allocation14 + $0x70] sm:$0xf]
        %v4700 = vld [vmem:[#allocation14 + $0x74] sm:$0xf]
        %v4701 = vld [vmem:[#allocation14 + $0x78] sm:$0xf]
        %v4702 = vld [vmem:[#allocation14 + $0x7c] sm:$0xf]
        %v4703 = vld [vmem:[#allocation3] sm:$0xfe]
        %v4704 = vld [vmem:[#allocation3 + $0x8] sm:$0xfe]
        %v4705 = vld [vmem:[#allocation3 + $0x20] sm:$0x3]
        %v4706 = vld [vmem:[#allocation3 + $0x28] sm:$0x3]
        %v4707 = vpack.c.bf16 %v4663, %v4703
        %v4708 = vpack.c.bf16 %v4664, %v4704
        %v4709 = vpack.c.bf16 %v4705, %v4705
        %v4710 = vpack.c.bf16 %v4706, %v4706
        %s4711 = scalar_lea.vmem [#allocation14], 128
        %v4712 = vld [vmem:[%s4711] sm:$0xf]
        %v4713 = vld [vmem:[%s4711 + $0x4] sm:$0xf]
        %v4714 = vld [vmem:[%s4711 + $0x8] sm:$0xf]
        %v4715 = vld [vmem:[%s4711 + $0xc] sm:$0xf]
        %v4716 = vld [vmem:[%s4711 + $0x10] sm:$0xf]
        %v4717 = vld [vmem:[%s4711 + $0x14] sm:$0xf]
        %v4718 = vld [vmem:[%s4711 + $0x18] sm:$0xf]
        %v4719 = vld [vmem:[%s4711 + $0x1c] sm:$0xf]
        %v4720 = vld [vmem:[%s4711 + $0x20] sm:$0xf]
        %v4721 = vld [vmem:[%s4711 + $0x24] sm:$0xf]
        %v4722 = vld [vmem:[%s4711 + $0x28] sm:$0xf]
        %v4723 = vld [vmem:[%s4711 + $0x2c] sm:$0xf]
        %v4724 = vld [vmem:[%s4711 + $0x30] sm:$0xf]
        %v4725 = vld [vmem:[%s4711 + $0x34] sm:$0xf]
        %v4726 = vld [vmem:[%s4711 + $0x38] sm:$0xf]
        %v4727 = vld [vmem:[%s4711 + $0x3c] sm:$0xf]
        %v4728 = vld [vmem:[%s4711 + $0x40] sm:$0xf]
        %v4729 = vld [vmem:[%s4711 + $0x44] sm:$0xf]
        %v4730 = vld [vmem:[%s4711 + $0x48] sm:$0xf]
        %v4731 = vld [vmem:[%s4711 + $0x4c] sm:$0xf]
        %v4732 = vld [vmem:[%s4711 + $0x50] sm:$0xf]
        %v4733 = vld [vmem:[%s4711 + $0x54] sm:$0xf]
        %v4734 = vld [vmem:[%s4711 + $0x58] sm:$0xf]
        %v4735 = vld [vmem:[%s4711 + $0x5c] sm:$0xf]
        %v4736 = vld [vmem:[%s4711 + $0x60] sm:$0xf]
        %v4737 = vld [vmem:[%s4711 + $0x64] sm:$0xf]
        %v4738 = vld [vmem:[%s4711 + $0x68] sm:$0xf]
        %v4739 = vld [vmem:[%s4711 + $0x6c] sm:$0xf]
        %v4740 = vld [vmem:[%s4711 + $0x70] sm:$0xf]
        %v4741 = vld [vmem:[%s4711 + $0x74] sm:$0xf]
        %v4742 = vld [vmem:[%s4711 + $0x78] sm:$0xf]
        %v4743 = vld [vmem:[%s4711 + $0x7c] sm:$0xf]
        %v4745 = vshrl.u32 %v4707, 16
        %v4747 = vshll.u32 %v4707, 16
        %v4749 = vrot.slane %v4747, 1
        %v4750 = vor.u32 %v4745, %v4749
        %v4752 = vshll.u32 %v4709, 16
        %v4754 = vrot.slane %v4752, 1
        %v4755 = vsel %vm2013, %v4750, %v4754
        %v4757 = vshrl.u32 %v4708, 16
        %v4759 = vshll.u32 %v4708, 16
        %v4761 = vrot.slane %v4759, 1
        %v4762 = vor.u32 %v4757, %v4761
        %v4764 = vshll.u32 %v4710, 16
        %v4766 = vrot.slane %v4764, 1
        %v4767 = vsel %vm2013, %v4762, %v4766
        %v4768 = vshrl.u32 %v4709, 16
        %v4770 = vshrl.u32 %v4710, 16
        %v4808 = vunpack.c.l.b16 %v4712
        %v4809 = vunpack.c.l.b16 %v4713
        %v4810 = vunpack.c.l.b16 %v4714
        %v4811 = vunpack.c.l.b16 %v4715
        %v4812 = vunpack.c.l.b16 %v4716
        %v4813 = vunpack.c.l.b16 %v4717
        %v4814 = vunpack.c.l.b16 %v4718
        %v4815 = vunpack.c.l.b16 %v4719
        %v4816 = vunpack.c.l.b16 %v4720
        %v4817 = vunpack.c.l.b16 %v4721
        %v4818 = vunpack.c.l.b16 %v4722
        %v4819 = vunpack.c.l.b16 %v4723
        %v4820 = vunpack.c.l.b16 %v4724
        %v4821 = vunpack.c.l.b16 %v4725
        %v4822 = vunpack.c.l.b16 %v4726
        %v4823 = vunpack.c.l.b16 %v4727
        %v4824 = vunpack.c.l.b16 %v4728
        %v4825 = vunpack.c.l.b16 %v4729
        %v4826 = vunpack.c.l.b16 %v4730
        %v4827 = vunpack.c.l.b16 %v4731
        %v4828 = vunpack.c.l.b16 %v4732
        %v4829 = vunpack.c.l.b16 %v4733
        %v4830 = vunpack.c.l.b16 %v4734
        %v4831 = vunpack.c.l.b16 %v4735
        %v4832 = vunpack.c.l.b16 %v4736
        %v4833 = vunpack.c.l.b16 %v4737
        %v4834 = vunpack.c.l.b16 %v4738
        %v4835 = vunpack.c.l.b16 %v4739
        %v4836 = vunpack.c.l.b16 %v4740
        %v4837 = vunpack.c.l.b16 %v4741
        %v4838 = vunpack.c.l.b16 %v4742
        %v4839 = vunpack.c.l.b16 %v4743
        %v4840 = vpack.c.b16 %v4809, %v4808
        %v4841 = vpack.c.b16 %v4811, %v4810
        %v4842 = vpack.c.b16 %v4813, %v4812
        %v4843 = vpack.c.b16 %v4815, %v4814
        %v4844 = vpack.c.b16 %v4817, %v4816
        %v4845 = vpack.c.b16 %v4819, %v4818
        %v4846 = vpack.c.b16 %v4821, %v4820
        %v4847 = vpack.c.b16 %v4823, %v4822
        %v4848 = vpack.c.b16 %v4825, %v4824
        %v4849 = vpack.c.b16 %v4827, %v4826
        %v4850 = vpack.c.b16 %v4829, %v4828
        %v4851 = vpack.c.b16 %v4831, %v4830
        %v4852 = vpack.c.b16 %v4833, %v4832
        %v4853 = vpack.c.b16 %v4835, %v4834
        %v4854 = vpack.c.b16 %v4837, %v4836
        %v4855 = vpack.c.b16 %v4839, %v4838
        %4872 = vmatprep.subr.bf16.mxu0 0
        %4873 = vmatpush1.bf16.msra.mxu0 %v4840
        %4874 = vmatprep.subr.bf16.mxu0 0
        %4875 = vmatpush1.bf16.msra.mxu0 %v4841
        %4876 = vmatprep.subr.bf16.mxu0 0
        %4877 = vmatpush1.bf16.msra.mxu0 %v4842
        %4878 = vmatprep.subr.bf16.mxu0 0
        %4879 = vmatpush1.bf16.msra.mxu0 %v4843
        %4880 = vmatprep.subr.bf16.mxu0 0
        %4881 = vmatpush1.bf16.msra.mxu0 %v4844
        %4882 = vmatprep.subr.bf16.mxu0 0
        %4883 = vmatpush1.bf16.msra.mxu0 %v4845
        %4884 = vmatprep.subr.bf16.mxu0 0
        %4885 = vmatpush1.bf16.msra.mxu0 %v4846
        %4886 = vmatprep.subr.bf16.mxu0 0
        %4887 = vmatpush1.bf16.msra.mxu0 %v4847
        %4888 = vmatprep.subr.bf16.mxu0 0
        %4889 = vmatpush1.bf16.msra.mxu0 %v4848
        %4890 = vmatprep.subr.bf16.mxu0 0
        %4891 = vmatpush1.bf16.msra.mxu0 %v4849
        %4892 = vmatprep.subr.bf16.mxu0 0
        %4893 = vmatpush1.bf16.msra.mxu0 %v4850
        %4894 = vmatprep.subr.bf16.mxu0 0
        %4895 = vmatpush1.bf16.msra.mxu0 %v4851
        %4896 = vmatprep.subr.bf16.mxu0 0
        %4897 = vmatpush1.bf16.msra.mxu0 %v4852
        %4898 = vmatprep.subr.bf16.mxu0 0
        %4899 = vmatpush1.bf16.msra.mxu0 %v4853
        %4900 = vmatprep.subr.bf16.mxu0 0
        %4901 = vmatpush1.bf16.msra.mxu0 %v4854
        %4902 = vmatprep.subr.bf16.mxu0 0
        %4903 = vmatpush1.bf16.msra.mxu0 %v4855
        %4904 = vmatprep.mubr.bf16.mxu0 %v4767
        %4905 = vmatmul.mubr.bf16.gmra.mrb[0].mxu0 %v4755
        %v4906 = vpop.f32.mrb[0].mxu0
        %v4907 = vadd.f32 0.0, %v4906
        %v4908 = vpop.f32.mrb[0].mxu0
        %v4909 = vpop.f32.mrb[0].mxu0
        %v4910 = vadd.f32 0.0, %v4909
        %v4911 = vpop.f32.mrb[0].mxu0
        %4912 = vmatprep.mubr.bf16.mxu0 %v4770
        %4913 = vmatmul.mubr.bf16.gmra.mrb[0].mxu0 %v4768
        %v4914 = vpop.f32.mrb[0].mxu0
        %v4915 = vadd.f32 0.0, %v4914
        %v4916 = vpop.f32.mrb[0].mxu0
        %v4917 = vpop.f32.mrb[0].mxu0
        %v4918 = vpop.f32.mrb[0].mxu0
        %4919 = vdwg.mxu0
        %v4952 = vunpack.c.l.b16 %v4671
        %v4953 = vunpack.c.l.b16 %v4672
        %v4954 = vunpack.c.l.b16 %v4673
        %v4955 = vunpack.c.l.b16 %v4674
        %v4956 = vunpack.c.l.b16 %v4675
        %v4957 = vunpack.c.l.b16 %v4676
        %v4958 = vunpack.c.l.b16 %v4677
        %v4959 = vunpack.c.l.b16 %v4678
        %v4960 = vunpack.c.l.b16 %v4679
        %v4961 = vunpack.c.l.b16 %v4680
        %v4962 = vunpack.c.l.b16 %v4681
        %v4963 = vunpack.c.l.b16 %v4682
        %v4964 = vunpack.c.l.b16 %v4683
        %v4965 = vunpack.c.l.b16 %v4684
        %v4966 = vunpack.c.l.b16 %v4685
        %v4967 = vunpack.c.l.b16 %v4686
        %v4968 = vunpack.c.l.b16 %v4687
        %v4969 = vunpack.c.l.b16 %v4688
        %v4970 = vunpack.c.l.b16 %v4689
        %v4971 = vunpack.c.l.b16 %v4690
        %v4972 = vunpack.c.l.b16 %v4691
        %v4973 = vunpack.c.l.b16 %v4692
        %v4974 = vunpack.c.l.b16 %v4693
        %v4975 = vunpack.c.l.b16 %v4694
        %v4976 = vunpack.c.l.b16 %v4695
        %v4977 = vunpack.c.l.b16 %v4696
        %v4978 = vunpack.c.l.b16 %v4697
        %v4979 = vunpack.c.l.b16 %v4698
        %v4980 = vunpack.c.l.b16 %v4699
        %v4981 = vunpack.c.l.b16 %v4700
        %v4982 = vunpack.c.l.b16 %v4701
        %v4983 = vunpack.c.l.b16 %v4702
        %v4984 = vpack.c.b16 %v4953, %v4952
        %v4985 = vpack.c.b16 %v4955, %v4954
        %v4986 = vpack.c.b16 %v4957, %v4956
        %v4987 = vpack.c.b16 %v4959, %v4958
        %v4988 = vpack.c.b16 %v4961, %v4960
        %v4989 = vpack.c.b16 %v4963, %v4962
        %v4990 = vpack.c.b16 %v4965, %v4964
        %v4991 = vpack.c.b16 %v4967, %v4966
        %v4992 = vpack.c.b16 %v4969, %v4968
        %v4993 = vpack.c.b16 %v4971, %v4970
        %v4994 = vpack.c.b16 %v4973, %v4972
        %v4995 = vpack.c.b16 %v4975, %v4974
        %v4996 = vpack.c.b16 %v4977, %v4976
        %v4997 = vpack.c.b16 %v4979, %v4978
        %v4998 = vpack.c.b16 %v4981, %v4980
        %v4999 = vpack.c.b16 %v4983, %v4982
        %5016 = vmatprep.subr.bf16.mxu0 0
        %5017 = vmatpush1.bf16.msra.mxu0 %v4984
        %5018 = vmatprep.subr.bf16.mxu0 0
        %5019 = vmatpush1.bf16.msra.mxu0 %v4985
        %5020 = vmatprep.subr.bf16.mxu0 0
        %5021 = vmatpush1.bf16.msra.mxu0 %v4986
        %5022 = vmatprep.subr.bf16.mxu0 0
        %5023 = vmatpush1.bf16.msra.mxu0 %v4987
        %5024 = vmatprep.subr.bf16.mxu0 0
        %5025 = vmatpush1.bf16.msra.mxu0 %v4988
        %5026 = vmatprep.subr.bf16.mxu0 0
        %5027 = vmatpush1.bf16.msra.mxu0 %v4989
        %5028 = vmatprep.subr.bf16.mxu0 0
        %5029 = vmatpush1.bf16.msra.mxu0 %v4990
        %5030 = vmatprep.subr.bf16.mxu0 0
        %5031 = vmatpush1.bf16.msra.mxu0 %v4991
        %5032 = vmatprep.subr.bf16.mxu0 0
        %5033 = vmatpush1.bf16.msra.mxu0 %v4992
        %5034 = vmatprep.subr.bf16.mxu0 0
        %5035 = vmatpush1.bf16.msra.mxu0 %v4993
        %5036 = vmatprep.subr.bf16.mxu0 0
        %5037 = vmatpush1.bf16.msra.mxu0 %v4994
        %5038 = vmatprep.subr.bf16.mxu0 0
        %5039 = vmatpush1.bf16.msra.mxu0 %v4995
        %5040 = vmatprep.subr.bf16.mxu0 0
        %5041 = vmatpush1.bf16.msra.mxu0 %v4996
        %5042 = vmatprep.subr.bf16.mxu0 0
        %5043 = vmatpush1.bf16.msra.mxu0 %v4997
        %5044 = vmatprep.subr.bf16.mxu0 0
        %5045 = vmatpush1.bf16.msra.mxu0 %v4998
        %5046 = vmatprep.subr.bf16.mxu0 0
        %5047 = vmatpush1.bf16.msra.mxu0 %v4999
        %5048 = vmatprep.mubr.bf16.mxu0 %v4668
        %5049 = vmatmul.mubr.bf16.gmra.mrb[0].mxu0 %v4667
        %v5050 = vpop.f32.mrb[0].mxu0
        %v5051 = vadd.f32 %v4907, %v5050
        %v5052 = vpop.f32.mrb[0].mxu0
        %v5053 = vpop.f32.mrb[0].mxu0
        %v5054 = vadd.f32 %v4910, %v5053
        %v5055 = vpop.f32.mrb[0].mxu0
        %5056 = vmatprep.mubr.bf16.mxu0 %v4670
        %5057 = vmatmul.mubr.bf16.gmra.mrb[0].mxu0 %v4669
        %v5058 = vpop.f32.mrb[0].mxu0
        %v5059 = vadd.f32 %v4915, %v5058
        %v5060 = vpop.f32.mrb[0].mxu0
        %v5061 = vpop.f32.mrb[0].mxu0
        %v5062 = vpop.f32.mrb[0].mxu0
        %5063 = vdwg.mxu0
        %v5064 = vld [vmem:[#allocation3] sm:$0xfc]
        %v5065 = vld [vmem:[#allocation3 + $0x8] sm:$0xfc]
        %v5066 = vld [vmem:[#allocation3 + $0x20] sm:$0x7]
        %v5067 = vld [vmem:[#allocation3 + $0x28] sm:$0x7]
        %v5068 = vpack.c.bf16 %v4663, %v5064
        %v5069 = vpack.c.bf16 %v4664, %v5065
        %v5070 = vpack.c.bf16 %v5066, %v5066
        %v5071 = vpack.c.bf16 %v5067, %v5067
        %s5072 = scalar_lea.vmem [#allocation14], 256
        %v5073 = vld [vmem:[%s5072] sm:$0xf]
        %v5074 = vld [vmem:[%s5072 + $0x4] sm:$0xf]
        %v5075 = vld [vmem:[%s5072 + $0x8] sm:$0xf]
        %v5076 = vld [vmem:[%s5072 + $0xc] sm:$0xf]
        %v5077 = vld [vmem:[%s5072 + $0x10] sm:$0xf]
        %v5078 = vld [vmem:[%s5072 + $0x14] sm:$0xf]
        %v5079 = vld [vmem:[%s5072 + $0x18] sm:$0xf]
        %v5080 = vld [vmem:[%s5072 + $0x1c] sm:$0xf]
        %v5081 = vld [vmem:[%s5072 + $0x20] sm:$0xf]
        %v5082 = vld [vmem:[%s5072 + $0x24] sm:$0xf]
        %v5083 = vld [vmem:[%s5072 + $0x28] sm:$0xf]
        %v5084 = vld [vmem:[%s5072 + $0x2c] sm:$0xf]
        %v5085 = vld [vmem:[%s5072 + $0x30] sm:$0xf]
        %v5086 = vld [vmem:[%s5072 + $0x34] sm:$0xf]
        %v5087 = vld [vmem:[%s5072 + $0x38] sm:$0xf]
        %v5088 = vld [vmem:[%s5072 + $0x3c] sm:$0xf]
        %v5089 = vld [vmem:[%s5072 + $0x40] sm:$0xf]
        %v5090 = vld [vmem:[%s5072 + $0x44] sm:$0xf]
        %v5091 = vld [vmem:[%s5072 + $0x48] sm:$0xf]
        %v5092 = vld [vmem:[%s5072 + $0x4c] sm:$0xf]
        %v5093 = vld [vmem:[%s5072 + $0x50] sm:$0xf]
        %v5094 = vld [vmem:[%s5072 + $0x54] sm:$0xf]
        %v5095 = vld [vmem:[%s5072 + $0x58] sm:$0xf]
        %v5096 = vld [vmem:[%s5072 + $0x5c] sm:$0xf]
        %v5097 = vld [vmem:[%s5072 + $0x60] sm:$0xf]
        %v5098 = vld [vmem:[%s5072 + $0x64] sm:$0xf]
        %v5099 = vld [vmem:[%s5072 + $0x68] sm:$0xf]
        %v5100 = vld [vmem:[%s5072 + $0x6c] sm:$0xf]
        %v5101 = vld [vmem:[%s5072 + $0x70] sm:$0xf]
        %v5102 = vld [vmem:[%s5072 + $0x74] sm:$0xf]
        %v5103 = vld [vmem:[%s5072 + $0x78] sm:$0xf]
        %v5104 = vld [vmem:[%s5072 + $0x7c] sm:$0xf]
        %v5109 = vrot.slane %v5068, 1
        %v5110 = vrot.slane %v5070, 1
        %v5111 = vsel %vm2553, %v5109, %v5110
        %v5112 = vrot.slane %v5069, 1
        %v5113 = vrot.slane %v5071, 1
        %v5114 = vsel %vm2553, %v5112, %v5113
        %v5151 = vunpack.c.l.b16 %v5073
        %v5152 = vunpack.c.l.b16 %v5074
        %v5153 = vunpack.c.l.b16 %v5075
        %v5154 = vunpack.c.l.b16 %v5076
        %v5155 = vunpack.c.l.b16 %v5077
        %v5156 = vunpack.c.l.b16 %v5078
        %v5157 = vunpack.c.l.b16 %v5079
        %v5158 = vunpack.c.l.b16 %v5080
        %v5159 = vunpack.c.l.b16 %v5081
        %v5160 = vunpack.c.l.b16 %v5082
        %v5161 = vunpack.c.l.b16 %v5083
        %v5162 = vunpack.c.l.b16 %v5084
        %v5163 = vunpack.c.l.b16 %v5085
        %v5164 = vunpack.c.l.b16 %v5086
        %v5165 = vunpack.c.l.b16 %v5087
        %v5166 = vunpack.c.l.b16 %v5088
        %v5167 = vunpack.c.l.b16 %v5089
        %v5168 = vunpack.c.l.b16 %v5090
        %v5169 = vunpack.c.l.b16 %v5091
        %v5170 = vunpack.c.l.b16 %v5092
        %v5171 = vunpack.c.l.b16 %v5093
        %v5172 = vunpack.c.l.b16 %v5094
        %v5173 = vunpack.c.l.b16 %v5095
        %v5174 = vunpack.c.l.b16 %v5096
        %v5175 = vunpack.c.l.b16 %v5097
        %v5176 = vunpack.c.l.b16 %v5098
        %v5177 = vunpack.c.l.b16 %v5099
        %v5178 = vunpack.c.l.b16 %v5100
        %v5179 = vunpack.c.l.b16 %v5101
        %v5180 = vunpack.c.l.b16 %v5102
        %v5181 = vunpack.c.l.b16 %v5103
        %v5182 = vunpack.c.l.b16 %v5104
        %v5183 = vpack.c.b16 %v5152, %v5151
        %v5184 = vpack.c.b16 %v5154, %v5153
        %v5185 = vpack.c.b16 %v5156, %v5155
        %v5186 = vpack.c.b16 %v5158, %v5157
        %v5187 = vpack.c.b16 %v5160, %v5159
        %v5188 = vpack.c.b16 %v5162, %v5161
        %v5189 = vpack.c.b16 %v5164, %v5163
        %v5190 = vpack.c.b16 %v5166, %v5165
        %v5191 = vpack.c.b16 %v5168, %v5167
        %v5192 = vpack.c.b16 %v5170, %v5169
        %v5193 = vpack.c.b16 %v5172, %v5171
        %v5194 = vpack.c.b16 %v5174, %v5173
        %v5195 = vpack.c.b16 %v5176, %v5175
        %v5196 = vpack.c.b16 %v5178, %v5177
        %v5197 = vpack.c.b16 %v5180, %v5179
        %v5198 = vpack.c.b16 %v5182, %v5181
        %5215 = vmatprep.subr.bf16.mxu0 0
        %5216 = vmatpush1.bf16.msra.mxu0 %v5183
        %5217 = vmatprep.subr.bf16.mxu0 0
        %5218 = vmatpush1.bf16.msra.mxu0 %v5184
        %5219 = vmatprep.subr.bf16.mxu0 0
        %5220 = vmatpush1.bf16.msra.mxu0 %v5185
        %5221 = vmatprep.subr.bf16.mxu0 0
        %5222 = vmatpush1.bf16.msra.mxu0 %v5186
        %5223 = vmatprep.subr.bf16.mxu0 0
        %5224 = vmatpush1.bf16.msra.mxu0 %v5187
        %5225 = vmatprep.subr.bf16.mxu0 0
        %5226 = vmatpush1.bf16.msra.mxu0 %v5188
        %5227 = vmatprep.subr.bf16.mxu0 0
        %5228 = vmatpush1.bf16.msra.mxu0 %v5189
        %5229 = vmatprep.subr.bf16.mxu0 0
        %5230 = vmatpush1.bf16.msra.mxu0 %v5190
        %5231 = vmatprep.subr.bf16.mxu0 0
        %5232 = vmatpush1.bf16.msra.mxu0 %v5191
        %5233 = vmatprep.subr.bf16.mxu0 0
        %5234 = vmatpush1.bf16.msra.mxu0 %v5192
        %5235 = vmatprep.subr.bf16.mxu0 0
        %5236 = vmatpush1.bf16.msra.mxu0 %v5193
        %5237 = vmatprep.subr.bf16.mxu0 0
        %5238 = vmatpush1.bf16.msra.mxu0 %v5194
        %5239 = vmatprep.subr.bf16.mxu0 0
        %5240 = vmatpush1.bf16.msra.mxu0 %v5195
        %5241 = vmatprep.subr.bf16.mxu0 0
        %5242 = vmatpush1.bf16.msra.mxu0 %v5196
        %5243 = vmatprep.subr.bf16.mxu0 0
        %5244 = vmatpush1.bf16.msra.mxu0 %v5197
        %5245 = vmatprep.subr.bf16.mxu0 0
        %5246 = vmatpush1.bf16.msra.mxu0 %v5198
        %5247 = vmatprep.mubr.bf16.mxu0 %v5114
        %5248 = vmatmul.mubr.bf16.gmra.mrb[0].mxu0 %v5111
        %v5249 = vpop.f32.mrb[0].mxu0
        %v5250 = vadd.f32 0.0, %v5249
        %v5251 = vpop.f32.mrb[0].mxu0
        %v5252 = vpop.f32.mrb[0].mxu0
        %v5253 = vadd.f32 0.0, %v5252
        %v5254 = vpop.f32.mrb[0].mxu0
        %5255 = vmatprep.mubr.bf16.mxu0 %v5113
        %5256 = vmatmul.mubr.bf16.gmra.mrb[0].mxu0 %v5110
        %v5257 = vpop.f32.mrb[0].mxu0
        %v5258 = vadd.f32 0.0, %v5257
        %v5259 = vpop.f32.mrb[0].mxu0
        %v5260 = vpop.f32.mrb[0].mxu0
        %v5261 = vpop.f32.mrb[0].mxu0
        %5262 = vdwg.mxu0
        %v5263 = vadd.f32 %v5051, %v5250
        %v5264 = vadd.f32 %v5054, %v5253
        %v5265 = vadd.f32 %v5059, %v5258
        %v5266 = vld [vmem:[#allocation3] sm:$0x80]
        %v5267 = vld [vmem:[#allocation3 + $0x8] sm:$0x80]
        %v5268 = vld [vmem:[#allocation3 + $0x20] sm:$0xff]
        %v5269 = vld [vmem:[#allocation3 + $0x28] sm:$0xff]
        %v5270 = vpack.c.bf16 %v4663, %v5266
        %v5271 = vpack.c.bf16 %v4664, %v5267
        %v5272 = vpack.c.bf16 %v5268, %v5268
        %v5273 = vpack.c.bf16 %v5269, %v5269
        %s5274 = scalar_lea.vmem [#allocation14], 384
        %v5275 = vld [vmem:[%s5274] sm:$0xf]
        %v5276 = vld [vmem:[%s5274 + $0x4] sm:$0xf]
        %v5277 = vld [vmem:[%s5274 + $0x8] sm:$0xf]
        %v5278 = vld [vmem:[%s5274 + $0xc] sm:$0xf]
        %v5279 = vld [vmem:[%s5274 + $0x10] sm:$0xf]
        %v5280 = vld [vmem:[%s5274 + $0x14] sm:$0xf]
        %v5281 = vld [vmem:[%s5274 + $0x18] sm:$0xf]
        %v5282 = vld [vmem:[%s5274 + $0x1c] sm:$0xf]
        %v5283 = vld [vmem:[%s5274 + $0x20] sm:$0xf]
        %v5284 = vld [vmem:[%s5274 + $0x24] sm:$0xf]
        %v5285 = vld [vmem:[%s5274 + $0x28] sm:$0xf]
        %v5286 = vld [vmem:[%s5274 + $0x2c] sm:$0xf]
        %v5287 = vld [vmem:[%s5274 + $0x30] sm:$0xf]
        %v5288 = vld [vmem:[%s5274 + $0x34] sm:$0xf]
        %v5289 = vld [vmem:[%s5274 + $0x38] sm:$0xf]
        %v5290 = vld [vmem:[%s5274 + $0x3c] sm:$0xf]
        %v5291 = vld [vmem:[%s5274 + $0x40] sm:$0xf]
        %v5292 = vld [vmem:[%s5274 + $0x44] sm:$0xf]
        %v5293 = vld [vmem:[%s5274 + $0x48] sm:$0xf]
        %v5294 = vld [vmem:[%s5274 + $0x4c] sm:$0xf]
        %v5295 = vld [vmem:[%s5274 + $0x50] sm:$0xf]
        %v5296 = vld [vmem:[%s5274 + $0x54] sm:$0xf]
        %v5297 = vld [vmem:[%s5274 + $0x58] sm:$0xf]
        %v5298 = vld [vmem:[%s5274 + $0x5c] sm:$0xf]
        %v5299 = vld [vmem:[%s5274 + $0x60] sm:$0xf]
        %v5300 = vld [vmem:[%s5274 + $0x64] sm:$0xf]
        %v5301 = vld [vmem:[%s5274 + $0x68] sm:$0xf]
        %v5302 = vld [vmem:[%s5274 + $0x6c] sm:$0xf]
        %v5303 = vld [vmem:[%s5274 + $0x70] sm:$0xf]
        %v5304 = vld [vmem:[%s5274 + $0x74] sm:$0xf]
        %v5305 = vld [vmem:[%s5274 + $0x78] sm:$0xf]
        %v5306 = vld [vmem:[%s5274 + $0x7c] sm:$0xf]
        %v5308 = vshrl.u32 %v5270, 16
        %v5310 = vrot.slane %v5308, 3
        %v5311 = vshll.u32 %v5270, 16
        %v5313 = vrot.slane %v5311, 4
        %v5314 = vor.u32 %v5310, %v5313
        %v5316 = vshrl.u32 %v5272, 16
        %v5318 = vrot.slane %v5316, 3
        %v5319 = vshll.u32 %v5272, 16
        %v5321 = vrot.slane %v5319, 4
        %v5322 = vor.u32 %v5318, %v5321
        %v5323 = vsel %vm2842, %v5314, %v5322
        %v5325 = vshrl.u32 %v5271, 16
        %v5327 = vrot.slane %v5325, 3
        %v5328 = vshll.u32 %v5271, 16
        %v5330 = vrot.slane %v5328, 4
        %v5331 = vor.u32 %v5327, %v5330
        %v5333 = vshrl.u32 %v5273, 16
        %v5335 = vrot.slane %v5333, 3
        %v5336 = vshll.u32 %v5273, 16
        %v5338 = vrot.slane %v5336, 4
        %v5339 = vor.u32 %v5335, %v5338
        %v5340 = vsel %vm2842, %v5331, %v5339
        %v5377 = vunpack.c.l.b16 %v5275
        %v5378 = vunpack.c.l.b16 %v5276
        %v5379 = vunpack.c.l.b16 %v5277
        %v5380 = vunpack.c.l.b16 %v5278
        %v5381 = vunpack.c.l.b16 %v5279
        %v5382 = vunpack.c.l.b16 %v5280
        %v5383 = vunpack.c.l.b16 %v5281
        %v5384 = vunpack.c.l.b16 %v5282
        %v5385 = vunpack.c.l.b16 %v5283
        %v5386 = vunpack.c.l.b16 %v5284
        %v5387 = vunpack.c.l.b16 %v5285
        %v5388 = vunpack.c.l.b16 %v5286
        %v5389 = vunpack.c.l.b16 %v5287
        %v5390 = vunpack.c.l.b16 %v5288
        %v5391 = vunpack.c.l.b16 %v5289
        %v5392 = vunpack.c.l.b16 %v5290
        %v5393 = vunpack.c.l.b16 %v5291
        %v5394 = vunpack.c.l.b16 %v5292
        %v5395 = vunpack.c.l.b16 %v5293
        %v5396 = vunpack.c.l.b16 %v5294
        %v5397 = vunpack.c.l.b16 %v5295
        %v5398 = vunpack.c.l.b16 %v5296
        %v5399 = vunpack.c.l.b16 %v5297
        %v5400 = vunpack.c.l.b16 %v5298
        %v5401 = vunpack.c.l.b16 %v5299
        %v5402 = vunpack.c.l.b16 %v5300
        %v5403 = vunpack.c.l.b16 %v5301
        %v5404 = vunpack.c.l.b16 %v5302
        %v5405 = vunpack.c.l.b16 %v5303
        %v5406 = vunpack.c.l.b16 %v5304
        %v5407 = vunpack.c.l.b16 %v5305
        %v5408 = vunpack.c.l.b16 %v5306
        %v5409 = vpack.c.b16 %v5378, %v5377
        %v5410 = vpack.c.b16 %v5380, %v5379
        %v5411 = vpack.c.b16 %v5382, %v5381
        %v5412 = vpack.c.b16 %v5384, %v5383
        %v5413 = vpack.c.b16 %v5386, %v5385
        %v5414 = vpack.c.b16 %v5388, %v5387
        %v5415 = vpack.c.b16 %v5390, %v5389
        %v5416 = vpack.c.b16 %v5392, %v5391
        %v5417 = vpack.c.b16 %v5394, %v5393
        %v5418 = vpack.c.b16 %v5396, %v5395
        %v5419 = vpack.c.b16 %v5398, %v5397
        %v5420 = vpack.c.b16 %v5400, %v5399
        %v5421 = vpack.c.b16 %v5402, %v5401
        %v5422 = vpack.c.b16 %v5404, %v5403
        %v5423 = vpack.c.b16 %v5406, %v5405
        %v5424 = vpack.c.b16 %v5408, %v5407
        %5441 = vmatprep.subr.bf16.mxu0 0
        %5442 = vmatpush1.bf16.msra.mxu0 %v5409
        %5443 = vmatprep.subr.bf16.mxu0 0
        %5444 = vmatpush1.bf16.msra.mxu0 %v5410
        %5445 = vmatprep.subr.bf16.mxu0 0
        %5446 = vmatpush1.bf16.msra.mxu0 %v5411
        %5447 = vmatprep.subr.bf16.mxu0 0
        %5448 = vmatpush1.bf16.msra.mxu0 %v5412
        %5449 = vmatprep.subr.bf16.mxu0 0
        %5450 = vmatpush1.bf16.msra.mxu0 %v5413
        %5451 = vmatprep.subr.bf16.mxu0 0
        %5452 = vmatpush1.bf16.msra.mxu0 %v5414
        %5453 = vmatprep.subr.bf16.mxu0 0
        %5454 = vmatpush1.bf16.msra.mxu0 %v5415
        %5455 = vmatprep.subr.bf16.mxu0 0
        %5456 = vmatpush1.bf16.msra.mxu0 %v5416
        %5457 = vmatprep.subr.bf16.mxu0 0
        %5458 = vmatpush1.bf16.msra.mxu0 %v5417
        %5459 = vmatprep.subr.bf16.mxu0 0
        %5460 = vmatpush1.bf16.msra.mxu0 %v5418
        %5461 = vmatprep.subr.bf16.mxu0 0
        %5462 = vmatpush1.bf16.msra.mxu0 %v5419
        %5463 = vmatprep.subr.bf16.mxu0 0
        %5464 = vmatpush1.bf16.msra.mxu0 %v5420
        %5465 = vmatprep.subr.bf16.mxu0 0
        %5466 = vmatpush1.bf16.msra.mxu0 %v5421
        %5467 = vmatprep.subr.bf16.mxu0 0
        %5468 = vmatpush1.bf16.msra.mxu0 %v5422
        %5469 = vmatprep.subr.bf16.mxu0 0
        %5470 = vmatpush1.bf16.msra.mxu0 %v5423
        %5471 = vmatprep.subr.bf16.mxu0 0
        %5472 = vmatpush1.bf16.msra.mxu0 %v5424
        %5473 = vmatprep.mubr.bf16.mxu0 %v5340
        %5474 = vmatmul.mubr.bf16.gmra.mrb[0].mxu0 %v5323
        %v5475 = vpop.f32.mrb[0].mxu0
        %v5476 = vadd.f32 0.0, %v5475
        %v5477 = vpop.f32.mrb[0].mxu0
        %v5478 = vpop.f32.mrb[0].mxu0
        %v5479 = vadd.f32 0.0, %v5478
        %v5480 = vpop.f32.mrb[0].mxu0
        %5481 = vmatprep.mubr.bf16.mxu0 %v5335
        %5482 = vmatmul.mubr.bf16.gmra.mrb[0].mxu0 %v5318
        %v5483 = vpop.f32.mrb[0].mxu0
        %v5484 = vadd.f32 0.0, %v5483
        %v5485 = vpop.f32.mrb[0].mxu0
        %v5486 = vpop.f32.mrb[0].mxu0
        %v5487 = vpop.f32.mrb[0].mxu0
        %5488 = vdwg.mxu0
        %v5489 = vadd.f32 %v5263, %v5476
        %v5490 = vadd.f32 %v5264, %v5479
        %v5491 = vadd.f32 %v5265, %v5484
        %v5492 = vld [vmem:[#allocation3 + $0x10] sm:$0xff]
        %v5493 = vld [vmem:[#allocation3 + $0x18] sm:$0xff]
        %v5494 = vld [vmem:[#allocation3 + $0x20] sm:$0xff]
        %v5495 = vld [vmem:[#allocation3 + $0x28] sm:$0xff]
        %v5496 = vld [vmem:[#allocation3 + $0x30] sm:$0x1]
        %v5497 = vld [vmem:[#allocation3 + $0x38] sm:$0x1]
        %v5498 = vpack.c.bf16 %v5494, %v5492
        %v5499 = vpack.c.bf16 %v5495, %v5493
        %v5500 = vpack.c.bf16 %v5496, %v5496
        %v5501 = vpack.c.bf16 %v5497, %v5497
        %s5502 = scalar_lea.vmem [#allocation14], 512
        %v5503 = vld [vmem:[%s5502] sm:$0xf]
        %v5504 = vld [vmem:[%s5502 + $0x4] sm:$0xf]
        %v5505 = vld [vmem:[%s5502 + $0x8] sm:$0xf]
        %v5506 = vld [vmem:[%s5502 + $0xc] sm:$0xf]
        %v5507 = vld [vmem:[%s5502 + $0x10] sm:$0xf]
        %v5508 = vld [vmem:[%s5502 + $0x14] sm:$0xf]
        %v5509 = vld [vmem:[%s5502 + $0x18] sm:$0xf]
        %v5510 = vld [vmem:[%s5502 + $0x1c] sm:$0xf]
        %v5511 = vld [vmem:[%s5502 + $0x20] sm:$0xf]
        %v5512 = vld [vmem:[%s5502 + $0x24] sm:$0xf]
        %v5513 = vld [vmem:[%s5502 + $0x28] sm:$0xf]
        %v5514 = vld [vmem:[%s5502 + $0x2c] sm:$0xf]
        %v5515 = vld [vmem:[%s5502 + $0x30] sm:$0xf]
        %v5516 = vld [vmem:[%s5502 + $0x34] sm:$0xf]
        %v5517 = vld [vmem:[%s5502 + $0x38] sm:$0xf]
        %v5518 = vld [vmem:[%s5502 + $0x3c] sm:$0xf]
        %v5519 = vld [vmem:[%s5502 + $0x40] sm:$0xf]
        %v5520 = vld [vmem:[%s5502 + $0x44] sm:$0xf]
        %v5521 = vld [vmem:[%s5502 + $0x48] sm:$0xf]
        %v5522 = vld [vmem:[%s5502 + $0x4c] sm:$0xf]
        %v5523 = vld [vmem:[%s5502 + $0x50] sm:$0xf]
        %v5524 = vld [vmem:[%s5502 + $0x54] sm:$0xf]
        %v5525 = vld [vmem:[%s5502 + $0x58] sm:$0xf]
        %v5526 = vld [vmem:[%s5502 + $0x5c] sm:$0xf]
        %v5527 = vld [vmem:[%s5502 + $0x60] sm:$0xf]
        %v5528 = vld [vmem:[%s5502 + $0x64] sm:$0xf]
        %v5529 = vld [vmem:[%s5502 + $0x68] sm:$0xf]
        %v5530 = vld [vmem:[%s5502 + $0x6c] sm:$0xf]
        %v5531 = vld [vmem:[%s5502 + $0x70] sm:$0xf]
        %v5532 = vld [vmem:[%s5502 + $0x74] sm:$0xf]
        %v5533 = vld [vmem:[%s5502 + $0x78] sm:$0xf]
        %v5534 = vld [vmem:[%s5502 + $0x7c] sm:$0xf]
        %v5567 = vunpack.c.l.b16 %v5503
        %v5568 = vunpack.c.l.b16 %v5504
        %v5569 = vunpack.c.l.b16 %v5505
        %v5570 = vunpack.c.l.b16 %v5506
        %v5571 = vunpack.c.l.b16 %v5507
        %v5572 = vunpack.c.l.b16 %v5508
        %v5573 = vunpack.c.l.b16 %v5509
        %v5574 = vunpack.c.l.b16 %v5510
        %v5575 = vunpack.c.l.b16 %v5511
        %v5576 = vunpack.c.l.b16 %v5512
        %v5577 = vunpack.c.l.b16 %v5513
        %v5578 = vunpack.c.l.b16 %v5514
        %v5579 = vunpack.c.l.b16 %v5515
        %v5580 = vunpack.c.l.b16 %v5516
        %v5581 = vunpack.c.l.b16 %v5517
        %v5582 = vunpack.c.l.b16 %v5518
        %v5583 = vunpack.c.l.b16 %v5519
        %v5584 = vunpack.c.l.b16 %v5520
        %v5585 = vunpack.c.l.b16 %v5521
        %v5586 = vunpack.c.l.b16 %v5522
        %v5587 = vunpack.c.l.b16 %v5523
        %v5588 = vunpack.c.l.b16 %v5524
        %v5589 = vunpack.c.l.b16 %v5525
        %v5590 = vunpack.c.l.b16 %v5526
        %v5591 = vunpack.c.l.b16 %v5527
        %v5592 = vunpack.c.l.b16 %v5528
        %v5593 = vunpack.c.l.b16 %v5529
        %v5594 = vunpack.c.l.b16 %v5530
        %v5595 = vunpack.c.l.b16 %v5531
        %v5596 = vunpack.c.l.b16 %v5532
        %v5597 = vunpack.c.l.b16 %v5533
        %v5598 = vunpack.c.l.b16 %v5534
        %v5599 = vpack.c.b16 %v5568, %v5567
        %v5600 = vpack.c.b16 %v5570, %v5569
        %v5601 = vpack.c.b16 %v5572, %v5571
        %v5602 = vpack.c.b16 %v5574, %v5573
        %v5603 = vpack.c.b16 %v5576, %v5575
        %v5604 = vpack.c.b16 %v5578, %v5577
        %v5605 = vpack.c.b16 %v5580, %v5579
        %v5606 = vpack.c.b16 %v5582, %v5581
        %v5607 = vpack.c.b16 %v5584, %v5583
        %v5608 = vpack.c.b16 %v5586, %v5585
        %v5609 = vpack.c.b16 %v5588, %v5587
        %v5610 = vpack.c.b16 %v5590, %v5589
        %v5611 = vpack.c.b16 %v5592, %v5591
        %v5612 = vpack.c.b16 %v5594, %v5593
        %v5613 = vpack.c.b16 %v5596, %v5595
        %v5614 = vpack.c.b16 %v5598, %v5597
        %5631 = vmatprep.subr.bf16.mxu0 0
        %5632 = vmatpush1.bf16.msra.mxu0 %v5599
        %5633 = vmatprep.subr.bf16.mxu0 0
        %5634 = vmatpush1.bf16.msra.mxu0 %v5600
        %5635 = vmatprep.subr.bf16.mxu0 0
        %5636 = vmatpush1.bf16.msra.mxu0 %v5601
        %5637 = vmatprep.subr.bf16.mxu0 0
        %5638 = vmatpush1.bf16.msra.mxu0 %v5602
        %5639 = vmatprep.subr.bf16.mxu0 0
        %5640 = vmatpush1.bf16.msra.mxu0 %v5603
        %5641 = vmatprep.subr.bf16.mxu0 0
        %5642 = vmatpush1.bf16.msra.mxu0 %v5604
        %5643 = vmatprep.subr.bf16.mxu0 0
        %5644 = vmatpush1.bf16.msra.mxu0 %v5605
        %5645 = vmatprep.subr.bf16.mxu0 0
        %5646 = vmatpush1.bf16.msra.mxu0 %v5606
        %5647 = vmatprep.subr.bf16.mxu0 0
        %5648 = vmatpush1.bf16.msra.mxu0 %v5607
        %5649 = vmatprep.subr.bf16.mxu0 0
        %5650 = vmatpush1.bf16.msra.mxu0 %v5608
        %5651 = vmatprep.subr.bf16.mxu0 0
        %5652 = vmatpush1.bf16.msra.mxu0 %v5609
        %5653 = vmatprep.subr.bf16.mxu0 0
        %5654 = vmatpush1.bf16.msra.mxu0 %v5610
        %5655 = vmatprep.subr.bf16.mxu0 0
        %5656 = vmatpush1.bf16.msra.mxu0 %v5611
        %5657 = vmatprep.subr.bf16.mxu0 0
        %5658 = vmatpush1.bf16.msra.mxu0 %v5612
        %5659 = vmatprep.subr.bf16.mxu0 0
        %5660 = vmatpush1.bf16.msra.mxu0 %v5613
        %5661 = vmatprep.subr.bf16.mxu0 0
        %5662 = vmatpush1.bf16.msra.mxu0 %v5614
        %5663 = vmatprep.mubr.bf16.mxu0 %v5499
        %5664 = vmatmul.mubr.bf16.gmra.mrb[0].mxu0 %v5498
        %v5665 = vpop.f32.mrb[0].mxu0
        %v5666 = vadd.f32 0.0, %v5665
        %v5667 = vpop.f32.mrb[0].mxu0
        %v5668 = vpop.f32.mrb[0].mxu0
        %v5669 = vadd.f32 0.0, %v5668
        %v5670 = vpop.f32.mrb[0].mxu0
        %5671 = vmatprep.mubr.bf16.mxu0 %v5501
        %5672 = vmatmul.mubr.bf16.gmra.mrb[0].mxu0 %v5500
        %v5673 = vpop.f32.mrb[0].mxu0
        %v5674 = vadd.f32 0.0, %v5673
        %v5675 = vpop.f32.mrb[0].mxu0
        %v5676 = vpop.f32.mrb[0].mxu0
        %v5677 = vpop.f32.mrb[0].mxu0
        %5678 = vdwg.mxu0
        %v5679 = vadd.f32 %v5489, %v5666
        %v5680 = vadd.f32 %v5490, %v5669
        %v5681 = vadd.f32 %v5491, %v5674
        %v5682 = vld [vmem:[#allocation3 + $0x10] sm:$0xfe]
        %v5683 = vld [vmem:[#allocation3 + $0x18] sm:$0xfe]
        %v5684 = vld [vmem:[#allocation3 + $0x30] sm:$0x3]
        %v5685 = vld [vmem:[#allocation3 + $0x38] sm:$0x3]
        %v5686 = vpack.c.bf16 %v5494, %v5682
        %v5687 = vpack.c.bf16 %v5495, %v5683
        %v5688 = vpack.c.bf16 %v5684, %v5684
        %v5689 = vpack.c.bf16 %v5685, %v5685
        %s5690 = scalar_lea.vmem [#allocation14], 640
        %v5691 = vld [vmem:[%s5690] sm:$0xf]
        %v5692 = vld [vmem:[%s5690 + $0x4] sm:$0xf]
        %v5693 = vld [vmem:[%s5690 + $0x8] sm:$0xf]
        %v5694 = vld [vmem:[%s5690 + $0xc] sm:$0xf]
        %v5695 = vld [vmem:[%s5690 + $0x10] sm:$0xf]
        %v5696 = vld [vmem:[%s5690 + $0x14] sm:$0xf]
        %v5697 = vld [vmem:[%s5690 + $0x18] sm:$0xf]
        %v5698 = vld [vmem:[%s5690 + $0x1c] sm:$0xf]
        %v5699 = vld [vmem:[%s5690 + $0x20] sm:$0xf]
        %v5700 = vld [vmem:[%s5690 + $0x24] sm:$0xf]
        %v5701 = vld [vmem:[%s5690 + $0x28] sm:$0xf]
        %v5702 = vld [vmem:[%s5690 + $0x2c] sm:$0xf]
        %v5703 = vld [vmem:[%s5690 + $0x30] sm:$0xf]
        %v5704 = vld [vmem:[%s5690 + $0x34] sm:$0xf]
        %v5705 = vld [vmem:[%s5690 + $0x38] sm:$0xf]
        %v5706 = vld [vmem:[%s5690 + $0x3c] sm:$0xf]
        %v5707 = vld [vmem:[%s5690 + $0x40] sm:$0xf]
        %v5708 = vld [vmem:[%s5690 + $0x44] sm:$0xf]
        %v5709 = vld [vmem:[%s5690 + $0x48] sm:$0xf]
        %v5710 = vld [vmem:[%s5690 + $0x4c] sm:$0xf]
        %v5711 = vld [vmem:[%s5690 + $0x50] sm:$0xf]
        %v5712 = vld [vmem:[%s5690 + $0x54] sm:$0xf]
        %v5713 = vld [vmem:[%s5690 + $0x58] sm:$0xf]
        %v5714 = vld [vmem:[%s5690 + $0x5c] sm:$0xf]
        %v5715 = vld [vmem:[%s5690 + $0x60] sm:$0xf]
        %v5716 = vld [vmem:[%s5690 + $0x64] sm:$0xf]
        %v5717 = vld [vmem:[%s5690 + $0x68] sm:$0xf]
        %v5718 = vld [vmem:[%s5690 + $0x6c] sm:$0xf]
        %v5719 = vld [vmem:[%s5690 + $0x70] sm:$0xf]
        %v5720 = vld [vmem:[%s5690 + $0x74] sm:$0xf]
        %v5721 = vld [vmem:[%s5690 + $0x78] sm:$0xf]
        %v5722 = vld [vmem:[%s5690 + $0x7c] sm:$0xf]
        %v5724 = vshrl.u32 %v5686, 16
        %v5726 = vshll.u32 %v5686, 16
        %v5728 = vrot.slane %v5726, 1
        %v5729 = vor.u32 %v5724, %v5728
        %v5731 = vshll.u32 %v5688, 16
        %v5733 = vrot.slane %v5731, 1
        %v5734 = vsel %vm2013, %v5729, %v5733
        %v5736 = vshrl.u32 %v5687, 16
        %v5738 = vshll.u32 %v5687, 16
        %v5740 = vrot.slane %v5738, 1
        %v5741 = vor.u32 %v5736, %v5740
        %v5743 = vshll.u32 %v5689, 16
        %v5745 = vrot.slane %v5743, 1
        %v5746 = vsel %vm2013, %v5741, %v5745
        %v5747 = vshrl.u32 %v5688, 16
        %v5749 = vshrl.u32 %v5689, 16
        %v5787 = vunpack.c.l.b16 %v5691
        %v5788 = vunpack.c.l.b16 %v5692
        %v5789 = vunpack.c.l.b16 %v5693
        %v5790 = vunpack.c.l.b16 %v5694
        %v5791 = vunpack.c.l.b16 %v5695
        %v5792 = vunpack.c.l.b16 %v5696
        %v5793 = vunpack.c.l.b16 %v5697
        %v5794 = vunpack.c.l.b16 %v5698
        %v5795 = vunpack.c.l.b16 %v5699
        %v5796 = vunpack.c.l.b16 %v5700
        %v5797 = vunpack.c.l.b16 %v5701
        %v5798 = vunpack.c.l.b16 %v5702
        %v5799 = vunpack.c.l.b16 %v5703
        %v5800 = vunpack.c.l.b16 %v5704
        %v5801 = vunpack.c.l.b16 %v5705
        %v5802 = vunpack.c.l.b16 %v5706
        %v5803 = vunpack.c.l.b16 %v5707
        %v5804 = vunpack.c.l.b16 %v5708
        %v5805 = vunpack.c.l.b16 %v5709
        %v5806 = vunpack.c.l.b16 %v5710
        %v5807 = vunpack.c.l.b16 %v5711
        %v5808 = vunpack.c.l.b16 %v5712
        %v5809 = vunpack.c.l.b16 %v5713
        %v5810 = vunpack.c.l.b16 %v5714
        %v5811 = vunpack.c.l.b16 %v5715
        %v5812 = vunpack.c.l.b16 %v5716
        %v5813 = vunpack.c.l.b16 %v5717
        %v5814 = vunpack.c.l.b16 %v5718
        %v5815 = vunpack.c.l.b16 %v5719
        %v5816 = vunpack.c.l.b16 %v5720
        %v5817 = vunpack.c.l.b16 %v5721
        %v5818 = vunpack.c.l.b16 %v5722
        %v5819 = vpack.c.b16 %v5788, %v5787
        %v5820 = vpack.c.b16 %v5790, %v5789
        %v5821 = vpack.c.b16 %v5792, %v5791
        %v5822 = vpack.c.b16 %v5794, %v5793
        %v5823 = vpack.c.b16 %v5796, %v5795
        %v5824 = vpack.c.b16 %v5798, %v5797
        %v5825 = vpack.c.b16 %v5800, %v5799
        %v5826 = vpack.c.b16 %v5802, %v5801
        %v5827 = vpack.c.b16 %v5804, %v5803
        %v5828 = vpack.c.b16 %v5806, %v5805
        %v5829 = vpack.c.b16 %v5808, %v5807
        %v5830 = vpack.c.b16 %v5810, %v5809
        %v5831 = vpack.c.b16 %v5812, %v5811
        %v5832 = vpack.c.b16 %v5814, %v5813
        %v5833 = vpack.c.b16 %v5816, %v5815
        %v5834 = vpack.c.b16 %v5818, %v5817
        %5851 = vmatprep.subr.bf16.mxu0 0
        %5852 = vmatpush1.bf16.msra.mxu0 %v5819
        %5853 = vmatprep.subr.bf16.mxu0 0
        %5854 = vmatpush1.bf16.msra.mxu0 %v5820
        %5855 = vmatprep.subr.bf16.mxu0 0
        %5856 = vmatpush1.bf16.msra.mxu0 %v5821
        %5857 = vmatprep.subr.bf16.mxu0 0
        %5858 = vmatpush1.bf16.msra.mxu0 %v5822
        %5859 = vmatprep.subr.bf16.mxu0 0
        %5860 = vmatpush1.bf16.msra.mxu0 %v5823
        %5861 = vmatprep.subr.bf16.mxu0 0
        %5862 = vmatpush1.bf16.msra.mxu0 %v5824
        %5863 = vmatprep.subr.bf16.mxu0 0
        %5864 = vmatpush1.bf16.msra.mxu0 %v5825
        %5865 = vmatprep.subr.bf16.mxu0 0
        %5866 = vmatpush1.bf16.msra.mxu0 %v5826
        %5867 = vmatprep.subr.bf16.mxu0 0
        %5868 = vmatpush1.bf16.msra.mxu0 %v5827
        %5869 = vmatprep.subr.bf16.mxu0 0
        %5870 = vmatpush1.bf16.msra.mxu0 %v5828
        %5871 = vmatprep.subr.bf16.mxu0 0
        %5872 = vmatpush1.bf16.msra.mxu0 %v5829
        %5873 = vmatprep.subr.bf16.mxu0 0
        %5874 = vmatpush1.bf16.msra.mxu0 %v5830
        %5875 = vmatprep.subr.bf16.mxu0 0
        %5876 = vmatpush1.bf16.msra.mxu0 %v5831
        %5877 = vmatprep.subr.bf16.mxu0 0
        %5878 = vmatpush1.bf16.msra.mxu0 %v5832
        %5879 = vmatprep.subr.bf16.mxu0 0
        %5880 = vmatpush1.bf16.msra.mxu0 %v5833
        %5881 = vmatprep.subr.bf16.mxu0 0
        %5882 = vmatpush1.bf16.msra.mxu0 %v5834
        %5883 = vmatprep.mubr.bf16.mxu0 %v5746
        %5884 = vmatmul.mubr.bf16.gmra.mrb[0].mxu0 %v5734
        %v5885 = vpop.f32.mrb[0].mxu0
        %v5886 = vadd.f32 0.0, %v5885
        %v5887 = vpop.f32.mrb[0].mxu0
        %v5888 = vpop.f32.mrb[0].mxu0
        %v5889 = vadd.f32 0.0, %v5888
        %v5890 = vpop.f32.mrb[0].mxu0
        %5891 = vmatprep.mubr.bf16.mxu0 %v5749
        %5892 = vmatmul.mubr.bf16.gmra.mrb[0].mxu0 %v5747
        %v5893 = vpop.f32.mrb[0].mxu0
        %v5894 = vadd.f32 0.0, %v5893
        %v5895 = vpop.f32.mrb[0].mxu0
        %v5896 = vpop.f32.mrb[0].mxu0
        %v5897 = vpop.f32.mrb[0].mxu0
        %5898 = vdwg.mxu0
        %v5899 = vadd.f32 %v5679, %v5886
        %v5900 = vadd.f32 %v5680, %v5889
        %v5901 = vadd.f32 %v5681, %v5894
        %v5902 = vld [vmem:[#allocation3 + $0x10] sm:$0xc0]
        %v5903 = vld [vmem:[#allocation3 + $0x18] sm:$0xc0]
        %v5904 = vld [vmem:[#allocation3 + $0x30] sm:$0x7f]
        %v5905 = vld [vmem:[#allocation3 + $0x38] sm:$0x7f]
        %v5906 = vpack.c.bf16 %v5494, %v5902
        %v5907 = vpack.c.bf16 %v5495, %v5903
        %v5908 = vpack.c.bf16 %v5904, %v5904
        %v5909 = vpack.c.bf16 %v5905, %v5905
        %s5910 = scalar_lea.vmem [#allocation14], 768
        %v5911 = vld [vmem:[%s5910] sm:$0xf]
        %v5912 = vld [vmem:[%s5910 + $0x4] sm:$0xf]
        %v5913 = vld [vmem:[%s5910 + $0x8] sm:$0xf]
        %v5914 = vld [vmem:[%s5910 + $0xc] sm:$0xf]
        %v5915 = vld [vmem:[%s5910 + $0x10] sm:$0xf]
        %v5916 = vld [vmem:[%s5910 + $0x14] sm:$0xf]
        %v5917 = vld [vmem:[%s5910 + $0x18] sm:$0xf]
        %v5918 = vld [vmem:[%s5910 + $0x1c] sm:$0xf]
        %v5919 = vld [vmem:[%s5910 + $0x20] sm:$0xf]
        %v5920 = vld [vmem:[%s5910 + $0x24] sm:$0xf]
        %v5921 = vld [vmem:[%s5910 + $0x28] sm:$0xf]
        %v5922 = vld [vmem:[%s5910 + $0x2c] sm:$0xf]
        %v5923 = vld [vmem:[%s5910 + $0x30] sm:$0xf]
        %v5924 = vld [vmem:[%s5910 + $0x34] sm:$0xf]
        %v5925 = vld [vmem:[%s5910 + $0x38] sm:$0xf]
        %v5926 = vld [vmem:[%s5910 + $0x3c] sm:$0xf]
        %v5927 = vld [vmem:[%s5910 + $0x40] sm:$0xf]
        %v5928 = vld [vmem:[%s5910 + $0x44] sm:$0xf]
        %v5929 = vld [vmem:[%s5910 + $0x48] sm:$0xf]
        %v5930 = vld [vmem:[%s5910 + $0x4c] sm:$0xf]
        %v5931 = vld [vmem:[%s5910 + $0x50] sm:$0xf]
        %v5932 = vld [vmem:[%s5910 + $0x54] sm:$0xf]
        %v5933 = vld [vmem:[%s5910 + $0x58] sm:$0xf]
        %v5934 = vld [vmem:[%s5910 + $0x5c] sm:$0xf]
        %v5935 = vld [vmem:[%s5910 + $0x60] sm:$0xf]
        %v5936 = vld [vmem:[%s5910 + $0x64] sm:$0xf]
        %v5937 = vld [vmem:[%s5910 + $0x68] sm:$0xf]
        %v5938 = vld [vmem:[%s5910 + $0x6c] sm:$0xf]
        %v5939 = vld [vmem:[%s5910 + $0x70] sm:$0xf]
        %v5940 = vld [vmem:[%s5910 + $0x74] sm:$0xf]
        %v5941 = vld [vmem:[%s5910 + $0x78] sm:$0xf]
        %v5942 = vld [vmem:[%s5910 + $0x7c] sm:$0xf]
        %v5947 = vrot.slane %v5906, 3
        %v5948 = vrot.slane %v5908, 3
        %v5949 = vsel %vm3771, %v5947, %v5948
        %v5950 = vrot.slane %v5907, 3
        %v5951 = vrot.slane %v5909, 3
        %v5952 = vsel %vm3771, %v5950, %v5951
        %v5989 = vunpack.c.l.b16 %v5911
        %v5990 = vunpack.c.l.b16 %v5912
        %v5991 = vunpack.c.l.b16 %v5913
        %v5992 = vunpack.c.l.b16 %v5914
        %v5993 = vunpack.c.l.b16 %v5915
        %v5994 = vunpack.c.l.b16 %v5916
        %v5995 = vunpack.c.l.b16 %v5917
        %v5996 = vunpack.c.l.b16 %v5918
        %v5997 = vunpack.c.l.b16 %v5919
        %v5998 = vunpack.c.l.b16 %v5920
        %v5999 = vunpack.c.l.b16 %v5921
        %v6000 = vunpack.c.l.b16 %v5922
        %v6001 = vunpack.c.l.b16 %v5923
        %v6002 = vunpack.c.l.b16 %v5924
        %v6003 = vunpack.c.l.b16 %v5925
        %v6004 = vunpack.c.l.b16 %v5926
        %v6005 = vunpack.c.l.b16 %v5927
        %v6006 = vunpack.c.l.b16 %v5928
        %v6007 = vunpack.c.l.b16 %v5929
        %v6008 = vunpack.c.l.b16 %v5930
        %v6009 = vunpack.c.l.b16 %v5931
        %v6010 = vunpack.c.l.b16 %v5932
        %v6011 = vunpack.c.l.b16 %v5933
        %v6012 = vunpack.c.l.b16 %v5934
        %v6013 = vunpack.c.l.b16 %v5935
        %v6014 = vunpack.c.l.b16 %v5936
        %v6015 = vunpack.c.l.b16 %v5937
        %v6016 = vunpack.c.l.b16 %v5938
        %v6017 = vunpack.c.l.b16 %v5939
        %v6018 = vunpack.c.l.b16 %v5940
        %v6019 = vunpack.c.l.b16 %v5941
        %v6020 = vunpack.c.l.b16 %v5942
        %v6021 = vpack.c.b16 %v5990, %v5989
        %v6022 = vpack.c.b16 %v5992, %v5991
        %v6023 = vpack.c.b16 %v5994, %v5993
        %v6024 = vpack.c.b16 %v5996, %v5995
        %v6025 = vpack.c.b16 %v5998, %v5997
        %v6026 = vpack.c.b16 %v6000, %v5999
        %v6027 = vpack.c.b16 %v6002, %v6001
        %v6028 = vpack.c.b16 %v6004, %v6003
        %v6029 = vpack.c.b16 %v6006, %v6005
        %v6030 = vpack.c.b16 %v6008, %v6007
        %v6031 = vpack.c.b16 %v6010, %v6009
        %v6032 = vpack.c.b16 %v6012, %v6011
        %v6033 = vpack.c.b16 %v6014, %v6013
        %v6034 = vpack.c.b16 %v6016, %v6015
        %v6035 = vpack.c.b16 %v6018, %v6017
        %v6036 = vpack.c.b16 %v6020, %v6019
        %6053 = vmatprep.subr.bf16.mxu0 0
        %6054 = vmatpush1.bf16.msra.mxu0 %v6021
        %6055 = vmatprep.subr.bf16.mxu0 0
        %6056 = vmatpush1.bf16.msra.mxu0 %v6022
        %6057 = vmatprep.subr.bf16.mxu0 0
        %6058 = vmatpush1.bf16.msra.mxu0 %v6023
        %6059 = vmatprep.subr.bf16.mxu0 0
        %6060 = vmatpush1.bf16.msra.mxu0 %v6024
        %6061 = vmatprep.subr.bf16.mxu0 0
        %6062 = vmatpush1.bf16.msra.mxu0 %v6025
        %6063 = vmatprep.subr.bf16.mxu0 0
        %6064 = vmatpush1.bf16.msra.mxu0 %v6026
        %6065 = vmatprep.subr.bf16.mxu0 0
        %6066 = vmatpush1.bf16.msra.mxu0 %v6027
        %6067 = vmatprep.subr.bf16.mxu0 0
        %6068 = vmatpush1.bf16.msra.mxu0 %v6028
        %6069 = vmatprep.subr.bf16.mxu0 0
        %6070 = vmatpush1.bf16.msra.mxu0 %v6029
        %6071 = vmatprep.subr.bf16.mxu0 0
        %6072 = vmatpush1.bf16.msra.mxu0 %v6030
        %6073 = vmatprep.subr.bf16.mxu0 0
        %6074 = vmatpush1.bf16.msra.mxu0 %v6031
        %6075 = vmatprep.subr.bf16.mxu0 0
        %6076 = vmatpush1.bf16.msra.mxu0 %v6032
        %6077 = vmatprep.subr.bf16.mxu0 0
        %6078 = vmatpush1.bf16.msra.mxu0 %v6033
        %6079 = vmatprep.subr.bf16.mxu0 0
        %6080 = vmatpush1.bf16.msra.mxu0 %v6034
        %6081 = vmatprep.subr.bf16.mxu0 0
        %6082 = vmatpush1.bf16.msra.mxu0 %v6035
        %6083 = vmatprep.subr.bf16.mxu0 0
        %6084 = vmatpush1.bf16.msra.mxu0 %v6036
        %6085 = vmatprep.mubr.bf16.mxu0 %v5952
        %6086 = vmatmul.mubr.bf16.gmra.mrb[0].mxu0 %v5949
        %v6087 = vpop.f32.mrb[0].mxu0
        %v6088 = vadd.f32 0.0, %v6087
        %v6089 = vpop.f32.mrb[0].mxu0
        %v6090 = vpop.f32.mrb[0].mxu0
        %v6091 = vadd.f32 0.0, %v6090
        %v6092 = vpop.f32.mrb[0].mxu0
        %6093 = vmatprep.mubr.bf16.mxu0 %v5951
        %6094 = vmatmul.mubr.bf16.gmra.mrb[0].mxu0 %v5948
        %v6095 = vpop.f32.mrb[0].mxu0
        %v6096 = vadd.f32 0.0, %v6095
        %v6097 = vpop.f32.mrb[0].mxu0
        %v6098 = vpop.f32.mrb[0].mxu0
        %v6099 = vpop.f32.mrb[0].mxu0
        %6100 = vdwg.mxu0
        %v6101 = vadd.f32 %v5899, %v6088
        %v6102 = vadd.f32 %v5900, %v6091
        %v6103 = vadd.f32 %v5901, %v6096
        %v6104 = vld [vmem:[#allocation3 + $0x10] sm:$0x80]
        %v6105 = vld [vmem:[#allocation3 + $0x18] sm:$0x80]
        %v6106 = vld [vmem:[#allocation3 + $0x30] sm:$0xff]
        %v6107 = vld [vmem:[#allocation3 + $0x38] sm:$0xff]
        %v6108 = vpack.c.bf16 %v5494, %v6104
        %v6109 = vpack.c.bf16 %v5495, %v6105
        %v6110 = vpack.c.bf16 %v6106, %v6106
        %v6111 = vpack.c.bf16 %v6107, %v6107
        %s6112 = scalar_lea.vmem [#allocation14], 896
        %v6113 = vld [vmem:[%s6112] sm:$0xf]
        %v6114 = vld [vmem:[%s6112 + $0x4] sm:$0xf]
        %v6115 = vld [vmem:[%s6112 + $0x8] sm:$0xf]
        %v6116 = vld [vmem:[%s6112 + $0xc] sm:$0xf]
        %v6117 = vld [vmem:[%s6112 + $0x10] sm:$0xf]
        %v6118 = vld [vmem:[%s6112 + $0x14] sm:$0xf]
        %v6119 = vld [vmem:[%s6112 + $0x18] sm:$0xf]
        %v6120 = vld [vmem:[%s6112 + $0x1c] sm:$0xf]
        %v6121 = vld [vmem:[%s6112 + $0x20] sm:$0xf]
        %v6122 = vld [vmem:[%s6112 + $0x24] sm:$0xf]
        %v6123 = vld [vmem:[%s6112 + $0x28] sm:$0xf]
        %v6124 = vld [vmem:[%s6112 + $0x2c] sm:$0xf]
        %v6125 = vld [vmem:[%s6112 + $0x30] sm:$0xf]
        %v6126 = vld [vmem:[%s6112 + $0x34] sm:$0xf]
        %v6127 = vld [vmem:[%s6112 + $0x38] sm:$0xf]
        %v6128 = vld [vmem:[%s6112 + $0x3c] sm:$0xf]
        %v6129 = vld [vmem:[%s6112 + $0x40] sm:$0xf]
        %v6130 = vld [vmem:[%s6112 + $0x44] sm:$0xf]
        %v6131 = vld [vmem:[%s6112 + $0x48] sm:$0xf]
        %v6132 = vld [vmem:[%s6112 + $0x4c] sm:$0xf]
        %v6133 = vld [vmem:[%s6112 + $0x50] sm:$0xf]
        %v6134 = vld [vmem:[%s6112 + $0x54] sm:$0xf]
        %v6135 = vld [vmem:[%s6112 + $0x58] sm:$0xf]
        %v6136 = vld [vmem:[%s6112 + $0x5c] sm:$0xf]
        %v6137 = vld [vmem:[%s6112 + $0x60] sm:$0xf]
        %v6138 = vld [vmem:[%s6112 + $0x64] sm:$0xf]
        %v6139 = vld [vmem:[%s6112 + $0x68] sm:$0xf]
        %v6140 = vld [vmem:[%s6112 + $0x6c] sm:$0xf]
        %v6141 = vld [vmem:[%s6112 + $0x70] sm:$0xf]
        %v6142 = vld [vmem:[%s6112 + $0x74] sm:$0xf]
        %v6143 = vld [vmem:[%s6112 + $0x78] sm:$0xf]
        %v6144 = vld [vmem:[%s6112 + $0x7c] sm:$0xf]
        %v6146 = vshrl.u32 %v6108, 16
        %v6148 = vrot.slane %v6146, 3
        %v6149 = vshll.u32 %v6108, 16
        %v6151 = vrot.slane %v6149, 4
        %v6152 = vor.u32 %v6148, %v6151
        %v6154 = vshrl.u32 %v6110, 16
        %v6156 = vrot.slane %v6154, 3
        %v6157 = vshll.u32 %v6110, 16
        %v6159 = vrot.slane %v6157, 4
        %v6160 = vor.u32 %v6156, %v6159
        %v6161 = vsel %vm2842, %v6152, %v6160
        %v6163 = vshrl.u32 %v6109, 16
        %v6165 = vrot.slane %v6163, 3
        %v6166 = vshll.u32 %v6109, 16
        %v6168 = vrot.slane %v6166, 4
        %v6169 = vor.u32 %v6165, %v6168
        %v6171 = vshrl.u32 %v6111, 16
        %v6173 = vrot.slane %v6171, 3
        %v6174 = vshll.u32 %v6111, 16
        %v6176 = vrot.slane %v6174, 4
        %v6177 = vor.u32 %v6173, %v6176
        %v6178 = vsel %vm2842, %v6169, %v6177
        %v6215 = vunpack.c.l.b16 %v6113
        %v6216 = vunpack.c.l.b16 %v6114
        %v6217 = vunpack.c.l.b16 %v6115
        %v6218 = vunpack.c.l.b16 %v6116
        %v6219 = vunpack.c.l.b16 %v6117
        %v6220 = vunpack.c.l.b16 %v6118
        %v6221 = vunpack.c.l.b16 %v6119
        %v6222 = vunpack.c.l.b16 %v6120
        %v6223 = vunpack.c.l.b16 %v6121
        %v6224 = vunpack.c.l.b16 %v6122
        %v6225 = vunpack.c.l.b16 %v6123
        %v6226 = vunpack.c.l.b16 %v6124
        %v6227 = vunpack.c.l.b16 %v6125
        %v6228 = vunpack.c.l.b16 %v6126
        %v6229 = vunpack.c.l.b16 %v6127
        %v6230 = vunpack.c.l.b16 %v6128
        %v6231 = vunpack.c.l.b16 %v6129
        %v6232 = vunpack.c.l.b16 %v6130
        %v6233 = vunpack.c.l.b16 %v6131
        %v6234 = vunpack.c.l.b16 %v6132
        %v6235 = vunpack.c.l.b16 %v6133
        %v6236 = vunpack.c.l.b16 %v6134
        %v6237 = vunpack.c.l.b16 %v6135
        %v6238 = vunpack.c.l.b16 %v6136
        %v6239 = vunpack.c.l.b16 %v6137
        %v6240 = vunpack.c.l.b16 %v6138
        %v6241 = vunpack.c.l.b16 %v6139
        %v6242 = vunpack.c.l.b16 %v6140
        %v6243 = vunpack.c.l.b16 %v6141
        %v6244 = vunpack.c.l.b16 %v6142
        %v6245 = vunpack.c.l.b16 %v6143
        %v6246 = vunpack.c.l.b16 %v6144
        %v6247 = vpack.c.b16 %v6216, %v6215
        %v6248 = vpack.c.b16 %v6218, %v6217
        %v6249 = vpack.c.b16 %v6220, %v6219
        %v6250 = vpack.c.b16 %v6222, %v6221
        %v6251 = vpack.c.b16 %v6224, %v6223
        %v6252 = vpack.c.b16 %v6226, %v6225
        %v6253 = vpack.c.b16 %v6228, %v6227
        %v6254 = vpack.c.b16 %v6230, %v6229
        %v6255 = vpack.c.b16 %v6232, %v6231
        %v6256 = vpack.c.b16 %v6234, %v6233
        %v6257 = vpack.c.b16 %v6236, %v6235
        %v6258 = vpack.c.b16 %v6238, %v6237
        %v6259 = vpack.c.b16 %v6240, %v6239
        %v6260 = vpack.c.b16 %v6242, %v6241
        %v6261 = vpack.c.b16 %v6244, %v6243
        %v6262 = vpack.c.b16 %v6246, %v6245
        %6279 = vmatprep.subr.bf16.mxu0 0
        %6280 = vmatpush1.bf16.msra.mxu0 %v6247
        %6281 = vmatprep.subr.bf16.mxu0 0
        %6282 = vmatpush1.bf16.msra.mxu0 %v6248
        %6283 = vmatprep.subr.bf16.mxu0 0
        %6284 = vmatpush1.bf16.msra.mxu0 %v6249
        %6285 = vmatprep.subr.bf16.mxu0 0
        %6286 = vmatpush1.bf16.msra.mxu0 %v6250
        %6287 = vmatprep.subr.bf16.mxu0 0
        %6288 = vmatpush1.bf16.msra.mxu0 %v6251
        %6289 = vmatprep.subr.bf16.mxu0 0
        %6290 = vmatpush1.bf16.msra.mxu0 %v6252
        %6291 = vmatprep.subr.bf16.mxu0 0
        %6292 = vmatpush1.bf16.msra.mxu0 %v6253
        %6293 = vmatprep.subr.bf16.mxu0 0
        %6294 = vmatpush1.bf16.msra.mxu0 %v6254
        %6295 = vmatprep.subr.bf16.mxu0 0
        %6296 = vmatpush1.bf16.msra.mxu0 %v6255
        %6297 = vmatprep.subr.bf16.mxu0 0
        %6298 = vmatpush1.bf16.msra.mxu0 %v6256
        %6299 = vmatprep.subr.bf16.mxu0 0
        %6300 = vmatpush1.bf16.msra.mxu0 %v6257
        %6301 = vmatprep.subr.bf16.mxu0 0
        %6302 = vmatpush1.bf16.msra.mxu0 %v6258
        %6303 = vmatprep.subr.bf16.mxu0 0
        %6304 = vmatpush1.bf16.msra.mxu0 %v6259
        %6305 = vmatprep.subr.bf16.mxu0 0
        %6306 = vmatpush1.bf16.msra.mxu0 %v6260
        %6307 = vmatprep.subr.bf16.mxu0 0
        %6308 = vmatpush1.bf16.msra.mxu0 %v6261
        %6309 = vmatprep.subr.bf16.mxu0 0
        %6310 = vmatpush1.bf16.msra.mxu0 %v6262
        %6311 = vmatprep.mubr.bf16.mxu0 %v6178
        %6312 = vmatmul.mubr.bf16.gmra.mrb[0].mxu0 %v6161
        %v6313 = vpop.f32.mrb[0].mxu0
        %v6314 = vadd.f32 0.0, %v6313
        %v6315 = vpop.f32.mrb[0].mxu0
        %v6316 = vpop.f32.mrb[0].mxu0
        %v6317 = vadd.f32 0.0, %v6316
        %v6318 = vpop.f32.mrb[0].mxu0
        %6319 = vmatprep.mubr.bf16.mxu0 %v6173
        %6320 = vmatmul.mubr.bf16.gmra.mrb[0].mxu0 %v6156
        %v6321 = vpop.f32.mrb[0].mxu0
        %v6322 = vadd.f32 0.0, %v6321
        %v6323 = vpop.f32.mrb[0].mxu0
        %v6324 = vpop.f32.mrb[0].mxu0
        %v6325 = vpop.f32.mrb[0].mxu0
        %6326 = vdwg.mxu0
        %v6327 = vadd.f32 %v6101, %v6314
        %v6328 = vadd.f32 %v6102, %v6317
        %v6329 = vadd.f32 %v6103, %v6322
        %v6330 = vld [vmem:[#allocation3 + $0x20] sm:$0xff]
        %v6331 = vld [vmem:[#allocation3 + $0x28] sm:$0xff]
        %v6332 = vld [vmem:[#allocation3 + $0x30] sm:$0xff]
        %v6333 = vld [vmem:[#allocation3 + $0x38] sm:$0xff]
        %v6334 = vld [vmem:[#allocation3 + $0x40] sm:$0x1]
        %v6335 = vld [vmem:[#allocation3 + $0x48] sm:$0x1]
        %v6336 = vpack.c.bf16 %v6332, %v6330
        %v6337 = vpack.c.bf16 %v6333, %v6331
        %v6338 = vpack.c.bf16 %v6334, %v6334
        %v6339 = vpack.c.bf16 %v6335, %v6335
        %s6340 = scalar_lea.vmem [#allocation14], 1024
        %v6341 = vld [vmem:[%s6340] sm:$0xf]
        %v6342 = vld [vmem:[%s6340 + $0x4] sm:$0xf]
        %v6343 = vld [vmem:[%s6340 + $0x8] sm:$0xf]
        %v6344 = vld [vmem:[%s6340 + $0xc] sm:$0xf]
        %v6345 = vld [vmem:[%s6340 + $0x10] sm:$0xf]
        %v6346 = vld [vmem:[%s6340 + $0x14] sm:$0xf]
        %v6347 = vld [vmem:[%s6340 + $0x18] sm:$0xf]
        %v6348 = vld [vmem:[%s6340 + $0x1c] sm:$0xf]
        %v6349 = vld [vmem:[%s6340 + $0x20] sm:$0xf]
        %v6350 = vld [vmem:[%s6340 + $0x24] sm:$0xf]
        %v6351 = vld [vmem:[%s6340 + $0x28] sm:$0xf]
        %v6352 = vld [vmem:[%s6340 + $0x2c] sm:$0xf]
        %v6353 = vld [vmem:[%s6340 + $0x30] sm:$0xf]
        %v6354 = vld [vmem:[%s6340 + $0x34] sm:$0xf]
        %v6355 = vld [vmem:[%s6340 + $0x38] sm:$0xf]
        %v6356 = vld [vmem:[%s6340 + $0x3c] sm:$0xf]
        %v6357 = vld [vmem:[%s6340 + $0x40] sm:$0xf]
        %v6358 = vld [vmem:[%s6340 + $0x44] sm:$0xf]
        %v6359 = vld [vmem:[%s6340 + $0x48] sm:$0xf]
        %v6360 = vld [vmem:[%s6340 + $0x4c] sm:$0xf]
        %v6361 = vld [vmem:[%s6340 + $0x50] sm:$0xf]
        %v6362 = vld [vmem:[%s6340 + $0x54] sm:$0xf]
        %v6363 = vld [vmem:[%s6340 + $0x58] sm:$0xf]
        %v6364 = vld [vmem:[%s6340 + $0x5c] sm:$0xf]
        %v6365 = vld [vmem:[%s6340 + $0x60] sm:$0xf]
        %v6366 = vld [vmem:[%s6340 + $0x64] sm:$0xf]
        %v6367 = vld [vmem:[%s6340 + $0x68] sm:$0xf]
        %v6368 = vld [vmem:[%s6340 + $0x6c] sm:$0xf]
        %v6369 = vld [vmem:[%s6340 + $0x70] sm:$0xf]
        %v6370 = vld [vmem:[%s6340 + $0x74] sm:$0xf]
        %v6371 = vld [vmem:[%s6340 + $0x78] sm:$0xf]
        %v6372 = vld [vmem:[%s6340 + $0x7c] sm:$0xf]
        %v6405 = vunpack.c.l.b16 %v6341
        %v6406 = vunpack.c.l.b16 %v6342
        %v6407 = vunpack.c.l.b16 %v6343
        %v6408 = vunpack.c.l.b16 %v6344
        %v6409 = vunpack.c.l.b16 %v6345
        %v6410 = vunpack.c.l.b16 %v6346
        %v6411 = vunpack.c.l.b16 %v6347
        %v6412 = vunpack.c.l.b16 %v6348
        %v6413 = vunpack.c.l.b16 %v6349
        %v6414 = vunpack.c.l.b16 %v6350
        %v6415 = vunpack.c.l.b16 %v6351
        %v6416 = vunpack.c.l.b16 %v6352
        %v6417 = vunpack.c.l.b16 %v6353
        %v6418 = vunpack.c.l.b16 %v6354
        %v6419 = vunpack.c.l.b16 %v6355
        %v6420 = vunpack.c.l.b16 %v6356
        %v6421 = vunpack.c.l.b16 %v6357
        %v6422 = vunpack.c.l.b16 %v6358
        %v6423 = vunpack.c.l.b16 %v6359
        %v6424 = vunpack.c.l.b16 %v6360
        %v6425 = vunpack.c.l.b16 %v6361
        %v6426 = vunpack.c.l.b16 %v6362
        %v6427 = vunpack.c.l.b16 %v6363
        %v6428 = vunpack.c.l.b16 %v6364
        %v6429 = vunpack.c.l.b16 %v6365
        %v6430 = vunpack.c.l.b16 %v6366
        %v6431 = vunpack.c.l.b16 %v6367
        %v6432 = vunpack.c.l.b16 %v6368
        %v6433 = vunpack.c.l.b16 %v6369
        %v6434 = vunpack.c.l.b16 %v6370
        %v6435 = vunpack.c.l.b16 %v6371
        %v6436 = vunpack.c.l.b16 %v6372
        %v6437 = vpack.c.b16 %v6406, %v6405
        %v6438 = vpack.c.b16 %v6408, %v6407
        %v6439 = vpack.c.b16 %v6410, %v6409
        %v6440 = vpack.c.b16 %v6412, %v6411
        %v6441 = vpack.c.b16 %v6414, %v6413
        %v6442 = vpack.c.b16 %v6416, %v6415
        %v6443 = vpack.c.b16 %v6418, %v6417
        %v6444 = vpack.c.b16 %v6420, %v6419
        %v6445 = vpack.c.b16 %v6422, %v6421
        %v6446 = vpack.c.b16 %v6424, %v6423
        %v6447 = vpack.c.b16 %v6426, %v6425
        %v6448 = vpack.c.b16 %v6428, %v6427
        %v6449 = vpack.c.b16 %v6430, %v6429
        %v6450 = vpack.c.b16 %v6432, %v6431
        %v6451 = vpack.c.b16 %v6434, %v6433
        %v6452 = vpack.c.b16 %v6436, %v6435
        %6469 = vmatprep.subr.bf16.mxu0 0
        %6470 = vmatpush1.bf16.msra.mxu0 %v6437
        %6471 = vmatprep.subr.bf16.mxu0 0
        %6472 = vmatpush1.bf16.msra.mxu0 %v6438
        %6473 = vmatprep.subr.bf16.mxu0 0
        %6474 = vmatpush1.bf16.msra.mxu0 %v6439
        %6475 = vmatprep.subr.bf16.mxu0 0
        %6476 = vmatpush1.bf16.msra.mxu0 %v6440
        %6477 = vmatprep.subr.bf16.mxu0 0
        %6478 = vmatpush1.bf16.msra.mxu0 %v6441
        %6479 = vmatprep.subr.bf16.mxu0 0
        %6480 = vmatpush1.bf16.msra.mxu0 %v6442
        %6481 = vmatprep.subr.bf16.mxu0 0
        %6482 = vmatpush1.bf16.msra.mxu0 %v6443
        %6483 = vmatprep.subr.bf16.mxu0 0
        %6484 = vmatpush1.bf16.msra.mxu0 %v6444
        %6485 = vmatprep.subr.bf16.mxu0 0
        %6486 = vmatpush1.bf16.msra.mxu0 %v6445
        %6487 = vmatprep.subr.bf16.mxu0 0
        %6488 = vmatpush1.bf16.msra.mxu0 %v6446
        %6489 = vmatprep.subr.bf16.mxu0 0
        %6490 = vmatpush1.bf16.msra.mxu0 %v6447
        %6491 = vmatprep.subr.bf16.mxu0 0
        %6492 = vmatpush1.bf16.msra.mxu0 %v6448
        %6493 = vmatprep.subr.bf16.mxu0 0
        %6494 = vmatpush1.bf16.msra.mxu0 %v6449
        %6495 = vmatprep.subr.bf16.mxu0 0
        %6496 = vmatpush1.bf16.msra.mxu0 %v6450
        %6497 = vmatprep.subr.bf16.mxu0 0
        %6498 = vmatpush1.bf16.msra.mxu0 %v6451
        %6499 = vmatprep.subr.bf16.mxu0 0
        %6500 = vmatpush1.bf16.msra.mxu0 %v6452
        %6501 = vmatprep.mubr.bf16.mxu0 %v6337
        %6502 = vmatmul.mubr.bf16.gmra.mrb[0].mxu0 %v6336
        %v6503 = vpop.f32.mrb[0].mxu0
        %v6504 = vadd.f32 0.0, %v6503
        %v6505 = vpop.f32.mrb[0].mxu0
        %v6506 = vpop.f32.mrb[0].mxu0
        %v6507 = vadd.f32 0.0, %v6506
        %v6508 = vpop.f32.mrb[0].mxu0
        %6509 = vmatprep.mubr.bf16.mxu0 %v6339
        %6510 = vmatmul.mubr.bf16.gmra.mrb[0].mxu0 %v6338
        %v6511 = vpop.f32.mrb[0].mxu0
        %v6512 = vadd.f32 0.0, %v6511
        %v6513 = vpop.f32.mrb[0].mxu0
        %v6514 = vpop.f32.mrb[0].mxu0
        %v6515 = vpop.f32.mrb[0].mxu0
        %6516 = vdwg.mxu0
        %v6517 = vadd.f32 %v6327, %v6504
        %v6518 = vadd.f32 %v6328, %v6507
        %v6519 = vadd.f32 %v6329, %v6512
        %v6520 = vld [vmem:[#allocation16] sm:$0x1]
        %v6522 = vlaneseq
        %v6523 = vshrl.u32 %v6522, 7
        %v6524 = vsub.s32 0, %v6523
        %v6525 = vrot.slane %v6520, %v6524
        %v6527 = vadd.f32 %v6517, %v6525
        %v6528 = vadd.f32 %v6518, %v6525
        %v6529 = vadd.f32 %v6519, %v6525
        %v6530 = vmax.f32 %v6527, 0.0
        %v6531 = vmax.f32 %v6528, 0.0
        %v6532 = vmax.f32 %v6529, 0.0
        %vm6533 = vcmask 523264
        %6534 = vst.msk [vmem:[#allocation4] sm:$0xff] %vm6533, %v6530
        %6535 = vst.msk [vmem:[#allocation4 + $0x8] sm:$0xff] %vm6533, %v6531
        %vm6536 = vcmask 516096
        %6537 = vst.msk [vmem:[#allocation4 + $0x10] sm:$0x1] %vm6536, %v6532
        %v6538 = vld [vmem:[#allocation4] sm:$0x1]
        %v6539 = vpack.c.bf16 %v6538, %v6538
        %v6540 = vld [vmem:[#allocation17] sm:$0xf]
        %v6541 = vld [vmem:[#allocation17 + $0x4] sm:$0xf]
        %v6542 = vld [vmem:[#allocation17 + $0x8] sm:$0xf]
        %v6543 = vld [vmem:[#allocation17 + $0xc] sm:$0xf]
        %v6544 = vld [vmem:[#allocation17 + $0x10] sm:$0xf]
        %v6545 = vld [vmem:[#allocation17 + $0x14] sm:$0xf]
        %v6546 = vld [vmem:[#allocation17 + $0x18] sm:$0xf]
        %v6547 = vld [vmem:[#allocation17 + $0x1c] sm:$0xf]
        %v6548 = vld [vmem:[#allocation4 + $0x1] sm:$0x1]
        %v6549 = vpack.c.bf16 %v6548, %v6548
        %s6550 = scalar_lea.vmem [#allocation17], 32
        %v6551 = vld [vmem:[%s6550] sm:$0xf]
        %v6552 = vld [vmem:[%s6550 + $0x4] sm:$0xf]
        %v6553 = vld [vmem:[%s6550 + $0x8] sm:$0xf]
        %v6554 = vld [vmem:[%s6550 + $0xc] sm:$0xf]
        %v6555 = vld [vmem:[%s6550 + $0x10] sm:$0xf]
        %v6556 = vld [vmem:[%s6550 + $0x14] sm:$0xf]
        %v6557 = vld [vmem:[%s6550 + $0x18] sm:$0xf]
        %v6558 = vld [vmem:[%s6550 + $0x1c] sm:$0xf]
        %v6567 = vunpack.c.l.b16 %v6551
        %v6568 = vunpack.c.l.b16 %v6552
        %v6569 = vunpack.c.l.b16 %v6553
        %v6570 = vunpack.c.l.b16 %v6554
        %v6571 = vunpack.c.l.b16 %v6555
        %v6572 = vunpack.c.l.b16 %v6556
        %v6573 = vunpack.c.l.b16 %v6557
        %v6574 = vunpack.c.l.b16 %v6558
        %v6575 = vpack.c.b16 %v6568, %v6567
        %v6576 = vpack.c.b16 %v6570, %v6569
        %v6577 = vpack.c.b16 %v6572, %v6571
        %v6578 = vpack.c.b16 %v6574, %v6573
        %v6584 = vsel %vm6533, %v6549, 0
        %6586 = vmatprep.subr.bf16.mxu0 0
        %6587 = vmatpush1.bf16.msra.mxu0 %v6575
        %6588 = vmatprep.subr.bf16.mxu0 0
        %6589 = vmatpush1.bf16.msra.mxu0 %v6576
        %6590 = vmatprep.subr.bf16.mxu0 0
        %6591 = vmatpush1.bf16.msra.mxu0 %v6577
        %6592 = vmatprep.subr.bf16.mxu0 0
        %6593 = vmatpush1.bf16.msra.mxu0 %v6578
        %6594 = vmatprep.subr.bf16.mxu0 0
        %6595 = vmatpush1.bf16.msra.mxu0 0
        %6596 = vmatprep.subr.bf16.mxu0 0
        %6597 = vmatpush1.bf16.msra.mxu0 0
        %6598 = vmatprep.subr.bf16.mxu0 0
        %6599 = vmatpush1.bf16.msra.mxu0 0
        %6600 = vmatprep.subr.bf16.mxu0 0
        %6601 = vmatpush1.bf16.msra.mxu0 0
        %6602 = vmatprep.subr.bf16.mxu0 0
        %6603 = vmatpush1.bf16.msra.mxu0 0
        %6604 = vmatprep.subr.bf16.mxu0 0
        %6605 = vmatpush1.bf16.msra.mxu0 0
        %6606 = vmatprep.subr.bf16.mxu0 0
        %6607 = vmatpush1.bf16.msra.mxu0 0
        %6608 = vmatprep.subr.bf16.mxu0 0
        %6609 = vmatpush1.bf16.msra.mxu0 0
        %6610 = vmatprep.subr.bf16.mxu0 0
        %6611 = vmatpush1.bf16.msra.mxu0 0
        %6612 = vmatprep.subr.bf16.mxu0 0
        %6613 = vmatpush1.bf16.msra.mxu0 0
        %6614 = vmatprep.subr.bf16.mxu0 0
        %6615 = vmatpush1.bf16.msra.mxu0 0
        %6616 = vmatprep.subr.bf16.mxu0 0
        %6617 = vmatpush1.bf16.msra.mxu0 0
        %6618 = vmatprep.mubr.bf16.mxu0 0
        %6619 = vmatmul.mubr.bf16.gmra.mrb[0].mxu0 %v6584
        %v6620 = vpop.f32.mrb[0].mxu0
        %v6621 = vadd.f32 0.0, %v6620
        %v6622 = vpop.f32.mrb[0].mxu0
        %v6623 = vpop.f32.mrb[0].mxu0
        %v6624 = vpop.f32.mrb[0].mxu0
        %6625 = vdwg.mxu0
        %v6634 = vunpack.c.l.b16 %v6540
        %v6635 = vunpack.c.l.b16 %v6541
        %v6636 = vunpack.c.l.b16 %v6542
        %v6637 = vunpack.c.l.b16 %v6543
        %v6638 = vunpack.c.l.b16 %v6544
        %v6639 = vunpack.c.l.b16 %v6545
        %v6640 = vunpack.c.l.b16 %v6546
        %v6641 = vunpack.c.l.b16 %v6547
        %v6642 = vpack.c.b16 %v6635, %v6634
        %v6643 = vpack.c.b16 %v6637, %v6636
        %v6644 = vpack.c.b16 %v6639, %v6638
        %v6645 = vpack.c.b16 %v6641, %v6640
        %v6651 = vsel %vm6533, %v6539, 0
        %6653 = vmatprep.subr.bf16.mxu0 0
        %6654 = vmatpush1.bf16.msra.mxu0 %v6642
        %6655 = vmatprep.subr.bf16.mxu0 0
        %6656 = vmatpush1.bf16.msra.mxu0 %v6643
        %6657 = vmatprep.subr.bf16.mxu0 0
        %6658 = vmatpush1.bf16.msra.mxu0 %v6644
        %6659 = vmatprep.subr.bf16.mxu0 0
        %6660 = vmatpush1.bf16.msra.mxu0 %v6645
        %6661 = vmatprep.subr.bf16.mxu0 0
        %6662 = vmatpush1.bf16.msra.mxu0 0
        %6663 = vmatprep.subr.bf16.mxu0 0
        %6664 = vmatpush1.bf16.msra.mxu0 0
        %6665 = vmatprep.subr.bf16.mxu0 0
        %6666 = vmatpush1.bf16.msra.mxu0 0
        %6667 = vmatprep.subr.bf16.mxu0 0
        %6668 = vmatpush1.bf16.msra.mxu0 0
        %6669 = vmatprep.subr.bf16.mxu0 0
        %6670 = vmatpush1.bf16.msra.mxu0 0
        %6671 = vmatprep.subr.bf16.mxu0 0
        %6672 = vmatpush1.bf16.msra.mxu0 0
        %6673 = vmatprep.subr.bf16.mxu0 0
        %6674 = vmatpush1.bf16.msra.mxu0 0
        %6675 = vmatprep.subr.bf16.mxu0 0
        %6676 = vmatpush1.bf16.msra.mxu0 0
        %6677 = vmatprep.subr.bf16.mxu0 0
        %6678 = vmatpush1.bf16.msra.mxu0 0
        %6679 = vmatprep.subr.bf16.mxu0 0
        %6680 = vmatpush1.bf16.msra.mxu0 0
        %6681 = vmatprep.subr.bf16.mxu0 0
        %6682 = vmatpush1.bf16.msra.mxu0 0
        %6683 = vmatprep.subr.bf16.mxu0 0
        %6684 = vmatpush1.bf16.msra.mxu0 0
        %6685 = vmatprep.mubr.bf16.mxu0 0
        %6686 = vmatmul.mubr.bf16.gmra.mrb[0].mxu0 %v6651
        %v6687 = vpop.f32.mrb[0].mxu0
        %v6688 = vadd.f32 %v6621, %v6687
        %v6689 = vpop.f32.mrb[0].mxu0
        %v6690 = vpop.f32.mrb[0].mxu0
        %v6691 = vpop.f32.mrb[0].mxu0
        %6692 = vdwg.mxu0
        %v6693 = vld [vmem:[#allocation4 + $0x2] sm:$0x1]
        %v6694 = vpack.c.bf16 %v6693, %v6693
        %s6695 = scalar_lea.vmem [#allocation17], 64
        %v6696 = vld [vmem:[%s6695] sm:$0xf]
        %v6697 = vld [vmem:[%s6695 + $0x4] sm:$0xf]
        %v6698 = vld [vmem:[%s6695 + $0x8] sm:$0xf]
        %v6699 = vld [vmem:[%s6695 + $0xc] sm:$0xf]
        %v6700 = vld [vmem:[%s6695 + $0x10] sm:$0xf]
        %v6701 = vld [vmem:[%s6695 + $0x14] sm:$0xf]
        %v6702 = vld [vmem:[%s6695 + $0x18] sm:$0xf]
        %v6703 = vld [vmem:[%s6695 + $0x1c] sm:$0xf]
        %v6712 = vunpack.c.l.b16 %v6696
        %v6713 = vunpack.c.l.b16 %v6697
        %v6714 = vunpack.c.l.b16 %v6698
        %v6715 = vunpack.c.l.b16 %v6699
        %v6716 = vunpack.c.l.b16 %v6700
        %v6717 = vunpack.c.l.b16 %v6701
        %v6718 = vunpack.c.l.b16 %v6702
        %v6719 = vunpack.c.l.b16 %v6703
        %v6720 = vpack.c.b16 %v6713, %v6712
        %v6721 = vpack.c.b16 %v6715, %v6714
        %v6722 = vpack.c.b16 %v6717, %v6716
        %v6723 = vpack.c.b16 %v6719, %v6718
        %v6729 = vsel %vm6533, %v6694, 0
        %6731 = vmatprep.subr.bf16.mxu0 0
        %6732 = vmatpush1.bf16.msra.mxu0 %v6720
        %6733 = vmatprep.subr.bf16.mxu0 0
        %6734 = vmatpush1.bf16.msra.mxu0 %v6721
        %6735 = vmatprep.subr.bf16.mxu0 0
        %6736 = vmatpush1.bf16.msra.mxu0 %v6722
        %6737 = vmatprep.subr.bf16.mxu0 0
        %6738 = vmatpush1.bf16.msra.mxu0 %v6723
        %6739 = vmatprep.subr.bf16.mxu0 0
        %6740 = vmatpush1.bf16.msra.mxu0 0
        %6741 = vmatprep.subr.bf16.mxu0 0
        %6742 = vmatpush1.bf16.msra.mxu0 0
        %6743 = vmatprep.subr.bf16.mxu0 0
        %6744 = vmatpush1.bf16.msra.mxu0 0
        %6745 = vmatprep.subr.bf16.mxu0 0
        %6746 = vmatpush1.bf16.msra.mxu0 0
        %6747 = vmatprep.subr.bf16.mxu0 0
        %6748 = vmatpush1.bf16.msra.mxu0 0
        %6749 = vmatprep.subr.bf16.mxu0 0
        %6750 = vmatpush1.bf16.msra.mxu0 0
        %6751 = vmatprep.subr.bf16.mxu0 0
        %6752 = vmatpush1.bf16.msra.mxu0 0
        %6753 = vmatprep.subr.bf16.mxu0 0
        %6754 = vmatpush1.bf16.msra.mxu0 0
        %6755 = vmatprep.subr.bf16.mxu0 0
        %6756 = vmatpush1.bf16.msra.mxu0 0
        %6757 = vmatprep.subr.bf16.mxu0 0
        %6758 = vmatpush1.bf16.msra.mxu0 0
        %6759 = vmatprep.subr.bf16.mxu0 0
        %6760 = vmatpush1.bf16.msra.mxu0 0
        %6761 = vmatprep.subr.bf16.mxu0 0
        %6762 = vmatpush1.bf16.msra.mxu0 0
        %6763 = vmatprep.mubr.bf16.mxu0 0
        %6764 = vmatmul.mubr.bf16.gmra.mrb[0].mxu0 %v6729
        %v6765 = vpop.f32.mrb[0].mxu0
        %v6766 = vadd.f32 0.0, %v6765
        %v6767 = vpop.f32.mrb[0].mxu0
        %v6768 = vpop.f32.mrb[0].mxu0
        %v6769 = vpop.f32.mrb[0].mxu0
        %6770 = vdwg.mxu0
        %v6771 = vadd.f32 %v6688, %v6766
        %v6772 = vld [vmem:[#allocation4 + $0x7] sm:$0x1]
        %v6773 = vpack.c.bf16 %v6772, %v6772
        %s6774 = scalar_lea.vmem [#allocation17], 96
        %v6775 = vld [vmem:[%s6774] sm:$0xf]
        %v6776 = vld [vmem:[%s6774 + $0x4] sm:$0xf]
        %v6777 = vld [vmem:[%s6774 + $0x8] sm:$0xf]
        %v6778 = vld [vmem:[%s6774 + $0xc] sm:$0xf]
        %v6779 = vld [vmem:[%s6774 + $0x10] sm:$0xf]
        %v6780 = vld [vmem:[%s6774 + $0x14] sm:$0xf]
        %v6781 = vld [vmem:[%s6774 + $0x18] sm:$0xf]
        %v6782 = vld [vmem:[%s6774 + $0x1c] sm:$0xf]
        %v6791 = vunpack.c.l.b16 %v6775
        %v6792 = vunpack.c.l.b16 %v6776
        %v6793 = vunpack.c.l.b16 %v6777
        %v6794 = vunpack.c.l.b16 %v6778
        %v6795 = vunpack.c.l.b16 %v6779
        %v6796 = vunpack.c.l.b16 %v6780
        %v6797 = vunpack.c.l.b16 %v6781
        %v6798 = vunpack.c.l.b16 %v6782
        %v6799 = vpack.c.b16 %v6792, %v6791
        %v6800 = vpack.c.b16 %v6794, %v6793
        %v6801 = vpack.c.b16 %v6796, %v6795
        %v6802 = vpack.c.b16 %v6798, %v6797
        %v6808 = vsel %vm6533, %v6773, 0
        %6810 = vmatprep.subr.bf16.mxu0 0
        %6811 = vmatpush1.bf16.msra.mxu0 %v6799
        %6812 = vmatprep.subr.bf16.mxu0 0
        %6813 = vmatpush1.bf16.msra.mxu0 %v6800
        %6814 = vmatprep.subr.bf16.mxu0 0
        %6815 = vmatpush1.bf16.msra.mxu0 %v6801
        %6816 = vmatprep.subr.bf16.mxu0 0
        %6817 = vmatpush1.bf16.msra.mxu0 %v6802
        %6818 = vmatprep.subr.bf16.mxu0 0
        %6819 = vmatpush1.bf16.msra.mxu0 0
        %6820 = vmatprep.subr.bf16.mxu0 0
        %6821 = vmatpush1.bf16.msra.mxu0 0
        %6822 = vmatprep.subr.bf16.mxu0 0
        %6823 = vmatpush1.bf16.msra.mxu0 0
        %6824 = vmatprep.subr.bf16.mxu0 0
        %6825 = vmatpush1.bf16.msra.mxu0 0
        %6826 = vmatprep.subr.bf16.mxu0 0
        %6827 = vmatpush1.bf16.msra.mxu0 0
        %6828 = vmatprep.subr.bf16.mxu0 0
        %6829 = vmatpush1.bf16.msra.mxu0 0
        %6830 = vmatprep.subr.bf16.mxu0 0
        %6831 = vmatpush1.bf16.msra.mxu0 0
        %6832 = vmatprep.subr.bf16.mxu0 0
        %6833 = vmatpush1.bf16.msra.mxu0 0
        %6834 = vmatprep.subr.bf16.mxu0 0
        %6835 = vmatpush1.bf16.msra.mxu0 0
        %6836 = vmatprep.subr.bf16.mxu0 0
        %6837 = vmatpush1.bf16.msra.mxu0 0
        %6838 = vmatprep.subr.bf16.mxu0 0
        %6839 = vmatpush1.bf16.msra.mxu0 0
        %6840 = vmatprep.subr.bf16.mxu0 0
        %6841 = vmatpush1.bf16.msra.mxu0 0
        %6842 = vmatprep.mubr.bf16.mxu0 0
        %6843 = vmatmul.mubr.bf16.gmra.mrb[0].mxu0 %v6808
        %v6844 = vpop.f32.mrb[0].mxu0
        %v6845 = vadd.f32 0.0, %v6844
        %v6846 = vpop.f32.mrb[0].mxu0
        %v6847 = vpop.f32.mrb[0].mxu0
        %v6848 = vpop.f32.mrb[0].mxu0
        %6849 = vdwg.mxu0
        %v6850 = vadd.f32 %v6771, %v6845
        %v6851 = vld [vmem:[#allocation4 + $0x8] sm:$0x1]
        %v6852 = vpack.c.bf16 %v6851, %v6851
        %s6853 = scalar_lea.vmem [#allocation17], 128
        %v6854 = vld [vmem:[%s6853] sm:$0xf]
        %v6855 = vld [vmem:[%s6853 + $0x4] sm:$0xf]
        %v6856 = vld [vmem:[%s6853 + $0x8] sm:$0xf]
        %v6857 = vld [vmem:[%s6853 + $0xc] sm:$0xf]
        %v6858 = vld [vmem:[%s6853 + $0x10] sm:$0xf]
        %v6859 = vld [vmem:[%s6853 + $0x14] sm:$0xf]
        %v6860 = vld [vmem:[%s6853 + $0x18] sm:$0xf]
        %v6861 = vld [vmem:[%s6853 + $0x1c] sm:$0xf]
        %v6870 = vunpack.c.l.b16 %v6854
        %v6871 = vunpack.c.l.b16 %v6855
        %v6872 = vunpack.c.l.b16 %v6856
        %v6873 = vunpack.c.l.b16 %v6857
        %v6874 = vunpack.c.l.b16 %v6858
        %v6875 = vunpack.c.l.b16 %v6859
        %v6876 = vunpack.c.l.b16 %v6860
        %v6877 = vunpack.c.l.b16 %v6861
        %v6878 = vpack.c.b16 %v6871, %v6870
        %v6879 = vpack.c.b16 %v6873, %v6872
        %v6880 = vpack.c.b16 %v6875, %v6874
        %v6881 = vpack.c.b16 %v6877, %v6876
        %v6887 = vsel %vm6533, %v6852, 0
        %6889 = vmatprep.subr.bf16.mxu0 0
        %6890 = vmatpush1.bf16.msra.mxu0 %v6878
        %6891 = vmatprep.subr.bf16.mxu0 0
        %6892 = vmatpush1.bf16.msra.mxu0 %v6879
        %6893 = vmatprep.subr.bf16.mxu0 0
        %6894 = vmatpush1.bf16.msra.mxu0 %v6880
        %6895 = vmatprep.subr.bf16.mxu0 0
        %6896 = vmatpush1.bf16.msra.mxu0 %v6881
        %6897 = vmatprep.subr.bf16.mxu0 0
        %6898 = vmatpush1.bf16.msra.mxu0 0
        %6899 = vmatprep.subr.bf16.mxu0 0
        %6900 = vmatpush1.bf16.msra.mxu0 0
        %6901 = vmatprep.subr.bf16.mxu0 0
        %6902 = vmatpush1.bf16.msra.mxu0 0
        %6903 = vmatprep.subr.bf16.mxu0 0
        %6904 = vmatpush1.bf16.msra.mxu0 0
        %6905 = vmatprep.subr.bf16.mxu0 0
        %6906 = vmatpush1.bf16.msra.mxu0 0
        %6907 = vmatprep.subr.bf16.mxu0 0
        %6908 = vmatpush1.bf16.msra.mxu0 0
        %6909 = vmatprep.subr.bf16.mxu0 0
        %6910 = vmatpush1.bf16.msra.mxu0 0
        %6911 = vmatprep.subr.bf16.mxu0 0
        %6912 = vmatpush1.bf16.msra.mxu0 0
        %6913 = vmatprep.subr.bf16.mxu0 0
        %6914 = vmatpush1.bf16.msra.mxu0 0
        %6915 = vmatprep.subr.bf16.mxu0 0
        %6916 = vmatpush1.bf16.msra.mxu0 0
        %6917 = vmatprep.subr.bf16.mxu0 0
        %6918 = vmatpush1.bf16.msra.mxu0 0
        %6919 = vmatprep.subr.bf16.mxu0 0
        %6920 = vmatpush1.bf16.msra.mxu0 0
        %6921 = vmatprep.mubr.bf16.mxu0 0
        %6922 = vmatmul.mubr.bf16.gmra.mrb[0].mxu0 %v6887
        %v6923 = vpop.f32.mrb[0].mxu0
        %v6924 = vadd.f32 0.0, %v6923
        %v6925 = vpop.f32.mrb[0].mxu0
        %v6926 = vpop.f32.mrb[0].mxu0
        %v6927 = vpop.f32.mrb[0].mxu0
        %6928 = vdwg.mxu0
        %v6929 = vadd.f32 %v6850, %v6924
        %v6930 = vld [vmem:[#allocation4 + $0x9] sm:$0x1]
        %v6931 = vpack.c.bf16 %v6930, %v6930
        %s6932 = scalar_lea.vmem [#allocation17], 160
        %v6933 = vld [vmem:[%s6932] sm:$0xf]
        %v6934 = vld [vmem:[%s6932 + $0x4] sm:$0xf]
        %v6935 = vld [vmem:[%s6932 + $0x8] sm:$0xf]
        %v6936 = vld [vmem:[%s6932 + $0xc] sm:$0xf]
        %v6937 = vld [vmem:[%s6932 + $0x10] sm:$0xf]
        %v6938 = vld [vmem:[%s6932 + $0x14] sm:$0xf]
        %v6939 = vld [vmem:[%s6932 + $0x18] sm:$0xf]
        %v6940 = vld [vmem:[%s6932 + $0x1c] sm:$0xf]
        %v6949 = vunpack.c.l.b16 %v6933
        %v6950 = vunpack.c.l.b16 %v6934
        %v6951 = vunpack.c.l.b16 %v6935
        %v6952 = vunpack.c.l.b16 %v6936
        %v6953 = vunpack.c.l.b16 %v6937
        %v6954 = vunpack.c.l.b16 %v6938
        %v6955 = vunpack.c.l.b16 %v6939
        %v6956 = vunpack.c.l.b16 %v6940
        %v6957 = vpack.c.b16 %v6950, %v6949
        %v6958 = vpack.c.b16 %v6952, %v6951
        %v6959 = vpack.c.b16 %v6954, %v6953
        %v6960 = vpack.c.b16 %v6956, %v6955
        %v6966 = vsel %vm6533, %v6931, 0
        %6968 = vmatprep.subr.bf16.mxu0 0
        %6969 = vmatpush1.bf16.msra.mxu0 %v6957
        %6970 = vmatprep.subr.bf16.mxu0 0
        %6971 = vmatpush1.bf16.msra.mxu0 %v6958
        %6972 = vmatprep.subr.bf16.mxu0 0
        %6973 = vmatpush1.bf16.msra.mxu0 %v6959
        %6974 = vmatprep.subr.bf16.mxu0 0
        %6975 = vmatpush1.bf16.msra.mxu0 %v6960
        %6976 = vmatprep.subr.bf16.mxu0 0
        %6977 = vmatpush1.bf16.msra.mxu0 0
        %6978 = vmatprep.subr.bf16.mxu0 0
        %6979 = vmatpush1.bf16.msra.mxu0 0
        %6980 = vmatprep.subr.bf16.mxu0 0
        %6981 = vmatpush1.bf16.msra.mxu0 0
        %6982 = vmatprep.subr.bf16.mxu0 0
        %6983 = vmatpush1.bf16.msra.mxu0 0
        %6984 = vmatprep.subr.bf16.mxu0 0
        %6985 = vmatpush1.bf16.msra.mxu0 0
        %6986 = vmatprep.subr.bf16.mxu0 0
        %6987 = vmatpush1.bf16.msra.mxu0 0
        %6988 = vmatprep.subr.bf16.mxu0 0
        %6989 = vmatpush1.bf16.msra.mxu0 0
        %6990 = vmatprep.subr.bf16.mxu0 0
        %6991 = vmatpush1.bf16.msra.mxu0 0
        %6992 = vmatprep.subr.bf16.mxu0 0
        %6993 = vmatpush1.bf16.msra.mxu0 0
        %6994 = vmatprep.subr.bf16.mxu0 0
        %6995 = vmatpush1.bf16.msra.mxu0 0
        %6996 = vmatprep.subr.bf16.mxu0 0
        %6997 = vmatpush1.bf16.msra.mxu0 0
        %6998 = vmatprep.subr.bf16.mxu0 0
        %6999 = vmatpush1.bf16.msra.mxu0 0
        %7000 = vmatprep.mubr.bf16.mxu0 0
        %7001 = vmatmul.mubr.bf16.gmra.mrb[0].mxu0 %v6966
        %v7002 = vpop.f32.mrb[0].mxu0
        %v7003 = vadd.f32 0.0, %v7002
        %v7004 = vpop.f32.mrb[0].mxu0
        %v7005 = vpop.f32.mrb[0].mxu0
        %v7006 = vpop.f32.mrb[0].mxu0
        %7007 = vdwg.mxu0
        %v7008 = vadd.f32 %v6929, %v7003
        %v7009 = vld [vmem:[#allocation4 + $0xe] sm:$0x1]
        %v7010 = vpack.c.bf16 %v7009, %v7009
        %s7011 = scalar_lea.vmem [#allocation17], 192
        %v7012 = vld [vmem:[%s7011] sm:$0xf]
        %v7013 = vld [vmem:[%s7011 + $0x4] sm:$0xf]
        %v7014 = vld [vmem:[%s7011 + $0x8] sm:$0xf]
        %v7015 = vld [vmem:[%s7011 + $0xc] sm:$0xf]
        %v7016 = vld [vmem:[%s7011 + $0x10] sm:$0xf]
        %v7017 = vld [vmem:[%s7011 + $0x14] sm:$0xf]
        %v7018 = vld [vmem:[%s7011 + $0x18] sm:$0xf]
        %v7019 = vld [vmem:[%s7011 + $0x1c] sm:$0xf]
        %v7028 = vunpack.c.l.b16 %v7012
        %v7029 = vunpack.c.l.b16 %v7013
        %v7030 = vunpack.c.l.b16 %v7014
        %v7031 = vunpack.c.l.b16 %v7015
        %v7032 = vunpack.c.l.b16 %v7016
        %v7033 = vunpack.c.l.b16 %v7017
        %v7034 = vunpack.c.l.b16 %v7018
        %v7035 = vunpack.c.l.b16 %v7019
        %v7036 = vpack.c.b16 %v7029, %v7028
        %v7037 = vpack.c.b16 %v7031, %v7030
        %v7038 = vpack.c.b16 %v7033, %v7032
        %v7039 = vpack.c.b16 %v7035, %v7034
        %v7045 = vsel %vm6533, %v7010, 0
        %7047 = vmatprep.subr.bf16.mxu0 0
        %7048 = vmatpush1.bf16.msra.mxu0 %v7036
        %7049 = vmatprep.subr.bf16.mxu0 0
        %7050 = vmatpush1.bf16.msra.mxu0 %v7037
        %7051 = vmatprep.subr.bf16.mxu0 0
        %7052 = vmatpush1.bf16.msra.mxu0 %v7038
        %7053 = vmatprep.subr.bf16.mxu0 0
        %7054 = vmatpush1.bf16.msra.mxu0 %v7039
        %7055 = vmatprep.subr.bf16.mxu0 0
        %7056 = vmatpush1.bf16.msra.mxu0 0
        %7057 = vmatprep.subr.bf16.mxu0 0
        %7058 = vmatpush1.bf16.msra.mxu0 0
        %7059 = vmatprep.subr.bf16.mxu0 0
        %7060 = vmatpush1.bf16.msra.mxu0 0
        %7061 = vmatprep.subr.bf16.mxu0 0
        %7062 = vmatpush1.bf16.msra.mxu0 0
        %7063 = vmatprep.subr.bf16.mxu0 0
        %7064 = vmatpush1.bf16.msra.mxu0 0
        %7065 = vmatprep.subr.bf16.mxu0 0
        %7066 = vmatpush1.bf16.msra.mxu0 0
        %7067 = vmatprep.subr.bf16.mxu0 0
        %7068 = vmatpush1.bf16.msra.mxu0 0
        %7069 = vmatprep.subr.bf16.mxu0 0
        %7070 = vmatpush1.bf16.msra.mxu0 0
        %7071 = vmatprep.subr.bf16.mxu0 0
        %7072 = vmatpush1.bf16.msra.mxu0 0
        %7073 = vmatprep.subr.bf16.mxu0 0
        %7074 = vmatpush1.bf16.msra.mxu0 0
        %7075 = vmatprep.subr.bf16.mxu0 0
        %7076 = vmatpush1.bf16.msra.mxu0 0
        %7077 = vmatprep.subr.bf16.mxu0 0
        %7078 = vmatpush1.bf16.msra.mxu0 0
        %7079 = vmatprep.mubr.bf16.mxu0 0
        %7080 = vmatmul.mubr.bf16.gmra.mrb[0].mxu0 %v7045
        %v7081 = vpop.f32.mrb[0].mxu0
        %v7082 = vadd.f32 0.0, %v7081
        %v7083 = vpop.f32.mrb[0].mxu0
        %v7084 = vpop.f32.mrb[0].mxu0
        %v7085 = vpop.f32.mrb[0].mxu0
        %7086 = vdwg.mxu0
        %v7087 = vadd.f32 %v7008, %v7082
        %v7088 = vld [vmem:[#allocation4 + $0xf] sm:$0x1]
        %v7089 = vpack.c.bf16 %v7088, %v7088
        %s7090 = scalar_lea.vmem [#allocation17], 224
        %v7091 = vld [vmem:[%s7090] sm:$0xf]
        %v7092 = vld [vmem:[%s7090 + $0x4] sm:$0xf]
        %v7093 = vld [vmem:[%s7090 + $0x8] sm:$0xf]
        %v7094 = vld [vmem:[%s7090 + $0xc] sm:$0xf]
        %v7095 = vld [vmem:[%s7090 + $0x10] sm:$0xf]
        %v7096 = vld [vmem:[%s7090 + $0x14] sm:$0xf]
        %v7097 = vld [vmem:[%s7090 + $0x18] sm:$0xf]
        %v7098 = vld [vmem:[%s7090 + $0x1c] sm:$0xf]
        %v7107 = vunpack.c.l.b16 %v7091
        %v7108 = vunpack.c.l.b16 %v7092
        %v7109 = vunpack.c.l.b16 %v7093
        %v7110 = vunpack.c.l.b16 %v7094
        %v7111 = vunpack.c.l.b16 %v7095
        %v7112 = vunpack.c.l.b16 %v7096
        %v7113 = vunpack.c.l.b16 %v7097
        %v7114 = vunpack.c.l.b16 %v7098
        %v7115 = vpack.c.b16 %v7108, %v7107
        %v7116 = vpack.c.b16 %v7110, %v7109
        %v7117 = vpack.c.b16 %v7112, %v7111
        %v7118 = vpack.c.b16 %v7114, %v7113
        %v7124 = vsel %vm6533, %v7089, 0
        %7126 = vmatprep.subr.bf16.mxu0 0
        %7127 = vmatpush1.bf16.msra.mxu0 %v7115
        %7128 = vmatprep.subr.bf16.mxu0 0
        %7129 = vmatpush1.bf16.msra.mxu0 %v7116
        %7130 = vmatprep.subr.bf16.mxu0 0
        %7131 = vmatpush1.bf16.msra.mxu0 %v7117
        %7132 = vmatprep.subr.bf16.mxu0 0
        %7133 = vmatpush1.bf16.msra.mxu0 %v7118
        %7134 = vmatprep.subr.bf16.mxu0 0
        %7135 = vmatpush1.bf16.msra.mxu0 0
        %7136 = vmatprep.subr.bf16.mxu0 0
        %7137 = vmatpush1.bf16.msra.mxu0 0
        %7138 = vmatprep.subr.bf16.mxu0 0
        %7139 = vmatpush1.bf16.msra.mxu0 0
        %7140 = vmatprep.subr.bf16.mxu0 0
        %7141 = vmatpush1.bf16.msra.mxu0 0
        %7142 = vmatprep.subr.bf16.mxu0 0
        %7143 = vmatpush1.bf16.msra.mxu0 0
        %7144 = vmatprep.subr.bf16.mxu0 0
        %7145 = vmatpush1.bf16.msra.mxu0 0
        %7146 = vmatprep.subr.bf16.mxu0 0
        %7147 = vmatpush1.bf16.msra.mxu0 0
        %7148 = vmatprep.subr.bf16.mxu0 0
        %7149 = vmatpush1.bf16.msra.mxu0 0
        %7150 = vmatprep.subr.bf16.mxu0 0
        %7151 = vmatpush1.bf16.msra.mxu0 0
        %7152 = vmatprep.subr.bf16.mxu0 0
        %7153 = vmatpush1.bf16.msra.mxu0 0
        %7154 = vmatprep.subr.bf16.mxu0 0
        %7155 = vmatpush1.bf16.msra.mxu0 0
        %7156 = vmatprep.subr.bf16.mxu0 0
        %7157 = vmatpush1.bf16.msra.mxu0 0
        %7158 = vmatprep.mubr.bf16.mxu0 0
        %7159 = vmatmul.mubr.bf16.gmra.mrb[0].mxu0 %v7124
        %v7160 = vpop.f32.mrb[0].mxu0
        %v7161 = vadd.f32 0.0, %v7160
        %v7162 = vpop.f32.mrb[0].mxu0
        %v7163 = vpop.f32.mrb[0].mxu0
        %v7164 = vpop.f32.mrb[0].mxu0
        %7165 = vdwg.mxu0
        %v7166 = vadd.f32 %v7087, %v7161
        %v7167 = vld [vmem:[#allocation4 + $0x10] sm:$0x1]
        %v7168 = vpack.c.bf16 %v7167, %v7167
        %s7169 = scalar_lea.vmem [#allocation17], 256
        %v7170 = vld [vmem:[%s7169] sm:$0xf]
        %v7171 = vld [vmem:[%s7169 + $0x4] sm:$0xf]
        %v7172 = vld [vmem:[%s7169 + $0x8] sm:$0xf]
        %v7173 = vld [vmem:[%s7169 + $0xc] sm:$0xf]
        %v7174 = vld [vmem:[%s7169 + $0x10] sm:$0xf]
        %v7175 = vld [vmem:[%s7169 + $0x14] sm:$0xf]
        %v7176 = vld [vmem:[%s7169 + $0x18] sm:$0xf]
        %v7177 = vld [vmem:[%s7169 + $0x1c] sm:$0xf]
        %v7186 = vunpack.c.l.b16 %v7170
        %v7187 = vunpack.c.l.b16 %v7171
        %v7188 = vunpack.c.l.b16 %v7172
        %v7189 = vunpack.c.l.b16 %v7173
        %v7190 = vunpack.c.l.b16 %v7174
        %v7191 = vunpack.c.l.b16 %v7175
        %v7192 = vunpack.c.l.b16 %v7176
        %v7193 = vunpack.c.l.b16 %v7177
        %v7194 = vpack.c.b16 %v7187, %v7186
        %v7195 = vpack.c.b16 %v7189, %v7188
        %v7196 = vpack.c.b16 %v7191, %v7190
        %v7197 = vpack.c.b16 %v7193, %v7192
        %v7203 = vsel %vm6533, %v7168, 0
        %7205 = vmatprep.subr.bf16.mxu0 0
        %7206 = vmatpush1.bf16.msra.mxu0 %v7194
        %7207 = vmatprep.subr.bf16.mxu0 0
        %7208 = vmatpush1.bf16.msra.mxu0 %v7195
        %7209 = vmatprep.subr.bf16.mxu0 0
        %7210 = vmatpush1.bf16.msra.mxu0 %v7196
        %7211 = vmatprep.subr.bf16.mxu0 0
        %7212 = vmatpush1.bf16.msra.mxu0 %v7197
        %7213 = vmatprep.subr.bf16.mxu0 0
        %7214 = vmatpush1.bf16.msra.mxu0 0
        %7215 = vmatprep.subr.bf16.mxu0 0
        %7216 = vmatpush1.bf16.msra.mxu0 0
        %7217 = vmatprep.subr.bf16.mxu0 0
        %7218 = vmatpush1.bf16.msra.mxu0 0
        %7219 = vmatprep.subr.bf16.mxu0 0
        %7220 = vmatpush1.bf16.msra.mxu0 0
        %7221 = vmatprep.subr.bf16.mxu0 0
        %7222 = vmatpush1.bf16.msra.mxu0 0
        %7223 = vmatprep.subr.bf16.mxu0 0
        %7224 = vmatpush1.bf16.msra.mxu0 0
        %7225 = vmatprep.subr.bf16.mxu0 0
        %7226 = vmatpush1.bf16.msra.mxu0 0
        %7227 = vmatprep.subr.bf16.mxu0 0
        %7228 = vmatpush1.bf16.msra.mxu0 0
        %7229 = vmatprep.subr.bf16.mxu0 0
        %7230 = vmatpush1.bf16.msra.mxu0 0
        %7231 = vmatprep.subr.bf16.mxu0 0
        %7232 = vmatpush1.bf16.msra.mxu0 0
        %7233 = vmatprep.subr.bf16.mxu0 0
        %7234 = vmatpush1.bf16.msra.mxu0 0
        %7235 = vmatprep.subr.bf16.mxu0 0
        %7236 = vmatpush1.bf16.msra.mxu0 0
        %7237 = vmatprep.mubr.bf16.mxu0 0
        %7238 = vmatmul.mubr.bf16.gmra.mrb[0].mxu0 %v7203
        %v7239 = vpop.f32.mrb[0].mxu0
        %v7240 = vadd.f32 0.0, %v7239
        %v7241 = vpop.f32.mrb[0].mxu0
        %v7242 = vpop.f32.mrb[0].mxu0
        %v7243 = vpop.f32.mrb[0].mxu0
        %7244 = vdwg.mxu0
        %v7245 = vadd.f32 %v7166, %v7240
        %v7246 = vld [vmem:[#allocation19] sm:$0x1]
        %v7247 = vadd.f32 %v7245, %v7246
        %v7248 = vmax.f32 %v7247, 0.0
        %v7249 = vld [vmem:[#allocation20] sm:$0xff]
        %v7250 = vld [vmem:[#allocation20 + $0x8] sm:$0xff]
        %v7251 = vld [vmem:[#allocation20 + $0x10] sm:$0xff]
        %v7252 = vld [vmem:[#allocation20 + $0x18] sm:$0xff]
        %v7253 = vld [vmem:[#allocation20 + $0x20] sm:$0xff]
        %v7254 = vld [vmem:[#allocation20 + $0x28] sm:$0xff]
        %v7255 = vld [vmem:[#allocation20 + $0x30] sm:$0xff]
        %v7256 = vld [vmem:[#allocation20 + $0x38] sm:$0xff]
        %v7257 = vld [vmem:[#allocation20 + $0x40] sm:$0xff]
        %v7258 = vld [vmem:[#allocation20 + $0x48] sm:$0xff]
        %v7259 = vld [vmem:[#allocation20 + $0x50] sm:$0xff]
        %v7260 = vld [vmem:[#allocation20 + $0x58] sm:$0xff]
        %v7261 = vld [vmem:[#allocation20 + $0x60] sm:$0xff]
        %v7262 = vld [vmem:[#allocation20 + $0x68] sm:$0xff]
        %v7263 = vld [vmem:[#allocation20 + $0x70] sm:$0xff]
        %v7264 = vld [vmem:[#allocation20 + $0x78] sm:$0xff]
        %v7265 = vld [vmem:[#allocation22] sm:$0x1]
        %7266 = vmatprep.subr.mxu0 0.0
        %7267 = vmatpush1.msra.mxu0 %v7249
        %7268 = vmatprep.subr.mxu0 0.0
        %7269 = vmatpush1.msra.mxu0 %v7250
        %7270 = vmatprep.subr.mxu0 0.0
        %7271 = vmatpush1.msra.mxu0 %v7251
        %7272 = vmatprep.subr.mxu0 0.0
        %7273 = vmatpush1.msra.mxu0 %v7252
        %7274 = vmatprep.subr.mxu0 0.0
        %7275 = vmatpush1.msra.mxu0 %v7253
        %7276 = vmatprep.subr.mxu0 0.0
        %7277 = vmatpush1.msra.mxu0 %v7254
        %7278 = vmatprep.subr.mxu0 0.0
        %7279 = vmatpush1.msra.mxu0 %v7255
        %7280 = vmatprep.subr.mxu0 0.0
        %7281 = vmatpush1.msra.mxu0 %v7256
        %7282 = vmatprep.subr.mxu0 0.0
        %7283 = vmatpush1.msra.mxu0 %v7257
        %7284 = vmatprep.subr.mxu0 0.0
        %7285 = vmatpush1.msra.mxu0 %v7258
        %7286 = vmatprep.subr.mxu0 0.0
        %7287 = vmatpush1.msra.mxu0 %v7259
        %7288 = vmatprep.subr.mxu0 0.0
        %7289 = vmatpush1.msra.mxu0 %v7260
        %7290 = vmatprep.subr.mxu0 0.0
        %7291 = vmatpush1.msra.mxu0 %v7261
        %7292 = vmatprep.subr.mxu0 0.0
        %7293 = vmatpush1.msra.mxu0 %v7262
        %7294 = vmatprep.subr.mxu0 0.0
        %7295 = vmatpush1.msra.mxu0 %v7263
        %7296 = vmatprep.subr.mxu0 0.0
        %7297 = vmatpush1.msra.mxu0 %v7264
        %7298 = vmatprep.subr.mxu0 0.0
        %7299 = vmatpush1.msra.mxu0 0.0
        %7300 = vmatprep.subr.mxu0 0.0
        %7301 = vmatpush1.msra.mxu0 0.0
        %7302 = vmatprep.subr.mxu0 0.0
        %7303 = vmatpush1.msra.mxu0 0.0
        %7304 = vmatprep.subr.mxu0 0.0
        %7305 = vmatpush1.msra.mxu0 0.0
        %7306 = vmatprep.subr.mxu0 0.0
        %7307 = vmatpush1.msra.mxu0 0.0
        %7308 = vmatprep.subr.mxu0 0.0
        %7309 = vmatpush1.msra.mxu0 0.0
        %7310 = vmatprep.subr.mxu0 0.0
        %7311 = vmatpush1.msra.mxu0 0.0
        %7312 = vmatprep.subr.mxu0 0.0
        %7313 = vmatpush1.msra.mxu0 0.0
        %7314 = vmatprep.subr.mxu0 0.0
        %7315 = vmatpush1.msra.mxu0 0.0
        %7316 = vmatprep.subr.mxu0 0.0
        %7317 = vmatpush1.msra.mxu0 0.0
        %7318 = vmatprep.subr.mxu0 0.0
        %7319 = vmatpush1.msra.mxu0 0.0
        %7320 = vmatprep.subr.mxu0 0.0
        %7321 = vmatpush1.msra.mxu0 0.0
        %7322 = vmatprep.subr.mxu0 0.0
        %7323 = vmatpush1.msra.mxu0 0.0
        %7324 = vmatprep.subr.mxu0 0.0
        %7325 = vmatpush1.msra.mxu0 0.0
        %7326 = vmatprep.subr.mxu0 0.0
        %7327 = vmatpush1.msra.mxu0 0.0
        %7328 = vmatprep.subr.mxu0 0.0
        %7329 = vmatpush1.msra.mxu0 0.0
        %7330 = vmatprep.mubr.f32.mxu0 0.0
        %7331 = vmatmul.mubr.f32.gmra.mrb[0].mxu0 %v7248
        %v7332 = vpop.f32.mrb[0].mxu0
        %v7333 = vadd.f32 %v7265, %v7332
        %v7334 = vpop.f32.mrb[0].mxu0
        %7335 = vdwg.mxu0
        %vm7336 = vcmask 16384
        %v7337 = vsel %vm7336, %v7333, -inf
        %7338 = vmax.xlane.f32.xlu0 %v7337
        %v7339 = vpop.xlane.xlu0 %7338
        %v7340 = vsub.f32 %v7333, %v7339
        %v7341 = vmul.f32 %v7340, 1.442695
        %v7342 = vpow.pop %v7341
        %v7343 = vsel %vm7336, %v7342, 0.0
        %7344 = vadd.xlane.f32.xlu0 %v7343
        %v7345 = vpop.xlane.xlu0 %7344
        %v7346 = vrcp.pop %v7345
        %v7347 = vmul.f32 %v7342, %v7346
        %7348 = vst.msk [vmem:[%s648] sm:$0x1] %vm7336, %v7347
        %v7349 = vld [vmem:[#allocation23] sm:$0x7]
        %v7350 = vld [vmem:[#allocation25] sm:$0x1]
        %vm7351 = vcmask 23552
        %v7353 = vsel %vm7351, %v7333, 0
        %vm7355 = vcmask 1042432
        %v7357 = vsel %vm7355, %v7349, 0
        %7359 = vmatprep.subr.mxu0 0.0
        %7360 = vmatpush1.msra.mxu0 %v7357
        %7361 = vmatprep.subr.mxu0 0.0
        %7362 = vmatpush1.msra.mxu0 0.0
        %7363 = vmatprep.subr.mxu0 0.0
        %7364 = vmatpush1.msra.mxu0 0.0
        %7365 = vmatprep.subr.mxu0 0.0
        %7366 = vmatpush1.msra.mxu0 0.0
        %7367 = vmatprep.subr.mxu0 0.0
        %7368 = vmatpush1.msra.mxu0 0.0
        %7369 = vmatprep.subr.mxu0 0.0
        %7370 = vmatpush1.msra.mxu0 0.0
        %7371 = vmatprep.subr.mxu0 0.0
        %7372 = vmatpush1.msra.mxu0 0.0
        %7373 = vmatprep.subr.mxu0 0.0
        %7374 = vmatpush1.msra.mxu0 0.0
        %7375 = vmatprep.subr.mxu0 0.0
        %7376 = vmatpush1.msra.mxu0 0.0
        %7377 = vmatprep.subr.mxu0 0.0
        %7378 = vmatpush1.msra.mxu0 0.0
        %7379 = vmatprep.subr.mxu0 0.0
        %7380 = vmatpush1.msra.mxu0 0.0
        %7381 = vmatprep.subr.mxu0 0.0
        %7382 = vmatpush1.msra.mxu0 0.0
        %7383 = vmatprep.subr.mxu0 0.0
        %7384 = vmatpush1.msra.mxu0 0.0
        %7385 = vmatprep.subr.mxu0 0.0
        %7386 = vmatpush1.msra.mxu0 0.0
        %7387 = vmatprep.subr.mxu0 0.0
        %7388 = vmatpush1.msra.mxu0 0.0
        %7389 = vmatprep.subr.mxu0 0.0
        %7390 = vmatpush1.msra.mxu0 0.0
        %7391 = vmatprep.subr.mxu0 0.0
        %7392 = vmatpush1.msra.mxu0 0.0
        %7393 = vmatprep.subr.mxu0 0.0
        %7394 = vmatpush1.msra.mxu0 0.0
        %7395 = vmatprep.subr.mxu0 0.0
        %7396 = vmatpush1.msra.mxu0 0.0
        %7397 = vmatprep.subr.mxu0 0.0
        %7398 = vmatpush1.msra.mxu0 0.0
        %7399 = vmatprep.subr.mxu0 0.0
        %7400 = vmatpush1.msra.mxu0 0.0
        %7401 = vmatprep.subr.mxu0 0.0
        %7402 = vmatpush1.msra.mxu0 0.0
        %7403 = vmatprep.subr.mxu0 0.0
        %7404 = vmatpush1.msra.mxu0 0.0
        %7405 = vmatprep.subr.mxu0 0.0
        %7406 = vmatpush1.msra.mxu0 0.0
        %7407 = vmatprep.subr.mxu0 0.0
        %7408 = vmatpush1.msra.mxu0 0.0
        %7409 = vmatprep.subr.mxu0 0.0
        %7410 = vmatpush1.msra.mxu0 0.0
        %7411 = vmatprep.subr.mxu0 0.0
        %7412 = vmatpush1.msra.mxu0 0.0
        %7413 = vmatprep.subr.mxu0 0.0
        %7414 = vmatpush1.msra.mxu0 0.0
        %7415 = vmatprep.subr.mxu0 0.0
        %7416 = vmatpush1.msra.mxu0 0.0
        %7417 = vmatprep.subr.mxu0 0.0
        %7418 = vmatpush1.msra.mxu0 0.0
        %7419 = vmatprep.subr.mxu0 0.0
        %7420 = vmatpush1.msra.mxu0 0.0
        %7421 = vmatprep.subr.mxu0 0.0
        %7422 = vmatpush1.msra.mxu0 0.0
        %7423 = vmatprep.mubr.f32.mxu0 0.0
        %7424 = vmatmul.mubr.f32.gmra.mrb[0].mxu0 %v7353
        %v7425 = vpop.f32.mrb[0].mxu0
        %v7426 = vadd.f32 %v7350, %v7425
        %v7427 = vpop.f32.mrb[0].mxu0
        %7428 = vdwg.mxu0
        %7429 = vst.msk [vmem:[%s654] sm:$0x1] %vm7336, %v7426
        %s7430 = sand.u32 %s327, 1
        %s7431 = scalar_lea.sflag [#allocation7], %s7430
        %s7432 = sand.u32 %s327, 1
        %s7433 = scalar_lea.vmem [#allocation26], %s7432
        %s7434 = sand.u32 %s353, 1
        %s7435 = scalar_lea.sflag [#allocation28], %s7434
        %s7436 = sand.u32 %s353, 1
        %s7437 = scalar_lea.vmem [#allocation27], %s7436
        // Predicated region
        $region125: #{fwd.1} parent=71 // pred_check
          %p7438 = pneg %p337
        $region126: #{fwd.1} parent=71 // pred_check_branch
          %7440 = sbr.rel (%p7438) target = $region128
        $region127: #{fwd.1} parent=71 // pred_region
          %s7442 = ssub.s32 16, 16
          %7443 = vsyncadd %s7431, %s7442
          %s7444 = smul.addr %s41, 16
          %s7445 = scalar_lea.hbm %s13, %s7444
          %s7447 = sshll.u32 %s7433, 4
          %s7448 = int_to_ptr.vmem [resolvable:$true] %s7447
          %7450 = dma.vmem_to_hbm [thread:$0]  %s7448, 16, %s7445, %s7431
        $region128: #{fwd.1} parent=71 // pred_fallthru
          _
        // Predicated region
        $region129: #{fwd.1} parent=71 // pred_check
          %p7451 = pneg %p363
        $region130: #{fwd.1} parent=71 // pred_check_branch
          %7453 = sbr.rel (%p7451) target = $region132
        $region131: #{fwd.1} parent=71 // pred_region
          %s7455 = ssub.s32 16, 16
          %7456 = vsyncadd %s7435, %s7455
          %s7457 = smul.addr %s41, 16
          %s7458 = scalar_lea.hbm %s14, %s7457
          %s7460 = sshll.u32 %s7437, 4
          %s7461 = int_to_ptr.vmem [resolvable:$true] %s7460
          %7463 = dma.vmem_to_hbm [thread:$0]  %s7461, 16, %s7458, %s7435
        $region132: #{fwd.1} parent=71 // pred_fallthru
          _
      $region72: #{fwd.1} parent=5 // pred_fallthru
        _
      %p7464 = scmp.le.s32.totalorder 2, %s36
      // Predicated region
      $region133: #{fwd.1} parent=5 // pred_check
        %p7465 = pneg %p7464
      $region134: #{fwd.1} parent=5 // pred_check_branch
        %7467 = sbr.rel (%p7465) target = $region136
      $region135: #{fwd.1} parent=5 // pred_region
        %s7468 = ssub.s32 %s36, 2
        // Predicated region
        $region137: #{fwd.1} parent=135 // pred_check
          %p7469 = pneg %p343
        $region138: #{fwd.1} parent=135 // pred_check_branch
          %7471 = sbr.rel (%p7469) target = $region140
        $region139: #{fwd.1} parent=135 // pred_region
          %s7472 = sand.u32 %s328, 1
          %s7473 = scalar_lea.sflag [#allocation7], %s7472
          %s7474 = sand.u32 %s328, 1
          %s7475 = scalar_lea.vmem [#allocation26], %s7474
          %7476 = dma.done %s7473, 16
        $region140: #{fwd.1} parent=135 // pred_fallthru
          _
        // Predicated region
        $region141: #{fwd.1} parent=135 // pred_check
          %p7477 = pneg %p369
        $region142: #{fwd.1} parent=135 // pred_check_branch
          %7479 = sbr.rel (%p7477) target = $region144
        $region143: #{fwd.1} parent=135 // pred_region
          %s7480 = sand.u32 %s354, 1
          %s7481 = scalar_lea.sflag [#allocation28], %s7480
          %s7482 = sand.u32 %s354, 1
          %s7483 = scalar_lea.vmem [#allocation27], %s7482
          %7484 = dma.done %s7481, 16
        $region144: #{fwd.1} parent=135 // pred_fallthru
          _
      $region136: #{fwd.1} parent=5 // pred_fallthru
        _
    $region6: #{fwd.1} parent=1 // loop_footer
      %s40 = sadd.s32 1, %s36
    $region7: #{fwd.1} parent=1 // loop_footer_branch
      %35 = sbr.rel target = $region3
    $region8: #{fwd.1} parent=1 // loop_exit
      _
    %7485 = vsyncpa [#allocation6], 1
    %s7486 = scalar_lea.sflag [#allocation6], 1
    %7487 = vsyncpa %s7486, 1
    %7488 = vsyncpa [#allocation9], 1
    %7489 = vsyncpa [#allocation12], 1
    %7490 = vsyncpa [#allocation15], 1
    %7491 = vsyncpa [#allocation18], 1
    %7492 = vsyncpa [#allocation21], 1
    %7493 = vsyncpa [#allocation24], 1
    %7494 = vsyncpa [#allocation7], 1
    %s7495 = scalar_lea.sflag [#allocation7], 1
    %7496 = vsyncpa %s7495, 1
    %7497 = vsyncpa [#allocation28], 1
    %s7498 = scalar_lea.sflag [#allocation28], 1
    %7499 = vsyncpa %s7498, 1

</llo_original>
